<compile_context>
chip_gen: v6e
topology: v6e:2x2x1
jax: 0.10.0
libtpu: 0.0.40
codegen_flags: <defaults>
</compile_context>

<pallas_src>
import functools

import jax
import jax.numpy as jnp
from jax import lax
from jax.experimental import pallas as pl
from jax.experimental.pallas import tpu as pltpu

_FORGET_BIAS = 1.0


def _sigmoid(x):
    return 1.0 / (1.0 + jnp.exp(-x))


def _fused_cell_kernel(patches_ref, c_ref, m_ref,
                       w_big_ref, wo_ref, wlast_ref,
                       out_ref, memp_ref, *, H, W, K, NH):
    """Entire ST-LSTM cell update for one batch sample.

    patches_ref: (1, H*W, K*K*(Cin+2*NH))  im2col of [x | h | m]
    c_ref/m_ref: (1, H*W, NH)              previous cell / spatiotemporal state
    w_big_ref:   (K*K*(Cin+2*NH), 7*NH)    combined conv_x/conv_h/conv_m weight
    wo_ref:      (K, K, 2*NH, NH)          conv_o weight (HWIO)
    wlast_ref:   (2*NH, NH)                conv_last 1x1 weight
    out_ref:     (1, H*W, 5*NH)            packed [h_new|c_new|m_new|dc|dm]
    memp_ref:    VMEM scratch (H+2P, W+2P, 2*NH) zero-padded mem
    """
    P = K // 2
    HW = H * W

    # All three gate convolutions as ONE deep matmul -> (H*W, 7*NH) accumulator.
    acc = jnp.dot(patches_ref[0], w_big_ref[...],
                  preferred_element_type=jnp.float32)

    gate = lambda k: acc[:, k * NH:(k + 1) * NH]
    c_t = c_ref[0]                      # (H*W, NH)
    m_t = m_ref[0]                      # (H*W, NH)

    i_t = _sigmoid(gate(0))
    f_t = _sigmoid(gate(1) + _FORGET_BIAS)
    g_t = jnp.tanh(gate(2))
    delta_c = i_t * g_t
    c_new = f_t * c_t + delta_c

    i_tp = _sigmoid(gate(3))
    f_tp = _sigmoid(gate(4) + _FORGET_BIAS)
    g_tp = jnp.tanh(gate(5))
    delta_m = i_tp * g_tp
    m_new = f_tp * m_t + delta_m

    # Build zero-padded mem = concat(c_new, m_new) in VMEM scratch (halo = 0).
    memp_ref[...] = jnp.zeros_like(memp_ref)
    memp_ref[P:P + H, P:P + W, 0:NH] = c_new.reshape(H, W, NH)
    memp_ref[P:P + H, P:P + W, NH:2 * NH] = m_new.reshape(H, W, NH)
    memp = memp_ref[...]                # (H+2P, W+2P, 2*NH)

    # conv_o(mem): K*K shifted matmuls on the padded scratch.
    o_conv = jnp.zeros((HW, NH), jnp.float32)
    for dh in range(K):
        for dw in range(K):
            patch = memp[dh:dh + H, dw:dw + W, :].reshape(HW, 2 * NH)
            o_conv = o_conv + jnp.dot(patch, wo_ref[dh, dw],
                                      preferred_element_type=jnp.float32)

    # conv_last(mem): 1x1 conv == matmul; split by c/m halves (no concat needed).
    last = (jnp.dot(c_new, wlast_ref[0:NH, :], preferred_element_type=jnp.float32)
            + jnp.dot(m_new, wlast_ref[NH:2 * NH, :],
                      preferred_element_type=jnp.float32))

    o_t = _sigmoid(gate(6) + o_conv)
    h_new = o_t * jnp.tanh(last)

    # Packed lane-dense output block.
    out_ref[0, :, 0 * NH:1 * NH] = h_new
    out_ref[0, :, 1 * NH:2 * NH] = c_new
    out_ref[0, :, 2 * NH:3 * NH] = m_new
    out_ref[0, :, 3 * NH:4 * NH] = delta_c
    out_ref[0, :, 4 * NH:5 * NH] = delta_m


def _im2col_nhwc(a, K, P):
    """(N, H, W, C) -> (N, H*W, K*K*C) patch matrix for 'same' convolution."""
    N, H, W, C = a.shape
    ap = jnp.pad(a, ((0, 0), (P, P), (P, P), (0, 0)))
    cols = [ap[:, dh:dh + H, dw:dw + W, :] for dh in range(K) for dw in range(K)]
    return jnp.concatenate(cols, axis=-1).reshape(N, H * W, K * K * C)


def st_lstm_cell_v2(x_t, h_t, c_t, m_t, params, *, filter_size=3):
    """PyTorch-compatible interface: all tensors NCHW, returns
    (h_new, c_new, m_new, delta_c, delta_m) in NCHW."""
    wx, wh, wm, wo, wlast = (params[k] for k in ("wx", "wh", "wm", "wo", "wlast"))
    K = filter_size
    P = K // 2
    N, Cin, H, W = x_t.shape
    NH = wh.shape[2]
    HW = H * W
    KD = K * K * (Cin + 2 * NH)

    to_nhwc = lambda a: jnp.transpose(a, (0, 2, 3, 1))
    x, h, c, m = (to_nhwc(t) for t in (x_t, h_t, c_t, m_t))

    # im2col patches for the x/h/m convolutions, packed along lanes.
    patches = jnp.concatenate([_im2col_nhwc(x, K, P),
                               _im2col_nhwc(h, K, P),
                               _im2col_nhwc(m, K, P)], axis=-1)   # (N, HW, KD)

    c_flat = c.reshape(N, HW, NH)
    m_flat = m.reshape(N, HW, NH)

    # Combined weight: map conv_h / conv_m outputs into conv_x gate columns
    #   [i, f, g, i', f', g', o]  (each NH wide).
    z = lambda r, cc: jnp.zeros((r, cc), jnp.float32)
    wx_r = wx.reshape(K * K * Cin, 7 * NH)
    wh_r = wh.reshape(K * K * NH, 4 * NH)
    wm_r = wm.reshape(K * K * NH, 3 * NH)
    wh_full = jnp.concatenate(
        [wh_r[:, :3 * NH], z(K * K * NH, 3 * NH), wh_r[:, 3 * NH:]], axis=1)
    wm_full = jnp.concatenate(
        [z(K * K * NH, 3 * NH), wm_r, z(K * K * NH, NH)], axis=1)
    w_big = jnp.concatenate([wx_r, wh_full, wm_full], axis=0)     # (KD, 7*NH)

    kern = functools.partial(_fused_cell_kernel, H=H, W=W, K=K, NH=NH)
    packed = pl.pallas_call(
        kern,
        grid=(N,),
        in_specs=[
            pl.BlockSpec((1, HW, KD), lambda n: (n, 0, 0)),
            pl.BlockSpec((1, HW, NH), lambda n: (n, 0, 0)),
            pl.BlockSpec((1, HW, NH), lambda n: (n, 0, 0)),
            pl.BlockSpec((KD, 7 * NH), lambda n: (0, 0)),
            pl.BlockSpec((K, K, 2 * NH, NH), lambda n: (0, 0, 0, 0)),
            pl.BlockSpec((2 * NH, NH), lambda n: (0, 0)),
        ],
        out_specs=pl.BlockSpec((1, HW, 5 * NH), lambda n: (n, 0, 0)),
        out_shape=jax.ShapeDtypeStruct((N, HW, 5 * NH), jnp.float32),
        scratch_shapes=[pltpu.VMEM((H + 2 * P, W + 2 * P, 2 * NH), jnp.float32)],
        compiler_params=pltpu.CompilerParams(
            dimension_semantics=("parallel",)),
    )(patches, c_flat, m_flat, w_big, wo, wlast)

    def unpack(k):
        blk = packed[:, :, k * NH:(k + 1) * NH].reshape(N, H, W, NH)
        return jnp.transpose(blk, (0, 3, 1, 2))

    h_new, c_new, m_new, dc, dm = (unpack(k) for k in range(5))
    return h_new, c_new, m_new, dc, dm


# ---------------- pure-JAX reference (for correctness check) ----------------
def st_lstm_cell_v2_ref(x_t, h_t, c_t, m_t, params, *, filter_size=3):
    K = filter_size
    P = K // 2
    NH = params["wh"].shape[2]

    def conv(a_nchw, w_hwio, pad):
        a = jnp.transpose(a_nchw, (0, 2, 3, 1))
        o = lax.conv_general_dilated(
            a, w_hwio, window_strides=(1, 1), padding=[(pad, pad), (pad, pad)],
            dimension_numbers=("NHWC", "HWIO", "NHWC"))
        return jnp.transpose(o, (0, 3, 1, 2))

    xc = conv(x_t, params["wx"], P)
    hc = conv(h_t, params["wh"], P)
    mc = conv(m_t, params["wm"], P)
    sp = lambda a, k: a[:, k * NH:(k + 1) * NH]
    i_x, f_x, g_x, i_xp, f_xp, g_xp, o_x = (sp(xc, k) for k in range(7))
    i_h, f_h, g_h, o_h = (sp(hc, k) for k in range(4))
    i_m, f_m, g_m = (sp(mc, k) for k in range(3))

    i_t = _sigmoid(i_x + i_h)
    f_t = _sigmoid(f_x + f_h + _FORGET_BIAS)
    g_t = jnp.tanh(g_x + g_h)
    delta_c = i_t * g_t
    c_new = f_t * c_t + delta_c
    i_tp = _sigmoid(i_xp + i_m)
    f_tp = _sigmoid(f_xp + f_m + _FORGET_BIAS)
    g_tp = jnp.tanh(g_xp + g_m)
    delta_m = i_tp * g_tp
    m_new = f_tp * m_t + delta_m
    mem = jnp.concatenate([c_new, m_new], axis=1)
    o_t = _sigmoid(o_x + o_h + conv(mem, params["wo"], P))
    wlast_hwio = params["wlast"].reshape(1, 1, 2 * NH, NH)
    h_new = o_t * jnp.tanh(conv(mem, wlast_hwio, 0))   # 1x1 conv: no padding
    return h_new, c_new, m_new, delta_c, delta_m


if __name__ == "__main__":
    N, CIN, H, W = 2, 4, 16, 16      # batch, in_channel, width, width
    NH, K = 32, 3                    # num_hidden, filter_size (stride=1)

    key = jax.random.PRNGKey(0)
    kx, kh, kc, km, k1, k2, k3, k4, k5 = jax.random.split(key, 9)

    def winit(k, shape):
        fan_in = shape[0] * shape[1] * shape[2] if len(shape) == 4 else shape[0]
        return jax.random.normal(k, shape, jnp.float32) / jnp.sqrt(fan_in)

    params = {
        "wx":    winit(k1, (K, K, CIN, 7 * NH)),
        "wh":    winit(k2, (K, K, NH, 4 * NH)),
        "wm":    winit(k3, (K, K, NH, 3 * NH)),
        "wo":    winit(k4, (K, K, 2 * NH, NH)),
        "wlast": winit(k5, (2 * NH, NH)),          # 1x1 conv, stored as matrix
    }

    x_t = jax.random.normal(kx, (N, CIN, H, W), jnp.float32)
    h_t = jax.random.normal(kh, (N, NH, H, W), jnp.float32) * 0.5
    c_t = jax.random.normal(kc, (N, NH, H, W), jnp.float32) * 0.5
    m_t = jax.random.normal(km, (N, NH, H, W), jnp.float32) * 0.5

    fn = jax.jit(functools.partial(st_lstm_cell_v2, filter_size=K))
    outs = fn(x_t, h_t, c_t, m_t, params)
    outs = jax.block_until_ready(outs)

    refs = st_lstm_cell_v2_ref(x_t, h_t, c_t, m_t, params, filter_size=K)
    for o, r, name in zip(outs, refs, ("h_new", "c_new", "m_new", "dc", "dm")):
        assert o.shape == r.shape, (name, o.shape, r.shape)
        err = float(jnp.max(jnp.abs(o - r)))
        if err > 3e-3:
            raise AssertionError(f"{name} mismatch: max abs err {err}")

    print("KERNEL_OK")
</pallas_src>

<mosaic_0001>
module attributes {stable_mosaic.version = 11 : i64} {
  func.func @_fused_cell_kernel(%arg0: i32, %arg1: memref<1x256x612xf32, #tpu.memory_space<vmem>>, %arg2: memref<1x256x32xf32, #tpu.memory_space<vmem>>, %arg3: memref<1x256x32xf32, #tpu.memory_space<vmem>>, %arg4: memref<612x224xf32, #tpu.memory_space<vmem>>, %arg5: memref<3x3x64x32xf32, #tpu.memory_space<vmem>>, %arg6: memref<64x32xf32, #tpu.memory_space<vmem>>, %arg7: memref<1x256x160xf32, #tpu.memory_space<vmem>>, %arg8: memref<18x18x64xf32, #tpu.memory_space<vmem>>) attributes {dimension_semantics = [#tpu.dimension_semantics<parallel>], iteration_bounds = array<i64: 2>, scalar_prefetch = 0 : i64, scratch_operands = 1 : i64, tpu.core_type = #tpu.core_type<tc>, window_params = [{transform_indices = @transform_0, window_bounds = array<i64: 1, 256, 612>}, {transform_indices = @transform_1, window_bounds = array<i64: 1, 256, 32>}, {transform_indices = @transform_2, window_bounds = array<i64: 1, 256, 32>}, {pipeline_mode = #tpu.pipeline_mode<synchronous>, transform_indices = @transform_3, window_bounds = array<i64: 612, 224>}, {pipeline_mode = #tpu.pipeline_mode<synchronous>, transform_indices = @transform_4, window_bounds = array<i64: 3, 3, 64, 32>}, {pipeline_mode = #tpu.pipeline_mode<synchronous>, transform_indices = @transform_5, window_bounds = array<i64: 64, 32>}, {transform_indices = @transform_6, window_bounds = array<i64: 1, 256, 160>}]} {
    %c0 = arith.constant 0 : index
    %c0_0 = arith.constant 0 : index
    %c0_1 = arith.constant 0 : index
    %0 = vector.load %arg1[%c0, %c0_0, %c0_1] : memref<1x256x612xf32, #tpu.memory_space<vmem>>, vector<1x256x612xf32>
    %1 = vector.shape_cast %0 : vector<1x256x612xf32> to vector<256x612xf32>
    %c0_2 = arith.constant 0 : index
    %c0_3 = arith.constant 0 : index
    %2 = vector.load %arg4[%c0_2, %c0_3] : memref<612x224xf32, #tpu.memory_space<vmem>>, vector<612x224xf32>
    %cst = arith.constant dense<0.000000e+00> : vector<256x224xf32>
    %3 = tpu.matmul %1, %2, %cst {dimension_numbers = #tpu.dot_dimension_numbers<[1], [0], [0], [1], [0, 0, 1, 1], [], []>} : vector<256x612xf32>, vector<612x224xf32>, vector<256x224xf32> -> vector<256x224xf32>
    %c0_4 = arith.constant 0 : index
    %c0_5 = arith.constant 0 : index
    %c0_6 = arith.constant 0 : index
    %4 = vector.load %arg2[%c0_4, %c0_5, %c0_6] : memref<1x256x32xf32, #tpu.memory_space<vmem>>, vector<1x256x32xf32>
    %5 = vector.shape_cast %4 : vector<1x256x32xf32> to vector<256x32xf32>
    %c0_7 = arith.constant 0 : index
    %c0_8 = arith.constant 0 : index
    %c0_9 = arith.constant 0 : index
    %6 = vector.load %arg3[%c0_7, %c0_8, %c0_9] : memref<1x256x32xf32, #tpu.memory_space<vmem>>, vector<1x256x32xf32>
    %7 = vector.shape_cast %6 : vector<1x256x32xf32> to vector<256x32xf32>
    %8 = vector.extract_strided_slice %3 {offsets = [0, 0], sizes = [256, 32], strides = [1, 1]} : vector<256x224xf32> to vector<256x32xf32>
    %cst_10 = arith.constant 0.000000e+00 : f32
    %9 = vector.broadcast %cst_10 : f32 to vector<256x32xf32>
    %10 = arith.subf %9, %8 : vector<256x32xf32>
    %11 = math.exp %10 : vector<256x32xf32>
    %cst_11 = arith.constant 1.000000e+00 : f32
    %12 = vector.broadcast %cst_11 : f32 to vector<256x32xf32>
    %13 = arith.addf %12, %11 : vector<256x32xf32>
    %cst_12 = arith.constant 1.000000e+00 : f32
    %14 = vector.broadcast %cst_12 : f32 to vector<256x32xf32>
    %15 = arith.divf %14, %13 : vector<256x32xf32>
    %16 = vector.extract_strided_slice %3 {offsets = [0, 32], sizes = [256, 32], strides = [1, 1]} : vector<256x224xf32> to vector<256x32xf32>
    %cst_13 = arith.constant 1.000000e+00 : f32
    %17 = vector.broadcast %cst_13 : f32 to vector<256x32xf32>
    %18 = arith.addf %16, %17 : vector<256x32xf32>
    %cst_14 = arith.constant 0.000000e+00 : f32
    %19 = vector.broadcast %cst_14 : f32 to vector<256x32xf32>
    %20 = arith.subf %19, %18 : vector<256x32xf32>
    %21 = math.exp %20 : vector<256x32xf32>
    %cst_15 = arith.constant 1.000000e+00 : f32
    %22 = vector.broadcast %cst_15 : f32 to vector<256x32xf32>
    %23 = arith.addf %22, %21 : vector<256x32xf32>
    %cst_16 = arith.constant 1.000000e+00 : f32
    %24 = vector.broadcast %cst_16 : f32 to vector<256x32xf32>
    %25 = arith.divf %24, %23 : vector<256x32xf32>
    %26 = vector.extract_strided_slice %3 {offsets = [0, 64], sizes = [256, 32], strides = [1, 1]} : vector<256x224xf32> to vector<256x32xf32>
    %27 = math.tanh %26 : vector<256x32xf32>
    %28 = arith.mulf %15, %27 : vector<256x32xf32>
    %29 = arith.mulf %25, %5 : vector<256x32xf32>
    %30 = arith.addf %29, %28 : vector<256x32xf32>
    %31 = vector.extract_strided_slice %3 {offsets = [0, 96], sizes = [256, 32], strides = [1, 1]} : vector<256x224xf32> to vector<256x32xf32>
    %cst_17 = arith.constant 0.000000e+00 : f32
    %32 = vector.broadcast %cst_17 : f32 to vector<256x32xf32>
    %33 = arith.subf %32, %31 : vector<256x32xf32>
    %34 = math.exp %33 : vector<256x32xf32>
    %cst_18 = arith.constant 1.000000e+00 : f32
    %35 = vector.broadcast %cst_18 : f32 to vector<256x32xf32>
    %36 = arith.addf %35, %34 : vector<256x32xf32>
    %cst_19 = arith.constant 1.000000e+00 : f32
    %37 = vector.broadcast %cst_19 : f32 to vector<256x32xf32>
    %38 = arith.divf %37, %36 : vector<256x32xf32>
    %39 = vector.extract_strided_slice %3 {offsets = [0, 128], sizes = [256, 32], strides = [1, 1]} : vector<256x224xf32> to vector<256x32xf32>
    %cst_20 = arith.constant 1.000000e+00 : f32
    %40 = vector.broadcast %cst_20 : f32 to vector<256x32xf32>
    %41 = arith.addf %39, %40 : vector<256x32xf32>
    %cst_21 = arith.constant 0.000000e+00 : f32
    %42 = vector.broadcast %cst_21 : f32 to vector<256x32xf32>
    %43 = arith.subf %42, %41 : vector<256x32xf32>
    %44 = math.exp %43 : vector<256x32xf32>
    %cst_22 = arith.constant 1.000000e+00 : f32
    %45 = vector.broadcast %cst_22 : f32 to vector<256x32xf32>
    %46 = arith.addf %45, %44 : vector<256x32xf32>
    %cst_23 = arith.constant 1.000000e+00 : f32
    %47 = vector.broadcast %cst_23 : f32 to vector<256x32xf32>
    %48 = arith.divf %47, %46 : vector<256x32xf32>
    %49 = vector.extract_strided_slice %3 {offsets = [0, 160], sizes = [256, 32], strides = [1, 1]} : vector<256x224xf32> to vector<256x32xf32>
    %50 = math.tanh %49 : vector<256x32xf32>
    %51 = arith.mulf %38, %50 : vector<256x32xf32>
    %52 = arith.mulf %48, %7 : vector<256x32xf32>
    %53 = arith.addf %52, %51 : vector<256x32xf32>
    %cst_24 = arith.constant 0.000000e+00 : f32
    %54 = vector.broadcast %cst_24 : f32 to vector<18x18x64xf32>
    %c0_25 = arith.constant 0 : index
    %c0_26 = arith.constant 0 : index
    %c0_27 = arith.constant 0 : index
    %55 = vector.load %arg8[%c0_25, %c0_26, %c0_27] : memref<18x18x64xf32, #tpu.memory_space<vmem>>, vector<18x18x64xf32>
    tpu.vector_store %arg8[%c0_25, %c0_26, %c0_27], %54 {strides = array<i32>} : memref<18x18x64xf32, #tpu.memory_space<vmem>>, vector<18x18x64xf32>,
    %56 = vector.shape_cast %30 : vector<256x32xf32> to vector<16x16x32xf32>
    %c1 = arith.constant 1 : index
    %c1_28 = arith.constant 1 : index
    %c0_29 = arith.constant 0 : index
    %57 = vector.load %arg8[%c1, %c1_28, %c0_29] : memref<18x18x64xf32, #tpu.memory_space<vmem>>, vector<16x16x32xf32>
    tpu.vector_store %arg8[%c1, %c1_28, %c0_29], %56 {strides = array<i32>} : memref<18x18x64xf32, #tpu.memory_space<vmem>>, vector<16x16x32xf32>,
    %58 = vector.shape_cast %53 : vector<256x32xf32> to vector<16x16x32xf32>
    %c1_30 = arith.constant 1 : index
    %c1_31 = arith.constant 1 : index
    %c32 = arith.constant 32 : index
    %59 = vector.load %arg8[%c1_30, %c1_31, %c32] : memref<18x18x64xf32, #tpu.memory_space<vmem>>, vector<16x16x32xf32>
    tpu.vector_store %arg8[%c1_30, %c1_31, %c32], %58 {strides = array<i32>} : memref<18x18x64xf32, #tpu.memory_space<vmem>>, vector<16x16x32xf32>,
    %c0_32 = arith.constant 0 : index
    %c0_33 = arith.constant 0 : index
    %c0_34 = arith.constant 0 : index
    %60 = vector.load %arg8[%c0_32, %c0_33, %c0_34] : memref<18x18x64xf32, #tpu.memory_space<vmem>>, vector<18x18x64xf32>
    %cst_35 = arith.constant 0.000000e+00 : f32
    %61 = vector.broadcast %cst_35 : f32 to vector<256x32xf32>
    %62 = vector.extract_strided_slice %60 {offsets = [0, 0, 0], sizes = [16, 16, 64], strides = [1, 1, 1]} : vector<18x18x64xf32> to vector<16x16x64xf32>
    %63 = vector.shape_cast %62 : vector<16x16x64xf32> to vector<256x64xf32>
    %c0_36 = arith.constant 0 : index
    %c0_37 = arith.constant 0 : index
    %c0_38 = arith.constant 0 : index
    %c0_39 = arith.constant 0 : index
    %64 = vector.load %arg5[%c0_36, %c0_37, %c0_38, %c0_39] : memref<3x3x64x32xf32, #tpu.memory_space<vmem>>, vector<1x1x64x32xf32>
    %65 = vector.shape_cast %64 : vector<1x1x64x32xf32> to vector<64x32xf32>
    %cst_40 = arith.constant dense<0.000000e+00> : vector<256x32xf32>
    %66 = tpu.matmul %63, %65, %cst_40 {dimension_numbers = #tpu.dot_dimension_numbers<[1], [0], [0], [1], [0, 0, 1, 1], [], []>} : vector<256x64xf32>, vector<64x32xf32>, vector<256x32xf32> -> vector<256x32xf32>
    %67 = arith.addf %61, %66 : vector<256x32xf32>
    %68 = vector.extract_strided_slice %60 {offsets = [0, 1, 0], sizes = [16, 16, 64], strides = [1, 1, 1]} : vector<18x18x64xf32> to vector<16x16x64xf32>
    %69 = vector.shape_cast %68 : vector<16x16x64xf32> to vector<256x64xf32>
    %c0_41 = arith.constant 0 : index
    %c1_42 = arith.constant 1 : index
    %c0_43 = arith.constant 0 : index
    %c0_44 = arith.constant 0 : index
    %70 = vector.load %arg5[%c0_41, %c1_42, %c0_43, %c0_44] : memref<3x3x64x32xf32, #tpu.memory_space<vmem>>, vector<1x1x64x32xf32>
    %71 = vector.shape_cast %70 : vector<1x1x64x32xf32> to vector<64x32xf32>
    %cst_45 = arith.constant dense<0.000000e+00> : vector<256x32xf32>
    %72 = tpu.matmul %69, %71, %cst_45 {dimension_numbers = #tpu.dot_dimension_numbers<[1], [0], [0], [1], [0, 0, 1, 1], [], []>} : vector<256x64xf32>, vector<64x32xf32>, vector<256x32xf32> -> vector<256x32xf32>
    %73 = arith.addf %67, %72 : vector<256x32xf32>
    %74 = vector.extract_strided_slice %60 {offsets = [0, 2, 0], sizes = [16, 16, 64], strides = [1, 1, 1]} : vector<18x18x64xf32> to vector<16x16x64xf32>
    %75 = vector.shape_cast %74 : vector<16x16x64xf32> to vector<256x64xf32>
    %c0_46 = arith.constant 0 : index
    %c2 = arith.constant 2 : index
    %c0_47 = arith.constant 0 : index
    %c0_48 = arith.constant 0 : index
    %76 = vector.load %arg5[%c0_46, %c2, %c0_47, %c0_48] : memref<3x3x64x32xf32, #tpu.memory_space<vmem>>, vector<1x1x64x32xf32>
    %77 = vector.shape_cast %76 : vector<1x1x64x32xf32> to vector<64x32xf32>
    %cst_49 = arith.constant dense<0.000000e+00> : vector<256x32xf32>
    %78 = tpu.matmul %75, %77, %cst_49 {dimension_numbers = #tpu.dot_dimension_numbers<[1], [0], [0], [1], [0, 0, 1, 1], [], []>} : vector<256x64xf32>, vector<64x32xf32>, vector<256x32xf32> -> vector<256x32xf32>
    %79 = arith.addf %73, %78 : vector<256x32xf32>
    %80 = vector.extract_strided_slice %60 {offsets = [1, 0, 0], sizes = [16, 16, 64], strides = [1, 1, 1]} : vector<18x18x64xf32> to vector<16x16x64xf32>
    %81 = vector.shape_cast %80 : vector<16x16x64xf32> to vector<256x64xf32>
    %c1_50 = arith.constant 1 : index
    %c0_51 = arith.constant 0 : index
    %c0_52 = arith.constant 0 : index
    %c0_53 = arith.constant 0 : index
    %82 = vector.load %arg5[%c1_50, %c0_51, %c0_52, %c0_53] : memref<3x3x64x32xf32, #tpu.memory_space<vmem>>, vector<1x1x64x32xf32>
    %83 = vector.shape_cast %82 : vector<1x1x64x32xf32> to vector<64x32xf32>
    %cst_54 = arith.constant dense<0.000000e+00> : vector<256x32xf32>
    %84 = tpu.matmul %81, %83, %cst_54 {dimension_numbers = #tpu.dot_dimension_numbers<[1], [0], [0], [1], [0, 0, 1, 1], [], []>} : vector<256x64xf32>, vector<64x32xf32>, vector<256x32xf32> -> vector<256x32xf32>
    %85 = arith.addf %79, %84 : vector<256x32xf32>
    %86 = vector.extract_strided_slice %60 {offsets = [1, 1, 0], sizes = [16, 16, 64], strides = [1, 1, 1]} : vector<18x18x64xf32> to vector<16x16x64xf32>
    %87 = vector.shape_cast %86 : vector<16x16x64xf32> to vector<256x64xf32>
    %c1_55 = arith.constant 1 : index
    %c1_56 = arith.constant 1 : index
    %c0_57 = arith.constant 0 : index
    %c0_58 = arith.constant 0 : index
    %88 = vector.load %arg5[%c1_55, %c1_56, %c0_57, %c0_58] : memref<3x3x64x32xf32, #tpu.memory_space<vmem>>, vector<1x1x64x32xf32>
    %89 = vector.shape_cast %88 : vector<1x1x64x32xf32> to vector<64x32xf32>
    %cst_59 = arith.constant dense<0.000000e+00> : vector<256x32xf32>
    %90 = tpu.matmul %87, %89, %cst_59 {dimension_numbers = #tpu.dot_dimension_numbers<[1], [0], [0], [1], [0, 0, 1, 1], [], []>} : vector<256x64xf32>, vector<64x32xf32>, vector<256x32xf32> -> vector<256x32xf32>
    %91 = arith.addf %85, %90 : vector<256x32xf32>
    %92 = vector.extract_strided_slice %60 {offsets = [1, 2, 0], sizes = [16, 16, 64], strides = [1, 1, 1]} : vector<18x18x64xf32> to vector<16x16x64xf32>
    %93 = vector.shape_cast %92 : vector<16x16x64xf32> to vector<256x64xf32>
    %c1_60 = arith.constant 1 : index
    %c2_61 = arith.constant 2 : index
    %c0_62 = arith.constant 0 : index
    %c0_63 = arith.constant 0 : index
    %94 = vector.load %arg5[%c1_60, %c2_61, %c0_62, %c0_63] : memref<3x3x64x32xf32, #tpu.memory_space<vmem>>, vector<1x1x64x32xf32>
    %95 = vector.shape_cast %94 : vector<1x1x64x32xf32> to vector<64x32xf32>
    %cst_64 = arith.constant dense<0.000000e+00> : vector<256x32xf32>
    %96 = tpu.matmul %93, %95, %cst_64 {dimension_numbers = #tpu.dot_dimension_numbers<[1], [0], [0], [1], [0, 0, 1, 1], [], []>} : vector<256x64xf32>, vector<64x32xf32>, vector<256x32xf32> -> vector<256x32xf32>
    %97 = arith.addf %91, %96 : vector<256x32xf32>
    %98 = vector.extract_strided_slice %60 {offsets = [2, 0, 0], sizes = [16, 16, 64], strides = [1, 1, 1]} : vector<18x18x64xf32> to vector<16x16x64xf32>
    %99 = vector.shape_cast %98 : vector<16x16x64xf32> to vector<256x64xf32>
    %c2_65 = arith.constant 2 : index
    %c0_66 = arith.constant 0 : index
    %c0_67 = arith.constant 0 : index
    %c0_68 = arith.constant 0 : index
    %100 = vector.load %arg5[%c2_65, %c0_66, %c0_67, %c0_68] : memref<3x3x64x32xf32, #tpu.memory_space<vmem>>, vector<1x1x64x32xf32>
    %101 = vector.shape_cast %100 : vector<1x1x64x32xf32> to vector<64x32xf32>
    %cst_69 = arith.constant dense<0.000000e+00> : vector<256x32xf32>
    %102 = tpu.matmul %99, %101, %cst_69 {dimension_numbers = #tpu.dot_dimension_numbers<[1], [0], [0], [1], [0, 0, 1, 1], [], []>} : vector<256x64xf32>, vector<64x32xf32>, vector<256x32xf32> -> vector<256x32xf32>
    %103 = arith.addf %97, %102 : vector<256x32xf32>
    %104 = vector.extract_strided_slice %60 {offsets = [2, 1, 0], sizes = [16, 16, 64], strides = [1, 1, 1]} : vector<18x18x64xf32> to vector<16x16x64xf32>
    %105 = vector.shape_cast %104 : vector<16x16x64xf32> to vector<256x64xf32>
    %c2_70 = arith.constant 2 : index
    %c1_71 = arith.constant 1 : index
    %c0_72 = arith.constant 0 : index
    %c0_73 = arith.constant 0 : index
    %106 = vector.load %arg5[%c2_70, %c1_71, %c0_72, %c0_73] : memref<3x3x64x32xf32, #tpu.memory_space<vmem>>, vector<1x1x64x32xf32>
    %107 = vector.shape_cast %106 : vector<1x1x64x32xf32> to vector<64x32xf32>
    %cst_74 = arith.constant dense<0.000000e+00> : vector<256x32xf32>
    %108 = tpu.matmul %105, %107, %cst_74 {dimension_numbers = #tpu.dot_dimension_numbers<[1], [0], [0], [1], [0, 0, 1, 1], [], []>} : vector<256x64xf32>, vector<64x32xf32>, vector<256x32xf32> -> vector<256x32xf32>
    %109 = arith.addf %103, %108 : vector<256x32xf32>
    %110 = vector.extract_strided_slice %60 {offsets = [2, 2, 0], sizes = [16, 16, 64], strides = [1, 1, 1]} : vector<18x18x64xf32> to vector<16x16x64xf32>
    %111 = vector.shape_cast %110 : vector<16x16x64xf32> to vector<256x64xf32>
    %c2_75 = arith.constant 2 : index
    %c2_76 = arith.constant 2 : index
    %c0_77 = arith.constant 0 : index
    %c0_78 = arith.constant 0 : index
    %112 = vector.load %arg5[%c2_75, %c2_76, %c0_77, %c0_78] : memref<3x3x64x32xf32, #tpu.memory_space<vmem>>, vector<1x1x64x32xf32>
    %113 = vector.shape_cast %112 : vector<1x1x64x32xf32> to vector<64x32xf32>
    %cst_79 = arith.constant dense<0.000000e+00> : vector<256x32xf32>
    %114 = tpu.matmul %111, %113, %cst_79 {dimension_numbers = #tpu.dot_dimension_numbers<[1], [0], [0], [1], [0, 0, 1, 1], [], []>} : vector<256x64xf32>, vector<64x32xf32>, vector<256x32xf32> -> vector<256x32xf32>
    %115 = arith.addf %109, %114 : vector<256x32xf32>
    %c0_80 = arith.constant 0 : index
    %c0_81 = arith.constant 0 : index
    %116 = vector.load %arg6[%c0_80, %c0_81] : memref<64x32xf32, #tpu.memory_space<vmem>>, vector<32x32xf32>
    %cst_82 = arith.constant dense<0.000000e+00> : vector<256x32xf32>
    %117 = tpu.matmul %30, %116, %cst_82 {dimension_numbers = #tpu.dot_dimension_numbers<[1], [0], [0], [1], [0, 0, 1, 1], [], []>} : vector<256x32xf32>, vector<32x32xf32>, vector<256x32xf32> -> vector<256x32xf32>
    %c32_83 = arith.constant 32 : index
    %c0_84 = arith.constant 0 : index
    %118 = vector.load %arg6[%c32_83, %c0_84] : memref<64x32xf32, #tpu.memory_space<vmem>>, vector<32x32xf32>
    %cst_85 = arith.constant dense<0.000000e+00> : vector<256x32xf32>
    %119 = tpu.matmul %53, %118, %cst_85 {dimension_numbers = #tpu.dot_dimension_numbers<[1], [0], [0], [1], [0, 0, 1, 1], [], []>} : vector<256x32xf32>, vector<32x32xf32>, vector<256x32xf32> -> vector<256x32xf32>
    %120 = arith.addf %117, %119 : vector<256x32xf32>
    %121 = vector.extract_strided_slice %3 {offsets = [0, 192], sizes = [256, 32], strides = [1, 1]} : vector<256x224xf32> to vector<256x32xf32>
    %122 = arith.addf %121, %115 : vector<256x32xf32>
    %cst_86 = arith.constant 0.000000e+00 : f32
    %123 = vector.broadcast %cst_86 : f32 to vector<256x32xf32>
    %124 = arith.subf %123, %122 : vector<256x32xf32>
    %125 = math.exp %124 : vector<256x32xf32>
    %cst_87 = arith.constant 1.000000e+00 : f32
    %126 = vector.broadcast %cst_87 : f32 to vector<256x32xf32>
    %127 = arith.addf %126, %125 : vector<256x32xf32>
    %cst_88 = arith.constant 1.000000e+00 : f32
    %128 = vector.broadcast %cst_88 : f32 to vector<256x32xf32>
    %129 = arith.divf %128, %127 : vector<256x32xf32>
    %130 = math.tanh %120 : vector<256x32xf32>
    %131 = arith.mulf %129, %130 : vector<256x32xf32>
    %c0_89 = arith.constant 0 : index
    %c0_90 = arith.constant 0 : index
    %c0_91 = arith.constant 0 : index
    %132 = vector.load %arg7[%c0_89, %c0_90, %c0_91] : memref<1x256x160xf32, #tpu.memory_space<vmem>>, vector<1x256x32xf32>
    %133 = vector.shape_cast %132 : vector<1x256x32xf32> to vector<256x32xf32>
    %134 = vector.shape_cast %131 : vector<256x32xf32> to vector<1x256x32xf32>
    tpu.vector_store %arg7[%c0_89, %c0_90, %c0_91], %134 {strides = array<i32>} : memref<1x256x160xf32, #tpu.memory_space<vmem>>, vector<1x256x32xf32>,
    %c0_92 = arith.constant 0 : index
    %c0_93 = arith.constant 0 : index
    %c32_94 = arith.constant 32 : index
    %135 = vector.load %arg7[%c0_92, %c0_93, %c32_94] : memref<1x256x160xf32, #tpu.memory_space<vmem>>, vector<1x256x32xf32>
    %136 = vector.shape_cast %135 : vector<1x256x32xf32> to vector<256x32xf32>
    %137 = vector.shape_cast %30 : vector<256x32xf32> to vector<1x256x32xf32>
    tpu.vector_store %arg7[%c0_92, %c0_93, %c32_94], %137 {strides = array<i32>} : memref<1x256x160xf32, #tpu.memory_space<vmem>>, vector<1x256x32xf32>,
    %c0_95 = arith.constant 0 : index
    %c0_96 = arith.constant 0 : index
    %c64 = arith.constant 64 : index
    %138 = vector.load %arg7[%c0_95, %c0_96, %c64] : memref<1x256x160xf32, #tpu.memory_space<vmem>>, vector<1x256x32xf32>
    %139 = vector.shape_cast %138 : vector<1x256x32xf32> to vector<256x32xf32>
    %140 = vector.shape_cast %53 : vector<256x32xf32> to vector<1x256x32xf32>
    tpu.vector_store %arg7[%c0_95, %c0_96, %c64], %140 {strides = array<i32>} : memref<1x256x160xf32, #tpu.memory_space<vmem>>, vector<1x256x32xf32>,
    %c0_97 = arith.constant 0 : index
    %c0_98 = arith.constant 0 : index
    %c96 = arith.constant 96 : index
    %141 = vector.load %arg7[%c0_97, %c0_98, %c96] : memref<1x256x160xf32, #tpu.memory_space<vmem>>, vector<1x256x32xf32>
    %142 = vector.shape_cast %141 : vector<1x256x32xf32> to vector<256x32xf32>
    %143 = vector.shape_cast %28 : vector<256x32xf32> to vector<1x256x32xf32>
    tpu.vector_store %arg7[%c0_97, %c0_98, %c96], %143 {strides = array<i32>} : memref<1x256x160xf32, #tpu.memory_space<vmem>>, vector<1x256x32xf32>,
    %c0_99 = arith.constant 0 : index
    %c0_100 = arith.constant 0 : index
    %c128 = arith.constant 128 : index
    %144 = vector.load %arg7[%c0_99, %c0_100, %c128] : memref<1x256x160xf32, #tpu.memory_space<vmem>>, vector<1x256x32xf32>
    %145 = vector.shape_cast %144 : vector<1x256x32xf32> to vector<256x32xf32>
    %146 = vector.shape_cast %51 : vector<256x32xf32> to vector<1x256x32xf32>
    tpu.vector_store %arg7[%c0_99, %c0_100, %c128], %146 {strides = array<i32>} : memref<1x256x160xf32, #tpu.memory_space<vmem>>, vector<1x256x32xf32>,
    return
  }
  func.func @transform_0(%arg0: i32) -> (i32, i32, i32) {
    %c0_i32 = arith.constant 0 : i32
    %c0_i32_0 = arith.constant 0 : i32
    %c0_i32_1 = arith.constant 0 : i32
    return %arg0, %c0_i32, %c0_i32_0 : i32, i32, i32
  }
  func.func @transform_1(%arg0: i32) -> (i32, i32, i32) {
    %c0_i32 = arith.constant 0 : i32
    %c0_i32_0 = arith.constant 0 : i32
    %c0_i32_1 = arith.constant 0 : i32
    return %arg0, %c0_i32, %c0_i32_0 : i32, i32, i32
  }
  func.func @transform_2(%arg0: i32) -> (i32, i32, i32) {
    %c0_i32 = arith.constant 0 : i32
    %c0_i32_0 = arith.constant 0 : i32
    %c0_i32_1 = arith.constant 0 : i32
    return %arg0, %c0_i32, %c0_i32_0 : i32, i32, i32
  }
  func.func @transform_3(%arg0: i32) -> (i32, i32) {
    %c0_i32 = arith.constant 0 : i32
    %c0_i32_0 = arith.constant 0 : i32
    %c0_i32_1 = arith.constant 0 : i32
    return %c0_i32, %c0_i32_0 : i32, i32
  }
  func.func @transform_4(%arg0: i32) -> (i32, i32, i32, i32) {
    %c0_i32 = arith.constant 0 : i32
    %c0_i32_0 = arith.constant 0 : i32
    %c0_i32_1 = arith.constant 0 : i32
    %c0_i32_2 = arith.constant 0 : i32
    %c0_i32_3 = arith.constant 0 : i32
    return %c0_i32, %c0_i32_0, %c0_i32_1, %c0_i32_2 : i32, i32, i32, i32
  }
  func.func @transform_5(%arg0: i32) -> (i32, i32) {
    %c0_i32 = arith.constant 0 : i32
    %c0_i32_0 = arith.constant 0 : i32
    %c0_i32_1 = arith.constant 0 : i32
    return %c0_i32, %c0_i32_0 : i32, i32
  }
  func.func @transform_6(%arg0: i32) -> (i32, i32, i32) {
    %c0_i32 = arith.constant 0 : i32
    %c0_i32_0 = arith.constant 0 : i32
    %c0_i32_1 = arith.constant 0 : i32
    return %arg0, %c0_i32, %c0_i32_0 : i32, i32, i32
  }
}

</mosaic_0001>

<llo_original>
// kernel: st_lstm_cell_v2.1
$region0: #{st_lstm_cell_v2.1}
  #allocation0 [shape = 'u32[]', space=smem, size = 0x4, offset = 0x4, fixed_abs, tag = 'smem constant byte address 0x4 - core index']
  #allocation1 [shape = 'u32[144,128]{1,0:T(1,128)}', space=vmem, size = 0x12000, scoped, tag = 'internal scratch']
  #allocation2 [shape = 'f32[18,18,64]{2,1,0:T(8,128)}', space=vmem, size = 0x36000, scoped, tag = 'scratch operand']
  %s0 = inlined_call_operand.vmem [shape: f32[2,256,612], index: 0, kind: input, shape index: {}]
  %s1 = inlined_call_operand.vmem [shape: f32[2,256,32], index: 1, kind: input, shape index: {}]
  %s2 = inlined_call_operand.vmem [shape: f32[2,256,32], index: 2, kind: input, shape index: {}]
  %s3 = inlined_call_operand.vmem [shape: f32[612,224], index: 3, kind: input, shape index: {}]
  %s4 = inlined_call_operand.vmem [shape: f32[3,3,64,32], index: 4, kind: input, shape index: {}]
  %s5 = inlined_call_operand.vmem [shape: f32[64,32], index: 5, kind: input, shape index: {}]
  %s6 = inlined_call_operand.vmem [shape: f32[2,256,160], index: 6, kind: output, shape index: {}]
  %s7 = sld [smem:[#allocation0]]
  $region57: #{st_lstm_cell_v2.1} parent=0
    _
  %s9 = ssub.s32 1, %s7
  %s10 = scalar_select 0, %s9, %s7
  loop: start=0, step=1, limit=4
  $region2: #{st_lstm_cell_v2.1} parent=0 // loop_pre_header
    _
  $region3: #{st_lstm_cell_v2.1} parent=0 // loop_header
    %s12 = sphi 0, %s16
    %p13 = scmp.ge.s32.totalorder %s12, 4
    %s22 = sphi 0, %s24
    %s25 = sphi 0, %s22
    %s26 = sphi 0, %s25
    %s42 = sphi 0, %s26
    %s48 = sphi 0, %s50
    %s51 = sphi 0, %s48
    %s52 = sphi 0, %s51
    %s68 = sphi 0, %s52
    %s74 = sphi 0, %s76
    %s77 = sphi 0, %s74
    %s78 = sphi 0, %s77
    %s94 = sphi 0, %s78
    %s98 = sphi 0, %s98
    %s100 = sphi 0, %s98
    %s101 = sphi 0, %s100
    %s115 = sphi 0, %s101
    %s119 = sphi 0, %s119
    %s121 = sphi 0, %s119
    %s122 = sphi 0, %s121
    %s136 = sphi 0, %s122
    %s140 = sphi 0, %s140
    %s142 = sphi 0, %s140
    %s143 = sphi 0, %s142
    %s157 = sphi 0, %s143
    %s163 = sphi 0, %s165
    %s166 = sphi 0, %s163
    %s167 = sphi 0, %s166
    %s183 = sphi 0, %s167
  $region4: #{st_lstm_cell_v2.1} parent=0 // loop_header_branch
    %15 = sbr.rel (%p13) target = $region8
  $region5: #{st_lstm_cell_v2.1} parent=0 // loop_body
    %s17 = ssub.s32 %s12, 1
    %s18 = ssub.s32 %s12, 2
    %s19 = sadd.s32 %s12, 1
    %s20 = ssub.s32 %s12, %s19
    %p21 = scmp.eq.s32.totalorder %s20, 0
    %s23 = sadd.s32 %s22, 1
    %s24 = scalar_select %p21, %s22, %s23
    %p27 = pneg %p21
    %p28 = scmp.eq.s32.totalorder %s12, 1
    %p29 = por %p27, %p28
    %p30 = scmp.ne.s32.totalorder %s22, %s25
    %p31 = scmp.eq.s32.totalorder %s12, 0
    %p32 = por %p30, %p31
    %p33 = scmp.ne.s32.totalorder %s22, %s25
    %p34 = scmp.eq.s32.totalorder %s17, 1
    %p35 = por %p33, %p34
    %p36 = scmp.ne.s32.totalorder %s25, %s26
    %p37 = scmp.eq.s32.totalorder %s17, 0
    %p38 = por %p36, %p37
    %p39 = scmp.ne.s32.totalorder %s25, %s26
    %p40 = scmp.eq.s32.totalorder %s18, 1
    %p41 = por %p39, %p40
    %p43 = scmp.ne.s32.totalorder %s26, %s42
    %p44 = scmp.eq.s32.totalorder %s18, 0
    %p45 = por %p43, %p44
    %s46 = ssub.s32 %s12, %s19
    %p47 = scmp.eq.s32.totalorder %s46, 0
    %s49 = sadd.s32 %s48, 1
    %s50 = scalar_select %p47, %s48, %s49
    %p53 = pneg %p47
    %p54 = scmp.eq.s32.totalorder %s12, 1
    %p55 = por %p53, %p54
    %p56 = scmp.ne.s32.totalorder %s48, %s51
    %p57 = scmp.eq.s32.totalorder %s12, 0
    %p58 = por %p56, %p57
    %p59 = scmp.ne.s32.totalorder %s48, %s51
    %p60 = scmp.eq.s32.totalorder %s17, 1
    %p61 = por %p59, %p60
    %p62 = scmp.ne.s32.totalorder %s51, %s52
    %p63 = scmp.eq.s32.totalorder %s17, 0
    %p64 = por %p62, %p63
    %p65 = scmp.ne.s32.totalorder %s51, %s52
    %p66 = scmp.eq.s32.totalorder %s18, 1
    %p67 = por %p65, %p66
    %p69 = scmp.ne.s32.totalorder %s52, %s68
    %p70 = scmp.eq.s32.totalorder %s18, 0
    %p71 = por %p69, %p70
    %s72 = ssub.s32 %s12, %s19
    %p73 = scmp.eq.s32.totalorder %s72, 0
    %s75 = sadd.s32 %s74, 1
    %s76 = scalar_select %p73, %s74, %s75
    %p79 = pneg %p73
    %p80 = scmp.eq.s32.totalorder %s12, 1
    %p81 = por %p79, %p80
    %p82 = scmp.ne.s32.totalorder %s74, %s77
    %p83 = scmp.eq.s32.totalorder %s12, 0
    %p84 = por %p82, %p83
    %p85 = scmp.ne.s32.totalorder %s74, %s77
    %p86 = scmp.eq.s32.totalorder %s17, 1
    %p87 = por %p85, %p86
    %p88 = scmp.ne.s32.totalorder %s77, %s78
    %p89 = scmp.eq.s32.totalorder %s17, 0
    %p90 = por %p88, %p89
    %p91 = scmp.ne.s32.totalorder %s77, %s78
    %p92 = scmp.eq.s32.totalorder %s18, 1
    %p93 = por %p91, %p92
    %p95 = scmp.ne.s32.totalorder %s78, %s94
    %p96 = scmp.eq.s32.totalorder %s18, 0
    %p97 = por %p95, %p96
    %s99 = sadd.s32 %s98, 1
    %p102 = scmp.eq.s32.totalorder %s12, 1
    %p103 = scmp.ne.s32.totalorder %s98, %s100
    %p104 = scmp.eq.s32.totalorder %s12, 0
    %p105 = por %p103, %p104
    %p106 = scmp.ne.s32.totalorder %s98, %s100
    %p107 = scmp.eq.s32.totalorder %s17, 1
    %p108 = por %p106, %p107
    %p109 = scmp.ne.s32.totalorder %s100, %s101
    %p110 = scmp.eq.s32.totalorder %s17, 0
    %p111 = por %p109, %p110
    %p112 = scmp.ne.s32.totalorder %s100, %s101
    %p113 = scmp.eq.s32.totalorder %s18, 1
    %p114 = por %p112, %p113
    %p116 = scmp.ne.s32.totalorder %s101, %s115
    %p117 = scmp.eq.s32.totalorder %s18, 0
    %p118 = por %p116, %p117
    %s120 = sadd.s32 %s119, 1
    %p123 = scmp.eq.s32.totalorder %s12, 1
    %p124 = scmp.ne.s32.totalorder %s119, %s121
    %p125 = scmp.eq.s32.totalorder %s12, 0
    %p126 = por %p124, %p125
    %p127 = scmp.ne.s32.totalorder %s119, %s121
    %p128 = scmp.eq.s32.totalorder %s17, 1
    %p129 = por %p127, %p128
    %p130 = scmp.ne.s32.totalorder %s121, %s122
    %p131 = scmp.eq.s32.totalorder %s17, 0
    %p132 = por %p130, %p131
    %p133 = scmp.ne.s32.totalorder %s121, %s122
    %p134 = scmp.eq.s32.totalorder %s18, 1
    %p135 = por %p133, %p134
    %p137 = scmp.ne.s32.totalorder %s122, %s136
    %p138 = scmp.eq.s32.totalorder %s18, 0
    %p139 = por %p137, %p138
    %s141 = sadd.s32 %s140, 1
    %p144 = scmp.eq.s32.totalorder %s12, 1
    %p145 = scmp.ne.s32.totalorder %s140, %s142
    %p146 = scmp.eq.s32.totalorder %s12, 0
    %p147 = por %p145, %p146
    %p148 = scmp.ne.s32.totalorder %s140, %s142
    %p149 = scmp.eq.s32.totalorder %s17, 1
    %p150 = por %p148, %p149
    %p151 = scmp.ne.s32.totalorder %s142, %s143
    %p152 = scmp.eq.s32.totalorder %s17, 0
    %p153 = por %p151, %p152
    %p154 = scmp.ne.s32.totalorder %s142, %s143
    %p155 = scmp.eq.s32.totalorder %s18, 1
    %p156 = por %p154, %p155
    %p158 = scmp.ne.s32.totalorder %s143, %s157
    %p159 = scmp.eq.s32.totalorder %s18, 0
    %p160 = por %p158, %p159
    %s161 = ssub.s32 %s12, %s19
    %p162 = scmp.eq.s32.totalorder %s161, 0
    %s164 = sadd.s32 %s163, 1
    %s165 = scalar_select %p162, %s163, %s164
    %p168 = pneg %p162
    %p169 = scmp.eq.s32.totalorder %s12, 1
    %p170 = por %p168, %p169
    %p171 = scmp.ne.s32.totalorder %s163, %s166
    %p172 = scmp.eq.s32.totalorder %s12, 0
    %p173 = por %p171, %p172
    %p174 = scmp.ne.s32.totalorder %s163, %s166
    %p175 = scmp.eq.s32.totalorder %s17, 1
    %p176 = por %p174, %p175
    %p177 = scmp.ne.s32.totalorder %s166, %s167
    %p178 = scmp.eq.s32.totalorder %s17, 0
    %p179 = por %p177, %p178
    %p180 = scmp.ne.s32.totalorder %s166, %s167
    %p181 = scmp.eq.s32.totalorder %s18, 1
    %p182 = por %p180, %p181
    %p184 = scmp.ne.s32.totalorder %s167, %s183
    %p185 = scmp.eq.s32.totalorder %s18, 0
    %p186 = por %p184, %p185
    %p187 = scmp.le.s32.totalorder 1, %s12
    %p188 = scmp.lt.s32.totalorder %s12, 3
    %p189 = pnand %p187, %p188
    %p190 = pneg %p189
    // Predicated region
    $region9: #{st_lstm_cell_v2.1} parent=5 // pred_check
      _
    $region10: #{st_lstm_cell_v2.1} parent=5 // pred_check_branch
      %192 = sbr.rel (%p189) target = $region12
    $region11: #{st_lstm_cell_v2.1} parent=5 // pred_region
      %s193 = ssub.s32 %s12, 1
      // Predicated region
      $region13: #{st_lstm_cell_v2.1} parent=11 // pred_check
        %p194 = pneg %p111
      $region14: #{st_lstm_cell_v2.1} parent=11 // pred_check_branch
        %196 = sbr.rel (%p194) target = $region16
      $region15: #{st_lstm_cell_v2.1} parent=11 // pred_region
        _
      $region16: #{st_lstm_cell_v2.1} parent=11 // pred_fallthru
        _
      // Predicated region
      $region17: #{st_lstm_cell_v2.1} parent=11 // pred_check
        %p197 = pneg %p132
      $region18: #{st_lstm_cell_v2.1} parent=11 // pred_check_branch
        %199 = sbr.rel (%p197) target = $region20
      $region19: #{st_lstm_cell_v2.1} parent=11 // pred_region
        _
      $region20: #{st_lstm_cell_v2.1} parent=11 // pred_fallthru
        _
      // Predicated region
      $region21: #{st_lstm_cell_v2.1} parent=11 // pred_check
        %p200 = pneg %p153
      $region22: #{st_lstm_cell_v2.1} parent=11 // pred_check_branch
        %202 = sbr.rel (%p200) target = $region24
      $region23: #{st_lstm_cell_v2.1} parent=11 // pred_region
        _
      $region24: #{st_lstm_cell_v2.1} parent=11 // pred_fallthru
        _
    $region12: #{st_lstm_cell_v2.1} parent=5 // pred_fallthru
      _
    %p203 = scmp.lt.s32.totalorder %s12, 2
    // Predicated region
    $region25: #{st_lstm_cell_v2.1} parent=5 // pred_check
      %p204 = pneg %p203
    $region26: #{st_lstm_cell_v2.1} parent=5 // pred_check_branch
      %206 = sbr.rel (%p204) target = $region28
    $region27: #{st_lstm_cell_v2.1} parent=5 // pred_region
      // Predicated region
      $region29: #{st_lstm_cell_v2.1} parent=27 // pred_check
        %p207 = pneg %p32
      $region30: #{st_lstm_cell_v2.1} parent=27 // pred_check_branch
        %209 = sbr.rel (%p207) target = $region32
      $region31: #{st_lstm_cell_v2.1} parent=27 // pred_region
        %p210 = scmp.lt.s32.totalorder %s12, 1
        %s211 = scalar_select %p210, %s12, 1
        %s212 = smul.addr %s211, 160
        %s213 = smul.addr %s212, 8
        %s214 = scalar_lea.vmem %s0, %s213
      $region32: #{st_lstm_cell_v2.1} parent=27 // pred_fallthru
        _
      // Predicated region
      $region33: #{st_lstm_cell_v2.1} parent=27 // pred_check
        %p215 = pneg %p58
      $region34: #{st_lstm_cell_v2.1} parent=27 // pred_check_branch
        %217 = sbr.rel (%p215) target = $region36
      $region35: #{st_lstm_cell_v2.1} parent=27 // pred_region
        %p218 = scmp.lt.s32.totalorder %s12, 1
        %s219 = scalar_select %p218, %s12, 1
        %s220 = smul.addr %s219, 32
        %s221 = smul.addr %s220, 8
        %s222 = scalar_lea.vmem %s1, %s221
      $region36: #{st_lstm_cell_v2.1} parent=27 // pred_fallthru
        _
      // Predicated region
      $region37: #{st_lstm_cell_v2.1} parent=27 // pred_check
        %p223 = pneg %p84
      $region38: #{st_lstm_cell_v2.1} parent=27 // pred_check_branch
        %225 = sbr.rel (%p223) target = $region40
      $region39: #{st_lstm_cell_v2.1} parent=27 // pred_region
        %p226 = scmp.lt.s32.totalorder %s12, 1
        %s227 = scalar_select %p226, %s12, 1
        %s228 = smul.addr %s227, 32
        %s229 = smul.addr %s228, 8
        %s230 = scalar_lea.vmem %s2, %s229
      $region40: #{st_lstm_cell_v2.1} parent=27 // pred_fallthru
        _
    $region28: #{st_lstm_cell_v2.1} parent=5 // pred_fallthru
      _
    %p231 = scmp.le.s32.totalorder 1, %s12
    %p232 = scmp.lt.s32.totalorder %s12, 3
    %p233 = pnand %p231, %p232
    %p234 = pneg %p233
    // Predicated region
    $region41: #{st_lstm_cell_v2.1} parent=5 // pred_check
      _
    $region42: #{st_lstm_cell_v2.1} parent=5 // pred_check_branch
      %236 = sbr.rel (%p233) target = $region44
    $region43: #{st_lstm_cell_v2.1} parent=5 // pred_region
      %s237 = ssub.s32 %s12, 1
      %p238 = scmp.lt.s32.totalorder %s17, 1
      %s239 = scalar_select %p238, %s17, 1
      %s240 = smul.addr %s239, 160
      %s241 = smul.addr %s240, 8
      %s242 = scalar_lea.vmem %s0, %s241
      %p243 = pneg %p38
      %p244 = pneg %p35
      %p245 = scmp.lt.s32.totalorder %s17, 1
      %s246 = scalar_select %p245, %s17, 1
      %s247 = smul.addr %s246, 32
      %s248 = smul.addr %s247, 8
      %s249 = scalar_lea.vmem %s1, %s248
      %p250 = pneg %p64
      %p251 = pneg %p61
      %p252 = scmp.lt.s32.totalorder %s17, 1
      %s253 = scalar_select %p252, %s17, 1
      %s254 = smul.addr %s253, 32
      %s255 = smul.addr %s254, 8
      %s256 = scalar_lea.vmem %s2, %s255
      %p257 = pneg %p90
      %p258 = pneg %p87
      %p259 = pneg %p111
      %p260 = pneg %p108
      %p261 = pneg %p132
      %p262 = pneg %p129
      %p263 = pneg %p153
      %p264 = pneg %p150
      %p265 = pneg %p179
      %p266 = pneg %p176
      %p267 = scmp.lt.s32.totalorder %s17, 1
      %s268 = scalar_select %p267, %s17, 1
      %s269 = smul.addr %s268, 64
      %s270 = smul.addr %s269, 8
      %s271 = scalar_lea.vmem %s6, %s270
      %p272 = scmp.lt.s32.totalorder %s17, 1
      %s273 = scalar_select %p272, %s17, 1
      %s274 = smul.addr %s273, 160
      %s275 = smul.addr %s274, 8
      %s276 = scalar_lea.vmem %s0, %s275
      %p277 = scmp.lt.s32.totalorder %s17, 1
      %s278 = scalar_select %p277, %s17, 1
      %s279 = smul.addr %s278, 32
      %s280 = smul.addr %s279, 8
      %s281 = scalar_lea.vmem %s1, %s280
      %p282 = scmp.lt.s32.totalorder %s17, 1
      %s283 = scalar_select %p282, %s17, 1
      %s284 = smul.addr %s283, 32
      %s285 = smul.addr %s284, 8
      %s286 = scalar_lea.vmem %s2, %s285
      %p287 = scmp.lt.s32.totalorder %s17, 1
      %s288 = scalar_select %p287, %s17, 1
      %s289 = smul.addr %s288, 64
      %s290 = smul.addr %s289, 8
      %s291 = scalar_lea.vmem %s6, %s290
      %v292 = vld [vmem:[%s276] sm:$0xff]
      %v293 = vld [vmem:[%s276 + $0x8] sm:$0xff]
      %v294 = vld [vmem:[%s276 + $0x10] sm:$0xff]
      %v295 = vld [vmem:[%s276 + $0x18] sm:$0xff]
      %v296 = vld [vmem:[%s276 + $0x20] sm:$0xff]
      %v297 = vld [vmem:[%s276 + $0x28] sm:$0xff]
      %v298 = vld [vmem:[%s276 + $0x30] sm:$0xff]
      %v299 = vld [vmem:[%s276 + $0x38] sm:$0xff]
      %v300 = vld [vmem:[%s276 + $0x40] sm:$0xff]
      %v301 = vld [vmem:[%s276 + $0x48] sm:$0xff]
      %v302 = vld [vmem:[%s276 + $0x50] sm:$0xff]
      %v303 = vld [vmem:[%s276 + $0x58] sm:$0xff]
      %v304 = vld [vmem:[%s276 + $0x60] sm:$0xff]
      %v305 = vld [vmem:[%s276 + $0x68] sm:$0xff]
      %v306 = vld [vmem:[%s276 + $0x70] sm:$0xff]
      %v307 = vld [vmem:[%s276 + $0x78] sm:$0xff]
      %v308 = vld [vmem:[%s276 + $0x80] sm:$0xff]
      %v309 = vld [vmem:[%s276 + $0x88] sm:$0xff]
      %v310 = vld [vmem:[%s276 + $0x90] sm:$0xff]
      %v311 = vld [vmem:[%s276 + $0x98] sm:$0xff]
      %v312 = vld [vmem:[%s276 + $0xa0] sm:$0xff]
      %v313 = vld [vmem:[%s276 + $0xa8] sm:$0xff]
      %v314 = vld [vmem:[%s276 + $0xb0] sm:$0xff]
      %v315 = vld [vmem:[%s276 + $0xb8] sm:$0xff]
      %v316 = vld [vmem:[%s276 + $0xc0] sm:$0xff]
      %v317 = vld [vmem:[%s276 + $0xc8] sm:$0xff]
      %v318 = vld [vmem:[%s276 + $0xd0] sm:$0xff]
      %v319 = vld [vmem:[%s276 + $0xd8] sm:$0xff]
      %v320 = vld [vmem:[%s276 + $0xe0] sm:$0xff]
      %v321 = vld [vmem:[%s276 + $0xe8] sm:$0xff]
      %v322 = vld [vmem:[%s276 + $0xf0] sm:$0xff]
      %v323 = vld [vmem:[%s276 + $0xf8] sm:$0xff]
      %v324 = vld [vmem:[%s276 + $0x100] sm:$0xff]
      %v325 = vld [vmem:[%s276 + $0x108] sm:$0xff]
      %v326 = vld [vmem:[%s276 + $0x110] sm:$0xff]
      %v327 = vld [vmem:[%s276 + $0x118] sm:$0xff]
      %v328 = vld [vmem:[%s276 + $0x120] sm:$0xff]
      %v329 = vld [vmem:[%s276 + $0x128] sm:$0xff]
      %v330 = vld [vmem:[%s276 + $0x130] sm:$0xff]
      %v331 = vld [vmem:[%s276 + $0x138] sm:$0xff]
      %v332 = vld [vmem:[%s276 + $0x140] sm:$0xff]
      %v333 = vld [vmem:[%s276 + $0x148] sm:$0xff]
      %v334 = vld [vmem:[%s276 + $0x150] sm:$0xff]
      %v335 = vld [vmem:[%s276 + $0x158] sm:$0xff]
      %v336 = vld [vmem:[%s276 + $0x160] sm:$0xff]
      %v337 = vld [vmem:[%s276 + $0x168] sm:$0xff]
      %v338 = vld [vmem:[%s276 + $0x170] sm:$0xff]
      %v339 = vld [vmem:[%s276 + $0x178] sm:$0xff]
      %v340 = vld [vmem:[%s276 + $0x180] sm:$0xff]
      %v341 = vld [vmem:[%s276 + $0x188] sm:$0xff]
      %v342 = vld [vmem:[%s276 + $0x190] sm:$0xff]
      %v343 = vld [vmem:[%s276 + $0x198] sm:$0xff]
      %v344 = vld [vmem:[%s276 + $0x1a0] sm:$0xff]
      %v345 = vld [vmem:[%s276 + $0x1a8] sm:$0xff]
      %v346 = vld [vmem:[%s276 + $0x1b0] sm:$0xff]
      %v347 = vld [vmem:[%s276 + $0x1b8] sm:$0xff]
      %v348 = vld [vmem:[%s276 + $0x1c0] sm:$0xff]
      %v349 = vld [vmem:[%s276 + $0x1c8] sm:$0xff]
      %v350 = vld [vmem:[%s276 + $0x1d0] sm:$0xff]
      %v351 = vld [vmem:[%s276 + $0x1d8] sm:$0xff]
      %v352 = vld [vmem:[%s276 + $0x1e0] sm:$0xff]
      %v353 = vld [vmem:[%s276 + $0x1e8] sm:$0xff]
      %v354 = vld [vmem:[%s276 + $0x1f0] sm:$0xff]
      %v355 = vld [vmem:[%s276 + $0x1f8] sm:$0xff]
      %v356 = vld [vmem:[%s276 + $0x200] sm:$0xff]
      %v357 = vld [vmem:[%s276 + $0x208] sm:$0xff]
      %v358 = vld [vmem:[%s276 + $0x210] sm:$0xff]
      %v359 = vld [vmem:[%s276 + $0x218] sm:$0xff]
      %v360 = vld [vmem:[%s276 + $0x220] sm:$0xff]
      %v361 = vld [vmem:[%s276 + $0x228] sm:$0xff]
      %v362 = vld [vmem:[%s276 + $0x230] sm:$0xff]
      %v363 = vld [vmem:[%s276 + $0x238] sm:$0xff]
      %v364 = vld [vmem:[%s276 + $0x240] sm:$0xff]
      %v365 = vld [vmem:[%s276 + $0x248] sm:$0xff]
      %v366 = vld [vmem:[%s276 + $0x250] sm:$0xff]
      %v367 = vld [vmem:[%s276 + $0x258] sm:$0xff]
      %v368 = vld [vmem:[%s276 + $0x260] sm:$0xff]
      %v369 = vld [vmem:[%s276 + $0x268] sm:$0xff]
      %v370 = vld [vmem:[%s276 + $0x270] sm:$0xff]
      %v371 = vld [vmem:[%s276 + $0x278] sm:$0xff]
      %v372 = vld [vmem:[%s276 + $0x280] sm:$0xff]
      %v373 = vld [vmem:[%s276 + $0x288] sm:$0xff]
      %v374 = vld [vmem:[%s276 + $0x290] sm:$0xff]
      %v375 = vld [vmem:[%s276 + $0x298] sm:$0xff]
      %v376 = vld [vmem:[%s276 + $0x2a0] sm:$0xff]
      %v377 = vld [vmem:[%s276 + $0x2a8] sm:$0xff]
      %v378 = vld [vmem:[%s276 + $0x2b0] sm:$0xff]
      %v379 = vld [vmem:[%s276 + $0x2b8] sm:$0xff]
      %v380 = vld [vmem:[%s276 + $0x2c0] sm:$0xff]
      %v381 = vld [vmem:[%s276 + $0x2c8] sm:$0xff]
      %v382 = vld [vmem:[%s276 + $0x2d0] sm:$0xff]
      %v383 = vld [vmem:[%s276 + $0x2d8] sm:$0xff]
      %v384 = vld [vmem:[%s276 + $0x2e0] sm:$0xff]
      %v385 = vld [vmem:[%s276 + $0x2e8] sm:$0xff]
      %v386 = vld [vmem:[%s276 + $0x2f0] sm:$0xff]
      %v387 = vld [vmem:[%s276 + $0x2f8] sm:$0xff]
      %v388 = vld [vmem:[%s276 + $0x300] sm:$0xff]
      %v389 = vld [vmem:[%s276 + $0x308] sm:$0xff]
      %v390 = vld [vmem:[%s276 + $0x310] sm:$0xff]
      %v391 = vld [vmem:[%s276 + $0x318] sm:$0xff]
      %v392 = vld [vmem:[%s276 + $0x320] sm:$0xff]
      %v393 = vld [vmem:[%s276 + $0x328] sm:$0xff]
      %v394 = vld [vmem:[%s276 + $0x330] sm:$0xff]
      %v395 = vld [vmem:[%s276 + $0x338] sm:$0xff]
      %v396 = vld [vmem:[%s276 + $0x340] sm:$0xff]
      %v397 = vld [vmem:[%s276 + $0x348] sm:$0xff]
      %v398 = vld [vmem:[%s276 + $0x350] sm:$0xff]
      %v399 = vld [vmem:[%s276 + $0x358] sm:$0xff]
      %v400 = vld [vmem:[%s276 + $0x360] sm:$0xff]
      %v401 = vld [vmem:[%s276 + $0x368] sm:$0xff]
      %v402 = vld [vmem:[%s276 + $0x370] sm:$0xff]
      %v403 = vld [vmem:[%s276 + $0x378] sm:$0xff]
      %v404 = vld [vmem:[%s276 + $0x380] sm:$0xff]
      %v405 = vld [vmem:[%s276 + $0x388] sm:$0xff]
      %v406 = vld [vmem:[%s276 + $0x390] sm:$0xff]
      %v407 = vld [vmem:[%s276 + $0x398] sm:$0xff]
      %v408 = vld [vmem:[%s276 + $0x3a0] sm:$0xff]
      %v409 = vld [vmem:[%s276 + $0x3a8] sm:$0xff]
      %v410 = vld [vmem:[%s276 + $0x3b0] sm:$0xff]
      %v411 = vld [vmem:[%s276 + $0x3b8] sm:$0xff]
      %v412 = vld [vmem:[%s276 + $0x3c0] sm:$0xff]
      %v413 = vld [vmem:[%s276 + $0x3c8] sm:$0xff]
      %v414 = vld [vmem:[%s276 + $0x3d0] sm:$0xff]
      %v415 = vld [vmem:[%s276 + $0x3d8] sm:$0xff]
      %v416 = vld [vmem:[%s276 + $0x3e0] sm:$0xff]
      %v417 = vld [vmem:[%s276 + $0x3e8] sm:$0xff]
      %v418 = vld [vmem:[%s276 + $0x3f0] sm:$0xff]
      %v419 = vld [vmem:[%s276 + $0x3f8] sm:$0xff]
      %v420 = vld [vmem:[%s276 + $0x400] sm:$0xff]
      %v421 = vld [vmem:[%s276 + $0x408] sm:$0xff]
      %v422 = vld [vmem:[%s276 + $0x410] sm:$0xff]
      %v423 = vld [vmem:[%s276 + $0x418] sm:$0xff]
      %v424 = vld [vmem:[%s276 + $0x420] sm:$0xff]
      %v425 = vld [vmem:[%s276 + $0x428] sm:$0xff]
      %v426 = vld [vmem:[%s276 + $0x430] sm:$0xff]
      %v427 = vld [vmem:[%s276 + $0x438] sm:$0xff]
      %v428 = vld [vmem:[%s276 + $0x440] sm:$0xff]
      %v429 = vld [vmem:[%s276 + $0x448] sm:$0xff]
      %v430 = vld [vmem:[%s276 + $0x450] sm:$0xff]
      %v431 = vld [vmem:[%s276 + $0x458] sm:$0xff]
      %v432 = vld [vmem:[%s276 + $0x460] sm:$0xff]
      %v433 = vld [vmem:[%s276 + $0x468] sm:$0xff]
      %v434 = vld [vmem:[%s276 + $0x470] sm:$0xff]
      %v435 = vld [vmem:[%s276 + $0x478] sm:$0xff]
      %v436 = vld [vmem:[%s276 + $0x480] sm:$0xff]
      %v437 = vld [vmem:[%s276 + $0x488] sm:$0xff]
      %v438 = vld [vmem:[%s276 + $0x490] sm:$0xff]
      %v439 = vld [vmem:[%s276 + $0x498] sm:$0xff]
      %v440 = vld [vmem:[%s276 + $0x4a0] sm:$0xff]
      %v441 = vld [vmem:[%s276 + $0x4a8] sm:$0xff]
      %v442 = vld [vmem:[%s276 + $0x4b0] sm:$0xff]
      %v443 = vld [vmem:[%s276 + $0x4b8] sm:$0xff]
      %v444 = vld [vmem:[%s276 + $0x4c0] sm:$0xff]
      %v445 = vld [vmem:[%s276 + $0x4c8] sm:$0xff]
      %v446 = vld [vmem:[%s276 + $0x4d0] sm:$0xff]
      %v447 = vld [vmem:[%s276 + $0x4d8] sm:$0xff]
      %v448 = vld [vmem:[%s276 + $0x4e0] sm:$0xff]
      %v449 = vld [vmem:[%s276 + $0x4e8] sm:$0xff]
      %v450 = vld [vmem:[%s276 + $0x4f0] sm:$0xff]
      %v451 = vld [vmem:[%s276 + $0x4f8] sm:$0xff]
      %v452 = vld [vmem:[%s3] sm:$0xff]
      %v453 = vld [vmem:[%s3 + $0x8] sm:$0xff]
      %v454 = vld [vmem:[%s3 + $0x10] sm:$0xff]
      %v455 = vld [vmem:[%s3 + $0x18] sm:$0xff]
      %v456 = vld [vmem:[%s3 + $0x20] sm:$0xff]
      %v457 = vld [vmem:[%s3 + $0x28] sm:$0xff]
      %v458 = vld [vmem:[%s3 + $0x30] sm:$0xff]
      %v459 = vld [vmem:[%s3 + $0x38] sm:$0xff]
      %v460 = vld [vmem:[%s3 + $0x40] sm:$0xff]
      %v461 = vld [vmem:[%s3 + $0x48] sm:$0xff]
      %v462 = vld [vmem:[%s3 + $0x50] sm:$0xff]
      %v463 = vld [vmem:[%s3 + $0x58] sm:$0xff]
      %v464 = vld [vmem:[%s3 + $0x60] sm:$0xff]
      %v465 = vld [vmem:[%s3 + $0x68] sm:$0xff]
      %v466 = vld [vmem:[%s3 + $0x70] sm:$0xff]
      %v467 = vld [vmem:[%s3 + $0x78] sm:$0xff]
      %v468 = vld [vmem:[%s3 + $0x80] sm:$0xff]
      %v469 = vld [vmem:[%s3 + $0x88] sm:$0xff]
      %v470 = vld [vmem:[%s3 + $0x90] sm:$0xff]
      %v471 = vld [vmem:[%s3 + $0x98] sm:$0xff]
      %v472 = vld [vmem:[%s3 + $0xa0] sm:$0xff]
      %v473 = vld [vmem:[%s3 + $0xa8] sm:$0xff]
      %v474 = vld [vmem:[%s3 + $0xb0] sm:$0xff]
      %v475 = vld [vmem:[%s3 + $0xb8] sm:$0xff]
      %v476 = vld [vmem:[%s3 + $0xc0] sm:$0xff]
      %v477 = vld [vmem:[%s3 + $0xc8] sm:$0xff]
      %v478 = vld [vmem:[%s3 + $0xd0] sm:$0xff]
      %v479 = vld [vmem:[%s3 + $0xd8] sm:$0xff]
      %v480 = vld [vmem:[%s3 + $0xe0] sm:$0xff]
      %v481 = vld [vmem:[%s3 + $0xe8] sm:$0xff]
      %v482 = vld [vmem:[%s3 + $0xf0] sm:$0xff]
      %v483 = vld [vmem:[%s3 + $0xf8] sm:$0xff]
      %v484 = vld [vmem:[%s3 + $0x100] sm:$0xff]
      %v485 = vld [vmem:[%s3 + $0x108] sm:$0xff]
      %v486 = vld [vmem:[%s3 + $0x110] sm:$0xff]
      %v487 = vld [vmem:[%s3 + $0x118] sm:$0xff]
      %v488 = vld [vmem:[%s3 + $0x120] sm:$0xff]
      %v489 = vld [vmem:[%s3 + $0x128] sm:$0xff]
      %v490 = vld [vmem:[%s3 + $0x130] sm:$0xff]
      %v491 = vld [vmem:[%s3 + $0x138] sm:$0xff]
      %v492 = vld [vmem:[%s3 + $0x140] sm:$0xff]
      %v493 = vld [vmem:[%s3 + $0x148] sm:$0xff]
      %v494 = vld [vmem:[%s3 + $0x150] sm:$0xff]
      %v495 = vld [vmem:[%s3 + $0x158] sm:$0xff]
      %v496 = vld [vmem:[%s3 + $0x160] sm:$0xff]
      %v497 = vld [vmem:[%s3 + $0x168] sm:$0xff]
      %v498 = vld [vmem:[%s3 + $0x170] sm:$0xff]
      %v499 = vld [vmem:[%s3 + $0x178] sm:$0xff]
      %v500 = vld [vmem:[%s3 + $0x180] sm:$0xff]
      %v501 = vld [vmem:[%s3 + $0x188] sm:$0xff]
      %v502 = vld [vmem:[%s3 + $0x190] sm:$0xff]
      %v503 = vld [vmem:[%s3 + $0x198] sm:$0xff]
      %v504 = vld [vmem:[%s3 + $0x1a0] sm:$0xff]
      %v505 = vld [vmem:[%s3 + $0x1a8] sm:$0xff]
      %v506 = vld [vmem:[%s3 + $0x1b0] sm:$0xff]
      %v507 = vld [vmem:[%s3 + $0x1b8] sm:$0xff]
      %v508 = vld [vmem:[%s3 + $0x1c0] sm:$0xff]
      %v509 = vld [vmem:[%s3 + $0x1c8] sm:$0xff]
      %v510 = vld [vmem:[%s3 + $0x1d0] sm:$0xff]
      %v511 = vld [vmem:[%s3 + $0x1d8] sm:$0xff]
      %v512 = vld [vmem:[%s3 + $0x1e0] sm:$0xff]
      %v513 = vld [vmem:[%s3 + $0x1e8] sm:$0xff]
      %v514 = vld [vmem:[%s3 + $0x1f0] sm:$0xff]
      %v515 = vld [vmem:[%s3 + $0x1f8] sm:$0xff]
      %v516 = vld [vmem:[%s3 + $0x200] sm:$0xff]
      %v517 = vld [vmem:[%s3 + $0x208] sm:$0xff]
      %v518 = vld [vmem:[%s3 + $0x210] sm:$0xff]
      %v519 = vld [vmem:[%s3 + $0x218] sm:$0xff]
      %v520 = vld [vmem:[%s3 + $0x220] sm:$0xff]
      %v521 = vld [vmem:[%s3 + $0x228] sm:$0xff]
      %v522 = vld [vmem:[%s3 + $0x230] sm:$0xff]
      %v523 = vld [vmem:[%s3 + $0x238] sm:$0xff]
      %v524 = vld [vmem:[%s3 + $0x240] sm:$0xff]
      %v525 = vld [vmem:[%s3 + $0x248] sm:$0xff]
      %v526 = vld [vmem:[%s3 + $0x250] sm:$0xff]
      %v527 = vld [vmem:[%s3 + $0x258] sm:$0xff]
      %v528 = vld [vmem:[%s3 + $0x260] sm:$0xff]
      %v529 = vld [vmem:[%s3 + $0x268] sm:$0xff]
      %v530 = vld [vmem:[%s3 + $0x270] sm:$0xff]
      %v531 = vld [vmem:[%s3 + $0x278] sm:$0xff]
      %v532 = vld [vmem:[%s3 + $0x280] sm:$0xff]
      %v533 = vld [vmem:[%s3 + $0x288] sm:$0xff]
      %v534 = vld [vmem:[%s3 + $0x290] sm:$0xff]
      %v535 = vld [vmem:[%s3 + $0x298] sm:$0xff]
      %v536 = vld [vmem:[%s3 + $0x2a0] sm:$0xff]
      %v537 = vld [vmem:[%s3 + $0x2a8] sm:$0xff]
      %v538 = vld [vmem:[%s3 + $0x2b0] sm:$0xff]
      %v539 = vld [vmem:[%s3 + $0x2b8] sm:$0xff]
      %v540 = vld [vmem:[%s3 + $0x2c0] sm:$0xff]
      %v541 = vld [vmem:[%s3 + $0x2c8] sm:$0xff]
      %v542 = vld [vmem:[%s3 + $0x2d0] sm:$0xff]
      %v543 = vld [vmem:[%s3 + $0x2d8] sm:$0xff]
      %v544 = vld [vmem:[%s3 + $0x2e0] sm:$0xff]
      %v545 = vld [vmem:[%s3 + $0x2e8] sm:$0xff]
      %v546 = vld [vmem:[%s3 + $0x2f0] sm:$0xff]
      %v547 = vld [vmem:[%s3 + $0x2f8] sm:$0xff]
      %v548 = vld [vmem:[%s3 + $0x300] sm:$0xff]
      %v549 = vld [vmem:[%s3 + $0x308] sm:$0xff]
      %v550 = vld [vmem:[%s3 + $0x310] sm:$0xff]
      %v551 = vld [vmem:[%s3 + $0x318] sm:$0xff]
      %v552 = vld [vmem:[%s3 + $0x320] sm:$0xff]
      %v553 = vld [vmem:[%s3 + $0x328] sm:$0xff]
      %v554 = vld [vmem:[%s3 + $0x330] sm:$0xff]
      %v555 = vld [vmem:[%s3 + $0x338] sm:$0xff]
      %v556 = vld [vmem:[%s3 + $0x340] sm:$0xff]
      %v557 = vld [vmem:[%s3 + $0x348] sm:$0xff]
      %v558 = vld [vmem:[%s3 + $0x350] sm:$0xff]
      %v559 = vld [vmem:[%s3 + $0x358] sm:$0xff]
      %v560 = vld [vmem:[%s3 + $0x360] sm:$0xff]
      %v561 = vld [vmem:[%s3 + $0x368] sm:$0xff]
      %v562 = vld [vmem:[%s3 + $0x370] sm:$0xff]
      %v563 = vld [vmem:[%s3 + $0x378] sm:$0xff]
      %v564 = vld [vmem:[%s3 + $0x380] sm:$0xff]
      %v565 = vld [vmem:[%s3 + $0x388] sm:$0xff]
      %v566 = vld [vmem:[%s3 + $0x390] sm:$0xff]
      %v567 = vld [vmem:[%s3 + $0x398] sm:$0xff]
      %v568 = vld [vmem:[%s3 + $0x3a0] sm:$0xff]
      %v569 = vld [vmem:[%s3 + $0x3a8] sm:$0xff]
      %v570 = vld [vmem:[%s3 + $0x3b0] sm:$0xff]
      %v571 = vld [vmem:[%s3 + $0x3b8] sm:$0xff]
      %v572 = vld [vmem:[%s3 + $0x3c0] sm:$0xff]
      %v573 = vld [vmem:[%s3 + $0x3c8] sm:$0xff]
      %v574 = vld [vmem:[%s3 + $0x3d0] sm:$0xff]
      %v575 = vld [vmem:[%s3 + $0x3d8] sm:$0xff]
      %v576 = vld [vmem:[%s3 + $0x3e0] sm:$0xff]
      %v577 = vld [vmem:[%s3 + $0x3e8] sm:$0xff]
      %v578 = vld [vmem:[%s3 + $0x3f0] sm:$0xff]
      %v579 = vld [vmem:[%s3 + $0x3f8] sm:$0xff]
      %v580 = vld [vmem:[%s3 + $0x400] sm:$0xff]
      %v581 = vld [vmem:[%s3 + $0x408] sm:$0xff]
      %v582 = vld [vmem:[%s3 + $0x410] sm:$0xff]
      %v583 = vld [vmem:[%s3 + $0x418] sm:$0xff]
      %v584 = vld [vmem:[%s3 + $0x420] sm:$0xff]
      %v585 = vld [vmem:[%s3 + $0x428] sm:$0xff]
      %v586 = vld [vmem:[%s3 + $0x430] sm:$0xff]
      %v587 = vld [vmem:[%s3 + $0x438] sm:$0xff]
      %v588 = vld [vmem:[%s3 + $0x440] sm:$0xff]
      %v589 = vld [vmem:[%s3 + $0x448] sm:$0xff]
      %v590 = vld [vmem:[%s3 + $0x450] sm:$0xff]
      %v591 = vld [vmem:[%s3 + $0x458] sm:$0xff]
      %v592 = vld [vmem:[%s3 + $0x460] sm:$0xff]
      %v593 = vld [vmem:[%s3 + $0x468] sm:$0xff]
      %v594 = vld [vmem:[%s3 + $0x470] sm:$0xff]
      %v595 = vld [vmem:[%s3 + $0x478] sm:$0xff]
      %v596 = vld [vmem:[%s3 + $0x480] sm:$0xff]
      %v597 = vld [vmem:[%s3 + $0x488] sm:$0xff]
      %v598 = vld [vmem:[%s3 + $0x490] sm:$0xff]
      %v599 = vld [vmem:[%s3 + $0x498] sm:$0xff]
      %v600 = vld [vmem:[%s3 + $0x4a0] sm:$0xff]
      %v601 = vld [vmem:[%s3 + $0x4a8] sm:$0xff]
      %v602 = vld [vmem:[%s3 + $0x4b0] sm:$0xff]
      %v603 = vld [vmem:[%s3 + $0x4b8] sm:$0xff]
      %v604 = vld [vmem:[%s3 + $0x4c0] sm:$0xf]
      %v605 = vld [vmem:[%s3 + $0x4c8] sm:$0xf]
      %vm606 = vcmask 818176
      %v608 = vsel %vm606, %v296, 0
      %v611 = vsel %vm606, %v301, 0
      %v614 = vsel %vm606, %v306, 0
      %v617 = vsel %vm606, %v311, 0
      %v620 = vsel %vm606, %v316, 0
      %v623 = vsel %vm606, %v321, 0
      %v626 = vsel %vm606, %v326, 0
      %v629 = vsel %vm606, %v331, 0
      %v632 = vsel %vm606, %v336, 0
      %v635 = vsel %vm606, %v341, 0
      %v638 = vsel %vm606, %v346, 0
      %v641 = vsel %vm606, %v351, 0
      %v644 = vsel %vm606, %v356, 0
      %v647 = vsel %vm606, %v361, 0
      %v650 = vsel %vm606, %v366, 0
      %v653 = vsel %vm606, %v371, 0
      %v656 = vsel %vm606, %v376, 0
      %v659 = vsel %vm606, %v381, 0
      %v662 = vsel %vm606, %v386, 0
      %v665 = vsel %vm606, %v391, 0
      %v668 = vsel %vm606, %v396, 0
      %v671 = vsel %vm606, %v401, 0
      %v674 = vsel %vm606, %v406, 0
      %v677 = vsel %vm606, %v411, 0
      %v680 = vsel %vm606, %v416, 0
      %v683 = vsel %vm606, %v421, 0
      %v686 = vsel %vm606, %v426, 0
      %v689 = vsel %vm606, %v431, 0
      %v692 = vsel %vm606, %v436, 0
      %v695 = vsel %vm606, %v441, 0
      %v698 = vsel %vm606, %v446, 0
      %v701 = vsel %vm606, %v451, 0
      %vm703 = vcmask 1043456
      %v705 = vsel %vm703, %v604, 0
      %v708 = vsel %vm703, %v605, 0
      %710 = vmatprep.subr.mxu0 %v483
      %711 = vmatpush1.msra.mxu0 %v482
      %712 = vmatprep.subr.mxu0 %v481
      %713 = vmatpush1.msra.mxu0 %v480
      %714 = vmatprep.subr.mxu0 %v479
      %715 = vmatpush1.msra.mxu0 %v478
      %716 = vmatprep.subr.mxu0 %v477
      %717 = vmatpush1.msra.mxu0 %v476
      %718 = vmatprep.subr.mxu0 %v475
      %719 = vmatpush1.msra.mxu0 %v474
      %720 = vmatprep.subr.mxu0 %v473
      %721 = vmatpush1.msra.mxu0 %v472
      %722 = vmatprep.subr.mxu0 %v471
      %723 = vmatpush1.msra.mxu0 %v470
      %724 = vmatprep.subr.mxu0 %v469
      %725 = vmatpush1.msra.mxu0 %v468
      %726 = vmatprep.subr.mxu0 %v467
      %727 = vmatpush1.msra.mxu0 %v466
      %728 = vmatprep.subr.mxu0 %v465
      %729 = vmatpush1.msra.mxu0 %v464
      %730 = vmatprep.subr.mxu0 %v463
      %731 = vmatpush1.msra.mxu0 %v462
      %732 = vmatprep.subr.mxu0 %v461
      %733 = vmatpush1.msra.mxu0 %v460
      %734 = vmatprep.subr.mxu0 %v459
      %735 = vmatpush1.msra.mxu0 %v458
      %736 = vmatprep.subr.mxu0 %v457
      %737 = vmatpush1.msra.mxu0 %v456
      %738 = vmatprep.subr.mxu0 %v455
      %739 = vmatpush1.msra.mxu0 %v454
      %740 = vmatprep.subr.mxu0 %v453
      %741 = vmatpush1.msra.mxu0 %v452
      %742 = vmatprep.subr.mxu0 %v515
      %743 = vmatpush2.msra.mxu0 %v514
      %744 = vmatprep.subr.mxu0 %v513
      %745 = vmatpush2.msra.mxu0 %v512
      %746 = vmatprep.subr.mxu0 %v511
      %747 = vmatpush2.msra.mxu0 %v510
      %748 = vmatprep.subr.mxu0 %v509
      %749 = vmatpush2.msra.mxu0 %v508
      %750 = vmatprep.subr.mxu0 %v507
      %751 = vmatpush2.msra.mxu0 %v506
      %752 = vmatprep.subr.mxu0 %v505
      %753 = vmatpush2.msra.mxu0 %v504
      %754 = vmatprep.subr.mxu0 %v503
      %755 = vmatpush2.msra.mxu0 %v502
      %756 = vmatprep.subr.mxu0 %v501
      %757 = vmatpush2.msra.mxu0 %v500
      %758 = vmatprep.subr.mxu0 %v499
      %759 = vmatpush2.msra.mxu0 %v498
      %760 = vmatprep.subr.mxu0 %v497
      %761 = vmatpush2.msra.mxu0 %v496
      %762 = vmatprep.subr.mxu0 %v495
      %763 = vmatpush2.msra.mxu0 %v494
      %764 = vmatprep.subr.mxu0 %v493
      %765 = vmatpush2.msra.mxu0 %v492
      %766 = vmatprep.subr.mxu0 %v491
      %767 = vmatpush2.msra.mxu0 %v490
      %768 = vmatprep.subr.mxu0 %v489
      %769 = vmatpush2.msra.mxu0 %v488
      %770 = vmatprep.subr.mxu0 %v487
      %771 = vmatpush2.msra.mxu0 %v486
      %772 = vmatprep.subr.mxu0 %v485
      %773 = vmatpush2.msra.mxu0 %v484
      %774 = vmatprep.mubr.f32.mxu0 %v293
      %775 = vmatmul.mubr.f32.gmra.mxu0 %v292
      %v776 = vpop.f32.mrf.mxu0
      %v777 = vadd.f32 0.0, %v776
      %v778 = vpop.f32.mrf.mxu0
      %v779 = vadd.f32 0.0, %v778
      %780 = vmatprep.mubr.f32.mxu0 %v298
      %781 = vmatmul.mubr.f32.gmra.mxu0 %v297
      %v782 = vpop.f32.mrf.mxu0
      %v783 = vadd.f32 0.0, %v782
      %v784 = vpop.f32.mrf.mxu0
      %v785 = vadd.f32 0.0, %v784
      %786 = vmatprep.mubr.f32.mxu0 %v303
      %787 = vmatmul.mubr.f32.gmra.mxu0 %v302
      %v788 = vpop.f32.mrf.mxu0
      %v789 = vadd.f32 0.0, %v788
      %v790 = vpop.f32.mrf.mxu0
      %v791 = vadd.f32 0.0, %v790
      %792 = vmatprep.mubr.f32.mxu0 %v308
      %793 = vmatmul.mubr.f32.gmra.mxu0 %v307
      %v794 = vpop.f32.mrf.mxu0
      %v795 = vadd.f32 0.0, %v794
      %v796 = vpop.f32.mrf.mxu0
      %v797 = vadd.f32 0.0, %v796
      %798 = vmatprep.mubr.f32.mxu0 %v313
      %799 = vmatmul.mubr.f32.gmra.mxu0 %v312
      %v800 = vpop.f32.mrf.mxu0
      %v801 = vadd.f32 0.0, %v800
      %v802 = vpop.f32.mrf.mxu0
      %v803 = vadd.f32 0.0, %v802
      %804 = vmatprep.mubr.f32.mxu0 %v318
      %805 = vmatmul.mubr.f32.gmra.mxu0 %v317
      %v806 = vpop.f32.mrf.mxu0
      %v807 = vadd.f32 0.0, %v806
      %v808 = vpop.f32.mrf.mxu0
      %v809 = vadd.f32 0.0, %v808
      %810 = vmatprep.mubr.f32.mxu0 %v323
      %811 = vmatmul.mubr.f32.gmra.mxu0 %v322
      %v812 = vpop.f32.mrf.mxu0
      %v813 = vadd.f32 0.0, %v812
      %v814 = vpop.f32.mrf.mxu0
      %v815 = vadd.f32 0.0, %v814
      %816 = vmatprep.mubr.f32.mxu0 %v328
      %817 = vmatmul.mubr.f32.gmra.mxu0 %v327
      %v818 = vpop.f32.mrf.mxu0
      %v819 = vadd.f32 0.0, %v818
      %v820 = vpop.f32.mrf.mxu0
      %v821 = vadd.f32 0.0, %v820
      %822 = vmatprep.mubr.f32.mxu0 %v333
      %823 = vmatmul.mubr.f32.gmra.mxu0 %v332
      %v824 = vpop.f32.mrf.mxu0
      %v825 = vadd.f32 0.0, %v824
      %v826 = vpop.f32.mrf.mxu0
      %v827 = vadd.f32 0.0, %v826
      %828 = vmatprep.mubr.f32.mxu0 %v338
      %829 = vmatmul.mubr.f32.gmra.mxu0 %v337
      %v830 = vpop.f32.mrf.mxu0
      %v831 = vadd.f32 0.0, %v830
      %v832 = vpop.f32.mrf.mxu0
      %v833 = vadd.f32 0.0, %v832
      %834 = vmatprep.mubr.f32.mxu0 %v343
      %835 = vmatmul.mubr.f32.gmra.mxu0 %v342
      %v836 = vpop.f32.mrf.mxu0
      %v837 = vadd.f32 0.0, %v836
      %v838 = vpop.f32.mrf.mxu0
      %v839 = vadd.f32 0.0, %v838
      %840 = vmatprep.mubr.f32.mxu0 %v348
      %841 = vmatmul.mubr.f32.gmra.mxu0 %v347
      %v842 = vpop.f32.mrf.mxu0
      %v843 = vadd.f32 0.0, %v842
      %v844 = vpop.f32.mrf.mxu0
      %v845 = vadd.f32 0.0, %v844
      %846 = vmatprep.mubr.f32.mxu0 %v353
      %847 = vmatmul.mubr.f32.gmra.mxu0 %v352
      %v848 = vpop.f32.mrf.mxu0
      %v849 = vadd.f32 0.0, %v848
      %v850 = vpop.f32.mrf.mxu0
      %v851 = vadd.f32 0.0, %v850
      %852 = vmatprep.mubr.f32.mxu0 %v358
      %853 = vmatmul.mubr.f32.gmra.mxu0 %v357
      %v854 = vpop.f32.mrf.mxu0
      %v855 = vadd.f32 0.0, %v854
      %v856 = vpop.f32.mrf.mxu0
      %v857 = vadd.f32 0.0, %v856
      %858 = vmatprep.mubr.f32.mxu0 %v363
      %859 = vmatmul.mubr.f32.gmra.mxu0 %v362
      %v860 = vpop.f32.mrf.mxu0
      %v861 = vadd.f32 0.0, %v860
      %v862 = vpop.f32.mrf.mxu0
      %v863 = vadd.f32 0.0, %v862
      %864 = vmatprep.mubr.f32.mxu0 %v368
      %865 = vmatmul.mubr.f32.gmra.mxu0 %v367
      %v866 = vpop.f32.mrf.mxu0
      %v867 = vadd.f32 0.0, %v866
      %v868 = vpop.f32.mrf.mxu0
      %v869 = vadd.f32 0.0, %v868
      %870 = vmatprep.mubr.f32.mxu0 %v373
      %871 = vmatmul.mubr.f32.gmra.mxu0 %v372
      %v872 = vpop.f32.mrf.mxu0
      %v873 = vadd.f32 0.0, %v872
      %v874 = vpop.f32.mrf.mxu0
      %v875 = vadd.f32 0.0, %v874
      %876 = vmatprep.mubr.f32.mxu0 %v378
      %877 = vmatmul.mubr.f32.gmra.mxu0 %v377
      %v878 = vpop.f32.mrf.mxu0
      %v879 = vadd.f32 0.0, %v878
      %v880 = vpop.f32.mrf.mxu0
      %v881 = vadd.f32 0.0, %v880
      %882 = vmatprep.mubr.f32.mxu0 %v383
      %883 = vmatmul.mubr.f32.gmra.mxu0 %v382
      %v884 = vpop.f32.mrf.mxu0
      %v885 = vadd.f32 0.0, %v884
      %v886 = vpop.f32.mrf.mxu0
      %v887 = vadd.f32 0.0, %v886
      %888 = vmatprep.mubr.f32.mxu0 %v388
      %889 = vmatmul.mubr.f32.gmra.mxu0 %v387
      %v890 = vpop.f32.mrf.mxu0
      %v891 = vadd.f32 0.0, %v890
      %v892 = vpop.f32.mrf.mxu0
      %v893 = vadd.f32 0.0, %v892
      %894 = vmatprep.mubr.f32.mxu0 %v393
      %895 = vmatmul.mubr.f32.gmra.mxu0 %v392
      %v896 = vpop.f32.mrf.mxu0
      %v897 = vadd.f32 0.0, %v896
      %v898 = vpop.f32.mrf.mxu0
      %v899 = vadd.f32 0.0, %v898
      %900 = vmatprep.mubr.f32.mxu0 %v398
      %901 = vmatmul.mubr.f32.gmra.mxu0 %v397
      %v902 = vpop.f32.mrf.mxu0
      %v903 = vadd.f32 0.0, %v902
      %v904 = vpop.f32.mrf.mxu0
      %v905 = vadd.f32 0.0, %v904
      %906 = vmatprep.mubr.f32.mxu0 %v403
      %907 = vmatmul.mubr.f32.gmra.mxu0 %v402
      %v908 = vpop.f32.mrf.mxu0
      %v909 = vadd.f32 0.0, %v908
      %v910 = vpop.f32.mrf.mxu0
      %v911 = vadd.f32 0.0, %v910
      %912 = vmatprep.mubr.f32.mxu0 %v408
      %913 = vmatmul.mubr.f32.gmra.mxu0 %v407
      %v914 = vpop.f32.mrf.mxu0
      %v915 = vadd.f32 0.0, %v914
      %v916 = vpop.f32.mrf.mxu0
      %v917 = vadd.f32 0.0, %v916
      %918 = vmatprep.mubr.f32.mxu0 %v413
      %919 = vmatmul.mubr.f32.gmra.mxu0 %v412
      %v920 = vpop.f32.mrf.mxu0
      %v921 = vadd.f32 0.0, %v920
      %v922 = vpop.f32.mrf.mxu0
      %v923 = vadd.f32 0.0, %v922
      %924 = vmatprep.mubr.f32.mxu0 %v418
      %925 = vmatmul.mubr.f32.gmra.mxu0 %v417
      %v926 = vpop.f32.mrf.mxu0
      %v927 = vadd.f32 0.0, %v926
      %v928 = vpop.f32.mrf.mxu0
      %v929 = vadd.f32 0.0, %v928
      %930 = vmatprep.mubr.f32.mxu0 %v423
      %931 = vmatmul.mubr.f32.gmra.mxu0 %v422
      %v932 = vpop.f32.mrf.mxu0
      %v933 = vadd.f32 0.0, %v932
      %v934 = vpop.f32.mrf.mxu0
      %v935 = vadd.f32 0.0, %v934
      %936 = vmatprep.mubr.f32.mxu0 %v428
      %937 = vmatmul.mubr.f32.gmra.mxu0 %v427
      %v938 = vpop.f32.mrf.mxu0
      %v939 = vadd.f32 0.0, %v938
      %v940 = vpop.f32.mrf.mxu0
      %v941 = vadd.f32 0.0, %v940
      %942 = vmatprep.mubr.f32.mxu0 %v433
      %943 = vmatmul.mubr.f32.gmra.mxu0 %v432
      %v944 = vpop.f32.mrf.mxu0
      %v945 = vadd.f32 0.0, %v944
      %v946 = vpop.f32.mrf.mxu0
      %v947 = vadd.f32 0.0, %v946
      %948 = vmatprep.mubr.f32.mxu0 %v438
      %949 = vmatmul.mubr.f32.gmra.mxu0 %v437
      %v950 = vpop.f32.mrf.mxu0
      %v951 = vadd.f32 0.0, %v950
      %v952 = vpop.f32.mrf.mxu0
      %v953 = vadd.f32 0.0, %v952
      %954 = vmatprep.mubr.f32.mxu0 %v443
      %955 = vmatmul.mubr.f32.gmra.mxu0 %v442
      %v956 = vpop.f32.mrf.mxu0
      %v957 = vadd.f32 0.0, %v956
      %v958 = vpop.f32.mrf.mxu0
      %v959 = vadd.f32 0.0, %v958
      %960 = vmatprep.mubr.f32.mxu0 %v448
      %961 = vmatmul.mubr.f32.gmra.mxu0 %v447
      %v962 = vpop.f32.mrf.mxu0
      %v963 = vadd.f32 0.0, %v962
      %v964 = vpop.f32.mrf.mxu0
      %v965 = vadd.f32 0.0, %v964
      %966 = vdwg.mxu0
      %967 = vmatprep.subr.mxu0 %v547
      %968 = vmatpush1.msra.mxu0 %v546
      %969 = vmatprep.subr.mxu0 %v545
      %970 = vmatpush1.msra.mxu0 %v544
      %971 = vmatprep.subr.mxu0 %v543
      %972 = vmatpush1.msra.mxu0 %v542
      %973 = vmatprep.subr.mxu0 %v541
      %974 = vmatpush1.msra.mxu0 %v540
      %975 = vmatprep.subr.mxu0 %v539
      %976 = vmatpush1.msra.mxu0 %v538
      %977 = vmatprep.subr.mxu0 %v537
      %978 = vmatpush1.msra.mxu0 %v536
      %979 = vmatprep.subr.mxu0 %v535
      %980 = vmatpush1.msra.mxu0 %v534
      %981 = vmatprep.subr.mxu0 %v533
      %982 = vmatpush1.msra.mxu0 %v532
      %983 = vmatprep.subr.mxu0 %v531
      %984 = vmatpush1.msra.mxu0 %v530
      %985 = vmatprep.subr.mxu0 %v529
      %986 = vmatpush1.msra.mxu0 %v528
      %987 = vmatprep.subr.mxu0 %v527
      %988 = vmatpush1.msra.mxu0 %v526
      %989 = vmatprep.subr.mxu0 %v525
      %990 = vmatpush1.msra.mxu0 %v524
      %991 = vmatprep.subr.mxu0 %v523
      %992 = vmatpush1.msra.mxu0 %v522
      %993 = vmatprep.subr.mxu0 %v521
      %994 = vmatpush1.msra.mxu0 %v520
      %995 = vmatprep.subr.mxu0 %v519
      %996 = vmatpush1.msra.mxu0 %v518
      %997 = vmatprep.subr.mxu0 %v517
      %998 = vmatpush1.msra.mxu0 %v516
      %999 = vmatprep.subr.mxu0 %v579
      %1000 = vmatpush2.msra.mxu0 %v578
      %1001 = vmatprep.subr.mxu0 %v577
      %1002 = vmatpush2.msra.mxu0 %v576
      %1003 = vmatprep.subr.mxu0 %v575
      %1004 = vmatpush2.msra.mxu0 %v574
      %1005 = vmatprep.subr.mxu0 %v573
      %1006 = vmatpush2.msra.mxu0 %v572
      %1007 = vmatprep.subr.mxu0 %v571
      %1008 = vmatpush2.msra.mxu0 %v570
      %1009 = vmatprep.subr.mxu0 %v569
      %1010 = vmatpush2.msra.mxu0 %v568
      %1011 = vmatprep.subr.mxu0 %v567
      %1012 = vmatpush2.msra.mxu0 %v566
      %1013 = vmatprep.subr.mxu0 %v565
      %1014 = vmatpush2.msra.mxu0 %v564
      %1015 = vmatprep.subr.mxu0 %v563
      %1016 = vmatpush2.msra.mxu0 %v562
      %1017 = vmatprep.subr.mxu0 %v561
      %1018 = vmatpush2.msra.mxu0 %v560
      %1019 = vmatprep.subr.mxu0 %v559
      %1020 = vmatpush2.msra.mxu0 %v558
      %1021 = vmatprep.subr.mxu0 %v557
      %1022 = vmatpush2.msra.mxu0 %v556
      %1023 = vmatprep.subr.mxu0 %v555
      %1024 = vmatpush2.msra.mxu0 %v554
      %1025 = vmatprep.subr.mxu0 %v553
      %1026 = vmatpush2.msra.mxu0 %v552
      %1027 = vmatprep.subr.mxu0 %v551
      %1028 = vmatpush2.msra.mxu0 %v550
      %1029 = vmatprep.subr.mxu0 %v549
      %1030 = vmatpush2.msra.mxu0 %v548
      %1031 = vmatprep.mubr.f32.mxu0 %v295
      %1032 = vmatmul.mubr.f32.gmra.mxu0 %v294
      %v1033 = vpop.f32.mrf.mxu0
      %v1034 = vadd.f32 %v777, %v1033
      %v1035 = vpop.f32.mrf.mxu0
      %v1036 = vadd.f32 %v779, %v1035
      %1037 = vmatprep.mubr.f32.mxu0 %v300
      %1038 = vmatmul.mubr.f32.gmra.mxu0 %v299
      %v1039 = vpop.f32.mrf.mxu0
      %v1040 = vadd.f32 %v783, %v1039
      %v1041 = vpop.f32.mrf.mxu0
      %v1042 = vadd.f32 %v785, %v1041
      %1043 = vmatprep.mubr.f32.mxu0 %v305
      %1044 = vmatmul.mubr.f32.gmra.mxu0 %v304
      %v1045 = vpop.f32.mrf.mxu0
      %v1046 = vadd.f32 %v789, %v1045
      %v1047 = vpop.f32.mrf.mxu0
      %v1048 = vadd.f32 %v791, %v1047
      %1049 = vmatprep.mubr.f32.mxu0 %v310
      %1050 = vmatmul.mubr.f32.gmra.mxu0 %v309
      %v1051 = vpop.f32.mrf.mxu0
      %v1052 = vadd.f32 %v795, %v1051
      %v1053 = vpop.f32.mrf.mxu0
      %v1054 = vadd.f32 %v797, %v1053
      %1055 = vmatprep.mubr.f32.mxu0 %v315
      %1056 = vmatmul.mubr.f32.gmra.mxu0 %v314
      %v1057 = vpop.f32.mrf.mxu0
      %v1058 = vadd.f32 %v801, %v1057
      %v1059 = vpop.f32.mrf.mxu0
      %v1060 = vadd.f32 %v803, %v1059
      %1061 = vmatprep.mubr.f32.mxu0 %v320
      %1062 = vmatmul.mubr.f32.gmra.mxu0 %v319
      %v1063 = vpop.f32.mrf.mxu0
      %v1064 = vadd.f32 %v807, %v1063
      %v1065 = vpop.f32.mrf.mxu0
      %v1066 = vadd.f32 %v809, %v1065
      %1067 = vmatprep.mubr.f32.mxu0 %v325
      %1068 = vmatmul.mubr.f32.gmra.mxu0 %v324
      %v1069 = vpop.f32.mrf.mxu0
      %v1070 = vadd.f32 %v813, %v1069
      %v1071 = vpop.f32.mrf.mxu0
      %v1072 = vadd.f32 %v815, %v1071
      %1073 = vmatprep.mubr.f32.mxu0 %v330
      %1074 = vmatmul.mubr.f32.gmra.mxu0 %v329
      %v1075 = vpop.f32.mrf.mxu0
      %v1076 = vadd.f32 %v819, %v1075
      %v1077 = vpop.f32.mrf.mxu0
      %v1078 = vadd.f32 %v821, %v1077
      %1079 = vmatprep.mubr.f32.mxu0 %v335
      %1080 = vmatmul.mubr.f32.gmra.mxu0 %v334
      %v1081 = vpop.f32.mrf.mxu0
      %v1082 = vadd.f32 %v825, %v1081
      %v1083 = vpop.f32.mrf.mxu0
      %v1084 = vadd.f32 %v827, %v1083
      %1085 = vmatprep.mubr.f32.mxu0 %v340
      %1086 = vmatmul.mubr.f32.gmra.mxu0 %v339
      %v1087 = vpop.f32.mrf.mxu0
      %v1088 = vadd.f32 %v831, %v1087
      %v1089 = vpop.f32.mrf.mxu0
      %v1090 = vadd.f32 %v833, %v1089
      %1091 = vmatprep.mubr.f32.mxu0 %v345
      %1092 = vmatmul.mubr.f32.gmra.mxu0 %v344
      %v1093 = vpop.f32.mrf.mxu0
      %v1094 = vadd.f32 %v837, %v1093
      %v1095 = vpop.f32.mrf.mxu0
      %v1096 = vadd.f32 %v839, %v1095
      %1097 = vmatprep.mubr.f32.mxu0 %v350
      %1098 = vmatmul.mubr.f32.gmra.mxu0 %v349
      %v1099 = vpop.f32.mrf.mxu0
      %v1100 = vadd.f32 %v843, %v1099
      %v1101 = vpop.f32.mrf.mxu0
      %v1102 = vadd.f32 %v845, %v1101
      %1103 = vmatprep.mubr.f32.mxu0 %v355
      %1104 = vmatmul.mubr.f32.gmra.mxu0 %v354
      %v1105 = vpop.f32.mrf.mxu0
      %v1106 = vadd.f32 %v849, %v1105
      %v1107 = vpop.f32.mrf.mxu0
      %v1108 = vadd.f32 %v851, %v1107
      %1109 = vmatprep.mubr.f32.mxu0 %v360
      %1110 = vmatmul.mubr.f32.gmra.mxu0 %v359
      %v1111 = vpop.f32.mrf.mxu0
      %v1112 = vadd.f32 %v855, %v1111
      %v1113 = vpop.f32.mrf.mxu0
      %v1114 = vadd.f32 %v857, %v1113
      %1115 = vmatprep.mubr.f32.mxu0 %v365
      %1116 = vmatmul.mubr.f32.gmra.mxu0 %v364
      %v1117 = vpop.f32.mrf.mxu0
      %v1118 = vadd.f32 %v861, %v1117
      %v1119 = vpop.f32.mrf.mxu0
      %v1120 = vadd.f32 %v863, %v1119
      %1121 = vmatprep.mubr.f32.mxu0 %v370
      %1122 = vmatmul.mubr.f32.gmra.mxu0 %v369
      %v1123 = vpop.f32.mrf.mxu0
      %v1124 = vadd.f32 %v867, %v1123
      %v1125 = vpop.f32.mrf.mxu0
      %v1126 = vadd.f32 %v869, %v1125
      %1127 = vmatprep.mubr.f32.mxu0 %v375
      %1128 = vmatmul.mubr.f32.gmra.mxu0 %v374
      %v1129 = vpop.f32.mrf.mxu0
      %v1130 = vadd.f32 %v873, %v1129
      %v1131 = vpop.f32.mrf.mxu0
      %v1132 = vadd.f32 %v875, %v1131
      %1133 = vmatprep.mubr.f32.mxu0 %v380
      %1134 = vmatmul.mubr.f32.gmra.mxu0 %v379
      %v1135 = vpop.f32.mrf.mxu0
      %v1136 = vadd.f32 %v879, %v1135
      %v1137 = vpop.f32.mrf.mxu0
      %v1138 = vadd.f32 %v881, %v1137
      %1139 = vmatprep.mubr.f32.mxu0 %v385
      %1140 = vmatmul.mubr.f32.gmra.mxu0 %v384
      %v1141 = vpop.f32.mrf.mxu0
      %v1142 = vadd.f32 %v885, %v1141
      %v1143 = vpop.f32.mrf.mxu0
      %v1144 = vadd.f32 %v887, %v1143
      %1145 = vmatprep.mubr.f32.mxu0 %v390
      %1146 = vmatmul.mubr.f32.gmra.mxu0 %v389
      %v1147 = vpop.f32.mrf.mxu0
      %v1148 = vadd.f32 %v891, %v1147
      %v1149 = vpop.f32.mrf.mxu0
      %v1150 = vadd.f32 %v893, %v1149
      %1151 = vmatprep.mubr.f32.mxu0 %v395
      %1152 = vmatmul.mubr.f32.gmra.mxu0 %v394
      %v1153 = vpop.f32.mrf.mxu0
      %v1154 = vadd.f32 %v897, %v1153
      %v1155 = vpop.f32.mrf.mxu0
      %v1156 = vadd.f32 %v899, %v1155
      %1157 = vmatprep.mubr.f32.mxu0 %v400
      %1158 = vmatmul.mubr.f32.gmra.mxu0 %v399
      %v1159 = vpop.f32.mrf.mxu0
      %v1160 = vadd.f32 %v903, %v1159
      %v1161 = vpop.f32.mrf.mxu0
      %v1162 = vadd.f32 %v905, %v1161
      %1163 = vmatprep.mubr.f32.mxu0 %v405
      %1164 = vmatmul.mubr.f32.gmra.mxu0 %v404
      %v1165 = vpop.f32.mrf.mxu0
      %v1166 = vadd.f32 %v909, %v1165
      %v1167 = vpop.f32.mrf.mxu0
      %v1168 = vadd.f32 %v911, %v1167
      %1169 = vmatprep.mubr.f32.mxu0 %v410
      %1170 = vmatmul.mubr.f32.gmra.mxu0 %v409
      %v1171 = vpop.f32.mrf.mxu0
      %v1172 = vadd.f32 %v915, %v1171
      %v1173 = vpop.f32.mrf.mxu0
      %v1174 = vadd.f32 %v917, %v1173
      %1175 = vmatprep.mubr.f32.mxu0 %v415
      %1176 = vmatmul.mubr.f32.gmra.mxu0 %v414
      %v1177 = vpop.f32.mrf.mxu0
      %v1178 = vadd.f32 %v921, %v1177
      %v1179 = vpop.f32.mrf.mxu0
      %v1180 = vadd.f32 %v923, %v1179
      %1181 = vmatprep.mubr.f32.mxu0 %v420
      %1182 = vmatmul.mubr.f32.gmra.mxu0 %v419
      %v1183 = vpop.f32.mrf.mxu0
      %v1184 = vadd.f32 %v927, %v1183
      %v1185 = vpop.f32.mrf.mxu0
      %v1186 = vadd.f32 %v929, %v1185
      %1187 = vmatprep.mubr.f32.mxu0 %v425
      %1188 = vmatmul.mubr.f32.gmra.mxu0 %v424
      %v1189 = vpop.f32.mrf.mxu0
      %v1190 = vadd.f32 %v933, %v1189
      %v1191 = vpop.f32.mrf.mxu0
      %v1192 = vadd.f32 %v935, %v1191
      %1193 = vmatprep.mubr.f32.mxu0 %v430
      %1194 = vmatmul.mubr.f32.gmra.mxu0 %v429
      %v1195 = vpop.f32.mrf.mxu0
      %v1196 = vadd.f32 %v939, %v1195
      %v1197 = vpop.f32.mrf.mxu0
      %v1198 = vadd.f32 %v941, %v1197
      %1199 = vmatprep.mubr.f32.mxu0 %v435
      %1200 = vmatmul.mubr.f32.gmra.mxu0 %v434
      %v1201 = vpop.f32.mrf.mxu0
      %v1202 = vadd.f32 %v945, %v1201
      %v1203 = vpop.f32.mrf.mxu0
      %v1204 = vadd.f32 %v947, %v1203
      %1205 = vmatprep.mubr.f32.mxu0 %v440
      %1206 = vmatmul.mubr.f32.gmra.mxu0 %v439
      %v1207 = vpop.f32.mrf.mxu0
      %v1208 = vadd.f32 %v951, %v1207
      %v1209 = vpop.f32.mrf.mxu0
      %v1210 = vadd.f32 %v953, %v1209
      %1211 = vmatprep.mubr.f32.mxu0 %v445
      %1212 = vmatmul.mubr.f32.gmra.mxu0 %v444
      %v1213 = vpop.f32.mrf.mxu0
      %v1214 = vadd.f32 %v957, %v1213
      %v1215 = vpop.f32.mrf.mxu0
      %v1216 = vadd.f32 %v959, %v1215
      %1217 = vmatprep.mubr.f32.mxu0 %v450
      %1218 = vmatmul.mubr.f32.gmra.mxu0 %v449
      %v1219 = vpop.f32.mrf.mxu0
      %v1220 = vadd.f32 %v963, %v1219
      %v1221 = vpop.f32.mrf.mxu0
      %v1222 = vadd.f32 %v965, %v1221
      %1223 = vdwg.mxu0
      %1224 = vmatprep.subr.mxu0 0.0
      %1225 = vmatpush1.msra.mxu0 0.0
      %1226 = vmatprep.subr.mxu0 0.0
      %1227 = vmatpush1.msra.mxu0 0.0
      %1228 = vmatprep.subr.mxu0 0.0
      %1229 = vmatpush1.msra.mxu0 0.0
      %1230 = vmatprep.subr.mxu0 %v708
      %1231 = vmatpush1.msra.mxu0 %v705
      %1232 = vmatprep.subr.mxu0 %v603
      %1233 = vmatpush1.msra.mxu0 %v602
      %1234 = vmatprep.subr.mxu0 %v601
      %1235 = vmatpush1.msra.mxu0 %v600
      %1236 = vmatprep.subr.mxu0 %v599
      %1237 = vmatpush1.msra.mxu0 %v598
      %1238 = vmatprep.subr.mxu0 %v597
      %1239 = vmatpush1.msra.mxu0 %v596
      %1240 = vmatprep.subr.mxu0 %v595
      %1241 = vmatpush1.msra.mxu0 %v594
      %1242 = vmatprep.subr.mxu0 %v593
      %1243 = vmatpush1.msra.mxu0 %v592
      %1244 = vmatprep.subr.mxu0 %v591
      %1245 = vmatpush1.msra.mxu0 %v590
      %1246 = vmatprep.subr.mxu0 %v589
      %1247 = vmatpush1.msra.mxu0 %v588
      %1248 = vmatprep.subr.mxu0 %v587
      %1249 = vmatpush1.msra.mxu0 %v586
      %1250 = vmatprep.subr.mxu0 %v585
      %1251 = vmatpush1.msra.mxu0 %v584
      %1252 = vmatprep.subr.mxu0 %v583
      %1253 = vmatpush1.msra.mxu0 %v582
      %1254 = vmatprep.subr.mxu0 %v581
      %1255 = vmatpush1.msra.mxu0 %v580
      %1256 = vmatprep.subr.mxu0 0.0
      %1257 = vmatpush2.msra.mxu0 0.0
      %1258 = vmatprep.subr.mxu0 0.0
      %1259 = vmatpush2.msra.mxu0 0.0
      %1260 = vmatprep.subr.mxu0 0.0
      %1261 = vmatpush2.msra.mxu0 0.0
      %1262 = vmatprep.subr.mxu0 0.0
      %1263 = vmatpush2.msra.mxu0 0.0
      %1264 = vmatprep.subr.mxu0 0.0
      %1265 = vmatpush2.msra.mxu0 0.0
      %1266 = vmatprep.subr.mxu0 0.0
      %1267 = vmatpush2.msra.mxu0 0.0
      %1268 = vmatprep.subr.mxu0 0.0
      %1269 = vmatpush2.msra.mxu0 0.0
      %1270 = vmatprep.subr.mxu0 0.0
      %1271 = vmatpush2.msra.mxu0 0.0
      %1272 = vmatprep.subr.mxu0 0.0
      %1273 = vmatpush2.msra.mxu0 0.0
      %1274 = vmatprep.subr.mxu0 0.0
      %1275 = vmatpush2.msra.mxu0 0.0
      %1276 = vmatprep.subr.mxu0 0.0
      %1277 = vmatpush2.msra.mxu0 0.0
      %1278 = vmatprep.subr.mxu0 0.0
      %1279 = vmatpush2.msra.mxu0 0.0
      %1280 = vmatprep.subr.mxu0 0.0
      %1281 = vmatpush2.msra.mxu0 0.0
      %1282 = vmatprep.subr.mxu0 0.0
      %1283 = vmatpush2.msra.mxu0 0.0
      %1284 = vmatprep.subr.mxu0 0.0
      %1285 = vmatpush2.msra.mxu0 0.0
      %1286 = vmatprep.subr.mxu0 0.0
      %1287 = vmatpush2.msra.mxu0 0.0
      %1288 = vmatprep.mubr.f32.mxu0 0.0
      %1289 = vmatmul.mubr.f32.gmra.mxu0 %v608
      %v1290 = vpop.f32.mrf.mxu0
      %v1291 = vadd.f32 %v1034, %v1290
      %v1292 = vpop.f32.mrf.mxu0
      %v1293 = vadd.f32 %v1036, %v1292
      %1294 = vmatprep.mubr.f32.mxu0 0.0
      %1295 = vmatmul.mubr.f32.gmra.mxu0 %v611
      %v1296 = vpop.f32.mrf.mxu0
      %v1297 = vadd.f32 %v1040, %v1296
      %v1298 = vpop.f32.mrf.mxu0
      %v1299 = vadd.f32 %v1042, %v1298
      %1300 = vmatprep.mubr.f32.mxu0 0.0
      %1301 = vmatmul.mubr.f32.gmra.mxu0 %v614
      %v1302 = vpop.f32.mrf.mxu0
      %v1303 = vadd.f32 %v1046, %v1302
      %v1304 = vpop.f32.mrf.mxu0
      %v1305 = vadd.f32 %v1048, %v1304
      %1306 = vmatprep.mubr.f32.mxu0 0.0
      %1307 = vmatmul.mubr.f32.gmra.mxu0 %v617
      %v1308 = vpop.f32.mrf.mxu0
      %v1309 = vadd.f32 %v1052, %v1308
      %v1310 = vpop.f32.mrf.mxu0
      %v1311 = vadd.f32 %v1054, %v1310
      %1312 = vmatprep.mubr.f32.mxu0 0.0
      %1313 = vmatmul.mubr.f32.gmra.mxu0 %v620
      %v1314 = vpop.f32.mrf.mxu0
      %v1315 = vadd.f32 %v1058, %v1314
      %v1316 = vpop.f32.mrf.mxu0
      %v1317 = vadd.f32 %v1060, %v1316
      %1318 = vmatprep.mubr.f32.mxu0 0.0
      %1319 = vmatmul.mubr.f32.gmra.mxu0 %v623
      %v1320 = vpop.f32.mrf.mxu0
      %v1321 = vadd.f32 %v1064, %v1320
      %v1322 = vpop.f32.mrf.mxu0
      %v1323 = vadd.f32 %v1066, %v1322
      %1324 = vmatprep.mubr.f32.mxu0 0.0
      %1325 = vmatmul.mubr.f32.gmra.mxu0 %v626
      %v1326 = vpop.f32.mrf.mxu0
      %v1327 = vadd.f32 %v1070, %v1326
      %v1328 = vpop.f32.mrf.mxu0
      %v1329 = vadd.f32 %v1072, %v1328
      %1330 = vmatprep.mubr.f32.mxu0 0.0
      %1331 = vmatmul.mubr.f32.gmra.mxu0 %v629
      %v1332 = vpop.f32.mrf.mxu0
      %v1333 = vadd.f32 %v1076, %v1332
      %v1334 = vpop.f32.mrf.mxu0
      %v1335 = vadd.f32 %v1078, %v1334
      %1336 = vmatprep.mubr.f32.mxu0 0.0
      %1337 = vmatmul.mubr.f32.gmra.mxu0 %v632
      %v1338 = vpop.f32.mrf.mxu0
      %v1339 = vadd.f32 %v1082, %v1338
      %v1340 = vpop.f32.mrf.mxu0
      %v1341 = vadd.f32 %v1084, %v1340
      %1342 = vmatprep.mubr.f32.mxu0 0.0
      %1343 = vmatmul.mubr.f32.gmra.mxu0 %v635
      %v1344 = vpop.f32.mrf.mxu0
      %v1345 = vadd.f32 %v1088, %v1344
      %v1346 = vpop.f32.mrf.mxu0
      %v1347 = vadd.f32 %v1090, %v1346
      %1348 = vmatprep.mubr.f32.mxu0 0.0
      %1349 = vmatmul.mubr.f32.gmra.mxu0 %v638
      %v1350 = vpop.f32.mrf.mxu0
      %v1351 = vadd.f32 %v1094, %v1350
      %v1352 = vpop.f32.mrf.mxu0
      %v1353 = vadd.f32 %v1096, %v1352
      %1354 = vmatprep.mubr.f32.mxu0 0.0
      %1355 = vmatmul.mubr.f32.gmra.mxu0 %v641
      %v1356 = vpop.f32.mrf.mxu0
      %v1357 = vadd.f32 %v1100, %v1356
      %v1358 = vpop.f32.mrf.mxu0
      %v1359 = vadd.f32 %v1102, %v1358
      %1360 = vmatprep.mubr.f32.mxu0 0.0
      %1361 = vmatmul.mubr.f32.gmra.mxu0 %v644
      %v1362 = vpop.f32.mrf.mxu0
      %v1363 = vadd.f32 %v1106, %v1362
      %v1364 = vpop.f32.mrf.mxu0
      %v1365 = vadd.f32 %v1108, %v1364
      %1366 = vmatprep.mubr.f32.mxu0 0.0
      %1367 = vmatmul.mubr.f32.gmra.mxu0 %v647
      %v1368 = vpop.f32.mrf.mxu0
      %v1369 = vadd.f32 %v1112, %v1368
      %v1370 = vpop.f32.mrf.mxu0
      %v1371 = vadd.f32 %v1114, %v1370
      %1372 = vmatprep.mubr.f32.mxu0 0.0
      %1373 = vmatmul.mubr.f32.gmra.mxu0 %v650
      %v1374 = vpop.f32.mrf.mxu0
      %v1375 = vadd.f32 %v1118, %v1374
      %v1376 = vpop.f32.mrf.mxu0
      %v1377 = vadd.f32 %v1120, %v1376
      %1378 = vmatprep.mubr.f32.mxu0 0.0
      %1379 = vmatmul.mubr.f32.gmra.mxu0 %v653
      %v1380 = vpop.f32.mrf.mxu0
      %v1381 = vadd.f32 %v1124, %v1380
      %v1382 = vpop.f32.mrf.mxu0
      %v1383 = vadd.f32 %v1126, %v1382
      %1384 = vmatprep.mubr.f32.mxu0 0.0
      %1385 = vmatmul.mubr.f32.gmra.mxu0 %v656
      %v1386 = vpop.f32.mrf.mxu0
      %v1387 = vadd.f32 %v1130, %v1386
      %v1388 = vpop.f32.mrf.mxu0
      %v1389 = vadd.f32 %v1132, %v1388
      %1390 = vmatprep.mubr.f32.mxu0 0.0
      %1391 = vmatmul.mubr.f32.gmra.mxu0 %v659
      %v1392 = vpop.f32.mrf.mxu0
      %v1393 = vadd.f32 %v1136, %v1392
      %v1394 = vpop.f32.mrf.mxu0
      %v1395 = vadd.f32 %v1138, %v1394
      %1396 = vmatprep.mubr.f32.mxu0 0.0
      %1397 = vmatmul.mubr.f32.gmra.mxu0 %v662
      %v1398 = vpop.f32.mrf.mxu0
      %v1399 = vadd.f32 %v1142, %v1398
      %v1400 = vpop.f32.mrf.mxu0
      %v1401 = vadd.f32 %v1144, %v1400
      %1402 = vmatprep.mubr.f32.mxu0 0.0
      %1403 = vmatmul.mubr.f32.gmra.mxu0 %v665
      %v1404 = vpop.f32.mrf.mxu0
      %v1405 = vadd.f32 %v1148, %v1404
      %v1406 = vpop.f32.mrf.mxu0
      %v1407 = vadd.f32 %v1150, %v1406
      %1408 = vmatprep.mubr.f32.mxu0 0.0
      %1409 = vmatmul.mubr.f32.gmra.mxu0 %v668
      %v1410 = vpop.f32.mrf.mxu0
      %v1411 = vadd.f32 %v1154, %v1410
      %v1412 = vpop.f32.mrf.mxu0
      %v1413 = vadd.f32 %v1156, %v1412
      %1414 = vmatprep.mubr.f32.mxu0 0.0
      %1415 = vmatmul.mubr.f32.gmra.mxu0 %v671
      %v1416 = vpop.f32.mrf.mxu0
      %v1417 = vadd.f32 %v1160, %v1416
      %v1418 = vpop.f32.mrf.mxu0
      %v1419 = vadd.f32 %v1162, %v1418
      %1420 = vmatprep.mubr.f32.mxu0 0.0
      %1421 = vmatmul.mubr.f32.gmra.mxu0 %v674
      %v1422 = vpop.f32.mrf.mxu0
      %v1423 = vadd.f32 %v1166, %v1422
      %v1424 = vpop.f32.mrf.mxu0
      %v1425 = vadd.f32 %v1168, %v1424
      %1426 = vmatprep.mubr.f32.mxu0 0.0
      %1427 = vmatmul.mubr.f32.gmra.mxu0 %v677
      %v1428 = vpop.f32.mrf.mxu0
      %v1429 = vadd.f32 %v1172, %v1428
      %v1430 = vpop.f32.mrf.mxu0
      %v1431 = vadd.f32 %v1174, %v1430
      %1432 = vmatprep.mubr.f32.mxu0 0.0
      %1433 = vmatmul.mubr.f32.gmra.mxu0 %v680
      %v1434 = vpop.f32.mrf.mxu0
      %v1435 = vadd.f32 %v1178, %v1434
      %v1436 = vpop.f32.mrf.mxu0
      %v1437 = vadd.f32 %v1180, %v1436
      %1438 = vmatprep.mubr.f32.mxu0 0.0
      %1439 = vmatmul.mubr.f32.gmra.mxu0 %v683
      %v1440 = vpop.f32.mrf.mxu0
      %v1441 = vadd.f32 %v1184, %v1440
      %v1442 = vpop.f32.mrf.mxu0
      %v1443 = vadd.f32 %v1186, %v1442
      %1444 = vmatprep.mubr.f32.mxu0 0.0
      %1445 = vmatmul.mubr.f32.gmra.mxu0 %v686
      %v1446 = vpop.f32.mrf.mxu0
      %v1447 = vadd.f32 %v1190, %v1446
      %v1448 = vpop.f32.mrf.mxu0
      %v1449 = vadd.f32 %v1192, %v1448
      %1450 = vmatprep.mubr.f32.mxu0 0.0
      %1451 = vmatmul.mubr.f32.gmra.mxu0 %v689
      %v1452 = vpop.f32.mrf.mxu0
      %v1453 = vadd.f32 %v1196, %v1452
      %v1454 = vpop.f32.mrf.mxu0
      %v1455 = vadd.f32 %v1198, %v1454
      %1456 = vmatprep.mubr.f32.mxu0 0.0
      %1457 = vmatmul.mubr.f32.gmra.mxu0 %v692
      %v1458 = vpop.f32.mrf.mxu0
      %v1459 = vadd.f32 %v1202, %v1458
      %v1460 = vpop.f32.mrf.mxu0
      %v1461 = vadd.f32 %v1204, %v1460
      %1462 = vmatprep.mubr.f32.mxu0 0.0
      %1463 = vmatmul.mubr.f32.gmra.mxu0 %v695
      %v1464 = vpop.f32.mrf.mxu0
      %v1465 = vadd.f32 %v1208, %v1464
      %v1466 = vpop.f32.mrf.mxu0
      %v1467 = vadd.f32 %v1210, %v1466
      %1468 = vmatprep.mubr.f32.mxu0 0.0
      %1469 = vmatmul.mubr.f32.gmra.mxu0 %v698
      %v1470 = vpop.f32.mrf.mxu0
      %v1471 = vadd.f32 %v1214, %v1470
      %v1472 = vpop.f32.mrf.mxu0
      %v1473 = vadd.f32 %v1216, %v1472
      %1474 = vmatprep.mubr.f32.mxu0 0.0
      %1475 = vmatmul.mubr.f32.gmra.mxu0 %v701
      %v1476 = vpop.f32.mrf.mxu0
      %v1477 = vadd.f32 %v1220, %v1476
      %v1478 = vpop.f32.mrf.mxu0
      %v1479 = vadd.f32 %v1222, %v1478
      %1480 = vdwg.mxu0
      %v1481 = vld [vmem:[%s281] sm:$0xff]
      %v1482 = vld [vmem:[%s281 + $0x8] sm:$0xff]
      %v1483 = vld [vmem:[%s281 + $0x10] sm:$0xff]
      %v1484 = vld [vmem:[%s281 + $0x18] sm:$0xff]
      %v1485 = vld [vmem:[%s281 + $0x20] sm:$0xff]
      %v1486 = vld [vmem:[%s281 + $0x28] sm:$0xff]
      %v1487 = vld [vmem:[%s281 + $0x30] sm:$0xff]
      %v1488 = vld [vmem:[%s281 + $0x38] sm:$0xff]
      %v1489 = vld [vmem:[%s281 + $0x40] sm:$0xff]
      %v1490 = vld [vmem:[%s281 + $0x48] sm:$0xff]
      %v1491 = vld [vmem:[%s281 + $0x50] sm:$0xff]
      %v1492 = vld [vmem:[%s281 + $0x58] sm:$0xff]
      %v1493 = vld [vmem:[%s281 + $0x60] sm:$0xff]
      %v1494 = vld [vmem:[%s281 + $0x68] sm:$0xff]
      %v1495 = vld [vmem:[%s281 + $0x70] sm:$0xff]
      %v1496 = vld [vmem:[%s281 + $0x78] sm:$0xff]
      %v1497 = vld [vmem:[%s281 + $0x80] sm:$0xff]
      %v1498 = vld [vmem:[%s281 + $0x88] sm:$0xff]
      %v1499 = vld [vmem:[%s281 + $0x90] sm:$0xff]
      %v1500 = vld [vmem:[%s281 + $0x98] sm:$0xff]
      %v1501 = vld [vmem:[%s281 + $0xa0] sm:$0xff]
      %v1502 = vld [vmem:[%s281 + $0xa8] sm:$0xff]
      %v1503 = vld [vmem:[%s281 + $0xb0] sm:$0xff]
      %v1504 = vld [vmem:[%s281 + $0xb8] sm:$0xff]
      %v1505 = vld [vmem:[%s281 + $0xc0] sm:$0xff]
      %v1506 = vld [vmem:[%s281 + $0xc8] sm:$0xff]
      %v1507 = vld [vmem:[%s281 + $0xd0] sm:$0xff]
      %v1508 = vld [vmem:[%s281 + $0xd8] sm:$0xff]
      %v1509 = vld [vmem:[%s281 + $0xe0] sm:$0xff]
      %v1510 = vld [vmem:[%s281 + $0xe8] sm:$0xff]
      %v1511 = vld [vmem:[%s281 + $0xf0] sm:$0xff]
      %v1512 = vld [vmem:[%s281 + $0xf8] sm:$0xff]
      %v1513 = vld [vmem:[%s286] sm:$0xff]
      %v1514 = vld [vmem:[%s286 + $0x8] sm:$0xff]
      %v1515 = vld [vmem:[%s286 + $0x10] sm:$0xff]
      %v1516 = vld [vmem:[%s286 + $0x18] sm:$0xff]
      %v1517 = vld [vmem:[%s286 + $0x20] sm:$0xff]
      %v1518 = vld [vmem:[%s286 + $0x28] sm:$0xff]
      %v1519 = vld [vmem:[%s286 + $0x30] sm:$0xff]
      %v1520 = vld [vmem:[%s286 + $0x38] sm:$0xff]
      %v1521 = vld [vmem:[%s286 + $0x40] sm:$0xff]
      %v1522 = vld [vmem:[%s286 + $0x48] sm:$0xff]
      %v1523 = vld [vmem:[%s286 + $0x50] sm:$0xff]
      %v1524 = vld [vmem:[%s286 + $0x58] sm:$0xff]
      %v1525 = vld [vmem:[%s286 + $0x60] sm:$0xff]
      %v1526 = vld [vmem:[%s286 + $0x68] sm:$0xff]
      %v1527 = vld [vmem:[%s286 + $0x70] sm:$0xff]
      %v1528 = vld [vmem:[%s286 + $0x78] sm:$0xff]
      %v1529 = vld [vmem:[%s286 + $0x80] sm:$0xff]
      %v1530 = vld [vmem:[%s286 + $0x88] sm:$0xff]
      %v1531 = vld [vmem:[%s286 + $0x90] sm:$0xff]
      %v1532 = vld [vmem:[%s286 + $0x98] sm:$0xff]
      %v1533 = vld [vmem:[%s286 + $0xa0] sm:$0xff]
      %v1534 = vld [vmem:[%s286 + $0xa8] sm:$0xff]
      %v1535 = vld [vmem:[%s286 + $0xb0] sm:$0xff]
      %v1536 = vld [vmem:[%s286 + $0xb8] sm:$0xff]
      %v1537 = vld [vmem:[%s286 + $0xc0] sm:$0xff]
      %v1538 = vld [vmem:[%s286 + $0xc8] sm:$0xff]
      %v1539 = vld [vmem:[%s286 + $0xd0] sm:$0xff]
      %v1540 = vld [vmem:[%s286 + $0xd8] sm:$0xff]
      %v1541 = vld [vmem:[%s286 + $0xe0] sm:$0xff]
      %v1542 = vld [vmem:[%s286 + $0xe8] sm:$0xff]
      %v1543 = vld [vmem:[%s286 + $0xf0] sm:$0xff]
      %v1544 = vld [vmem:[%s286 + $0xf8] sm:$0xff]
      %v1545 = vsub.f32 0.0, %v1291
      %v1546 = vsub.f32 0.0, %v1297
      %v1547 = vsub.f32 0.0, %v1303
      %v1548 = vsub.f32 0.0, %v1309
      %v1549 = vsub.f32 0.0, %v1315
      %v1550 = vsub.f32 0.0, %v1321
      %v1551 = vsub.f32 0.0, %v1327
      %v1552 = vsub.f32 0.0, %v1333
      %v1553 = vsub.f32 0.0, %v1339
      %v1554 = vsub.f32 0.0, %v1345
      %v1555 = vsub.f32 0.0, %v1351
      %v1556 = vsub.f32 0.0, %v1357
      %v1557 = vsub.f32 0.0, %v1363
      %v1558 = vsub.f32 0.0, %v1369
      %v1559 = vsub.f32 0.0, %v1375
      %v1560 = vsub.f32 0.0, %v1381
      %v1561 = vsub.f32 0.0, %v1387
      %v1562 = vsub.f32 0.0, %v1393
      %v1563 = vsub.f32 0.0, %v1399
      %v1564 = vsub.f32 0.0, %v1405
      %v1565 = vsub.f32 0.0, %v1411
      %v1566 = vsub.f32 0.0, %v1417
      %v1567 = vsub.f32 0.0, %v1423
      %v1568 = vsub.f32 0.0, %v1429
      %v1569 = vsub.f32 0.0, %v1435
      %v1570 = vsub.f32 0.0, %v1441
      %v1571 = vsub.f32 0.0, %v1447
      %v1572 = vsub.f32 0.0, %v1453
      %v1573 = vsub.f32 0.0, %v1459
      %v1574 = vsub.f32 0.0, %v1465
      %v1575 = vsub.f32 0.0, %v1471
      %v1576 = vsub.f32 0.0, %v1477
      %v1577 = vmul.f32 %v1545, 1.442695
      %v1578 = vpow.pop %v1577
      %v1579 = vmul.f32 %v1546, 1.442695
      %v1580 = vpow.pop %v1579
      %v1581 = vmul.f32 %v1547, 1.442695
      %v1582 = vpow.pop %v1581
      %v1583 = vmul.f32 %v1548, 1.442695
      %v1584 = vpow.pop %v1583
      %v1585 = vmul.f32 %v1549, 1.442695
      %v1586 = vpow.pop %v1585
      %v1587 = vmul.f32 %v1550, 1.442695
      %v1588 = vpow.pop %v1587
      %v1589 = vmul.f32 %v1551, 1.442695
      %v1590 = vpow.pop %v1589
      %v1591 = vmul.f32 %v1552, 1.442695
      %v1592 = vpow.pop %v1591
      %v1593 = vmul.f32 %v1553, 1.442695
      %v1594 = vpow.pop %v1593
      %v1595 = vmul.f32 %v1554, 1.442695
      %v1596 = vpow.pop %v1595
      %v1597 = vmul.f32 %v1555, 1.442695
      %v1598 = vpow.pop %v1597
      %v1599 = vmul.f32 %v1556, 1.442695
      %v1600 = vpow.pop %v1599
      %v1601 = vmul.f32 %v1557, 1.442695
      %v1602 = vpow.pop %v1601
      %v1603 = vmul.f32 %v1558, 1.442695
      %v1604 = vpow.pop %v1603
      %v1605 = vmul.f32 %v1559, 1.442695
      %v1606 = vpow.pop %v1605
      %v1607 = vmul.f32 %v1560, 1.442695
      %v1608 = vpow.pop %v1607
      %v1609 = vmul.f32 %v1561, 1.442695
      %v1610 = vpow.pop %v1609
      %v1611 = vmul.f32 %v1562, 1.442695
      %v1612 = vpow.pop %v1611
      %v1613 = vmul.f32 %v1563, 1.442695
      %v1614 = vpow.pop %v1613
      %v1615 = vmul.f32 %v1564, 1.442695
      %v1616 = vpow.pop %v1615
      %v1617 = vmul.f32 %v1565, 1.442695
      %v1618 = vpow.pop %v1617
      %v1619 = vmul.f32 %v1566, 1.442695
      %v1620 = vpow.pop %v1619
      %v1621 = vmul.f32 %v1567, 1.442695
      %v1622 = vpow.pop %v1621
      %v1623 = vmul.f32 %v1568, 1.442695
      %v1624 = vpow.pop %v1623
      %v1625 = vmul.f32 %v1569, 1.442695
      %v1626 = vpow.pop %v1625
      %v1627 = vmul.f32 %v1570, 1.442695
      %v1628 = vpow.pop %v1627
      %v1629 = vmul.f32 %v1571, 1.442695
      %v1630 = vpow.pop %v1629
      %v1631 = vmul.f32 %v1572, 1.442695
      %v1632 = vpow.pop %v1631
      %v1633 = vmul.f32 %v1573, 1.442695
      %v1634 = vpow.pop %v1633
      %v1635 = vmul.f32 %v1574, 1.442695
      %v1636 = vpow.pop %v1635
      %v1637 = vmul.f32 %v1575, 1.442695
      %v1638 = vpow.pop %v1637
      %v1639 = vmul.f32 %v1576, 1.442695
      %v1640 = vpow.pop %v1639
      %v1641 = vadd.f32 %v1578, 1.0
      %v1642 = vadd.f32 %v1580, 1.0
      %v1643 = vadd.f32 %v1582, 1.0
      %v1644 = vadd.f32 %v1584, 1.0
      %v1645 = vadd.f32 %v1586, 1.0
      %v1646 = vadd.f32 %v1588, 1.0
      %v1647 = vadd.f32 %v1590, 1.0
      %v1648 = vadd.f32 %v1592, 1.0
      %v1649 = vadd.f32 %v1594, 1.0
      %v1650 = vadd.f32 %v1596, 1.0
      %v1651 = vadd.f32 %v1598, 1.0
      %v1652 = vadd.f32 %v1600, 1.0
      %v1653 = vadd.f32 %v1602, 1.0
      %v1654 = vadd.f32 %v1604, 1.0
      %v1655 = vadd.f32 %v1606, 1.0
      %v1656 = vadd.f32 %v1608, 1.0
      %v1657 = vadd.f32 %v1610, 1.0
      %v1658 = vadd.f32 %v1612, 1.0
      %v1659 = vadd.f32 %v1614, 1.0
      %v1660 = vadd.f32 %v1616, 1.0
      %v1661 = vadd.f32 %v1618, 1.0
      %v1662 = vadd.f32 %v1620, 1.0
      %v1663 = vadd.f32 %v1622, 1.0
      %v1664 = vadd.f32 %v1624, 1.0
      %v1665 = vadd.f32 %v1626, 1.0
      %v1666 = vadd.f32 %v1628, 1.0
      %v1667 = vadd.f32 %v1630, 1.0
      %v1668 = vadd.f32 %v1632, 1.0
      %v1669 = vadd.f32 %v1634, 1.0
      %v1670 = vadd.f32 %v1636, 1.0
      %v1671 = vadd.f32 %v1638, 1.0
      %v1672 = vadd.f32 %v1640, 1.0
      %v1673 = vrcp.pop %v1641
      %v1674 = vmul.f32 1.0, %v1673
      %v1675 = vrcp.pop %v1642
      %v1676 = vmul.f32 1.0, %v1675
      %v1677 = vrcp.pop %v1643
      %v1678 = vmul.f32 1.0, %v1677
      %v1679 = vrcp.pop %v1644
      %v1680 = vmul.f32 1.0, %v1679
      %v1681 = vrcp.pop %v1645
      %v1682 = vmul.f32 1.0, %v1681
      %v1683 = vrcp.pop %v1646
      %v1684 = vmul.f32 1.0, %v1683
      %v1685 = vrcp.pop %v1647
      %v1686 = vmul.f32 1.0, %v1685
      %v1687 = vrcp.pop %v1648
      %v1688 = vmul.f32 1.0, %v1687
      %v1689 = vrcp.pop %v1649
      %v1690 = vmul.f32 1.0, %v1689
      %v1691 = vrcp.pop %v1650
      %v1692 = vmul.f32 1.0, %v1691
      %v1693 = vrcp.pop %v1651
      %v1694 = vmul.f32 1.0, %v1693
      %v1695 = vrcp.pop %v1652
      %v1696 = vmul.f32 1.0, %v1695
      %v1697 = vrcp.pop %v1653
      %v1698 = vmul.f32 1.0, %v1697
      %v1699 = vrcp.pop %v1654
      %v1700 = vmul.f32 1.0, %v1699
      %v1701 = vrcp.pop %v1655
      %v1702 = vmul.f32 1.0, %v1701
      %v1703 = vrcp.pop %v1656
      %v1704 = vmul.f32 1.0, %v1703
      %v1705 = vrcp.pop %v1657
      %v1706 = vmul.f32 1.0, %v1705
      %v1707 = vrcp.pop %v1658
      %v1708 = vmul.f32 1.0, %v1707
      %v1709 = vrcp.pop %v1659
      %v1710 = vmul.f32 1.0, %v1709
      %v1711 = vrcp.pop %v1660
      %v1712 = vmul.f32 1.0, %v1711
      %v1713 = vrcp.pop %v1661
      %v1714 = vmul.f32 1.0, %v1713
      %v1715 = vrcp.pop %v1662
      %v1716 = vmul.f32 1.0, %v1715
      %v1717 = vrcp.pop %v1663
      %v1718 = vmul.f32 1.0, %v1717
      %v1719 = vrcp.pop %v1664
      %v1720 = vmul.f32 1.0, %v1719
      %v1721 = vrcp.pop %v1665
      %v1722 = vmul.f32 1.0, %v1721
      %v1723 = vrcp.pop %v1666
      %v1724 = vmul.f32 1.0, %v1723
      %v1725 = vrcp.pop %v1667
      %v1726 = vmul.f32 1.0, %v1725
      %v1727 = vrcp.pop %v1668
      %v1728 = vmul.f32 1.0, %v1727
      %v1729 = vrcp.pop %v1669
      %v1730 = vmul.f32 1.0, %v1729
      %v1731 = vrcp.pop %v1670
      %v1732 = vmul.f32 1.0, %v1731
      %v1733 = vrcp.pop %v1671
      %v1734 = vmul.f32 1.0, %v1733
      %v1735 = vrcp.pop %v1672
      %v1736 = vmul.f32 1.0, %v1735
      %v1737 = vadd.f32 %v1291, 1.0
      %v1738 = vadd.f32 %v1297, 1.0
      %v1739 = vadd.f32 %v1303, 1.0
      %v1740 = vadd.f32 %v1309, 1.0
      %v1741 = vadd.f32 %v1315, 1.0
      %v1742 = vadd.f32 %v1321, 1.0
      %v1743 = vadd.f32 %v1327, 1.0
      %v1744 = vadd.f32 %v1333, 1.0
      %v1745 = vadd.f32 %v1339, 1.0
      %v1746 = vadd.f32 %v1345, 1.0
      %v1747 = vadd.f32 %v1351, 1.0
      %v1748 = vadd.f32 %v1357, 1.0
      %v1749 = vadd.f32 %v1363, 1.0
      %v1750 = vadd.f32 %v1369, 1.0
      %v1751 = vadd.f32 %v1375, 1.0
      %v1752 = vadd.f32 %v1381, 1.0
      %v1753 = vadd.f32 %v1387, 1.0
      %v1754 = vadd.f32 %v1393, 1.0
      %v1755 = vadd.f32 %v1399, 1.0
      %v1756 = vadd.f32 %v1405, 1.0
      %v1757 = vadd.f32 %v1411, 1.0
      %v1758 = vadd.f32 %v1417, 1.0
      %v1759 = vadd.f32 %v1423, 1.0
      %v1760 = vadd.f32 %v1429, 1.0
      %v1761 = vadd.f32 %v1435, 1.0
      %v1762 = vadd.f32 %v1441, 1.0
      %v1763 = vadd.f32 %v1447, 1.0
      %v1764 = vadd.f32 %v1453, 1.0
      %v1765 = vadd.f32 %v1459, 1.0
      %v1766 = vadd.f32 %v1465, 1.0
      %v1767 = vadd.f32 %v1471, 1.0
      %v1768 = vadd.f32 %v1477, 1.0
      %v1769 = vsub.f32 0.0, %v1737
      %v1770 = vsub.f32 0.0, %v1738
      %v1771 = vsub.f32 0.0, %v1739
      %v1772 = vsub.f32 0.0, %v1740
      %v1773 = vsub.f32 0.0, %v1741
      %v1774 = vsub.f32 0.0, %v1742
      %v1775 = vsub.f32 0.0, %v1743
      %v1776 = vsub.f32 0.0, %v1744
      %v1777 = vsub.f32 0.0, %v1745
      %v1778 = vsub.f32 0.0, %v1746
      %v1779 = vsub.f32 0.0, %v1747
      %v1780 = vsub.f32 0.0, %v1748
      %v1781 = vsub.f32 0.0, %v1749
      %v1782 = vsub.f32 0.0, %v1750
      %v1783 = vsub.f32 0.0, %v1751
      %v1784 = vsub.f32 0.0, %v1752
      %v1785 = vsub.f32 0.0, %v1753
      %v1786 = vsub.f32 0.0, %v1754
      %v1787 = vsub.f32 0.0, %v1755
      %v1788 = vsub.f32 0.0, %v1756
      %v1789 = vsub.f32 0.0, %v1757
      %v1790 = vsub.f32 0.0, %v1758
      %v1791 = vsub.f32 0.0, %v1759
      %v1792 = vsub.f32 0.0, %v1760
      %v1793 = vsub.f32 0.0, %v1761
      %v1794 = vsub.f32 0.0, %v1762
      %v1795 = vsub.f32 0.0, %v1763
      %v1796 = vsub.f32 0.0, %v1764
      %v1797 = vsub.f32 0.0, %v1765
      %v1798 = vsub.f32 0.0, %v1766
      %v1799 = vsub.f32 0.0, %v1767
      %v1800 = vsub.f32 0.0, %v1768
      %v1801 = vmul.f32 %v1769, 1.442695
      %v1802 = vpow.pop %v1801
      %v1803 = vmul.f32 %v1770, 1.442695
      %v1804 = vpow.pop %v1803
      %v1805 = vmul.f32 %v1771, 1.442695
      %v1806 = vpow.pop %v1805
      %v1807 = vmul.f32 %v1772, 1.442695
      %v1808 = vpow.pop %v1807
      %v1809 = vmul.f32 %v1773, 1.442695
      %v1810 = vpow.pop %v1809
      %v1811 = vmul.f32 %v1774, 1.442695
      %v1812 = vpow.pop %v1811
      %v1813 = vmul.f32 %v1775, 1.442695
      %v1814 = vpow.pop %v1813
      %v1815 = vmul.f32 %v1776, 1.442695
      %v1816 = vpow.pop %v1815
      %v1817 = vmul.f32 %v1777, 1.442695
      %v1818 = vpow.pop %v1817
      %v1819 = vmul.f32 %v1778, 1.442695
      %v1820 = vpow.pop %v1819
      %v1821 = vmul.f32 %v1779, 1.442695
      %v1822 = vpow.pop %v1821
      %v1823 = vmul.f32 %v1780, 1.442695
      %v1824 = vpow.pop %v1823
      %v1825 = vmul.f32 %v1781, 1.442695
      %v1826 = vpow.pop %v1825
      %v1827 = vmul.f32 %v1782, 1.442695
      %v1828 = vpow.pop %v1827
      %v1829 = vmul.f32 %v1783, 1.442695
      %v1830 = vpow.pop %v1829
      %v1831 = vmul.f32 %v1784, 1.442695
      %v1832 = vpow.pop %v1831
      %v1833 = vmul.f32 %v1785, 1.442695
      %v1834 = vpow.pop %v1833
      %v1835 = vmul.f32 %v1786, 1.442695
      %v1836 = vpow.pop %v1835
      %v1837 = vmul.f32 %v1787, 1.442695
      %v1838 = vpow.pop %v1837
      %v1839 = vmul.f32 %v1788, 1.442695
      %v1840 = vpow.pop %v1839
      %v1841 = vmul.f32 %v1789, 1.442695
      %v1842 = vpow.pop %v1841
      %v1843 = vmul.f32 %v1790, 1.442695
      %v1844 = vpow.pop %v1843
      %v1845 = vmul.f32 %v1791, 1.442695
      %v1846 = vpow.pop %v1845
      %v1847 = vmul.f32 %v1792, 1.442695
      %v1848 = vpow.pop %v1847
      %v1849 = vmul.f32 %v1793, 1.442695
      %v1850 = vpow.pop %v1849
      %v1851 = vmul.f32 %v1794, 1.442695
      %v1852 = vpow.pop %v1851
      %v1853 = vmul.f32 %v1795, 1.442695
      %v1854 = vpow.pop %v1853
      %v1855 = vmul.f32 %v1796, 1.442695
      %v1856 = vpow.pop %v1855
      %v1857 = vmul.f32 %v1797, 1.442695
      %v1858 = vpow.pop %v1857
      %v1859 = vmul.f32 %v1798, 1.442695
      %v1860 = vpow.pop %v1859
      %v1861 = vmul.f32 %v1799, 1.442695
      %v1862 = vpow.pop %v1861
      %v1863 = vmul.f32 %v1800, 1.442695
      %v1864 = vpow.pop %v1863
      %v1865 = vadd.f32 %v1802, 1.0
      %v1866 = vadd.f32 %v1804, 1.0
      %v1867 = vadd.f32 %v1806, 1.0
      %v1868 = vadd.f32 %v1808, 1.0
      %v1869 = vadd.f32 %v1810, 1.0
      %v1870 = vadd.f32 %v1812, 1.0
      %v1871 = vadd.f32 %v1814, 1.0
      %v1872 = vadd.f32 %v1816, 1.0
      %v1873 = vadd.f32 %v1818, 1.0
      %v1874 = vadd.f32 %v1820, 1.0
      %v1875 = vadd.f32 %v1822, 1.0
      %v1876 = vadd.f32 %v1824, 1.0
      %v1877 = vadd.f32 %v1826, 1.0
      %v1878 = vadd.f32 %v1828, 1.0
      %v1879 = vadd.f32 %v1830, 1.0
      %v1880 = vadd.f32 %v1832, 1.0
      %v1881 = vadd.f32 %v1834, 1.0
      %v1882 = vadd.f32 %v1836, 1.0
      %v1883 = vadd.f32 %v1838, 1.0
      %v1884 = vadd.f32 %v1840, 1.0
      %v1885 = vadd.f32 %v1842, 1.0
      %v1886 = vadd.f32 %v1844, 1.0
      %v1887 = vadd.f32 %v1846, 1.0
      %v1888 = vadd.f32 %v1848, 1.0
      %v1889 = vadd.f32 %v1850, 1.0
      %v1890 = vadd.f32 %v1852, 1.0
      %v1891 = vadd.f32 %v1854, 1.0
      %v1892 = vadd.f32 %v1856, 1.0
      %v1893 = vadd.f32 %v1858, 1.0
      %v1894 = vadd.f32 %v1860, 1.0
      %v1895 = vadd.f32 %v1862, 1.0
      %v1896 = vadd.f32 %v1864, 1.0
      %v1897 = vrcp.pop %v1865
      %v1898 = vmul.f32 1.0, %v1897
      %v1899 = vrcp.pop %v1866
      %v1900 = vmul.f32 1.0, %v1899
      %v1901 = vrcp.pop %v1867
      %v1902 = vmul.f32 1.0, %v1901
      %v1903 = vrcp.pop %v1868
      %v1904 = vmul.f32 1.0, %v1903
      %v1905 = vrcp.pop %v1869
      %v1906 = vmul.f32 1.0, %v1905
      %v1907 = vrcp.pop %v1870
      %v1908 = vmul.f32 1.0, %v1907
      %v1909 = vrcp.pop %v1871
      %v1910 = vmul.f32 1.0, %v1909
      %v1911 = vrcp.pop %v1872
      %v1912 = vmul.f32 1.0, %v1911
      %v1913 = vrcp.pop %v1873
      %v1914 = vmul.f32 1.0, %v1913
      %v1915 = vrcp.pop %v1874
      %v1916 = vmul.f32 1.0, %v1915
      %v1917 = vrcp.pop %v1875
      %v1918 = vmul.f32 1.0, %v1917
      %v1919 = vrcp.pop %v1876
      %v1920 = vmul.f32 1.0, %v1919
      %v1921 = vrcp.pop %v1877
      %v1922 = vmul.f32 1.0, %v1921
      %v1923 = vrcp.pop %v1878
      %v1924 = vmul.f32 1.0, %v1923
      %v1925 = vrcp.pop %v1879
      %v1926 = vmul.f32 1.0, %v1925
      %v1927 = vrcp.pop %v1880
      %v1928 = vmul.f32 1.0, %v1927
      %v1929 = vrcp.pop %v1881
      %v1930 = vmul.f32 1.0, %v1929
      %v1931 = vrcp.pop %v1882
      %v1932 = vmul.f32 1.0, %v1931
      %v1933 = vrcp.pop %v1883
      %v1934 = vmul.f32 1.0, %v1933
      %v1935 = vrcp.pop %v1884
      %v1936 = vmul.f32 1.0, %v1935
      %v1937 = vrcp.pop %v1885
      %v1938 = vmul.f32 1.0, %v1937
      %v1939 = vrcp.pop %v1886
      %v1940 = vmul.f32 1.0, %v1939
      %v1941 = vrcp.pop %v1887
      %v1942 = vmul.f32 1.0, %v1941
      %v1943 = vrcp.pop %v1888
      %v1944 = vmul.f32 1.0, %v1943
      %v1945 = vrcp.pop %v1889
      %v1946 = vmul.f32 1.0, %v1945
      %v1947 = vrcp.pop %v1890
      %v1948 = vmul.f32 1.0, %v1947
      %v1949 = vrcp.pop %v1891
      %v1950 = vmul.f32 1.0, %v1949
      %v1951 = vrcp.pop %v1892
      %v1952 = vmul.f32 1.0, %v1951
      %v1953 = vrcp.pop %v1893
      %v1954 = vmul.f32 1.0, %v1953
      %v1955 = vrcp.pop %v1894
      %v1956 = vmul.f32 1.0, %v1955
      %v1957 = vrcp.pop %v1895
      %v1958 = vmul.f32 1.0, %v1957
      %v1959 = vrcp.pop %v1896
      %v1960 = vmul.f32 1.0, %v1959
      %v1961 = vtanh.pop %v1291
      %v1962 = vtanh.pop %v1297
      %v1963 = vtanh.pop %v1303
      %v1964 = vtanh.pop %v1309
      %v1965 = vtanh.pop %v1315
      %v1966 = vtanh.pop %v1321
      %v1967 = vtanh.pop %v1327
      %v1968 = vtanh.pop %v1333
      %v1969 = vtanh.pop %v1339
      %v1970 = vtanh.pop %v1345
      %v1971 = vtanh.pop %v1351
      %v1972 = vtanh.pop %v1357
      %v1973 = vtanh.pop %v1363
      %v1974 = vtanh.pop %v1369
      %v1975 = vtanh.pop %v1375
      %v1976 = vtanh.pop %v1381
      %v1977 = vtanh.pop %v1387
      %v1978 = vtanh.pop %v1393
      %v1979 = vtanh.pop %v1399
      %v1980 = vtanh.pop %v1405
      %v1981 = vtanh.pop %v1411
      %v1982 = vtanh.pop %v1417
      %v1983 = vtanh.pop %v1423
      %v1984 = vtanh.pop %v1429
      %v1985 = vtanh.pop %v1435
      %v1986 = vtanh.pop %v1441
      %v1987 = vtanh.pop %v1447
      %v1988 = vtanh.pop %v1453
      %v1989 = vtanh.pop %v1459
      %v1990 = vtanh.pop %v1465
      %v1991 = vtanh.pop %v1471
      %v1992 = vtanh.pop %v1477
      %2025 = vrot.lane.b32.xlu0 %v1961, 64
      %v2026 = vpop.permute.xlu0 %2025
      %2027 = vrot.lane.b32.xlu0 %v1962, 64
      %v2028 = vpop.permute.xlu0 %2027
      %2029 = vrot.lane.b32.xlu0 %v1963, 64
      %v2030 = vpop.permute.xlu0 %2029
      %2031 = vrot.lane.b32.xlu0 %v1964, 64
      %v2032 = vpop.permute.xlu0 %2031
      %2033 = vrot.lane.b32.xlu0 %v1965, 64
      %v2034 = vpop.permute.xlu0 %2033
      %2035 = vrot.lane.b32.xlu0 %v1966, 64
      %v2036 = vpop.permute.xlu0 %2035
      %2037 = vrot.lane.b32.xlu0 %v1967, 64
      %v2038 = vpop.permute.xlu0 %2037
      %2039 = vrot.lane.b32.xlu0 %v1968, 64
      %v2040 = vpop.permute.xlu0 %2039
      %2041 = vrot.lane.b32.xlu0 %v1969, 64
      %v2042 = vpop.permute.xlu0 %2041
      %2043 = vrot.lane.b32.xlu0 %v1970, 64
      %v2044 = vpop.permute.xlu0 %2043
      %2045 = vrot.lane.b32.xlu0 %v1971, 64
      %v2046 = vpop.permute.xlu0 %2045
      %2047 = vrot.lane.b32.xlu0 %v1972, 64
      %v2048 = vpop.permute.xlu0 %2047
      %2049 = vrot.lane.b32.xlu0 %v1973, 64
      %v2050 = vpop.permute.xlu0 %2049
      %2051 = vrot.lane.b32.xlu0 %v1974, 64
      %v2052 = vpop.permute.xlu0 %2051
      %2053 = vrot.lane.b32.xlu0 %v1975, 64
      %v2054 = vpop.permute.xlu0 %2053
      %2055 = vrot.lane.b32.xlu0 %v1976, 64
      %v2056 = vpop.permute.xlu0 %2055
      %2057 = vrot.lane.b32.xlu0 %v1977, 64
      %v2058 = vpop.permute.xlu0 %2057
      %2059 = vrot.lane.b32.xlu0 %v1978, 64
      %v2060 = vpop.permute.xlu0 %2059
      %2061 = vrot.lane.b32.xlu0 %v1979, 64
      %v2062 = vpop.permute.xlu0 %2061
      %2063 = vrot.lane.b32.xlu0 %v1980, 64
      %v2064 = vpop.permute.xlu0 %2063
      %2065 = vrot.lane.b32.xlu0 %v1981, 64
      %v2066 = vpop.permute.xlu0 %2065
      %2067 = vrot.lane.b32.xlu0 %v1982, 64
      %v2068 = vpop.permute.xlu0 %2067
      %2069 = vrot.lane.b32.xlu0 %v1983, 64
      %v2070 = vpop.permute.xlu0 %2069
      %2071 = vrot.lane.b32.xlu0 %v1984, 64
      %v2072 = vpop.permute.xlu0 %2071
      %2073 = vrot.lane.b32.xlu0 %v1985, 64
      %v2074 = vpop.permute.xlu0 %2073
      %2075 = vrot.lane.b32.xlu0 %v1986, 64
      %v2076 = vpop.permute.xlu0 %2075
      %2077 = vrot.lane.b32.xlu0 %v1987, 64
      %v2078 = vpop.permute.xlu0 %2077
      %2079 = vrot.lane.b32.xlu0 %v1988, 64
      %v2080 = vpop.permute.xlu0 %2079
      %2081 = vrot.lane.b32.xlu0 %v1989, 64
      %v2082 = vpop.permute.xlu0 %2081
      %2083 = vrot.lane.b32.xlu0 %v1990, 64
      %v2084 = vpop.permute.xlu0 %2083
      %2085 = vrot.lane.b32.xlu0 %v1991, 64
      %v2086 = vpop.permute.xlu0 %2085
      %2087 = vrot.lane.b32.xlu0 %v1992, 64
      %v2088 = vpop.permute.xlu0 %2087
      %v2121 = vmul.f32 %v1674, %v2026
      %v2122 = vmul.f32 %v1676, %v2028
      %v2123 = vmul.f32 %v1678, %v2030
      %v2124 = vmul.f32 %v1680, %v2032
      %v2125 = vmul.f32 %v1682, %v2034
      %v2126 = vmul.f32 %v1684, %v2036
      %v2127 = vmul.f32 %v1686, %v2038
      %v2128 = vmul.f32 %v1688, %v2040
      %v2129 = vmul.f32 %v1690, %v2042
      %v2130 = vmul.f32 %v1692, %v2044
      %v2131 = vmul.f32 %v1694, %v2046
      %v2132 = vmul.f32 %v1696, %v2048
      %v2133 = vmul.f32 %v1698, %v2050
      %v2134 = vmul.f32 %v1700, %v2052
      %v2135 = vmul.f32 %v1702, %v2054
      %v2136 = vmul.f32 %v1704, %v2056
      %v2137 = vmul.f32 %v1706, %v2058
      %v2138 = vmul.f32 %v1708, %v2060
      %v2139 = vmul.f32 %v1710, %v2062
      %v2140 = vmul.f32 %v1712, %v2064
      %v2141 = vmul.f32 %v1714, %v2066
      %v2142 = vmul.f32 %v1716, %v2068
      %v2143 = vmul.f32 %v1718, %v2070
      %v2144 = vmul.f32 %v1720, %v2072
      %v2145 = vmul.f32 %v1722, %v2074
      %v2146 = vmul.f32 %v1724, %v2076
      %v2147 = vmul.f32 %v1726, %v2078
      %v2148 = vmul.f32 %v1728, %v2080
      %v2149 = vmul.f32 %v1730, %v2082
      %v2150 = vmul.f32 %v1732, %v2084
      %v2151 = vmul.f32 %v1734, %v2086
      %v2152 = vmul.f32 %v1736, %v2088
      %2185 = vrot.lane.b32.xlu0 %v1481, 32
      %v2186 = vpop.permute.xlu0 %2185
      %2187 = vrot.lane.b32.xlu0 %v1482, 32
      %v2188 = vpop.permute.xlu0 %2187
      %2189 = vrot.lane.b32.xlu0 %v1483, 32
      %v2190 = vpop.permute.xlu0 %2189
      %2191 = vrot.lane.b32.xlu0 %v1484, 32
      %v2192 = vpop.permute.xlu0 %2191
      %2193 = vrot.lane.b32.xlu0 %v1485, 32
      %v2194 = vpop.permute.xlu0 %2193
      %2195 = vrot.lane.b32.xlu0 %v1486, 32
      %v2196 = vpop.permute.xlu0 %2195
      %2197 = vrot.lane.b32.xlu0 %v1487, 32
      %v2198 = vpop.permute.xlu0 %2197
      %2199 = vrot.lane.b32.xlu0 %v1488, 32
      %v2200 = vpop.permute.xlu0 %2199
      %2201 = vrot.lane.b32.xlu0 %v1489, 32
      %v2202 = vpop.permute.xlu0 %2201
      %2203 = vrot.lane.b32.xlu0 %v1490, 32
      %v2204 = vpop.permute.xlu0 %2203
      %2205 = vrot.lane.b32.xlu0 %v1491, 32
      %v2206 = vpop.permute.xlu0 %2205
      %2207 = vrot.lane.b32.xlu0 %v1492, 32
      %v2208 = vpop.permute.xlu0 %2207
      %2209 = vrot.lane.b32.xlu0 %v1493, 32
      %v2210 = vpop.permute.xlu0 %2209
      %2211 = vrot.lane.b32.xlu0 %v1494, 32
      %v2212 = vpop.permute.xlu0 %2211
      %2213 = vrot.lane.b32.xlu0 %v1495, 32
      %v2214 = vpop.permute.xlu0 %2213
      %2215 = vrot.lane.b32.xlu0 %v1496, 32
      %v2216 = vpop.permute.xlu0 %2215
      %2217 = vrot.lane.b32.xlu0 %v1497, 32
      %v2218 = vpop.permute.xlu0 %2217
      %2219 = vrot.lane.b32.xlu0 %v1498, 32
      %v2220 = vpop.permute.xlu0 %2219
      %2221 = vrot.lane.b32.xlu0 %v1499, 32
      %v2222 = vpop.permute.xlu0 %2221
      %2223 = vrot.lane.b32.xlu0 %v1500, 32
      %v2224 = vpop.permute.xlu0 %2223
      %2225 = vrot.lane.b32.xlu0 %v1501, 32
      %v2226 = vpop.permute.xlu0 %2225
      %2227 = vrot.lane.b32.xlu0 %v1502, 32
      %v2228 = vpop.permute.xlu0 %2227
      %2229 = vrot.lane.b32.xlu0 %v1503, 32
      %v2230 = vpop.permute.xlu0 %2229
      %2231 = vrot.lane.b32.xlu0 %v1504, 32
      %v2232 = vpop.permute.xlu0 %2231
      %2233 = vrot.lane.b32.xlu0 %v1505, 32
      %v2234 = vpop.permute.xlu0 %2233
      %2235 = vrot.lane.b32.xlu0 %v1506, 32
      %v2236 = vpop.permute.xlu0 %2235
      %2237 = vrot.lane.b32.xlu0 %v1507, 32
      %v2238 = vpop.permute.xlu0 %2237
      %2239 = vrot.lane.b32.xlu0 %v1508, 32
      %v2240 = vpop.permute.xlu0 %2239
      %2241 = vrot.lane.b32.xlu0 %v1509, 32
      %v2242 = vpop.permute.xlu0 %2241
      %2243 = vrot.lane.b32.xlu0 %v1510, 32
      %v2244 = vpop.permute.xlu0 %2243
      %2245 = vrot.lane.b32.xlu0 %v1511, 32
      %v2246 = vpop.permute.xlu0 %2245
      %2247 = vrot.lane.b32.xlu0 %v1512, 32
      %v2248 = vpop.permute.xlu0 %2247
      %v2281 = vmul.f32 %v1898, %v2186
      %v2282 = vmul.f32 %v1900, %v2188
      %v2283 = vmul.f32 %v1902, %v2190
      %v2284 = vmul.f32 %v1904, %v2192
      %v2285 = vmul.f32 %v1906, %v2194
      %v2286 = vmul.f32 %v1908, %v2196
      %v2287 = vmul.f32 %v1910, %v2198
      %v2288 = vmul.f32 %v1912, %v2200
      %v2289 = vmul.f32 %v1914, %v2202
      %v2290 = vmul.f32 %v1916, %v2204
      %v2291 = vmul.f32 %v1918, %v2206
      %v2292 = vmul.f32 %v1920, %v2208
      %v2293 = vmul.f32 %v1922, %v2210
      %v2294 = vmul.f32 %v1924, %v2212
      %v2295 = vmul.f32 %v1926, %v2214
      %v2296 = vmul.f32 %v1928, %v2216
      %v2297 = vmul.f32 %v1930, %v2218
      %v2298 = vmul.f32 %v1932, %v2220
      %v2299 = vmul.f32 %v1934, %v2222
      %v2300 = vmul.f32 %v1936, %v2224
      %v2301 = vmul.f32 %v1938, %v2226
      %v2302 = vmul.f32 %v1940, %v2228
      %v2303 = vmul.f32 %v1942, %v2230
      %v2304 = vmul.f32 %v1944, %v2232
      %v2305 = vmul.f32 %v1946, %v2234
      %v2306 = vmul.f32 %v1948, %v2236
      %v2307 = vmul.f32 %v1950, %v2238
      %v2308 = vmul.f32 %v1952, %v2240
      %v2309 = vmul.f32 %v1954, %v2242
      %v2310 = vmul.f32 %v1956, %v2244
      %v2311 = vmul.f32 %v1958, %v2246
      %v2312 = vmul.f32 %v1960, %v2248
      %2345 = vrot.lane.b32.xlu0 %v2121, 32
      %v2346 = vpop.permute.xlu0 %2345
      %2347 = vrot.lane.b32.xlu0 %v2122, 32
      %v2348 = vpop.permute.xlu0 %2347
      %2349 = vrot.lane.b32.xlu0 %v2123, 32
      %v2350 = vpop.permute.xlu0 %2349
      %2351 = vrot.lane.b32.xlu0 %v2124, 32
      %v2352 = vpop.permute.xlu0 %2351
      %2353 = vrot.lane.b32.xlu0 %v2125, 32
      %v2354 = vpop.permute.xlu0 %2353
      %2355 = vrot.lane.b32.xlu0 %v2126, 32
      %v2356 = vpop.permute.xlu0 %2355
      %2357 = vrot.lane.b32.xlu0 %v2127, 32
      %v2358 = vpop.permute.xlu0 %2357
      %2359 = vrot.lane.b32.xlu0 %v2128, 32
      %v2360 = vpop.permute.xlu0 %2359
      %2361 = vrot.lane.b32.xlu0 %v2129, 32
      %v2362 = vpop.permute.xlu0 %2361
      %2363 = vrot.lane.b32.xlu0 %v2130, 32
      %v2364 = vpop.permute.xlu0 %2363
      %2365 = vrot.lane.b32.xlu0 %v2131, 32
      %v2366 = vpop.permute.xlu0 %2365
      %2367 = vrot.lane.b32.xlu0 %v2132, 32
      %v2368 = vpop.permute.xlu0 %2367
      %2369 = vrot.lane.b32.xlu0 %v2133, 32
      %v2370 = vpop.permute.xlu0 %2369
      %2371 = vrot.lane.b32.xlu0 %v2134, 32
      %v2372 = vpop.permute.xlu0 %2371
      %2373 = vrot.lane.b32.xlu0 %v2135, 32
      %v2374 = vpop.permute.xlu0 %2373
      %2375 = vrot.lane.b32.xlu0 %v2136, 32
      %v2376 = vpop.permute.xlu0 %2375
      %2377 = vrot.lane.b32.xlu0 %v2137, 32
      %v2378 = vpop.permute.xlu0 %2377
      %2379 = vrot.lane.b32.xlu0 %v2138, 32
      %v2380 = vpop.permute.xlu0 %2379
      %2381 = vrot.lane.b32.xlu0 %v2139, 32
      %v2382 = vpop.permute.xlu0 %2381
      %2383 = vrot.lane.b32.xlu0 %v2140, 32
      %v2384 = vpop.permute.xlu0 %2383
      %2385 = vrot.lane.b32.xlu0 %v2141, 32
      %v2386 = vpop.permute.xlu0 %2385
      %2387 = vrot.lane.b32.xlu0 %v2142, 32
      %v2388 = vpop.permute.xlu0 %2387
      %2389 = vrot.lane.b32.xlu0 %v2143, 32
      %v2390 = vpop.permute.xlu0 %2389
      %2391 = vrot.lane.b32.xlu0 %v2144, 32
      %v2392 = vpop.permute.xlu0 %2391
      %2393 = vrot.lane.b32.xlu0 %v2145, 32
      %v2394 = vpop.permute.xlu0 %2393
      %2395 = vrot.lane.b32.xlu0 %v2146, 32
      %v2396 = vpop.permute.xlu0 %2395
      %2397 = vrot.lane.b32.xlu0 %v2147, 32
      %v2398 = vpop.permute.xlu0 %2397
      %2399 = vrot.lane.b32.xlu0 %v2148, 32
      %v2400 = vpop.permute.xlu0 %2399
      %2401 = vrot.lane.b32.xlu0 %v2149, 32
      %v2402 = vpop.permute.xlu0 %2401
      %2403 = vrot.lane.b32.xlu0 %v2150, 32
      %v2404 = vpop.permute.xlu0 %2403
      %2405 = vrot.lane.b32.xlu0 %v2151, 32
      %v2406 = vpop.permute.xlu0 %2405
      %2407 = vrot.lane.b32.xlu0 %v2152, 32
      %v2408 = vpop.permute.xlu0 %2407
      %v2441 = vadd.f32 %v2281, %v2346
      %v2442 = vadd.f32 %v2282, %v2348
      %v2443 = vadd.f32 %v2283, %v2350
      %v2444 = vadd.f32 %v2284, %v2352
      %v2445 = vadd.f32 %v2285, %v2354
      %v2446 = vadd.f32 %v2286, %v2356
      %v2447 = vadd.f32 %v2287, %v2358
      %v2448 = vadd.f32 %v2288, %v2360
      %v2449 = vadd.f32 %v2289, %v2362
      %v2450 = vadd.f32 %v2290, %v2364
      %v2451 = vadd.f32 %v2291, %v2366
      %v2452 = vadd.f32 %v2292, %v2368
      %v2453 = vadd.f32 %v2293, %v2370
      %v2454 = vadd.f32 %v2294, %v2372
      %v2455 = vadd.f32 %v2295, %v2374
      %v2456 = vadd.f32 %v2296, %v2376
      %v2457 = vadd.f32 %v2297, %v2378
      %v2458 = vadd.f32 %v2298, %v2380
      %v2459 = vadd.f32 %v2299, %v2382
      %v2460 = vadd.f32 %v2300, %v2384
      %v2461 = vadd.f32 %v2301, %v2386
      %v2462 = vadd.f32 %v2302, %v2388
      %v2463 = vadd.f32 %v2303, %v2390
      %v2464 = vadd.f32 %v2304, %v2392
      %v2465 = vadd.f32 %v2305, %v2394
      %v2466 = vadd.f32 %v2306, %v2396
      %v2467 = vadd.f32 %v2307, %v2398
      %v2468 = vadd.f32 %v2308, %v2400
      %v2469 = vadd.f32 %v2309, %v2402
      %v2470 = vadd.f32 %v2310, %v2404
      %v2471 = vadd.f32 %v2311, %v2406
      %v2472 = vadd.f32 %v2312, %v2408
      %v2473 = vadd.f32 %v1293, 1.0
      %v2474 = vadd.f32 %v1299, 1.0
      %v2475 = vadd.f32 %v1305, 1.0
      %v2476 = vadd.f32 %v1311, 1.0
      %v2477 = vadd.f32 %v1317, 1.0
      %v2478 = vadd.f32 %v1323, 1.0
      %v2479 = vadd.f32 %v1329, 1.0
      %v2480 = vadd.f32 %v1335, 1.0
      %v2481 = vadd.f32 %v1341, 1.0
      %v2482 = vadd.f32 %v1347, 1.0
      %v2483 = vadd.f32 %v1353, 1.0
      %v2484 = vadd.f32 %v1359, 1.0
      %v2485 = vadd.f32 %v1365, 1.0
      %v2486 = vadd.f32 %v1371, 1.0
      %v2487 = vadd.f32 %v1377, 1.0
      %v2488 = vadd.f32 %v1383, 1.0
      %v2489 = vadd.f32 %v1389, 1.0
      %v2490 = vadd.f32 %v1395, 1.0
      %v2491 = vadd.f32 %v1401, 1.0
      %v2492 = vadd.f32 %v1407, 1.0
      %v2493 = vadd.f32 %v1413, 1.0
      %v2494 = vadd.f32 %v1419, 1.0
      %v2495 = vadd.f32 %v1425, 1.0
      %v2496 = vadd.f32 %v1431, 1.0
      %v2497 = vadd.f32 %v1437, 1.0
      %v2498 = vadd.f32 %v1443, 1.0
      %v2499 = vadd.f32 %v1449, 1.0
      %v2500 = vadd.f32 %v1455, 1.0
      %v2501 = vadd.f32 %v1461, 1.0
      %v2502 = vadd.f32 %v1467, 1.0
      %v2503 = vadd.f32 %v1473, 1.0
      %v2504 = vadd.f32 %v1479, 1.0
      %v2505 = vsub.f32 0.0, %v2473
      %v2506 = vsub.f32 0.0, %v2474
      %v2507 = vsub.f32 0.0, %v2475
      %v2508 = vsub.f32 0.0, %v2476
      %v2509 = vsub.f32 0.0, %v2477
      %v2510 = vsub.f32 0.0, %v2478
      %v2511 = vsub.f32 0.0, %v2479
      %v2512 = vsub.f32 0.0, %v2480
      %v2513 = vsub.f32 0.0, %v2481
      %v2514 = vsub.f32 0.0, %v2482
      %v2515 = vsub.f32 0.0, %v2483
      %v2516 = vsub.f32 0.0, %v2484
      %v2517 = vsub.f32 0.0, %v2485
      %v2518 = vsub.f32 0.0, %v2486
      %v2519 = vsub.f32 0.0, %v2487
      %v2520 = vsub.f32 0.0, %v2488
      %v2521 = vsub.f32 0.0, %v2489
      %v2522 = vsub.f32 0.0, %v2490
      %v2523 = vsub.f32 0.0, %v2491
      %v2524 = vsub.f32 0.0, %v2492
      %v2525 = vsub.f32 0.0, %v2493
      %v2526 = vsub.f32 0.0, %v2494
      %v2527 = vsub.f32 0.0, %v2495
      %v2528 = vsub.f32 0.0, %v2496
      %v2529 = vsub.f32 0.0, %v2497
      %v2530 = vsub.f32 0.0, %v2498
      %v2531 = vsub.f32 0.0, %v2499
      %v2532 = vsub.f32 0.0, %v2500
      %v2533 = vsub.f32 0.0, %v2501
      %v2534 = vsub.f32 0.0, %v2502
      %v2535 = vsub.f32 0.0, %v2503
      %v2536 = vsub.f32 0.0, %v2504
      %v2537 = vmul.f32 %v2505, 1.442695
      %v2538 = vpow.pop %v2537
      %v2539 = vmul.f32 %v2506, 1.442695
      %v2540 = vpow.pop %v2539
      %v2541 = vmul.f32 %v2507, 1.442695
      %v2542 = vpow.pop %v2541
      %v2543 = vmul.f32 %v2508, 1.442695
      %v2544 = vpow.pop %v2543
      %v2545 = vmul.f32 %v2509, 1.442695
      %v2546 = vpow.pop %v2545
      %v2547 = vmul.f32 %v2510, 1.442695
      %v2548 = vpow.pop %v2547
      %v2549 = vmul.f32 %v2511, 1.442695
      %v2550 = vpow.pop %v2549
      %v2551 = vmul.f32 %v2512, 1.442695
      %v2552 = vpow.pop %v2551
      %v2553 = vmul.f32 %v2513, 1.442695
      %v2554 = vpow.pop %v2553
      %v2555 = vmul.f32 %v2514, 1.442695
      %v2556 = vpow.pop %v2555
      %v2557 = vmul.f32 %v2515, 1.442695
      %v2558 = vpow.pop %v2557
      %v2559 = vmul.f32 %v2516, 1.442695
      %v2560 = vpow.pop %v2559
      %v2561 = vmul.f32 %v2517, 1.442695
      %v2562 = vpow.pop %v2561
      %v2563 = vmul.f32 %v2518, 1.442695
      %v2564 = vpow.pop %v2563
      %v2565 = vmul.f32 %v2519, 1.442695
      %v2566 = vpow.pop %v2565
      %v2567 = vmul.f32 %v2520, 1.442695
      %v2568 = vpow.pop %v2567
      %v2569 = vmul.f32 %v2521, 1.442695
      %v2570 = vpow.pop %v2569
      %v2571 = vmul.f32 %v2522, 1.442695
      %v2572 = vpow.pop %v2571
      %v2573 = vmul.f32 %v2523, 1.442695
      %v2574 = vpow.pop %v2573
      %v2575 = vmul.f32 %v2524, 1.442695
      %v2576 = vpow.pop %v2575
      %v2577 = vmul.f32 %v2525, 1.442695
      %v2578 = vpow.pop %v2577
      %v2579 = vmul.f32 %v2526, 1.442695
      %v2580 = vpow.pop %v2579
      %v2581 = vmul.f32 %v2527, 1.442695
      %v2582 = vpow.pop %v2581
      %v2583 = vmul.f32 %v2528, 1.442695
      %v2584 = vpow.pop %v2583
      %v2585 = vmul.f32 %v2529, 1.442695
      %v2586 = vpow.pop %v2585
      %v2587 = vmul.f32 %v2530, 1.442695
      %v2588 = vpow.pop %v2587
      %v2589 = vmul.f32 %v2531, 1.442695
      %v2590 = vpow.pop %v2589
      %v2591 = vmul.f32 %v2532, 1.442695
      %v2592 = vpow.pop %v2591
      %v2593 = vmul.f32 %v2533, 1.442695
      %v2594 = vpow.pop %v2593
      %v2595 = vmul.f32 %v2534, 1.442695
      %v2596 = vpow.pop %v2595
      %v2597 = vmul.f32 %v2535, 1.442695
      %v2598 = vpow.pop %v2597
      %v2599 = vmul.f32 %v2536, 1.442695
      %v2600 = vpow.pop %v2599
      %v2601 = vadd.f32 %v2538, 1.0
      %v2602 = vadd.f32 %v2540, 1.0
      %v2603 = vadd.f32 %v2542, 1.0
      %v2604 = vadd.f32 %v2544, 1.0
      %v2605 = vadd.f32 %v2546, 1.0
      %v2606 = vadd.f32 %v2548, 1.0
      %v2607 = vadd.f32 %v2550, 1.0
      %v2608 = vadd.f32 %v2552, 1.0
      %v2609 = vadd.f32 %v2554, 1.0
      %v2610 = vadd.f32 %v2556, 1.0
      %v2611 = vadd.f32 %v2558, 1.0
      %v2612 = vadd.f32 %v2560, 1.0
      %v2613 = vadd.f32 %v2562, 1.0
      %v2614 = vadd.f32 %v2564, 1.0
      %v2615 = vadd.f32 %v2566, 1.0
      %v2616 = vadd.f32 %v2568, 1.0
      %v2617 = vadd.f32 %v2570, 1.0
      %v2618 = vadd.f32 %v2572, 1.0
      %v2619 = vadd.f32 %v2574, 1.0
      %v2620 = vadd.f32 %v2576, 1.0
      %v2621 = vadd.f32 %v2578, 1.0
      %v2622 = vadd.f32 %v2580, 1.0
      %v2623 = vadd.f32 %v2582, 1.0
      %v2624 = vadd.f32 %v2584, 1.0
      %v2625 = vadd.f32 %v2586, 1.0
      %v2626 = vadd.f32 %v2588, 1.0
      %v2627 = vadd.f32 %v2590, 1.0
      %v2628 = vadd.f32 %v2592, 1.0
      %v2629 = vadd.f32 %v2594, 1.0
      %v2630 = vadd.f32 %v2596, 1.0
      %v2631 = vadd.f32 %v2598, 1.0
      %v2632 = vadd.f32 %v2600, 1.0
      %v2633 = vrcp.pop %v2601
      %v2634 = vmul.f32 1.0, %v2633
      %v2635 = vrcp.pop %v2602
      %v2636 = vmul.f32 1.0, %v2635
      %v2637 = vrcp.pop %v2603
      %v2638 = vmul.f32 1.0, %v2637
      %v2639 = vrcp.pop %v2604
      %v2640 = vmul.f32 1.0, %v2639
      %v2641 = vrcp.pop %v2605
      %v2642 = vmul.f32 1.0, %v2641
      %v2643 = vrcp.pop %v2606
      %v2644 = vmul.f32 1.0, %v2643
      %v2645 = vrcp.pop %v2607
      %v2646 = vmul.f32 1.0, %v2645
      %v2647 = vrcp.pop %v2608
      %v2648 = vmul.f32 1.0, %v2647
      %v2649 = vrcp.pop %v2609
      %v2650 = vmul.f32 1.0, %v2649
      %v2651 = vrcp.pop %v2610
      %v2652 = vmul.f32 1.0, %v2651
      %v2653 = vrcp.pop %v2611
      %v2654 = vmul.f32 1.0, %v2653
      %v2655 = vrcp.pop %v2612
      %v2656 = vmul.f32 1.0, %v2655
      %v2657 = vrcp.pop %v2613
      %v2658 = vmul.f32 1.0, %v2657
      %v2659 = vrcp.pop %v2614
      %v2660 = vmul.f32 1.0, %v2659
      %v2661 = vrcp.pop %v2615
      %v2662 = vmul.f32 1.0, %v2661
      %v2663 = vrcp.pop %v2616
      %v2664 = vmul.f32 1.0, %v2663
      %v2665 = vrcp.pop %v2617
      %v2666 = vmul.f32 1.0, %v2665
      %v2667 = vrcp.pop %v2618
      %v2668 = vmul.f32 1.0, %v2667
      %v2669 = vrcp.pop %v2619
      %v2670 = vmul.f32 1.0, %v2669
      %v2671 = vrcp.pop %v2620
      %v2672 = vmul.f32 1.0, %v2671
      %v2673 = vrcp.pop %v2621
      %v2674 = vmul.f32 1.0, %v2673
      %v2675 = vrcp.pop %v2622
      %v2676 = vmul.f32 1.0, %v2675
      %v2677 = vrcp.pop %v2623
      %v2678 = vmul.f32 1.0, %v2677
      %v2679 = vrcp.pop %v2624
      %v2680 = vmul.f32 1.0, %v2679
      %v2681 = vrcp.pop %v2625
      %v2682 = vmul.f32 1.0, %v2681
      %v2683 = vrcp.pop %v2626
      %v2684 = vmul.f32 1.0, %v2683
      %v2685 = vrcp.pop %v2627
      %v2686 = vmul.f32 1.0, %v2685
      %v2687 = vrcp.pop %v2628
      %v2688 = vmul.f32 1.0, %v2687
      %v2689 = vrcp.pop %v2629
      %v2690 = vmul.f32 1.0, %v2689
      %v2691 = vrcp.pop %v2630
      %v2692 = vmul.f32 1.0, %v2691
      %v2693 = vrcp.pop %v2631
      %v2694 = vmul.f32 1.0, %v2693
      %v2695 = vrcp.pop %v2632
      %v2696 = vmul.f32 1.0, %v2695
      %v2697 = vtanh.pop %v1293
      %v2698 = vtanh.pop %v1299
      %v2699 = vtanh.pop %v1305
      %v2700 = vtanh.pop %v1311
      %v2701 = vtanh.pop %v1317
      %v2702 = vtanh.pop %v1323
      %v2703 = vtanh.pop %v1329
      %v2704 = vtanh.pop %v1335
      %v2705 = vtanh.pop %v1341
      %v2706 = vtanh.pop %v1347
      %v2707 = vtanh.pop %v1353
      %v2708 = vtanh.pop %v1359
      %v2709 = vtanh.pop %v1365
      %v2710 = vtanh.pop %v1371
      %v2711 = vtanh.pop %v1377
      %v2712 = vtanh.pop %v1383
      %v2713 = vtanh.pop %v1389
      %v2714 = vtanh.pop %v1395
      %v2715 = vtanh.pop %v1401
      %v2716 = vtanh.pop %v1407
      %v2717 = vtanh.pop %v1413
      %v2718 = vtanh.pop %v1419
      %v2719 = vtanh.pop %v1425
      %v2720 = vtanh.pop %v1431
      %v2721 = vtanh.pop %v1437
      %v2722 = vtanh.pop %v1443
      %v2723 = vtanh.pop %v1449
      %v2724 = vtanh.pop %v1455
      %v2725 = vtanh.pop %v1461
      %v2726 = vtanh.pop %v1467
      %v2727 = vtanh.pop %v1473
      %v2728 = vtanh.pop %v1479
      %2761 = vrot.lane.b32.xlu0 %v2697, 64
      %v2762 = vpop.permute.xlu0 %2761
      %2763 = vrot.lane.b32.xlu0 %v2698, 64
      %v2764 = vpop.permute.xlu0 %2763
      %2765 = vrot.lane.b32.xlu0 %v2699, 64
      %v2766 = vpop.permute.xlu0 %2765
      %2767 = vrot.lane.b32.xlu0 %v2700, 64
      %v2768 = vpop.permute.xlu0 %2767
      %2769 = vrot.lane.b32.xlu0 %v2701, 64
      %v2770 = vpop.permute.xlu0 %2769
      %2771 = vrot.lane.b32.xlu0 %v2702, 64
      %v2772 = vpop.permute.xlu0 %2771
      %2773 = vrot.lane.b32.xlu0 %v2703, 64
      %v2774 = vpop.permute.xlu0 %2773
      %2775 = vrot.lane.b32.xlu0 %v2704, 64
      %v2776 = vpop.permute.xlu0 %2775
      %2777 = vrot.lane.b32.xlu0 %v2705, 64
      %v2778 = vpop.permute.xlu0 %2777
      %2779 = vrot.lane.b32.xlu0 %v2706, 64
      %v2780 = vpop.permute.xlu0 %2779
      %2781 = vrot.lane.b32.xlu0 %v2707, 64
      %v2782 = vpop.permute.xlu0 %2781
      %2783 = vrot.lane.b32.xlu0 %v2708, 64
      %v2784 = vpop.permute.xlu0 %2783
      %2785 = vrot.lane.b32.xlu0 %v2709, 64
      %v2786 = vpop.permute.xlu0 %2785
      %2787 = vrot.lane.b32.xlu0 %v2710, 64
      %v2788 = vpop.permute.xlu0 %2787
      %2789 = vrot.lane.b32.xlu0 %v2711, 64
      %v2790 = vpop.permute.xlu0 %2789
      %2791 = vrot.lane.b32.xlu0 %v2712, 64
      %v2792 = vpop.permute.xlu0 %2791
      %2793 = vrot.lane.b32.xlu0 %v2713, 64
      %v2794 = vpop.permute.xlu0 %2793
      %2795 = vrot.lane.b32.xlu0 %v2714, 64
      %v2796 = vpop.permute.xlu0 %2795
      %2797 = vrot.lane.b32.xlu0 %v2715, 64
      %v2798 = vpop.permute.xlu0 %2797
      %2799 = vrot.lane.b32.xlu0 %v2716, 64
      %v2800 = vpop.permute.xlu0 %2799
      %2801 = vrot.lane.b32.xlu0 %v2717, 64
      %v2802 = vpop.permute.xlu0 %2801
      %2803 = vrot.lane.b32.xlu0 %v2718, 64
      %v2804 = vpop.permute.xlu0 %2803
      %2805 = vrot.lane.b32.xlu0 %v2719, 64
      %v2806 = vpop.permute.xlu0 %2805
      %2807 = vrot.lane.b32.xlu0 %v2720, 64
      %v2808 = vpop.permute.xlu0 %2807
      %2809 = vrot.lane.b32.xlu0 %v2721, 64
      %v2810 = vpop.permute.xlu0 %2809
      %2811 = vrot.lane.b32.xlu0 %v2722, 64
      %v2812 = vpop.permute.xlu0 %2811
      %2813 = vrot.lane.b32.xlu0 %v2723, 64
      %v2814 = vpop.permute.xlu0 %2813
      %2815 = vrot.lane.b32.xlu0 %v2724, 64
      %v2816 = vpop.permute.xlu0 %2815
      %2817 = vrot.lane.b32.xlu0 %v2725, 64
      %v2818 = vpop.permute.xlu0 %2817
      %2819 = vrot.lane.b32.xlu0 %v2726, 64
      %v2820 = vpop.permute.xlu0 %2819
      %2821 = vrot.lane.b32.xlu0 %v2727, 64
      %v2822 = vpop.permute.xlu0 %2821
      %2823 = vrot.lane.b32.xlu0 %v2728, 64
      %v2824 = vpop.permute.xlu0 %2823
      %v2857 = vmul.f32 %v1674, %v2762
      %v2858 = vmul.f32 %v1676, %v2764
      %v2859 = vmul.f32 %v1678, %v2766
      %v2860 = vmul.f32 %v1680, %v2768
      %v2861 = vmul.f32 %v1682, %v2770
      %v2862 = vmul.f32 %v1684, %v2772
      %v2863 = vmul.f32 %v1686, %v2774
      %v2864 = vmul.f32 %v1688, %v2776
      %v2865 = vmul.f32 %v1690, %v2778
      %v2866 = vmul.f32 %v1692, %v2780
      %v2867 = vmul.f32 %v1694, %v2782
      %v2868 = vmul.f32 %v1696, %v2784
      %v2869 = vmul.f32 %v1698, %v2786
      %v2870 = vmul.f32 %v1700, %v2788
      %v2871 = vmul.f32 %v1702, %v2790
      %v2872 = vmul.f32 %v1704, %v2792
      %v2873 = vmul.f32 %v1706, %v2794
      %v2874 = vmul.f32 %v1708, %v2796
      %v2875 = vmul.f32 %v1710, %v2798
      %v2876 = vmul.f32 %v1712, %v2800
      %v2877 = vmul.f32 %v1714, %v2802
      %v2878 = vmul.f32 %v1716, %v2804
      %v2879 = vmul.f32 %v1718, %v2806
      %v2880 = vmul.f32 %v1720, %v2808
      %v2881 = vmul.f32 %v1722, %v2810
      %v2882 = vmul.f32 %v1724, %v2812
      %v2883 = vmul.f32 %v1726, %v2814
      %v2884 = vmul.f32 %v1728, %v2816
      %v2885 = vmul.f32 %v1730, %v2818
      %v2886 = vmul.f32 %v1732, %v2820
      %v2887 = vmul.f32 %v1734, %v2822
      %v2888 = vmul.f32 %v1736, %v2824
      %v2889 = vmul.f32 %v2634, %v1513
      %v2890 = vmul.f32 %v2636, %v1514
      %v2891 = vmul.f32 %v2638, %v1515
      %v2892 = vmul.f32 %v2640, %v1516
      %v2893 = vmul.f32 %v2642, %v1517
      %v2894 = vmul.f32 %v2644, %v1518
      %v2895 = vmul.f32 %v2646, %v1519
      %v2896 = vmul.f32 %v2648, %v1520
      %v2897 = vmul.f32 %v2650, %v1521
      %v2898 = vmul.f32 %v2652, %v1522
      %v2899 = vmul.f32 %v2654, %v1523
      %v2900 = vmul.f32 %v2656, %v1524
      %v2901 = vmul.f32 %v2658, %v1525
      %v2902 = vmul.f32 %v2660, %v1526
      %v2903 = vmul.f32 %v2662, %v1527
      %v2904 = vmul.f32 %v2664, %v1528
      %v2905 = vmul.f32 %v2666, %v1529
      %v2906 = vmul.f32 %v2668, %v1530
      %v2907 = vmul.f32 %v2670, %v1531
      %v2908 = vmul.f32 %v2672, %v1532
      %v2909 = vmul.f32 %v2674, %v1533
      %v2910 = vmul.f32 %v2676, %v1534
      %v2911 = vmul.f32 %v2678, %v1535
      %v2912 = vmul.f32 %v2680, %v1536
      %v2913 = vmul.f32 %v2682, %v1537
      %v2914 = vmul.f32 %v2684, %v1538
      %v2915 = vmul.f32 %v2686, %v1539
      %v2916 = vmul.f32 %v2688, %v1540
      %v2917 = vmul.f32 %v2690, %v1541
      %v2918 = vmul.f32 %v2692, %v1542
      %v2919 = vmul.f32 %v2694, %v1543
      %v2920 = vmul.f32 %v2696, %v1544
      %2953 = vrot.lane.b32.xlu0 %v2857, 32
      %v2954 = vpop.permute.xlu0 %2953
      %2955 = vrot.lane.b32.xlu0 %v2858, 32
      %v2956 = vpop.permute.xlu0 %2955
      %2957 = vrot.lane.b32.xlu0 %v2859, 32
      %v2958 = vpop.permute.xlu0 %2957
      %2959 = vrot.lane.b32.xlu0 %v2860, 32
      %v2960 = vpop.permute.xlu0 %2959
      %2961 = vrot.lane.b32.xlu0 %v2861, 32
      %v2962 = vpop.permute.xlu0 %2961
      %2963 = vrot.lane.b32.xlu0 %v2862, 32
      %v2964 = vpop.permute.xlu0 %2963
      %2965 = vrot.lane.b32.xlu0 %v2863, 32
      %v2966 = vpop.permute.xlu0 %2965
      %2967 = vrot.lane.b32.xlu0 %v2864, 32
      %v2968 = vpop.permute.xlu0 %2967
      %2969 = vrot.lane.b32.xlu0 %v2865, 32
      %v2970 = vpop.permute.xlu0 %2969
      %2971 = vrot.lane.b32.xlu0 %v2866, 32
      %v2972 = vpop.permute.xlu0 %2971
      %2973 = vrot.lane.b32.xlu0 %v2867, 32
      %v2974 = vpop.permute.xlu0 %2973
      %2975 = vrot.lane.b32.xlu0 %v2868, 32
      %v2976 = vpop.permute.xlu0 %2975
      %2977 = vrot.lane.b32.xlu0 %v2869, 32
      %v2978 = vpop.permute.xlu0 %2977
      %2979 = vrot.lane.b32.xlu0 %v2870, 32
      %v2980 = vpop.permute.xlu0 %2979
      %2981 = vrot.lane.b32.xlu0 %v2871, 32
      %v2982 = vpop.permute.xlu0 %2981
      %2983 = vrot.lane.b32.xlu0 %v2872, 32
      %v2984 = vpop.permute.xlu0 %2983
      %2985 = vrot.lane.b32.xlu0 %v2873, 32
      %v2986 = vpop.permute.xlu0 %2985
      %2987 = vrot.lane.b32.xlu0 %v2874, 32
      %v2988 = vpop.permute.xlu0 %2987
      %2989 = vrot.lane.b32.xlu0 %v2875, 32
      %v2990 = vpop.permute.xlu0 %2989
      %2991 = vrot.lane.b32.xlu0 %v2876, 32
      %v2992 = vpop.permute.xlu0 %2991
      %2993 = vrot.lane.b32.xlu0 %v2877, 32
      %v2994 = vpop.permute.xlu0 %2993
      %2995 = vrot.lane.b32.xlu0 %v2878, 32
      %v2996 = vpop.permute.xlu0 %2995
      %2997 = vrot.lane.b32.xlu0 %v2879, 32
      %v2998 = vpop.permute.xlu0 %2997
      %2999 = vrot.lane.b32.xlu0 %v2880, 32
      %v3000 = vpop.permute.xlu0 %2999
      %3001 = vrot.lane.b32.xlu0 %v2881, 32
      %v3002 = vpop.permute.xlu0 %3001
      %3003 = vrot.lane.b32.xlu0 %v2882, 32
      %v3004 = vpop.permute.xlu0 %3003
      %3005 = vrot.lane.b32.xlu0 %v2883, 32
      %v3006 = vpop.permute.xlu0 %3005
      %3007 = vrot.lane.b32.xlu0 %v2884, 32
      %v3008 = vpop.permute.xlu0 %3007
      %3009 = vrot.lane.b32.xlu0 %v2885, 32
      %v3010 = vpop.permute.xlu0 %3009
      %3011 = vrot.lane.b32.xlu0 %v2886, 32
      %v3012 = vpop.permute.xlu0 %3011
      %3013 = vrot.lane.b32.xlu0 %v2887, 32
      %v3014 = vpop.permute.xlu0 %3013
      %3015 = vrot.lane.b32.xlu0 %v2888, 32
      %v3016 = vpop.permute.xlu0 %3015
      %v3049 = vadd.f32 %v2889, %v2954
      %v3050 = vadd.f32 %v2890, %v2956
      %v3051 = vadd.f32 %v2891, %v2958
      %v3052 = vadd.f32 %v2892, %v2960
      %v3053 = vadd.f32 %v2893, %v2962
      %v3054 = vadd.f32 %v2894, %v2964
      %v3055 = vadd.f32 %v2895, %v2966
      %v3056 = vadd.f32 %v2896, %v2968
      %v3057 = vadd.f32 %v2897, %v2970
      %v3058 = vadd.f32 %v2898, %v2972
      %v3059 = vadd.f32 %v2899, %v2974
      %v3060 = vadd.f32 %v2900, %v2976
      %v3061 = vadd.f32 %v2901, %v2978
      %v3062 = vadd.f32 %v2902, %v2980
      %v3063 = vadd.f32 %v2903, %v2982
      %v3064 = vadd.f32 %v2904, %v2984
      %v3065 = vadd.f32 %v2905, %v2986
      %v3066 = vadd.f32 %v2906, %v2988
      %v3067 = vadd.f32 %v2907, %v2990
      %v3068 = vadd.f32 %v2908, %v2992
      %v3069 = vadd.f32 %v2909, %v2994
      %v3070 = vadd.f32 %v2910, %v2996
      %v3071 = vadd.f32 %v2911, %v2998
      %v3072 = vadd.f32 %v2912, %v3000
      %v3073 = vadd.f32 %v2913, %v3002
      %v3074 = vadd.f32 %v2914, %v3004
      %v3075 = vadd.f32 %v2915, %v3006
      %v3076 = vadd.f32 %v2916, %v3008
      %v3077 = vadd.f32 %v2917, %v3010
      %v3078 = vadd.f32 %v2918, %v3012
      %v3079 = vadd.f32 %v2919, %v3014
      %v3080 = vadd.f32 %v2920, %v3016
      %vm3081 = vcmask 523264
      %3082 = vst.msk [vmem:[#allocation2] sm:$0xff] %vm3081, 0.0
      %3083 = vst.msk [vmem:[#allocation2 + $0x8] sm:$0xff] %vm3081, 0.0
      %vm3084 = vcmask 517120
      %3085 = vst.msk [vmem:[#allocation2 + $0x10] sm:$0x3] %vm3084, 0.0
      %3086 = vst.msk [vmem:[#allocation2 + $0x18] sm:$0xff] %vm3081, 0.0
      %3087 = vst.msk [vmem:[#allocation2 + $0x20] sm:$0xff] %vm3081, 0.0
      %3088 = vst.msk [vmem:[#allocation2 + $0x28] sm:$0x3] %vm3084, 0.0
      %3089 = vst.msk [vmem:[#allocation2 + $0x30] sm:$0xff] %vm3081, 0.0
      %3090 = vst.msk [vmem:[#allocation2 + $0x38] sm:$0xff] %vm3081, 0.0
      %3091 = vst.msk [vmem:[#allocation2 + $0x40] sm:$0x3] %vm3084, 0.0
      %3092 = vst.msk [vmem:[#allocation2 + $0x48] sm:$0xff] %vm3081, 0.0
      %3093 = vst.msk [vmem:[#allocation2 + $0x50] sm:$0xff] %vm3081, 0.0
      %3094 = vst.msk [vmem:[#allocation2 + $0x58] sm:$0x3] %vm3084, 0.0
      %3095 = vst.msk [vmem:[#allocation2 + $0x60] sm:$0xff] %vm3081, 0.0
      %3096 = vst.msk [vmem:[#allocation2 + $0x68] sm:$0xff] %vm3081, 0.0
      %3097 = vst.msk [vmem:[#allocation2 + $0x70] sm:$0x3] %vm3084, 0.0
      %3098 = vst.msk [vmem:[#allocation2 + $0x78] sm:$0xff] %vm3081, 0.0
      %3099 = vst.msk [vmem:[#allocation2 + $0x80] sm:$0xff] %vm3081, 0.0
      %3100 = vst.msk [vmem:[#allocation2 + $0x88] sm:$0x3] %vm3084, 0.0
      %3101 = vst.msk [vmem:[#allocation2 + $0x90] sm:$0xff] %vm3081, 0.0
      %3102 = vst.msk [vmem:[#allocation2 + $0x98] sm:$0xff] %vm3081, 0.0
      %3103 = vst.msk [vmem:[#allocation2 + $0xa0] sm:$0x3] %vm3084, 0.0
      %3104 = vst.msk [vmem:[#allocation2 + $0xa8] sm:$0xff] %vm3081, 0.0
      %3105 = vst.msk [vmem:[#allocation2 + $0xb0] sm:$0xff] %vm3081, 0.0
      %3106 = vst.msk [vmem:[#allocation2 + $0xb8] sm:$0x3] %vm3084, 0.0
      %3107 = vst.msk [vmem:[#allocation2 + $0xc0] sm:$0xff] %vm3081, 0.0
      %3108 = vst.msk [vmem:[#allocation2 + $0xc8] sm:$0xff] %vm3081, 0.0
      %3109 = vst.msk [vmem:[#allocation2 + $0xd0] sm:$0x3] %vm3084, 0.0
      %3110 = vst.msk [vmem:[#allocation2 + $0xd8] sm:$0xff] %vm3081, 0.0
      %3111 = vst.msk [vmem:[#allocation2 + $0xe0] sm:$0xff] %vm3081, 0.0
      %3112 = vst.msk [vmem:[#allocation2 + $0xe8] sm:$0x3] %vm3084, 0.0
      %3113 = vst.msk [vmem:[#allocation2 + $0xf0] sm:$0xff] %vm3081, 0.0
      %3114 = vst.msk [vmem:[#allocation2 + $0xf8] sm:$0xff] %vm3081, 0.0
      %3115 = vst.msk [vmem:[#allocation2 + $0x100] sm:$0x3] %vm3084, 0.0
      %3116 = vst.msk [vmem:[#allocation2 + $0x108] sm:$0xff] %vm3081, 0.0
      %3117 = vst.msk [vmem:[#allocation2 + $0x110] sm:$0xff] %vm3081, 0.0
      %3118 = vst.msk [vmem:[#allocation2 + $0x118] sm:$0x3] %vm3084, 0.0
      %3119 = vst.msk [vmem:[#allocation2 + $0x120] sm:$0xff] %vm3081, 0.0
      %3120 = vst.msk [vmem:[#allocation2 + $0x128] sm:$0xff] %vm3081, 0.0
      %3121 = vst.msk [vmem:[#allocation2 + $0x130] sm:$0x3] %vm3084, 0.0
      %3122 = vst.msk [vmem:[#allocation2 + $0x138] sm:$0xff] %vm3081, 0.0
      %3123 = vst.msk [vmem:[#allocation2 + $0x140] sm:$0xff] %vm3081, 0.0
      %3124 = vst.msk [vmem:[#allocation2 + $0x148] sm:$0x3] %vm3084, 0.0
      %3125 = vst.msk [vmem:[#allocation2 + $0x150] sm:$0xff] %vm3081, 0.0
      %3126 = vst.msk [vmem:[#allocation2 + $0x158] sm:$0xff] %vm3081, 0.0
      %3127 = vst.msk [vmem:[#allocation2 + $0x160] sm:$0x3] %vm3084, 0.0
      %3128 = vst.msk [vmem:[#allocation2 + $0x168] sm:$0xff] %vm3081, 0.0
      %3129 = vst.msk [vmem:[#allocation2 + $0x170] sm:$0xff] %vm3081, 0.0
      %3130 = vst.msk [vmem:[#allocation2 + $0x178] sm:$0x3] %vm3084, 0.0
      %3131 = vst.msk [vmem:[#allocation2 + $0x180] sm:$0xff] %vm3081, 0.0
      %3132 = vst.msk [vmem:[#allocation2 + $0x188] sm:$0xff] %vm3081, 0.0
      %3133 = vst.msk [vmem:[#allocation2 + $0x190] sm:$0x3] %vm3084, 0.0
      %3134 = vst.msk [vmem:[#allocation2 + $0x198] sm:$0xff] %vm3081, 0.0
      %3135 = vst.msk [vmem:[#allocation2 + $0x1a0] sm:$0xff] %vm3081, 0.0
      %3136 = vst.msk [vmem:[#allocation2 + $0x1a8] sm:$0x3] %vm3084, 0.0
      %3169 = vrot.lane.b32.xlu0 %v2441, 96
      %v3170 = vpop.permute.xlu0 %3169
      %3171 = vrot.lane.b32.xlu0 %v2442, 96
      %v3172 = vpop.permute.xlu0 %3171
      %3173 = vrot.lane.b32.xlu0 %v2443, 96
      %v3174 = vpop.permute.xlu0 %3173
      %3175 = vrot.lane.b32.xlu0 %v2444, 96
      %v3176 = vpop.permute.xlu0 %3175
      %3177 = vrot.lane.b32.xlu0 %v2445, 96
      %v3178 = vpop.permute.xlu0 %3177
      %3179 = vrot.lane.b32.xlu0 %v2446, 96
      %v3180 = vpop.permute.xlu0 %3179
      %3181 = vrot.lane.b32.xlu0 %v2447, 96
      %v3182 = vpop.permute.xlu0 %3181
      %3183 = vrot.lane.b32.xlu0 %v2448, 96
      %v3184 = vpop.permute.xlu0 %3183
      %3185 = vrot.lane.b32.xlu0 %v2449, 96
      %v3186 = vpop.permute.xlu0 %3185
      %3187 = vrot.lane.b32.xlu0 %v2450, 96
      %v3188 = vpop.permute.xlu0 %3187
      %3189 = vrot.lane.b32.xlu0 %v2451, 96
      %v3190 = vpop.permute.xlu0 %3189
      %3191 = vrot.lane.b32.xlu0 %v2452, 96
      %v3192 = vpop.permute.xlu0 %3191
      %3193 = vrot.lane.b32.xlu0 %v2453, 96
      %v3194 = vpop.permute.xlu0 %3193
      %3195 = vrot.lane.b32.xlu0 %v2454, 96
      %v3196 = vpop.permute.xlu0 %3195
      %3197 = vrot.lane.b32.xlu0 %v2455, 96
      %v3198 = vpop.permute.xlu0 %3197
      %3199 = vrot.lane.b32.xlu0 %v2456, 96
      %v3200 = vpop.permute.xlu0 %3199
      %3201 = vrot.lane.b32.xlu0 %v2457, 96
      %v3202 = vpop.permute.xlu0 %3201
      %3203 = vrot.lane.b32.xlu0 %v2458, 96
      %v3204 = vpop.permute.xlu0 %3203
      %3205 = vrot.lane.b32.xlu0 %v2459, 96
      %v3206 = vpop.permute.xlu0 %3205
      %3207 = vrot.lane.b32.xlu0 %v2460, 96
      %v3208 = vpop.permute.xlu0 %3207
      %3209 = vrot.lane.b32.xlu0 %v2461, 96
      %v3210 = vpop.permute.xlu0 %3209
      %3211 = vrot.lane.b32.xlu0 %v2462, 96
      %v3212 = vpop.permute.xlu0 %3211
      %3213 = vrot.lane.b32.xlu0 %v2463, 96
      %v3214 = vpop.permute.xlu0 %3213
      %3215 = vrot.lane.b32.xlu0 %v2464, 96
      %v3216 = vpop.permute.xlu0 %3215
      %3217 = vrot.lane.b32.xlu0 %v2465, 96
      %v3218 = vpop.permute.xlu0 %3217
      %3219 = vrot.lane.b32.xlu0 %v2466, 96
      %v3220 = vpop.permute.xlu0 %3219
      %3221 = vrot.lane.b32.xlu0 %v2467, 96
      %v3222 = vpop.permute.xlu0 %3221
      %3223 = vrot.lane.b32.xlu0 %v2468, 96
      %v3224 = vpop.permute.xlu0 %3223
      %3225 = vrot.lane.b32.xlu0 %v2469, 96
      %v3226 = vpop.permute.xlu0 %3225
      %3227 = vrot.lane.b32.xlu0 %v2470, 96
      %v3228 = vpop.permute.xlu0 %3227
      %3229 = vrot.lane.b32.xlu0 %v2471, 96
      %v3230 = vpop.permute.xlu0 %3229
      %3231 = vrot.lane.b32.xlu0 %v2472, 96
      %v3232 = vpop.permute.xlu0 %3231
      %s3265 = scalar_lea.vmem [#allocation2], 24
      %vm3266 = vcmask 261120
      %3267 = vst.msk [vmem:[%s3265 + $0x1] sm:$0xff] %vm3266, %v3170
      %3268 = vst.msk [vmem:[%s3265 + $0x9] sm:$0xff] %vm3266, %v3172
      %3269 = vst.msk [vmem:[%s3265 + $0x19] sm:$0xff] %vm3266, %v3174
      %3270 = vst.msk [vmem:[%s3265 + $0x21] sm:$0xff] %vm3266, %v3176
      %3271 = vst.msk [vmem:[%s3265 + $0x31] sm:$0xff] %vm3266, %v3178
      %3272 = vst.msk [vmem:[%s3265 + $0x39] sm:$0xff] %vm3266, %v3180
      %3273 = vst.msk [vmem:[%s3265 + $0x49] sm:$0xff] %vm3266, %v3182
      %3274 = vst.msk [vmem:[%s3265 + $0x51] sm:$0xff] %vm3266, %v3184
      %3275 = vst.msk [vmem:[%s3265 + $0x61] sm:$0xff] %vm3266, %v3186
      %3276 = vst.msk [vmem:[%s3265 + $0x69] sm:$0xff] %vm3266, %v3188
      %3277 = vst.msk [vmem:[%s3265 + $0x79] sm:$0xff] %vm3266, %v3190
      %3278 = vst.msk [vmem:[%s3265 + $0x81] sm:$0xff] %vm3266, %v3192
      %3279 = vst.msk [vmem:[%s3265 + $0x91] sm:$0xff] %vm3266, %v3194
      %3280 = vst.msk [vmem:[%s3265 + $0x99] sm:$0xff] %vm3266, %v3196
      %3281 = vst.msk [vmem:[%s3265 + $0xa9] sm:$0xff] %vm3266, %v3198
      %3282 = vst.msk [vmem:[%s3265 + $0xb1] sm:$0xff] %vm3266, %v3200
      %3283 = vst.msk [vmem:[%s3265 + $0xc1] sm:$0xff] %vm3266, %v3202
      %3284 = vst.msk [vmem:[%s3265 + $0xc9] sm:$0xff] %vm3266, %v3204
      %3285 = vst.msk [vmem:[%s3265 + $0xd9] sm:$0xff] %vm3266, %v3206
      %3286 = vst.msk [vmem:[%s3265 + $0xe1] sm:$0xff] %vm3266, %v3208
      %3287 = vst.msk [vmem:[%s3265 + $0xf1] sm:$0xff] %vm3266, %v3210
      %3288 = vst.msk [vmem:[%s3265 + $0xf9] sm:$0xff] %vm3266, %v3212
      %3289 = vst.msk [vmem:[%s3265 + $0x109] sm:$0xff] %vm3266, %v3214
      %3290 = vst.msk [vmem:[%s3265 + $0x111] sm:$0xff] %vm3266, %v3216
      %3291 = vst.msk [vmem:[%s3265 + $0x121] sm:$0xff] %vm3266, %v3218
      %3292 = vst.msk [vmem:[%s3265 + $0x129] sm:$0xff] %vm3266, %v3220
      %3293 = vst.msk [vmem:[%s3265 + $0x139] sm:$0xff] %vm3266, %v3222
      %3294 = vst.msk [vmem:[%s3265 + $0x141] sm:$0xff] %vm3266, %v3224
      %3295 = vst.msk [vmem:[%s3265 + $0x151] sm:$0xff] %vm3266, %v3226
      %3296 = vst.msk [vmem:[%s3265 + $0x159] sm:$0xff] %vm3266, %v3228
      %3297 = vst.msk [vmem:[%s3265 + $0x169] sm:$0xff] %vm3266, %v3230
      %3298 = vst.msk [vmem:[%s3265 + $0x171] sm:$0xff] %vm3266, %v3232
      %3331 = vrot.lane.b32.xlu0 %v3049, 32
      %v3332 = vpop.permute.xlu0 %3331
      %3333 = vrot.lane.b32.xlu0 %v3050, 32
      %v3334 = vpop.permute.xlu0 %3333
      %3335 = vrot.lane.b32.xlu0 %v3051, 32
      %v3336 = vpop.permute.xlu0 %3335
      %3337 = vrot.lane.b32.xlu0 %v3052, 32
      %v3338 = vpop.permute.xlu0 %3337
      %3339 = vrot.lane.b32.xlu0 %v3053, 32
      %v3340 = vpop.permute.xlu0 %3339
      %3341 = vrot.lane.b32.xlu0 %v3054, 32
      %v3342 = vpop.permute.xlu0 %3341
      %3343 = vrot.lane.b32.xlu0 %v3055, 32
      %v3344 = vpop.permute.xlu0 %3343
      %3345 = vrot.lane.b32.xlu0 %v3056, 32
      %v3346 = vpop.permute.xlu0 %3345
      %3347 = vrot.lane.b32.xlu0 %v3057, 32
      %v3348 = vpop.permute.xlu0 %3347
      %3349 = vrot.lane.b32.xlu0 %v3058, 32
      %v3350 = vpop.permute.xlu0 %3349
      %3351 = vrot.lane.b32.xlu0 %v3059, 32
      %v3352 = vpop.permute.xlu0 %3351
      %3353 = vrot.lane.b32.xlu0 %v3060, 32
      %v3354 = vpop.permute.xlu0 %3353
      %3355 = vrot.lane.b32.xlu0 %v3061, 32
      %v3356 = vpop.permute.xlu0 %3355
      %3357 = vrot.lane.b32.xlu0 %v3062, 32
      %v3358 = vpop.permute.xlu0 %3357
      %3359 = vrot.lane.b32.xlu0 %v3063, 32
      %v3360 = vpop.permute.xlu0 %3359
      %3361 = vrot.lane.b32.xlu0 %v3064, 32
      %v3362 = vpop.permute.xlu0 %3361
      %3363 = vrot.lane.b32.xlu0 %v3065, 32
      %v3364 = vpop.permute.xlu0 %3363
      %3365 = vrot.lane.b32.xlu0 %v3066, 32
      %v3366 = vpop.permute.xlu0 %3365
      %3367 = vrot.lane.b32.xlu0 %v3067, 32
      %v3368 = vpop.permute.xlu0 %3367
      %3369 = vrot.lane.b32.xlu0 %v3068, 32
      %v3370 = vpop.permute.xlu0 %3369
      %3371 = vrot.lane.b32.xlu0 %v3069, 32
      %v3372 = vpop.permute.xlu0 %3371
      %3373 = vrot.lane.b32.xlu0 %v3070, 32
      %v3374 = vpop.permute.xlu0 %3373
      %3375 = vrot.lane.b32.xlu0 %v3071, 32
      %v3376 = vpop.permute.xlu0 %3375
      %3377 = vrot.lane.b32.xlu0 %v3072, 32
      %v3378 = vpop.permute.xlu0 %3377
      %3379 = vrot.lane.b32.xlu0 %v3073, 32
      %v3380 = vpop.permute.xlu0 %3379
      %3381 = vrot.lane.b32.xlu0 %v3074, 32
      %v3382 = vpop.permute.xlu0 %3381
      %3383 = vrot.lane.b32.xlu0 %v3075, 32
      %v3384 = vpop.permute.xlu0 %3383
      %3385 = vrot.lane.b32.xlu0 %v3076, 32
      %v3386 = vpop.permute.xlu0 %3385
      %3387 = vrot.lane.b32.xlu0 %v3077, 32
      %v3388 = vpop.permute.xlu0 %3387
      %3389 = vrot.lane.b32.xlu0 %v3078, 32
      %v3390 = vpop.permute.xlu0 %3389
      %3391 = vrot.lane.b32.xlu0 %v3079, 32
      %v3392 = vpop.permute.xlu0 %3391
      %3393 = vrot.lane.b32.xlu0 %v3080, 32
      %v3394 = vpop.permute.xlu0 %3393
      %vm3427 = vcmask 523520
      %3428 = vst.msk [vmem:[%s3265 + $0x1] sm:$0xff] %vm3427, %v3332
      %3429 = vst.msk [vmem:[%s3265 + $0x9] sm:$0xff] %vm3427, %v3334
      %3430 = vst.msk [vmem:[%s3265 + $0x19] sm:$0xff] %vm3427, %v3336
      %3431 = vst.msk [vmem:[%s3265 + $0x21] sm:$0xff] %vm3427, %v3338
      %3432 = vst.msk [vmem:[%s3265 + $0x31] sm:$0xff] %vm3427, %v3340
      %3433 = vst.msk [vmem:[%s3265 + $0x39] sm:$0xff] %vm3427, %v3342
      %3434 = vst.msk [vmem:[%s3265 + $0x49] sm:$0xff] %vm3427, %v3344
      %3435 = vst.msk [vmem:[%s3265 + $0x51] sm:$0xff] %vm3427, %v3346
      %3436 = vst.msk [vmem:[%s3265 + $0x61] sm:$0xff] %vm3427, %v3348
      %3437 = vst.msk [vmem:[%s3265 + $0x69] sm:$0xff] %vm3427, %v3350
      %3438 = vst.msk [vmem:[%s3265 + $0x79] sm:$0xff] %vm3427, %v3352
      %3439 = vst.msk [vmem:[%s3265 + $0x81] sm:$0xff] %vm3427, %v3354
      %3440 = vst.msk [vmem:[%s3265 + $0x91] sm:$0xff] %vm3427, %v3356
      %3441 = vst.msk [vmem:[%s3265 + $0x99] sm:$0xff] %vm3427, %v3358
      %3442 = vst.msk [vmem:[%s3265 + $0xa9] sm:$0xff] %vm3427, %v3360
      %3443 = vst.msk [vmem:[%s3265 + $0xb1] sm:$0xff] %vm3427, %v3362
      %3444 = vst.msk [vmem:[%s3265 + $0xc1] sm:$0xff] %vm3427, %v3364
      %3445 = vst.msk [vmem:[%s3265 + $0xc9] sm:$0xff] %vm3427, %v3366
      %3446 = vst.msk [vmem:[%s3265 + $0xd9] sm:$0xff] %vm3427, %v3368
      %3447 = vst.msk [vmem:[%s3265 + $0xe1] sm:$0xff] %vm3427, %v3370
      %3448 = vst.msk [vmem:[%s3265 + $0xf1] sm:$0xff] %vm3427, %v3372
      %3449 = vst.msk [vmem:[%s3265 + $0xf9] sm:$0xff] %vm3427, %v3374
      %3450 = vst.msk [vmem:[%s3265 + $0x109] sm:$0xff] %vm3427, %v3376
      %3451 = vst.msk [vmem:[%s3265 + $0x111] sm:$0xff] %vm3427, %v3378
      %3452 = vst.msk [vmem:[%s3265 + $0x121] sm:$0xff] %vm3427, %v3380
      %3453 = vst.msk [vmem:[%s3265 + $0x129] sm:$0xff] %vm3427, %v3382
      %3454 = vst.msk [vmem:[%s3265 + $0x139] sm:$0xff] %vm3427, %v3384
      %3455 = vst.msk [vmem:[%s3265 + $0x141] sm:$0xff] %vm3427, %v3386
      %3456 = vst.msk [vmem:[%s3265 + $0x151] sm:$0xff] %vm3427, %v3388
      %3457 = vst.msk [vmem:[%s3265 + $0x159] sm:$0xff] %vm3427, %v3390
      %3458 = vst.msk [vmem:[%s3265 + $0x169] sm:$0xff] %vm3427, %v3392
      %3459 = vst.msk [vmem:[%s3265 + $0x171] sm:$0xff] %vm3427, %v3394
      %v3460 = vld [vmem:[#allocation2] sm:$0xff]
      %v3461 = vld [vmem:[#allocation2 + $0x8] sm:$0xff]
      %v3462 = vld [vmem:[#allocation2 + $0x10] sm:$0x3]
      %v3463 = vld [vmem:[#allocation2 + $0x18] sm:$0xff]
      %v3464 = vld [vmem:[#allocation2 + $0x20] sm:$0xff]
      %v3465 = vld [vmem:[#allocation2 + $0x28] sm:$0x3]
      %v3466 = vld [vmem:[#allocation2 + $0x30] sm:$0xff]
      %v3467 = vld [vmem:[#allocation2 + $0x38] sm:$0xff]
      %v3468 = vld [vmem:[#allocation2 + $0x40] sm:$0x3]
      %v3469 = vld [vmem:[#allocation2 + $0x48] sm:$0xff]
      %v3470 = vld [vmem:[#allocation2 + $0x50] sm:$0xff]
      %v3471 = vld [vmem:[#allocation2 + $0x58] sm:$0x3]
      %v3472 = vld [vmem:[#allocation2 + $0x60] sm:$0xff]
      %v3473 = vld [vmem:[#allocation2 + $0x68] sm:$0xff]
      %v3474 = vld [vmem:[#allocation2 + $0x70] sm:$0x3]
      %v3475 = vld [vmem:[#allocation2 + $0x78] sm:$0xff]
      %v3476 = vld [vmem:[#allocation2 + $0x80] sm:$0xff]
      %v3477 = vld [vmem:[#allocation2 + $0x88] sm:$0x3]
      %v3478 = vld [vmem:[#allocation2 + $0x90] sm:$0xff]
      %v3479 = vld [vmem:[#allocation2 + $0x98] sm:$0xff]
      %v3480 = vld [vmem:[#allocation2 + $0xa0] sm:$0x3]
      %v3481 = vld [vmem:[#allocation2 + $0xa8] sm:$0xff]
      %v3482 = vld [vmem:[#allocation2 + $0xb0] sm:$0xff]
      %v3483 = vld [vmem:[#allocation2 + $0xb8] sm:$0x3]
      %v3484 = vld [vmem:[#allocation2 + $0xc0] sm:$0xff]
      %v3485 = vld [vmem:[#allocation2 + $0xc8] sm:$0xff]
      %v3486 = vld [vmem:[#allocation2 + $0xd0] sm:$0x3]
      %v3487 = vld [vmem:[#allocation2 + $0xd8] sm:$0xff]
      %v3488 = vld [vmem:[#allocation2 + $0xe0] sm:$0xff]
      %v3489 = vld [vmem:[#allocation2 + $0xe8] sm:$0x3]
      %v3490 = vld [vmem:[#allocation2 + $0xf0] sm:$0xff]
      %v3491 = vld [vmem:[#allocation2 + $0xf8] sm:$0xff]
      %v3492 = vld [vmem:[#allocation2 + $0x100] sm:$0x3]
      %v3493 = vld [vmem:[#allocation2 + $0x108] sm:$0xff]
      %v3494 = vld [vmem:[#allocation2 + $0x110] sm:$0xff]
      %v3495 = vld [vmem:[#allocation2 + $0x118] sm:$0x3]
      %v3496 = vld [vmem:[#allocation2 + $0x120] sm:$0xff]
      %v3497 = vld [vmem:[#allocation2 + $0x128] sm:$0xff]
      %v3498 = vld [vmem:[#allocation2 + $0x130] sm:$0x3]
      %v3499 = vld [vmem:[#allocation2 + $0x138] sm:$0xff]
      %v3500 = vld [vmem:[#allocation2 + $0x140] sm:$0xff]
      %v3501 = vld [vmem:[#allocation2 + $0x148] sm:$0x3]
      %v3502 = vld [vmem:[#allocation2 + $0x150] sm:$0xff]
      %v3503 = vld [vmem:[#allocation2 + $0x158] sm:$0xff]
      %v3504 = vld [vmem:[#allocation2 + $0x160] sm:$0x3]
      %v3505 = vld [vmem:[#allocation2 + $0x168] sm:$0xff]
      %v3506 = vld [vmem:[#allocation2 + $0x170] sm:$0xff]
      %v3507 = vld [vmem:[#allocation2 + $0x178] sm:$0x3]
      %v3508 = vld [vmem:[#allocation2 + $0x180] sm:$0xff]
      %v3509 = vld [vmem:[#allocation2 + $0x188] sm:$0xff]
      %v3510 = vld [vmem:[#allocation2 + $0x190] sm:$0x3]
      %v3511 = vld [vmem:[#allocation2 + $0x198] sm:$0xff]
      %v3512 = vld [vmem:[#allocation2 + $0x1a0] sm:$0xff]
      %v3513 = vld [vmem:[#allocation2 + $0x1a8] sm:$0x3]
      %v3514 = vld [vmem:[%s4] sm:$0xff]
      %v3515 = vld [vmem:[%s4 + $0x8] sm:$0xff]
      %v3516 = vld [vmem:[%s4 + $0x10] sm:$0xff]
      %v3517 = vld [vmem:[%s4 + $0x18] sm:$0xff]
      %v3518 = vld [vmem:[%s4 + $0x20] sm:$0xff]
      %v3519 = vld [vmem:[%s4 + $0x28] sm:$0xff]
      %v3520 = vld [vmem:[%s4 + $0x30] sm:$0xff]
      %v3521 = vld [vmem:[%s4 + $0x38] sm:$0xff]
      %vm3570 = vcmask 1046528
      %v3571 = vrot.slane %v3460, 1
      %v3572 = vrot.slane %v3461, 1
      %v3573 = vsel %vm3570, %v3571, %v3572
      %v3574 = vrot.slane %v3462, 1
      %v3575 = vsel %vm3570, %v3572, %v3574
      %v3576 = vrot.slane %v3463, 1
      %v3577 = vrot.slane %v3464, 1
      %v3578 = vsel %vm3570, %v3576, %v3577
      %v3579 = vrot.slane %v3465, 1
      %v3580 = vsel %vm3570, %v3577, %v3579
      %v3581 = vrot.slane %v3466, 1
      %v3582 = vrot.slane %v3467, 1
      %v3583 = vsel %vm3570, %v3581, %v3582
      %v3584 = vrot.slane %v3468, 1
      %v3585 = vsel %vm3570, %v3582, %v3584
      %v3586 = vrot.slane %v3469, 1
      %v3587 = vrot.slane %v3470, 1
      %v3588 = vsel %vm3570, %v3586, %v3587
      %v3589 = vrot.slane %v3471, 1
      %v3590 = vsel %vm3570, %v3587, %v3589
      %v3591 = vrot.slane %v3472, 1
      %v3592 = vrot.slane %v3473, 1
      %v3593 = vsel %vm3570, %v3591, %v3592
      %v3594 = vrot.slane %v3474, 1
      %v3595 = vsel %vm3570, %v3592, %v3594
      %v3596 = vrot.slane %v3475, 1
      %v3597 = vrot.slane %v3476, 1
      %v3598 = vsel %vm3570, %v3596, %v3597
      %v3599 = vrot.slane %v3477, 1
      %v3600 = vsel %vm3570, %v3597, %v3599
      %v3601 = vrot.slane %v3478, 1
      %v3602 = vrot.slane %v3479, 1
      %v3603 = vsel %vm3570, %v3601, %v3602
      %v3604 = vrot.slane %v3480, 1
      %v3605 = vsel %vm3570, %v3602, %v3604
      %v3606 = vrot.slane %v3481, 1
      %v3607 = vrot.slane %v3482, 1
      %v3608 = vsel %vm3570, %v3606, %v3607
      %v3609 = vrot.slane %v3483, 1
      %v3610 = vsel %vm3570, %v3607, %v3609
      %v3611 = vrot.slane %v3484, 1
      %v3612 = vrot.slane %v3485, 1
      %v3613 = vsel %vm3570, %v3611, %v3612
      %v3614 = vrot.slane %v3486, 1
      %v3615 = vsel %vm3570, %v3612, %v3614
      %v3616 = vrot.slane %v3487, 1
      %v3617 = vrot.slane %v3488, 1
      %v3618 = vsel %vm3570, %v3616, %v3617
      %v3619 = vrot.slane %v3489, 1
      %v3620 = vsel %vm3570, %v3617, %v3619
      %v3621 = vrot.slane %v3490, 1
      %v3622 = vrot.slane %v3491, 1
      %v3623 = vsel %vm3570, %v3621, %v3622
      %v3624 = vrot.slane %v3492, 1
      %v3625 = vsel %vm3570, %v3622, %v3624
      %v3626 = vrot.slane %v3493, 1
      %v3627 = vrot.slane %v3494, 1
      %v3628 = vsel %vm3570, %v3626, %v3627
      %v3629 = vrot.slane %v3495, 1
      %v3630 = vsel %vm3570, %v3627, %v3629
      %v3631 = vrot.slane %v3496, 1
      %v3632 = vrot.slane %v3497, 1
      %v3633 = vsel %vm3570, %v3631, %v3632
      %v3634 = vrot.slane %v3498, 1
      %v3635 = vsel %vm3570, %v3632, %v3634
      %v3636 = vrot.slane %v3499, 1
      %v3637 = vrot.slane %v3500, 1
      %v3638 = vsel %vm3570, %v3636, %v3637
      %v3639 = vrot.slane %v3501, 1
      %v3640 = vsel %vm3570, %v3637, %v3639
      %v3641 = vrot.slane %v3502, 1
      %v3642 = vrot.slane %v3503, 1
      %v3643 = vsel %vm3570, %v3641, %v3642
      %v3644 = vrot.slane %v3504, 1
      %v3645 = vsel %vm3570, %v3642, %v3644
      %v3646 = vrot.slane %v3505, 1
      %v3647 = vrot.slane %v3506, 1
      %v3648 = vsel %vm3570, %v3646, %v3647
      %v3649 = vrot.slane %v3507, 1
      %v3650 = vsel %vm3570, %v3647, %v3649
      %s3651 = scalar_lea.vmem %s4, 64
      %v3652 = vld [vmem:[%s3651] sm:$0xff]
      %v3653 = vld [vmem:[%s3651 + $0x8] sm:$0xff]
      %v3654 = vld [vmem:[%s3651 + $0x10] sm:$0xff]
      %v3655 = vld [vmem:[%s3651 + $0x18] sm:$0xff]
      %v3656 = vld [vmem:[%s3651 + $0x20] sm:$0xff]
      %v3657 = vld [vmem:[%s3651 + $0x28] sm:$0xff]
      %v3658 = vld [vmem:[%s3651 + $0x30] sm:$0xff]
      %v3659 = vld [vmem:[%s3651 + $0x38] sm:$0xff]
      %v3660 = vsel %vm3081, %v3573, 0
      %v3662 = vsel %vm3081, %v3575, 0
      %v3664 = vsel %vm3081, %v3578, 0
      %v3666 = vsel %vm3081, %v3580, 0
      %v3668 = vsel %vm3081, %v3583, 0
      %v3670 = vsel %vm3081, %v3585, 0
      %v3672 = vsel %vm3081, %v3588, 0
      %v3674 = vsel %vm3081, %v3590, 0
      %v3676 = vsel %vm3081, %v3593, 0
      %v3678 = vsel %vm3081, %v3595, 0
      %v3680 = vsel %vm3081, %v3598, 0
      %v3682 = vsel %vm3081, %v3600, 0
      %v3684 = vsel %vm3081, %v3603, 0
      %v3686 = vsel %vm3081, %v3605, 0
      %v3688 = vsel %vm3081, %v3608, 0
      %v3690 = vsel %vm3081, %v3610, 0
      %v3692 = vsel %vm3081, %v3613, 0
      %v3694 = vsel %vm3081, %v3615, 0
      %v3696 = vsel %vm3081, %v3618, 0
      %v3698 = vsel %vm3081, %v3620, 0
      %v3700 = vsel %vm3081, %v3623, 0
      %v3702 = vsel %vm3081, %v3625, 0
      %v3704 = vsel %vm3081, %v3628, 0
      %v3706 = vsel %vm3081, %v3630, 0
      %v3708 = vsel %vm3081, %v3633, 0
      %v3710 = vsel %vm3081, %v3635, 0
      %v3712 = vsel %vm3081, %v3638, 0
      %v3714 = vsel %vm3081, %v3640, 0
      %v3716 = vsel %vm3081, %v3643, 0
      %v3718 = vsel %vm3081, %v3645, 0
      %v3720 = vsel %vm3081, %v3648, 0
      %v3722 = vsel %vm3081, %v3650, 0
      %3724 = vmatprep.subr.mxu0 0.0
      %3725 = vmatpush1.msra.mxu0 0.0
      %3726 = vmatprep.subr.mxu0 0.0
      %3727 = vmatpush1.msra.mxu0 0.0
      %3728 = vmatprep.subr.mxu0 0.0
      %3729 = vmatpush1.msra.mxu0 0.0
      %3730 = vmatprep.subr.mxu0 0.0
      %3731 = vmatpush1.msra.mxu0 0.0
      %3732 = vmatprep.subr.mxu0 0.0
      %3733 = vmatpush1.msra.mxu0 0.0
      %3734 = vmatprep.subr.mxu0 0.0
      %3735 = vmatpush1.msra.mxu0 0.0
      %3736 = vmatprep.subr.mxu0 0.0
      %3737 = vmatpush1.msra.mxu0 0.0
      %3738 = vmatprep.subr.mxu0 0.0
      %3739 = vmatpush1.msra.mxu0 0.0
      %3740 = vmatprep.subr.mxu0 0.0
      %3741 = vmatpush1.msra.mxu0 %v3659
      %3742 = vmatprep.subr.mxu0 0.0
      %3743 = vmatpush1.msra.mxu0 %v3658
      %3744 = vmatprep.subr.mxu0 0.0
      %3745 = vmatpush1.msra.mxu0 %v3657
      %3746 = vmatprep.subr.mxu0 0.0
      %3747 = vmatpush1.msra.mxu0 %v3656
      %3748 = vmatprep.subr.mxu0 0.0
      %3749 = vmatpush1.msra.mxu0 %v3655
      %3750 = vmatprep.subr.mxu0 0.0
      %3751 = vmatpush1.msra.mxu0 %v3654
      %3752 = vmatprep.subr.mxu0 0.0
      %3753 = vmatpush1.msra.mxu0 %v3653
      %3754 = vmatprep.subr.mxu0 0.0
      %3755 = vmatpush1.msra.mxu0 %v3652
      %3756 = vmatprep.subr.mxu0 0.0
      %3757 = vmatpush2.msra.mxu0 0.0
      %3758 = vmatprep.subr.mxu0 0.0
      %3759 = vmatpush2.msra.mxu0 0.0
      %3760 = vmatprep.subr.mxu0 0.0
      %3761 = vmatpush2.msra.mxu0 0.0
      %3762 = vmatprep.subr.mxu0 0.0
      %3763 = vmatpush2.msra.mxu0 0.0
      %3764 = vmatprep.subr.mxu0 0.0
      %3765 = vmatpush2.msra.mxu0 0.0
      %3766 = vmatprep.subr.mxu0 0.0
      %3767 = vmatpush2.msra.mxu0 0.0
      %3768 = vmatprep.subr.mxu0 0.0
      %3769 = vmatpush2.msra.mxu0 0.0
      %3770 = vmatprep.subr.mxu0 0.0
      %3771 = vmatpush2.msra.mxu0 0.0
      %3772 = vmatprep.subr.mxu0 0.0
      %3773 = vmatpush2.msra.mxu0 0.0
      %3774 = vmatprep.subr.mxu0 0.0
      %3775 = vmatpush2.msra.mxu0 0.0
      %3776 = vmatprep.subr.mxu0 0.0
      %3777 = vmatpush2.msra.mxu0 0.0
      %3778 = vmatprep.subr.mxu0 0.0
      %3779 = vmatpush2.msra.mxu0 0.0
      %3780 = vmatprep.subr.mxu0 0.0
      %3781 = vmatpush2.msra.mxu0 0.0
      %3782 = vmatprep.subr.mxu0 0.0
      %3783 = vmatpush2.msra.mxu0 0.0
      %3784 = vmatprep.subr.mxu0 0.0
      %3785 = vmatpush2.msra.mxu0 0.0
      %3786 = vmatprep.subr.mxu0 0.0
      %3787 = vmatpush2.msra.mxu0 0.0
      %3788 = vmatprep.mubr.f32.mxu0 0.0
      %3789 = vmatmul.mubr.f32.gmra.mxu0 %v3660
      %v3790 = vpop.f32.mrf.mxu0
      %v3791 = vadd.f32 0.0, %v3790
      %v3792 = vpop.f32.mrf.mxu0
      %3793 = vmatprep.mubr.f32.mxu0 0.0
      %3794 = vmatmul.mubr.f32.gmra.mxu0 %v3662
      %v3795 = vpop.f32.mrf.mxu0
      %v3796 = vadd.f32 0.0, %v3795
      %v3797 = vpop.f32.mrf.mxu0
      %3798 = vmatprep.mubr.f32.mxu0 0.0
      %3799 = vmatmul.mubr.f32.gmra.mxu0 %v3664
      %v3800 = vpop.f32.mrf.mxu0
      %v3801 = vadd.f32 0.0, %v3800
      %v3802 = vpop.f32.mrf.mxu0
      %3803 = vmatprep.mubr.f32.mxu0 0.0
      %3804 = vmatmul.mubr.f32.gmra.mxu0 %v3666
      %v3805 = vpop.f32.mrf.mxu0
      %v3806 = vadd.f32 0.0, %v3805
      %v3807 = vpop.f32.mrf.mxu0
      %3808 = vmatprep.mubr.f32.mxu0 0.0
      %3809 = vmatmul.mubr.f32.gmra.mxu0 %v3668
      %v3810 = vpop.f32.mrf.mxu0
      %v3811 = vadd.f32 0.0, %v3810
      %v3812 = vpop.f32.mrf.mxu0
      %3813 = vmatprep.mubr.f32.mxu0 0.0
      %3814 = vmatmul.mubr.f32.gmra.mxu0 %v3670
      %v3815 = vpop.f32.mrf.mxu0
      %v3816 = vadd.f32 0.0, %v3815
      %v3817 = vpop.f32.mrf.mxu0
      %3818 = vmatprep.mubr.f32.mxu0 0.0
      %3819 = vmatmul.mubr.f32.gmra.mxu0 %v3672
      %v3820 = vpop.f32.mrf.mxu0
      %v3821 = vadd.f32 0.0, %v3820
      %v3822 = vpop.f32.mrf.mxu0
      %3823 = vmatprep.mubr.f32.mxu0 0.0
      %3824 = vmatmul.mubr.f32.gmra.mxu0 %v3674
      %v3825 = vpop.f32.mrf.mxu0
      %v3826 = vadd.f32 0.0, %v3825
      %v3827 = vpop.f32.mrf.mxu0
      %3828 = vmatprep.mubr.f32.mxu0 0.0
      %3829 = vmatmul.mubr.f32.gmra.mxu0 %v3676
      %v3830 = vpop.f32.mrf.mxu0
      %v3831 = vadd.f32 0.0, %v3830
      %v3832 = vpop.f32.mrf.mxu0
      %3833 = vmatprep.mubr.f32.mxu0 0.0
      %3834 = vmatmul.mubr.f32.gmra.mxu0 %v3678
      %v3835 = vpop.f32.mrf.mxu0
      %v3836 = vadd.f32 0.0, %v3835
      %v3837 = vpop.f32.mrf.mxu0
      %3838 = vmatprep.mubr.f32.mxu0 0.0
      %3839 = vmatmul.mubr.f32.gmra.mxu0 %v3680
      %v3840 = vpop.f32.mrf.mxu0
      %v3841 = vadd.f32 0.0, %v3840
      %v3842 = vpop.f32.mrf.mxu0
      %3843 = vmatprep.mubr.f32.mxu0 0.0
      %3844 = vmatmul.mubr.f32.gmra.mxu0 %v3682
      %v3845 = vpop.f32.mrf.mxu0
      %v3846 = vadd.f32 0.0, %v3845
      %v3847 = vpop.f32.mrf.mxu0
      %3848 = vmatprep.mubr.f32.mxu0 0.0
      %3849 = vmatmul.mubr.f32.gmra.mxu0 %v3684
      %v3850 = vpop.f32.mrf.mxu0
      %v3851 = vadd.f32 0.0, %v3850
      %v3852 = vpop.f32.mrf.mxu0
      %3853 = vmatprep.mubr.f32.mxu0 0.0
      %3854 = vmatmul.mubr.f32.gmra.mxu0 %v3686
      %v3855 = vpop.f32.mrf.mxu0
      %v3856 = vadd.f32 0.0, %v3855
      %v3857 = vpop.f32.mrf.mxu0
      %3858 = vmatprep.mubr.f32.mxu0 0.0
      %3859 = vmatmul.mubr.f32.gmra.mxu0 %v3688
      %v3860 = vpop.f32.mrf.mxu0
      %v3861 = vadd.f32 0.0, %v3860
      %v3862 = vpop.f32.mrf.mxu0
      %3863 = vmatprep.mubr.f32.mxu0 0.0
      %3864 = vmatmul.mubr.f32.gmra.mxu0 %v3690
      %v3865 = vpop.f32.mrf.mxu0
      %v3866 = vadd.f32 0.0, %v3865
      %v3867 = vpop.f32.mrf.mxu0
      %3868 = vmatprep.mubr.f32.mxu0 0.0
      %3869 = vmatmul.mubr.f32.gmra.mxu0 %v3692
      %v3870 = vpop.f32.mrf.mxu0
      %v3871 = vadd.f32 0.0, %v3870
      %v3872 = vpop.f32.mrf.mxu0
      %3873 = vmatprep.mubr.f32.mxu0 0.0
      %3874 = vmatmul.mubr.f32.gmra.mxu0 %v3694
      %v3875 = vpop.f32.mrf.mxu0
      %v3876 = vadd.f32 0.0, %v3875
      %v3877 = vpop.f32.mrf.mxu0
      %3878 = vmatprep.mubr.f32.mxu0 0.0
      %3879 = vmatmul.mubr.f32.gmra.mxu0 %v3696
      %v3880 = vpop.f32.mrf.mxu0
      %v3881 = vadd.f32 0.0, %v3880
      %v3882 = vpop.f32.mrf.mxu0
      %3883 = vmatprep.mubr.f32.mxu0 0.0
      %3884 = vmatmul.mubr.f32.gmra.mxu0 %v3698
      %v3885 = vpop.f32.mrf.mxu0
      %v3886 = vadd.f32 0.0, %v3885
      %v3887 = vpop.f32.mrf.mxu0
      %3888 = vmatprep.mubr.f32.mxu0 0.0
      %3889 = vmatmul.mubr.f32.gmra.mxu0 %v3700
      %v3890 = vpop.f32.mrf.mxu0
      %v3891 = vadd.f32 0.0, %v3890
      %v3892 = vpop.f32.mrf.mxu0
      %3893 = vmatprep.mubr.f32.mxu0 0.0
      %3894 = vmatmul.mubr.f32.gmra.mxu0 %v3702
      %v3895 = vpop.f32.mrf.mxu0
      %v3896 = vadd.f32 0.0, %v3895
      %v3897 = vpop.f32.mrf.mxu0
      %3898 = vmatprep.mubr.f32.mxu0 0.0
      %3899 = vmatmul.mubr.f32.gmra.mxu0 %v3704
      %v3900 = vpop.f32.mrf.mxu0
      %v3901 = vadd.f32 0.0, %v3900
      %v3902 = vpop.f32.mrf.mxu0
      %3903 = vmatprep.mubr.f32.mxu0 0.0
      %3904 = vmatmul.mubr.f32.gmra.mxu0 %v3706
      %v3905 = vpop.f32.mrf.mxu0
      %v3906 = vadd.f32 0.0, %v3905
      %v3907 = vpop.f32.mrf.mxu0
      %3908 = vmatprep.mubr.f32.mxu0 0.0
      %3909 = vmatmul.mubr.f32.gmra.mxu0 %v3708
      %v3910 = vpop.f32.mrf.mxu0
      %v3911 = vadd.f32 0.0, %v3910
      %v3912 = vpop.f32.mrf.mxu0
      %3913 = vmatprep.mubr.f32.mxu0 0.0
      %3914 = vmatmul.mubr.f32.gmra.mxu0 %v3710
      %v3915 = vpop.f32.mrf.mxu0
      %v3916 = vadd.f32 0.0, %v3915
      %v3917 = vpop.f32.mrf.mxu0
      %3918 = vmatprep.mubr.f32.mxu0 0.0
      %3919 = vmatmul.mubr.f32.gmra.mxu0 %v3712
      %v3920 = vpop.f32.mrf.mxu0
      %v3921 = vadd.f32 0.0, %v3920
      %v3922 = vpop.f32.mrf.mxu0
      %3923 = vmatprep.mubr.f32.mxu0 0.0
      %3924 = vmatmul.mubr.f32.gmra.mxu0 %v3714
      %v3925 = vpop.f32.mrf.mxu0
      %v3926 = vadd.f32 0.0, %v3925
      %v3927 = vpop.f32.mrf.mxu0
      %3928 = vmatprep.mubr.f32.mxu0 0.0
      %3929 = vmatmul.mubr.f32.gmra.mxu0 %v3716
      %v3930 = vpop.f32.mrf.mxu0
      %v3931 = vadd.f32 0.0, %v3930
      %v3932 = vpop.f32.mrf.mxu0
      %3933 = vmatprep.mubr.f32.mxu0 0.0
      %3934 = vmatmul.mubr.f32.gmra.mxu0 %v3718
      %v3935 = vpop.f32.mrf.mxu0
      %v3936 = vadd.f32 0.0, %v3935
      %v3937 = vpop.f32.mrf.mxu0
      %3938 = vmatprep.mubr.f32.mxu0 0.0
      %3939 = vmatmul.mubr.f32.gmra.mxu0 %v3720
      %v3940 = vpop.f32.mrf.mxu0
      %v3941 = vadd.f32 0.0, %v3940
      %v3942 = vpop.f32.mrf.mxu0
      %3943 = vmatprep.mubr.f32.mxu0 0.0
      %3944 = vmatmul.mubr.f32.gmra.mxu0 %v3722
      %v3945 = vpop.f32.mrf.mxu0
      %v3946 = vadd.f32 0.0, %v3945
      %v3947 = vpop.f32.mrf.mxu0
      %3948 = vdwg.mxu0
      %v3949 = vsel %vm3081, %v3460, 0
      %v3951 = vsel %vm3081, %v3461, 0
      %v3953 = vsel %vm3081, %v3463, 0
      %v3955 = vsel %vm3081, %v3464, 0
      %v3957 = vsel %vm3081, %v3466, 0
      %v3959 = vsel %vm3081, %v3467, 0
      %v3961 = vsel %vm3081, %v3469, 0
      %v3963 = vsel %vm3081, %v3470, 0
      %v3965 = vsel %vm3081, %v3472, 0
      %v3967 = vsel %vm3081, %v3473, 0
      %v3969 = vsel %vm3081, %v3475, 0
      %v3971 = vsel %vm3081, %v3476, 0
      %v3973 = vsel %vm3081, %v3478, 0
      %v3975 = vsel %vm3081, %v3479, 0
      %v3977 = vsel %vm3081, %v3481, 0
      %v3979 = vsel %vm3081, %v3482, 0
      %v3981 = vsel %vm3081, %v3484, 0
      %v3983 = vsel %vm3081, %v3485, 0
      %v3985 = vsel %vm3081, %v3487, 0
      %v3987 = vsel %vm3081, %v3488, 0
      %v3989 = vsel %vm3081, %v3490, 0
      %v3991 = vsel %vm3081, %v3491, 0
      %v3993 = vsel %vm3081, %v3493, 0
      %v3995 = vsel %vm3081, %v3494, 0
      %v3997 = vsel %vm3081, %v3496, 0
      %v3999 = vsel %vm3081, %v3497, 0
      %v4001 = vsel %vm3081, %v3499, 0
      %v4003 = vsel %vm3081, %v3500, 0
      %v4005 = vsel %vm3081, %v3502, 0
      %v4007 = vsel %vm3081, %v3503, 0
      %v4009 = vsel %vm3081, %v3505, 0
      %v4011 = vsel %vm3081, %v3506, 0
      %4013 = vmatprep.subr.mxu0 0.0
      %4014 = vmatpush1.msra.mxu0 0.0
      %4015 = vmatprep.subr.mxu0 0.0
      %4016 = vmatpush1.msra.mxu0 0.0
      %4017 = vmatprep.subr.mxu0 0.0
      %4018 = vmatpush1.msra.mxu0 0.0
      %4019 = vmatprep.subr.mxu0 0.0
      %4020 = vmatpush1.msra.mxu0 0.0
      %4021 = vmatprep.subr.mxu0 0.0
      %4022 = vmatpush1.msra.mxu0 0.0
      %4023 = vmatprep.subr.mxu0 0.0
      %4024 = vmatpush1.msra.mxu0 0.0
      %4025 = vmatprep.subr.mxu0 0.0
      %4026 = vmatpush1.msra.mxu0 0.0
      %4027 = vmatprep.subr.mxu0 0.0
      %4028 = vmatpush1.msra.mxu0 0.0
      %4029 = vmatprep.subr.mxu0 0.0
      %4030 = vmatpush1.msra.mxu0 %v3521
      %4031 = vmatprep.subr.mxu0 0.0
      %4032 = vmatpush1.msra.mxu0 %v3520
      %4033 = vmatprep.subr.mxu0 0.0
      %4034 = vmatpush1.msra.mxu0 %v3519
      %4035 = vmatprep.subr.mxu0 0.0
      %4036 = vmatpush1.msra.mxu0 %v3518
      %4037 = vmatprep.subr.mxu0 0.0
      %4038 = vmatpush1.msra.mxu0 %v3517
      %4039 = vmatprep.subr.mxu0 0.0
      %4040 = vmatpush1.msra.mxu0 %v3516
      %4041 = vmatprep.subr.mxu0 0.0
      %4042 = vmatpush1.msra.mxu0 %v3515
      %4043 = vmatprep.subr.mxu0 0.0
      %4044 = vmatpush1.msra.mxu0 %v3514
      %4045 = vmatprep.subr.mxu0 0.0
      %4046 = vmatpush2.msra.mxu0 0.0
      %4047 = vmatprep.subr.mxu0 0.0
      %4048 = vmatpush2.msra.mxu0 0.0
      %4049 = vmatprep.subr.mxu0 0.0
      %4050 = vmatpush2.msra.mxu0 0.0
      %4051 = vmatprep.subr.mxu0 0.0
      %4052 = vmatpush2.msra.mxu0 0.0
      %4053 = vmatprep.subr.mxu0 0.0
      %4054 = vmatpush2.msra.mxu0 0.0
      %4055 = vmatprep.subr.mxu0 0.0
      %4056 = vmatpush2.msra.mxu0 0.0
      %4057 = vmatprep.subr.mxu0 0.0
      %4058 = vmatpush2.msra.mxu0 0.0
      %4059 = vmatprep.subr.mxu0 0.0
      %4060 = vmatpush2.msra.mxu0 0.0
      %4061 = vmatprep.subr.mxu0 0.0
      %4062 = vmatpush2.msra.mxu0 0.0
      %4063 = vmatprep.subr.mxu0 0.0
      %4064 = vmatpush2.msra.mxu0 0.0
      %4065 = vmatprep.subr.mxu0 0.0
      %4066 = vmatpush2.msra.mxu0 0.0
      %4067 = vmatprep.subr.mxu0 0.0
      %4068 = vmatpush2.msra.mxu0 0.0
      %4069 = vmatprep.subr.mxu0 0.0
      %4070 = vmatpush2.msra.mxu0 0.0
      %4071 = vmatprep.subr.mxu0 0.0
      %4072 = vmatpush2.msra.mxu0 0.0
      %4073 = vmatprep.subr.mxu0 0.0
      %4074 = vmatpush2.msra.mxu0 0.0
      %4075 = vmatprep.subr.mxu0 0.0
      %4076 = vmatpush2.msra.mxu0 0.0
      %4077 = vmatprep.mubr.f32.mxu0 0.0
      %4078 = vmatmul.mubr.f32.gmra.mxu0 %v3949
      %v4079 = vpop.f32.mrf.mxu0
      %v4080 = vadd.f32 %v3791, %v4079
      %v4081 = vpop.f32.mrf.mxu0
      %4082 = vmatprep.mubr.f32.mxu0 0.0
      %4083 = vmatmul.mubr.f32.gmra.mxu0 %v3951
      %v4084 = vpop.f32.mrf.mxu0
      %v4085 = vadd.f32 %v3796, %v4084
      %v4086 = vpop.f32.mrf.mxu0
      %4087 = vmatprep.mubr.f32.mxu0 0.0
      %4088 = vmatmul.mubr.f32.gmra.mxu0 %v3953
      %v4089 = vpop.f32.mrf.mxu0
      %v4090 = vadd.f32 %v3801, %v4089
      %v4091 = vpop.f32.mrf.mxu0
      %4092 = vmatprep.mubr.f32.mxu0 0.0
      %4093 = vmatmul.mubr.f32.gmra.mxu0 %v3955
      %v4094 = vpop.f32.mrf.mxu0
      %v4095 = vadd.f32 %v3806, %v4094
      %v4096 = vpop.f32.mrf.mxu0
      %4097 = vmatprep.mubr.f32.mxu0 0.0
      %4098 = vmatmul.mubr.f32.gmra.mxu0 %v3957
      %v4099 = vpop.f32.mrf.mxu0
      %v4100 = vadd.f32 %v3811, %v4099
      %v4101 = vpop.f32.mrf.mxu0
      %4102 = vmatprep.mubr.f32.mxu0 0.0
      %4103 = vmatmul.mubr.f32.gmra.mxu0 %v3959
      %v4104 = vpop.f32.mrf.mxu0
      %v4105 = vadd.f32 %v3816, %v4104
      %v4106 = vpop.f32.mrf.mxu0
      %4107 = vmatprep.mubr.f32.mxu0 0.0
      %4108 = vmatmul.mubr.f32.gmra.mxu0 %v3961
      %v4109 = vpop.f32.mrf.mxu0
      %v4110 = vadd.f32 %v3821, %v4109
      %v4111 = vpop.f32.mrf.mxu0
      %4112 = vmatprep.mubr.f32.mxu0 0.0
      %4113 = vmatmul.mubr.f32.gmra.mxu0 %v3963
      %v4114 = vpop.f32.mrf.mxu0
      %v4115 = vadd.f32 %v3826, %v4114
      %v4116 = vpop.f32.mrf.mxu0
      %4117 = vmatprep.mubr.f32.mxu0 0.0
      %4118 = vmatmul.mubr.f32.gmra.mxu0 %v3965
      %v4119 = vpop.f32.mrf.mxu0
      %v4120 = vadd.f32 %v3831, %v4119
      %v4121 = vpop.f32.mrf.mxu0
      %4122 = vmatprep.mubr.f32.mxu0 0.0
      %4123 = vmatmul.mubr.f32.gmra.mxu0 %v3967
      %v4124 = vpop.f32.mrf.mxu0
      %v4125 = vadd.f32 %v3836, %v4124
      %v4126 = vpop.f32.mrf.mxu0
      %4127 = vmatprep.mubr.f32.mxu0 0.0
      %4128 = vmatmul.mubr.f32.gmra.mxu0 %v3969
      %v4129 = vpop.f32.mrf.mxu0
      %v4130 = vadd.f32 %v3841, %v4129
      %v4131 = vpop.f32.mrf.mxu0
      %4132 = vmatprep.mubr.f32.mxu0 0.0
      %4133 = vmatmul.mubr.f32.gmra.mxu0 %v3971
      %v4134 = vpop.f32.mrf.mxu0
      %v4135 = vadd.f32 %v3846, %v4134
      %v4136 = vpop.f32.mrf.mxu0
      %4137 = vmatprep.mubr.f32.mxu0 0.0
      %4138 = vmatmul.mubr.f32.gmra.mxu0 %v3973
      %v4139 = vpop.f32.mrf.mxu0
      %v4140 = vadd.f32 %v3851, %v4139
      %v4141 = vpop.f32.mrf.mxu0
      %4142 = vmatprep.mubr.f32.mxu0 0.0
      %4143 = vmatmul.mubr.f32.gmra.mxu0 %v3975
      %v4144 = vpop.f32.mrf.mxu0
      %v4145 = vadd.f32 %v3856, %v4144
      %v4146 = vpop.f32.mrf.mxu0
      %4147 = vmatprep.mubr.f32.mxu0 0.0
      %4148 = vmatmul.mubr.f32.gmra.mxu0 %v3977
      %v4149 = vpop.f32.mrf.mxu0
      %v4150 = vadd.f32 %v3861, %v4149
      %v4151 = vpop.f32.mrf.mxu0
      %4152 = vmatprep.mubr.f32.mxu0 0.0
      %4153 = vmatmul.mubr.f32.gmra.mxu0 %v3979
      %v4154 = vpop.f32.mrf.mxu0
      %v4155 = vadd.f32 %v3866, %v4154
      %v4156 = vpop.f32.mrf.mxu0
      %4157 = vmatprep.mubr.f32.mxu0 0.0
      %4158 = vmatmul.mubr.f32.gmra.mxu0 %v3981
      %v4159 = vpop.f32.mrf.mxu0
      %v4160 = vadd.f32 %v3871, %v4159
      %v4161 = vpop.f32.mrf.mxu0
      %4162 = vmatprep.mubr.f32.mxu0 0.0
      %4163 = vmatmul.mubr.f32.gmra.mxu0 %v3983
      %v4164 = vpop.f32.mrf.mxu0
      %v4165 = vadd.f32 %v3876, %v4164
      %v4166 = vpop.f32.mrf.mxu0
      %4167 = vmatprep.mubr.f32.mxu0 0.0
      %4168 = vmatmul.mubr.f32.gmra.mxu0 %v3985
      %v4169 = vpop.f32.mrf.mxu0
      %v4170 = vadd.f32 %v3881, %v4169
      %v4171 = vpop.f32.mrf.mxu0
      %4172 = vmatprep.mubr.f32.mxu0 0.0
      %4173 = vmatmul.mubr.f32.gmra.mxu0 %v3987
      %v4174 = vpop.f32.mrf.mxu0
      %v4175 = vadd.f32 %v3886, %v4174
      %v4176 = vpop.f32.mrf.mxu0
      %4177 = vmatprep.mubr.f32.mxu0 0.0
      %4178 = vmatmul.mubr.f32.gmra.mxu0 %v3989
      %v4179 = vpop.f32.mrf.mxu0
      %v4180 = vadd.f32 %v3891, %v4179
      %v4181 = vpop.f32.mrf.mxu0
      %4182 = vmatprep.mubr.f32.mxu0 0.0
      %4183 = vmatmul.mubr.f32.gmra.mxu0 %v3991
      %v4184 = vpop.f32.mrf.mxu0
      %v4185 = vadd.f32 %v3896, %v4184
      %v4186 = vpop.f32.mrf.mxu0
      %4187 = vmatprep.mubr.f32.mxu0 0.0
      %4188 = vmatmul.mubr.f32.gmra.mxu0 %v3993
      %v4189 = vpop.f32.mrf.mxu0
      %v4190 = vadd.f32 %v3901, %v4189
      %v4191 = vpop.f32.mrf.mxu0
      %4192 = vmatprep.mubr.f32.mxu0 0.0
      %4193 = vmatmul.mubr.f32.gmra.mxu0 %v3995
      %v4194 = vpop.f32.mrf.mxu0
      %v4195 = vadd.f32 %v3906, %v4194
      %v4196 = vpop.f32.mrf.mxu0
      %4197 = vmatprep.mubr.f32.mxu0 0.0
      %4198 = vmatmul.mubr.f32.gmra.mxu0 %v3997
      %v4199 = vpop.f32.mrf.mxu0
      %v4200 = vadd.f32 %v3911, %v4199
      %v4201 = vpop.f32.mrf.mxu0
      %4202 = vmatprep.mubr.f32.mxu0 0.0
      %4203 = vmatmul.mubr.f32.gmra.mxu0 %v3999
      %v4204 = vpop.f32.mrf.mxu0
      %v4205 = vadd.f32 %v3916, %v4204
      %v4206 = vpop.f32.mrf.mxu0
      %4207 = vmatprep.mubr.f32.mxu0 0.0
      %4208 = vmatmul.mubr.f32.gmra.mxu0 %v4001
      %v4209 = vpop.f32.mrf.mxu0
      %v4210 = vadd.f32 %v3921, %v4209
      %v4211 = vpop.f32.mrf.mxu0
      %4212 = vmatprep.mubr.f32.mxu0 0.0
      %4213 = vmatmul.mubr.f32.gmra.mxu0 %v4003
      %v4214 = vpop.f32.mrf.mxu0
      %v4215 = vadd.f32 %v3926, %v4214
      %v4216 = vpop.f32.mrf.mxu0
      %4217 = vmatprep.mubr.f32.mxu0 0.0
      %4218 = vmatmul.mubr.f32.gmra.mxu0 %v4005
      %v4219 = vpop.f32.mrf.mxu0
      %v4220 = vadd.f32 %v3931, %v4219
      %v4221 = vpop.f32.mrf.mxu0
      %4222 = vmatprep.mubr.f32.mxu0 0.0
      %4223 = vmatmul.mubr.f32.gmra.mxu0 %v4007
      %v4224 = vpop.f32.mrf.mxu0
      %v4225 = vadd.f32 %v3936, %v4224
      %v4226 = vpop.f32.mrf.mxu0
      %4227 = vmatprep.mubr.f32.mxu0 0.0
      %4228 = vmatmul.mubr.f32.gmra.mxu0 %v4009
      %v4229 = vpop.f32.mrf.mxu0
      %v4230 = vadd.f32 %v3941, %v4229
      %v4231 = vpop.f32.mrf.mxu0
      %4232 = vmatprep.mubr.f32.mxu0 0.0
      %4233 = vmatmul.mubr.f32.gmra.mxu0 %v4011
      %v4234 = vpop.f32.mrf.mxu0
      %v4235 = vadd.f32 %v3946, %v4234
      %v4236 = vpop.f32.mrf.mxu0
      %4237 = vdwg.mxu0
      %vm4238 = vcmask 1045504
      %v4239 = vrot.slane %v3460, 2
      %v4240 = vrot.slane %v3461, 2
      %v4241 = vsel %vm4238, %v4239, %v4240
      %v4242 = vrot.slane %v3462, 2
      %v4243 = vsel %vm4238, %v4240, %v4242
      %v4244 = vrot.slane %v3463, 2
      %v4245 = vrot.slane %v3464, 2
      %v4246 = vsel %vm4238, %v4244, %v4245
      %v4247 = vrot.slane %v3465, 2
      %v4248 = vsel %vm4238, %v4245, %v4247
      %v4249 = vrot.slane %v3466, 2
      %v4250 = vrot.slane %v3467, 2
      %v4251 = vsel %vm4238, %v4249, %v4250
      %v4252 = vrot.slane %v3468, 2
      %v4253 = vsel %vm4238, %v4250, %v4252
      %v4254 = vrot.slane %v3469, 2
      %v4255 = vrot.slane %v3470, 2
      %v4256 = vsel %vm4238, %v4254, %v4255
      %v4257 = vrot.slane %v3471, 2
      %v4258 = vsel %vm4238, %v4255, %v4257
      %v4259 = vrot.slane %v3472, 2
      %v4260 = vrot.slane %v3473, 2
      %v4261 = vsel %vm4238, %v4259, %v4260
      %v4262 = vrot.slane %v3474, 2
      %v4263 = vsel %vm4238, %v4260, %v4262
      %v4264 = vrot.slane %v3475, 2
      %v4265 = vrot.slane %v3476, 2
      %v4266 = vsel %vm4238, %v4264, %v4265
      %v4267 = vrot.slane %v3477, 2
      %v4268 = vsel %vm4238, %v4265, %v4267
      %v4269 = vrot.slane %v3478, 2
      %v4270 = vrot.slane %v3479, 2
      %v4271 = vsel %vm4238, %v4269, %v4270
      %v4272 = vrot.slane %v3480, 2
      %v4273 = vsel %vm4238, %v4270, %v4272
      %v4274 = vrot.slane %v3481, 2
      %v4275 = vrot.slane %v3482, 2
      %v4276 = vsel %vm4238, %v4274, %v4275
      %v4277 = vrot.slane %v3483, 2
      %v4278 = vsel %vm4238, %v4275, %v4277
      %v4279 = vrot.slane %v3484, 2
      %v4280 = vrot.slane %v3485, 2
      %v4281 = vsel %vm4238, %v4279, %v4280
      %v4282 = vrot.slane %v3486, 2
      %v4283 = vsel %vm4238, %v4280, %v4282
      %v4284 = vrot.slane %v3487, 2
      %v4285 = vrot.slane %v3488, 2
      %v4286 = vsel %vm4238, %v4284, %v4285
      %v4287 = vrot.slane %v3489, 2
      %v4288 = vsel %vm4238, %v4285, %v4287
      %v4289 = vrot.slane %v3490, 2
      %v4290 = vrot.slane %v3491, 2
      %v4291 = vsel %vm4238, %v4289, %v4290
      %v4292 = vrot.slane %v3492, 2
      %v4293 = vsel %vm4238, %v4290, %v4292
      %v4294 = vrot.slane %v3493, 2
      %v4295 = vrot.slane %v3494, 2
      %v4296 = vsel %vm4238, %v4294, %v4295
      %v4297 = vrot.slane %v3495, 2
      %v4298 = vsel %vm4238, %v4295, %v4297
      %v4299 = vrot.slane %v3496, 2
      %v4300 = vrot.slane %v3497, 2
      %v4301 = vsel %vm4238, %v4299, %v4300
      %v4302 = vrot.slane %v3498, 2
      %v4303 = vsel %vm4238, %v4300, %v4302
      %v4304 = vrot.slane %v3499, 2
      %v4305 = vrot.slane %v3500, 2
      %v4306 = vsel %vm4238, %v4304, %v4305
      %v4307 = vrot.slane %v3501, 2
      %v4308 = vsel %vm4238, %v4305, %v4307
      %v4309 = vrot.slane %v3502, 2
      %v4310 = vrot.slane %v3503, 2
      %v4311 = vsel %vm4238, %v4309, %v4310
      %v4312 = vrot.slane %v3504, 2
      %v4313 = vsel %vm4238, %v4310, %v4312
      %v4314 = vrot.slane %v3505, 2
      %v4315 = vrot.slane %v3506, 2
      %v4316 = vsel %vm4238, %v4314, %v4315
      %v4317 = vrot.slane %v3507, 2
      %v4318 = vsel %vm4238, %v4315, %v4317
      %s4319 = scalar_lea.vmem %s4, 128
      %v4320 = vld [vmem:[%s4319] sm:$0xff]
      %v4321 = vld [vmem:[%s4319 + $0x8] sm:$0xff]
      %v4322 = vld [vmem:[%s4319 + $0x10] sm:$0xff]
      %v4323 = vld [vmem:[%s4319 + $0x18] sm:$0xff]
      %v4324 = vld [vmem:[%s4319 + $0x20] sm:$0xff]
      %v4325 = vld [vmem:[%s4319 + $0x28] sm:$0xff]
      %v4326 = vld [vmem:[%s4319 + $0x30] sm:$0xff]
      %v4327 = vld [vmem:[%s4319 + $0x38] sm:$0xff]
      %v4328 = vsel %vm3081, %v4241, 0
      %v4330 = vsel %vm3081, %v4243, 0
      %v4332 = vsel %vm3081, %v4246, 0
      %v4334 = vsel %vm3081, %v4248, 0
      %v4336 = vsel %vm3081, %v4251, 0
      %v4338 = vsel %vm3081, %v4253, 0
      %v4340 = vsel %vm3081, %v4256, 0
      %v4342 = vsel %vm3081, %v4258, 0
      %v4344 = vsel %vm3081, %v4261, 0
      %v4346 = vsel %vm3081, %v4263, 0
      %v4348 = vsel %vm3081, %v4266, 0
      %v4350 = vsel %vm3081, %v4268, 0
      %v4352 = vsel %vm3081, %v4271, 0
      %v4354 = vsel %vm3081, %v4273, 0
      %v4356 = vsel %vm3081, %v4276, 0
      %v4358 = vsel %vm3081, %v4278, 0
      %v4360 = vsel %vm3081, %v4281, 0
      %v4362 = vsel %vm3081, %v4283, 0
      %v4364 = vsel %vm3081, %v4286, 0
      %v4366 = vsel %vm3081, %v4288, 0
      %v4368 = vsel %vm3081, %v4291, 0
      %v4370 = vsel %vm3081, %v4293, 0
      %v4372 = vsel %vm3081, %v4296, 0
      %v4374 = vsel %vm3081, %v4298, 0
      %v4376 = vsel %vm3081, %v4301, 0
      %v4378 = vsel %vm3081, %v4303, 0
      %v4380 = vsel %vm3081, %v4306, 0
      %v4382 = vsel %vm3081, %v4308, 0
      %v4384 = vsel %vm3081, %v4311, 0
      %v4386 = vsel %vm3081, %v4313, 0
      %v4388 = vsel %vm3081, %v4316, 0
      %v4390 = vsel %vm3081, %v4318, 0
      %4392 = vmatprep.subr.mxu0 0.0
      %4393 = vmatpush1.msra.mxu0 0.0
      %4394 = vmatprep.subr.mxu0 0.0
      %4395 = vmatpush1.msra.mxu0 0.0
      %4396 = vmatprep.subr.mxu0 0.0
      %4397 = vmatpush1.msra.mxu0 0.0
      %4398 = vmatprep.subr.mxu0 0.0
      %4399 = vmatpush1.msra.mxu0 0.0
      %4400 = vmatprep.subr.mxu0 0.0
      %4401 = vmatpush1.msra.mxu0 0.0
      %4402 = vmatprep.subr.mxu0 0.0
      %4403 = vmatpush1.msra.mxu0 0.0
      %4404 = vmatprep.subr.mxu0 0.0
      %4405 = vmatpush1.msra.mxu0 0.0
      %4406 = vmatprep.subr.mxu0 0.0
      %4407 = vmatpush1.msra.mxu0 0.0
      %4408 = vmatprep.subr.mxu0 0.0
      %4409 = vmatpush1.msra.mxu0 %v4327
      %4410 = vmatprep.subr.mxu0 0.0
      %4411 = vmatpush1.msra.mxu0 %v4326
      %4412 = vmatprep.subr.mxu0 0.0
      %4413 = vmatpush1.msra.mxu0 %v4325
      %4414 = vmatprep.subr.mxu0 0.0
      %4415 = vmatpush1.msra.mxu0 %v4324
      %4416 = vmatprep.subr.mxu0 0.0
      %4417 = vmatpush1.msra.mxu0 %v4323
      %4418 = vmatprep.subr.mxu0 0.0
      %4419 = vmatpush1.msra.mxu0 %v4322
      %4420 = vmatprep.subr.mxu0 0.0
      %4421 = vmatpush1.msra.mxu0 %v4321
      %4422 = vmatprep.subr.mxu0 0.0
      %4423 = vmatpush1.msra.mxu0 %v4320
      %4424 = vmatprep.subr.mxu0 0.0
      %4425 = vmatpush2.msra.mxu0 0.0
      %4426 = vmatprep.subr.mxu0 0.0
      %4427 = vmatpush2.msra.mxu0 0.0
      %4428 = vmatprep.subr.mxu0 0.0
      %4429 = vmatpush2.msra.mxu0 0.0
      %4430 = vmatprep.subr.mxu0 0.0
      %4431 = vmatpush2.msra.mxu0 0.0
      %4432 = vmatprep.subr.mxu0 0.0
      %4433 = vmatpush2.msra.mxu0 0.0
      %4434 = vmatprep.subr.mxu0 0.0
      %4435 = vmatpush2.msra.mxu0 0.0
      %4436 = vmatprep.subr.mxu0 0.0
      %4437 = vmatpush2.msra.mxu0 0.0
      %4438 = vmatprep.subr.mxu0 0.0
      %4439 = vmatpush2.msra.mxu0 0.0
      %4440 = vmatprep.subr.mxu0 0.0
      %4441 = vmatpush2.msra.mxu0 0.0
      %4442 = vmatprep.subr.mxu0 0.0
      %4443 = vmatpush2.msra.mxu0 0.0
      %4444 = vmatprep.subr.mxu0 0.0
      %4445 = vmatpush2.msra.mxu0 0.0
      %4446 = vmatprep.subr.mxu0 0.0
      %4447 = vmatpush2.msra.mxu0 0.0
      %4448 = vmatprep.subr.mxu0 0.0
      %4449 = vmatpush2.msra.mxu0 0.0
      %4450 = vmatprep.subr.mxu0 0.0
      %4451 = vmatpush2.msra.mxu0 0.0
      %4452 = vmatprep.subr.mxu0 0.0
      %4453 = vmatpush2.msra.mxu0 0.0
      %4454 = vmatprep.subr.mxu0 0.0
      %4455 = vmatpush2.msra.mxu0 0.0
      %4456 = vmatprep.mubr.f32.mxu0 0.0
      %4457 = vmatmul.mubr.f32.gmra.mxu0 %v4328
      %v4458 = vpop.f32.mrf.mxu0
      %v4459 = vadd.f32 0.0, %v4458
      %v4460 = vpop.f32.mrf.mxu0
      %4461 = vmatprep.mubr.f32.mxu0 0.0
      %4462 = vmatmul.mubr.f32.gmra.mxu0 %v4330
      %v4463 = vpop.f32.mrf.mxu0
      %v4464 = vadd.f32 0.0, %v4463
      %v4465 = vpop.f32.mrf.mxu0
      %4466 = vmatprep.mubr.f32.mxu0 0.0
      %4467 = vmatmul.mubr.f32.gmra.mxu0 %v4332
      %v4468 = vpop.f32.mrf.mxu0
      %v4469 = vadd.f32 0.0, %v4468
      %v4470 = vpop.f32.mrf.mxu0
      %4471 = vmatprep.mubr.f32.mxu0 0.0
      %4472 = vmatmul.mubr.f32.gmra.mxu0 %v4334
      %v4473 = vpop.f32.mrf.mxu0
      %v4474 = vadd.f32 0.0, %v4473
      %v4475 = vpop.f32.mrf.mxu0
      %4476 = vmatprep.mubr.f32.mxu0 0.0
      %4477 = vmatmul.mubr.f32.gmra.mxu0 %v4336
      %v4478 = vpop.f32.mrf.mxu0
      %v4479 = vadd.f32 0.0, %v4478
      %v4480 = vpop.f32.mrf.mxu0
      %4481 = vmatprep.mubr.f32.mxu0 0.0
      %4482 = vmatmul.mubr.f32.gmra.mxu0 %v4338
      %v4483 = vpop.f32.mrf.mxu0
      %v4484 = vadd.f32 0.0, %v4483
      %v4485 = vpop.f32.mrf.mxu0
      %4486 = vmatprep.mubr.f32.mxu0 0.0
      %4487 = vmatmul.mubr.f32.gmra.mxu0 %v4340
      %v4488 = vpop.f32.mrf.mxu0
      %v4489 = vadd.f32 0.0, %v4488
      %v4490 = vpop.f32.mrf.mxu0
      %4491 = vmatprep.mubr.f32.mxu0 0.0
      %4492 = vmatmul.mubr.f32.gmra.mxu0 %v4342
      %v4493 = vpop.f32.mrf.mxu0
      %v4494 = vadd.f32 0.0, %v4493
      %v4495 = vpop.f32.mrf.mxu0
      %4496 = vmatprep.mubr.f32.mxu0 0.0
      %4497 = vmatmul.mubr.f32.gmra.mxu0 %v4344
      %v4498 = vpop.f32.mrf.mxu0
      %v4499 = vadd.f32 0.0, %v4498
      %v4500 = vpop.f32.mrf.mxu0
      %4501 = vmatprep.mubr.f32.mxu0 0.0
      %4502 = vmatmul.mubr.f32.gmra.mxu0 %v4346
      %v4503 = vpop.f32.mrf.mxu0
      %v4504 = vadd.f32 0.0, %v4503
      %v4505 = vpop.f32.mrf.mxu0
      %4506 = vmatprep.mubr.f32.mxu0 0.0
      %4507 = vmatmul.mubr.f32.gmra.mxu0 %v4348
      %v4508 = vpop.f32.mrf.mxu0
      %v4509 = vadd.f32 0.0, %v4508
      %v4510 = vpop.f32.mrf.mxu0
      %4511 = vmatprep.mubr.f32.mxu0 0.0
      %4512 = vmatmul.mubr.f32.gmra.mxu0 %v4350
      %v4513 = vpop.f32.mrf.mxu0
      %v4514 = vadd.f32 0.0, %v4513
      %v4515 = vpop.f32.mrf.mxu0
      %4516 = vmatprep.mubr.f32.mxu0 0.0
      %4517 = vmatmul.mubr.f32.gmra.mxu0 %v4352
      %v4518 = vpop.f32.mrf.mxu0
      %v4519 = vadd.f32 0.0, %v4518
      %v4520 = vpop.f32.mrf.mxu0
      %4521 = vmatprep.mubr.f32.mxu0 0.0
      %4522 = vmatmul.mubr.f32.gmra.mxu0 %v4354
      %v4523 = vpop.f32.mrf.mxu0
      %v4524 = vadd.f32 0.0, %v4523
      %v4525 = vpop.f32.mrf.mxu0
      %4526 = vmatprep.mubr.f32.mxu0 0.0
      %4527 = vmatmul.mubr.f32.gmra.mxu0 %v4356
      %v4528 = vpop.f32.mrf.mxu0
      %v4529 = vadd.f32 0.0, %v4528
      %v4530 = vpop.f32.mrf.mxu0
      %4531 = vmatprep.mubr.f32.mxu0 0.0
      %4532 = vmatmul.mubr.f32.gmra.mxu0 %v4358
      %v4533 = vpop.f32.mrf.mxu0
      %v4534 = vadd.f32 0.0, %v4533
      %v4535 = vpop.f32.mrf.mxu0
      %4536 = vmatprep.mubr.f32.mxu0 0.0
      %4537 = vmatmul.mubr.f32.gmra.mxu0 %v4360
      %v4538 = vpop.f32.mrf.mxu0
      %v4539 = vadd.f32 0.0, %v4538
      %v4540 = vpop.f32.mrf.mxu0
      %4541 = vmatprep.mubr.f32.mxu0 0.0
      %4542 = vmatmul.mubr.f32.gmra.mxu0 %v4362
      %v4543 = vpop.f32.mrf.mxu0
      %v4544 = vadd.f32 0.0, %v4543
      %v4545 = vpop.f32.mrf.mxu0
      %4546 = vmatprep.mubr.f32.mxu0 0.0
      %4547 = vmatmul.mubr.f32.gmra.mxu0 %v4364
      %v4548 = vpop.f32.mrf.mxu0
      %v4549 = vadd.f32 0.0, %v4548
      %v4550 = vpop.f32.mrf.mxu0
      %4551 = vmatprep.mubr.f32.mxu0 0.0
      %4552 = vmatmul.mubr.f32.gmra.mxu0 %v4366
      %v4553 = vpop.f32.mrf.mxu0
      %v4554 = vadd.f32 0.0, %v4553
      %v4555 = vpop.f32.mrf.mxu0
      %4556 = vmatprep.mubr.f32.mxu0 0.0
      %4557 = vmatmul.mubr.f32.gmra.mxu0 %v4368
      %v4558 = vpop.f32.mrf.mxu0
      %v4559 = vadd.f32 0.0, %v4558
      %v4560 = vpop.f32.mrf.mxu0
      %4561 = vmatprep.mubr.f32.mxu0 0.0
      %4562 = vmatmul.mubr.f32.gmra.mxu0 %v4370
      %v4563 = vpop.f32.mrf.mxu0
      %v4564 = vadd.f32 0.0, %v4563
      %v4565 = vpop.f32.mrf.mxu0
      %4566 = vmatprep.mubr.f32.mxu0 0.0
      %4567 = vmatmul.mubr.f32.gmra.mxu0 %v4372
      %v4568 = vpop.f32.mrf.mxu0
      %v4569 = vadd.f32 0.0, %v4568
      %v4570 = vpop.f32.mrf.mxu0
      %4571 = vmatprep.mubr.f32.mxu0 0.0
      %4572 = vmatmul.mubr.f32.gmra.mxu0 %v4374
      %v4573 = vpop.f32.mrf.mxu0
      %v4574 = vadd.f32 0.0, %v4573
      %v4575 = vpop.f32.mrf.mxu0
      %4576 = vmatprep.mubr.f32.mxu0 0.0
      %4577 = vmatmul.mubr.f32.gmra.mxu0 %v4376
      %v4578 = vpop.f32.mrf.mxu0
      %v4579 = vadd.f32 0.0, %v4578
      %v4580 = vpop.f32.mrf.mxu0
      %4581 = vmatprep.mubr.f32.mxu0 0.0
      %4582 = vmatmul.mubr.f32.gmra.mxu0 %v4378
      %v4583 = vpop.f32.mrf.mxu0
      %v4584 = vadd.f32 0.0, %v4583
      %v4585 = vpop.f32.mrf.mxu0
      %4586 = vmatprep.mubr.f32.mxu0 0.0
      %4587 = vmatmul.mubr.f32.gmra.mxu0 %v4380
      %v4588 = vpop.f32.mrf.mxu0
      %v4589 = vadd.f32 0.0, %v4588
      %v4590 = vpop.f32.mrf.mxu0
      %4591 = vmatprep.mubr.f32.mxu0 0.0
      %4592 = vmatmul.mubr.f32.gmra.mxu0 %v4382
      %v4593 = vpop.f32.mrf.mxu0
      %v4594 = vadd.f32 0.0, %v4593
      %v4595 = vpop.f32.mrf.mxu0
      %4596 = vmatprep.mubr.f32.mxu0 0.0
      %4597 = vmatmul.mubr.f32.gmra.mxu0 %v4384
      %v4598 = vpop.f32.mrf.mxu0
      %v4599 = vadd.f32 0.0, %v4598
      %v4600 = vpop.f32.mrf.mxu0
      %4601 = vmatprep.mubr.f32.mxu0 0.0
      %4602 = vmatmul.mubr.f32.gmra.mxu0 %v4386
      %v4603 = vpop.f32.mrf.mxu0
      %v4604 = vadd.f32 0.0, %v4603
      %v4605 = vpop.f32.mrf.mxu0
      %4606 = vmatprep.mubr.f32.mxu0 0.0
      %4607 = vmatmul.mubr.f32.gmra.mxu0 %v4388
      %v4608 = vpop.f32.mrf.mxu0
      %v4609 = vadd.f32 0.0, %v4608
      %v4610 = vpop.f32.mrf.mxu0
      %4611 = vmatprep.mubr.f32.mxu0 0.0
      %4612 = vmatmul.mubr.f32.gmra.mxu0 %v4390
      %v4613 = vpop.f32.mrf.mxu0
      %v4614 = vadd.f32 0.0, %v4613
      %v4615 = vpop.f32.mrf.mxu0
      %4616 = vdwg.mxu0
      %v4617 = vadd.f32 %v4080, %v4459
      %v4618 = vadd.f32 %v4085, %v4464
      %v4619 = vadd.f32 %v4090, %v4469
      %v4620 = vadd.f32 %v4095, %v4474
      %v4621 = vadd.f32 %v4100, %v4479
      %v4622 = vadd.f32 %v4105, %v4484
      %v4623 = vadd.f32 %v4110, %v4489
      %v4624 = vadd.f32 %v4115, %v4494
      %v4625 = vadd.f32 %v4120, %v4499
      %v4626 = vadd.f32 %v4125, %v4504
      %v4627 = vadd.f32 %v4130, %v4509
      %v4628 = vadd.f32 %v4135, %v4514
      %v4629 = vadd.f32 %v4140, %v4519
      %v4630 = vadd.f32 %v4145, %v4524
      %v4631 = vadd.f32 %v4150, %v4529
      %v4632 = vadd.f32 %v4155, %v4534
      %v4633 = vadd.f32 %v4160, %v4539
      %v4634 = vadd.f32 %v4165, %v4544
      %v4635 = vadd.f32 %v4170, %v4549
      %v4636 = vadd.f32 %v4175, %v4554
      %v4637 = vadd.f32 %v4180, %v4559
      %v4638 = vadd.f32 %v4185, %v4564
      %v4639 = vadd.f32 %v4190, %v4569
      %v4640 = vadd.f32 %v4195, %v4574
      %v4641 = vadd.f32 %v4200, %v4579
      %v4642 = vadd.f32 %v4205, %v4584
      %v4643 = vadd.f32 %v4210, %v4589
      %v4644 = vadd.f32 %v4215, %v4594
      %v4645 = vadd.f32 %v4220, %v4599
      %v4646 = vadd.f32 %v4225, %v4604
      %v4647 = vadd.f32 %v4230, %v4609
      %v4648 = vadd.f32 %v4235, %v4614
      %s4649 = scalar_lea.vmem %s4, 192
      %v4650 = vld [vmem:[%s4649] sm:$0xff]
      %v4651 = vld [vmem:[%s4649 + $0x8] sm:$0xff]
      %v4652 = vld [vmem:[%s4649 + $0x10] sm:$0xff]
      %v4653 = vld [vmem:[%s4649 + $0x18] sm:$0xff]
      %v4654 = vld [vmem:[%s4649 + $0x20] sm:$0xff]
      %v4655 = vld [vmem:[%s4649 + $0x28] sm:$0xff]
      %v4656 = vld [vmem:[%s4649 + $0x30] sm:$0xff]
      %v4657 = vld [vmem:[%s4649 + $0x38] sm:$0xff]
      %v4659 = vsel %vm3081, %v3508, 0
      %v4662 = vsel %vm3081, %v3509, 0
      %4664 = vmatprep.subr.mxu0 0.0
      %4665 = vmatpush1.msra.mxu0 0.0
      %4666 = vmatprep.subr.mxu0 0.0
      %4667 = vmatpush1.msra.mxu0 0.0
      %4668 = vmatprep.subr.mxu0 0.0
      %4669 = vmatpush1.msra.mxu0 0.0
      %4670 = vmatprep.subr.mxu0 0.0
      %4671 = vmatpush1.msra.mxu0 0.0
      %4672 = vmatprep.subr.mxu0 0.0
      %4673 = vmatpush1.msra.mxu0 0.0
      %4674 = vmatprep.subr.mxu0 0.0
      %4675 = vmatpush1.msra.mxu0 0.0
      %4676 = vmatprep.subr.mxu0 0.0
      %4677 = vmatpush1.msra.mxu0 0.0
      %4678 = vmatprep.subr.mxu0 0.0
      %4679 = vmatpush1.msra.mxu0 0.0
      %4680 = vmatprep.subr.mxu0 0.0
      %4681 = vmatpush1.msra.mxu0 %v4657
      %4682 = vmatprep.subr.mxu0 0.0
      %4683 = vmatpush1.msra.mxu0 %v4656
      %4684 = vmatprep.subr.mxu0 0.0
      %4685 = vmatpush1.msra.mxu0 %v4655
      %4686 = vmatprep.subr.mxu0 0.0
      %4687 = vmatpush1.msra.mxu0 %v4654
      %4688 = vmatprep.subr.mxu0 0.0
      %4689 = vmatpush1.msra.mxu0 %v4653
      %4690 = vmatprep.subr.mxu0 0.0
      %4691 = vmatpush1.msra.mxu0 %v4652
      %4692 = vmatprep.subr.mxu0 0.0
      %4693 = vmatpush1.msra.mxu0 %v4651
      %4694 = vmatprep.subr.mxu0 0.0
      %4695 = vmatpush1.msra.mxu0 %v4650
      %4696 = vmatprep.subr.mxu0 0.0
      %4697 = vmatpush2.msra.mxu0 0.0
      %4698 = vmatprep.subr.mxu0 0.0
      %4699 = vmatpush2.msra.mxu0 0.0
      %4700 = vmatprep.subr.mxu0 0.0
      %4701 = vmatpush2.msra.mxu0 0.0
      %4702 = vmatprep.subr.mxu0 0.0
      %4703 = vmatpush2.msra.mxu0 0.0
      %4704 = vmatprep.subr.mxu0 0.0
      %4705 = vmatpush2.msra.mxu0 0.0
      %4706 = vmatprep.subr.mxu0 0.0
      %4707 = vmatpush2.msra.mxu0 0.0
      %4708 = vmatprep.subr.mxu0 0.0
      %4709 = vmatpush2.msra.mxu0 0.0
      %4710 = vmatprep.subr.mxu0 0.0
      %4711 = vmatpush2.msra.mxu0 0.0
      %4712 = vmatprep.subr.mxu0 0.0
      %4713 = vmatpush2.msra.mxu0 0.0
      %4714 = vmatprep.subr.mxu0 0.0
      %4715 = vmatpush2.msra.mxu0 0.0
      %4716 = vmatprep.subr.mxu0 0.0
      %4717 = vmatpush2.msra.mxu0 0.0
      %4718 = vmatprep.subr.mxu0 0.0
      %4719 = vmatpush2.msra.mxu0 0.0
      %4720 = vmatprep.subr.mxu0 0.0
      %4721 = vmatpush2.msra.mxu0 0.0
      %4722 = vmatprep.subr.mxu0 0.0
      %4723 = vmatpush2.msra.mxu0 0.0
      %4724 = vmatprep.subr.mxu0 0.0
      %4725 = vmatpush2.msra.mxu0 0.0
      %4726 = vmatprep.subr.mxu0 0.0
      %4727 = vmatpush2.msra.mxu0 0.0
      %4728 = vmatprep.mubr.f32.mxu0 0.0
      %4729 = vmatmul.mubr.f32.gmra.mxu0 %v3953
      %v4730 = vpop.f32.mrf.mxu0
      %v4731 = vadd.f32 0.0, %v4730
      %v4732 = vpop.f32.mrf.mxu0
      %4733 = vmatprep.mubr.f32.mxu0 0.0
      %4734 = vmatmul.mubr.f32.gmra.mxu0 %v3955
      %v4735 = vpop.f32.mrf.mxu0
      %v4736 = vadd.f32 0.0, %v4735
      %v4737 = vpop.f32.mrf.mxu0
      %4738 = vmatprep.mubr.f32.mxu0 0.0
      %4739 = vmatmul.mubr.f32.gmra.mxu0 %v3957
      %v4740 = vpop.f32.mrf.mxu0
      %v4741 = vadd.f32 0.0, %v4740
      %v4742 = vpop.f32.mrf.mxu0
      %4743 = vmatprep.mubr.f32.mxu0 0.0
      %4744 = vmatmul.mubr.f32.gmra.mxu0 %v3959
      %v4745 = vpop.f32.mrf.mxu0
      %v4746 = vadd.f32 0.0, %v4745
      %v4747 = vpop.f32.mrf.mxu0
      %4748 = vmatprep.mubr.f32.mxu0 0.0
      %4749 = vmatmul.mubr.f32.gmra.mxu0 %v3961
      %v4750 = vpop.f32.mrf.mxu0
      %v4751 = vadd.f32 0.0, %v4750
      %v4752 = vpop.f32.mrf.mxu0
      %4753 = vmatprep.mubr.f32.mxu0 0.0
      %4754 = vmatmul.mubr.f32.gmra.mxu0 %v3963
      %v4755 = vpop.f32.mrf.mxu0
      %v4756 = vadd.f32 0.0, %v4755
      %v4757 = vpop.f32.mrf.mxu0
      %4758 = vmatprep.mubr.f32.mxu0 0.0
      %4759 = vmatmul.mubr.f32.gmra.mxu0 %v3965
      %v4760 = vpop.f32.mrf.mxu0
      %v4761 = vadd.f32 0.0, %v4760
      %v4762 = vpop.f32.mrf.mxu0
      %4763 = vmatprep.mubr.f32.mxu0 0.0
      %4764 = vmatmul.mubr.f32.gmra.mxu0 %v3967
      %v4765 = vpop.f32.mrf.mxu0
      %v4766 = vadd.f32 0.0, %v4765
      %v4767 = vpop.f32.mrf.mxu0
      %4768 = vmatprep.mubr.f32.mxu0 0.0
      %4769 = vmatmul.mubr.f32.gmra.mxu0 %v3969
      %v4770 = vpop.f32.mrf.mxu0
      %v4771 = vadd.f32 0.0, %v4770
      %v4772 = vpop.f32.mrf.mxu0
      %4773 = vmatprep.mubr.f32.mxu0 0.0
      %4774 = vmatmul.mubr.f32.gmra.mxu0 %v3971
      %v4775 = vpop.f32.mrf.mxu0
      %v4776 = vadd.f32 0.0, %v4775
      %v4777 = vpop.f32.mrf.mxu0
      %4778 = vmatprep.mubr.f32.mxu0 0.0
      %4779 = vmatmul.mubr.f32.gmra.mxu0 %v3973
      %v4780 = vpop.f32.mrf.mxu0
      %v4781 = vadd.f32 0.0, %v4780
      %v4782 = vpop.f32.mrf.mxu0
      %4783 = vmatprep.mubr.f32.mxu0 0.0
      %4784 = vmatmul.mubr.f32.gmra.mxu0 %v3975
      %v4785 = vpop.f32.mrf.mxu0
      %v4786 = vadd.f32 0.0, %v4785
      %v4787 = vpop.f32.mrf.mxu0
      %4788 = vmatprep.mubr.f32.mxu0 0.0
      %4789 = vmatmul.mubr.f32.gmra.mxu0 %v3977
      %v4790 = vpop.f32.mrf.mxu0
      %v4791 = vadd.f32 0.0, %v4790
      %v4792 = vpop.f32.mrf.mxu0
      %4793 = vmatprep.mubr.f32.mxu0 0.0
      %4794 = vmatmul.mubr.f32.gmra.mxu0 %v3979
      %v4795 = vpop.f32.mrf.mxu0
      %v4796 = vadd.f32 0.0, %v4795
      %v4797 = vpop.f32.mrf.mxu0
      %4798 = vmatprep.mubr.f32.mxu0 0.0
      %4799 = vmatmul.mubr.f32.gmra.mxu0 %v3981
      %v4800 = vpop.f32.mrf.mxu0
      %v4801 = vadd.f32 0.0, %v4800
      %v4802 = vpop.f32.mrf.mxu0
      %4803 = vmatprep.mubr.f32.mxu0 0.0
      %4804 = vmatmul.mubr.f32.gmra.mxu0 %v3983
      %v4805 = vpop.f32.mrf.mxu0
      %v4806 = vadd.f32 0.0, %v4805
      %v4807 = vpop.f32.mrf.mxu0
      %4808 = vmatprep.mubr.f32.mxu0 0.0
      %4809 = vmatmul.mubr.f32.gmra.mxu0 %v3985
      %v4810 = vpop.f32.mrf.mxu0
      %v4811 = vadd.f32 0.0, %v4810
      %v4812 = vpop.f32.mrf.mxu0
      %4813 = vmatprep.mubr.f32.mxu0 0.0
      %4814 = vmatmul.mubr.f32.gmra.mxu0 %v3987
      %v4815 = vpop.f32.mrf.mxu0
      %v4816 = vadd.f32 0.0, %v4815
      %v4817 = vpop.f32.mrf.mxu0
      %4818 = vmatprep.mubr.f32.mxu0 0.0
      %4819 = vmatmul.mubr.f32.gmra.mxu0 %v3989
      %v4820 = vpop.f32.mrf.mxu0
      %v4821 = vadd.f32 0.0, %v4820
      %v4822 = vpop.f32.mrf.mxu0
      %4823 = vmatprep.mubr.f32.mxu0 0.0
      %4824 = vmatmul.mubr.f32.gmra.mxu0 %v3991
      %v4825 = vpop.f32.mrf.mxu0
      %v4826 = vadd.f32 0.0, %v4825
      %v4827 = vpop.f32.mrf.mxu0
      %4828 = vmatprep.mubr.f32.mxu0 0.0
      %4829 = vmatmul.mubr.f32.gmra.mxu0 %v3993
      %v4830 = vpop.f32.mrf.mxu0
      %v4831 = vadd.f32 0.0, %v4830
      %v4832 = vpop.f32.mrf.mxu0
      %4833 = vmatprep.mubr.f32.mxu0 0.0
      %4834 = vmatmul.mubr.f32.gmra.mxu0 %v3995
      %v4835 = vpop.f32.mrf.mxu0
      %v4836 = vadd.f32 0.0, %v4835
      %v4837 = vpop.f32.mrf.mxu0
      %4838 = vmatprep.mubr.f32.mxu0 0.0
      %4839 = vmatmul.mubr.f32.gmra.mxu0 %v3997
      %v4840 = vpop.f32.mrf.mxu0
      %v4841 = vadd.f32 0.0, %v4840
      %v4842 = vpop.f32.mrf.mxu0
      %4843 = vmatprep.mubr.f32.mxu0 0.0
      %4844 = vmatmul.mubr.f32.gmra.mxu0 %v3999
      %v4845 = vpop.f32.mrf.mxu0
      %v4846 = vadd.f32 0.0, %v4845
      %v4847 = vpop.f32.mrf.mxu0
      %4848 = vmatprep.mubr.f32.mxu0 0.0
      %4849 = vmatmul.mubr.f32.gmra.mxu0 %v4001
      %v4850 = vpop.f32.mrf.mxu0
      %v4851 = vadd.f32 0.0, %v4850
      %v4852 = vpop.f32.mrf.mxu0
      %4853 = vmatprep.mubr.f32.mxu0 0.0
      %4854 = vmatmul.mubr.f32.gmra.mxu0 %v4003
      %v4855 = vpop.f32.mrf.mxu0
      %v4856 = vadd.f32 0.0, %v4855
      %v4857 = vpop.f32.mrf.mxu0
      %4858 = vmatprep.mubr.f32.mxu0 0.0
      %4859 = vmatmul.mubr.f32.gmra.mxu0 %v4005
      %v4860 = vpop.f32.mrf.mxu0
      %v4861 = vadd.f32 0.0, %v4860
      %v4862 = vpop.f32.mrf.mxu0
      %4863 = vmatprep.mubr.f32.mxu0 0.0
      %4864 = vmatmul.mubr.f32.gmra.mxu0 %v4007
      %v4865 = vpop.f32.mrf.mxu0
      %v4866 = vadd.f32 0.0, %v4865
      %v4867 = vpop.f32.mrf.mxu0
      %4868 = vmatprep.mubr.f32.mxu0 0.0
      %4869 = vmatmul.mubr.f32.gmra.mxu0 %v4009
      %v4870 = vpop.f32.mrf.mxu0
      %v4871 = vadd.f32 0.0, %v4870
      %v4872 = vpop.f32.mrf.mxu0
      %4873 = vmatprep.mubr.f32.mxu0 0.0
      %4874 = vmatmul.mubr.f32.gmra.mxu0 %v4011
      %v4875 = vpop.f32.mrf.mxu0
      %v4876 = vadd.f32 0.0, %v4875
      %v4877 = vpop.f32.mrf.mxu0
      %4878 = vmatprep.mubr.f32.mxu0 0.0
      %4879 = vmatmul.mubr.f32.gmra.mxu0 %v4659
      %v4880 = vpop.f32.mrf.mxu0
      %v4881 = vadd.f32 0.0, %v4880
      %v4882 = vpop.f32.mrf.mxu0
      %4883 = vmatprep.mubr.f32.mxu0 0.0
      %4884 = vmatmul.mubr.f32.gmra.mxu0 %v4662
      %v4885 = vpop.f32.mrf.mxu0
      %v4886 = vadd.f32 0.0, %v4885
      %v4887 = vpop.f32.mrf.mxu0
      %4888 = vdwg.mxu0
      %v4889 = vadd.f32 %v4617, %v4731
      %v4890 = vadd.f32 %v4618, %v4736
      %v4891 = vadd.f32 %v4619, %v4741
      %v4892 = vadd.f32 %v4620, %v4746
      %v4893 = vadd.f32 %v4621, %v4751
      %v4894 = vadd.f32 %v4622, %v4756
      %v4895 = vadd.f32 %v4623, %v4761
      %v4896 = vadd.f32 %v4624, %v4766
      %v4897 = vadd.f32 %v4625, %v4771
      %v4898 = vadd.f32 %v4626, %v4776
      %v4899 = vadd.f32 %v4627, %v4781
      %v4900 = vadd.f32 %v4628, %v4786
      %v4901 = vadd.f32 %v4629, %v4791
      %v4902 = vadd.f32 %v4630, %v4796
      %v4903 = vadd.f32 %v4631, %v4801
      %v4904 = vadd.f32 %v4632, %v4806
      %v4905 = vadd.f32 %v4633, %v4811
      %v4906 = vadd.f32 %v4634, %v4816
      %v4907 = vadd.f32 %v4635, %v4821
      %v4908 = vadd.f32 %v4636, %v4826
      %v4909 = vadd.f32 %v4637, %v4831
      %v4910 = vadd.f32 %v4638, %v4836
      %v4911 = vadd.f32 %v4639, %v4841
      %v4912 = vadd.f32 %v4640, %v4846
      %v4913 = vadd.f32 %v4641, %v4851
      %v4914 = vadd.f32 %v4642, %v4856
      %v4915 = vadd.f32 %v4643, %v4861
      %v4916 = vadd.f32 %v4644, %v4866
      %v4917 = vadd.f32 %v4645, %v4871
      %v4918 = vadd.f32 %v4646, %v4876
      %v4919 = vadd.f32 %v4647, %v4881
      %v4920 = vadd.f32 %v4648, %v4886
      %v4922 = vrot.slane %v3508, 1
      %v4923 = vrot.slane %v3509, 1
      %v4924 = vsel %vm3570, %v4922, %v4923
      %v4925 = vrot.slane %v3510, 1
      %v4926 = vsel %vm3570, %v4923, %v4925
      %s4927 = scalar_lea.vmem %s4, 256
      %v4928 = vld [vmem:[%s4927] sm:$0xff]
      %v4929 = vld [vmem:[%s4927 + $0x8] sm:$0xff]
      %v4930 = vld [vmem:[%s4927 + $0x10] sm:$0xff]
      %v4931 = vld [vmem:[%s4927 + $0x18] sm:$0xff]
      %v4932 = vld [vmem:[%s4927 + $0x20] sm:$0xff]
      %v4933 = vld [vmem:[%s4927 + $0x28] sm:$0xff]
      %v4934 = vld [vmem:[%s4927 + $0x30] sm:$0xff]
      %v4935 = vld [vmem:[%s4927 + $0x38] sm:$0xff]
      %v4936 = vsel %vm3081, %v4924, 0
      %v4938 = vsel %vm3081, %v4926, 0
      %4940 = vmatprep.subr.mxu0 0.0
      %4941 = vmatpush1.msra.mxu0 0.0
      %4942 = vmatprep.subr.mxu0 0.0
      %4943 = vmatpush1.msra.mxu0 0.0
      %4944 = vmatprep.subr.mxu0 0.0
      %4945 = vmatpush1.msra.mxu0 0.0
      %4946 = vmatprep.subr.mxu0 0.0
      %4947 = vmatpush1.msra.mxu0 0.0
      %4948 = vmatprep.subr.mxu0 0.0
      %4949 = vmatpush1.msra.mxu0 0.0
      %4950 = vmatprep.subr.mxu0 0.0
      %4951 = vmatpush1.msra.mxu0 0.0
      %4952 = vmatprep.subr.mxu0 0.0
      %4953 = vmatpush1.msra.mxu0 0.0
      %4954 = vmatprep.subr.mxu0 0.0
      %4955 = vmatpush1.msra.mxu0 0.0
      %4956 = vmatprep.subr.mxu0 0.0
      %4957 = vmatpush1.msra.mxu0 %v4935
      %4958 = vmatprep.subr.mxu0 0.0
      %4959 = vmatpush1.msra.mxu0 %v4934
      %4960 = vmatprep.subr.mxu0 0.0
      %4961 = vmatpush1.msra.mxu0 %v4933
      %4962 = vmatprep.subr.mxu0 0.0
      %4963 = vmatpush1.msra.mxu0 %v4932
      %4964 = vmatprep.subr.mxu0 0.0
      %4965 = vmatpush1.msra.mxu0 %v4931
      %4966 = vmatprep.subr.mxu0 0.0
      %4967 = vmatpush1.msra.mxu0 %v4930
      %4968 = vmatprep.subr.mxu0 0.0
      %4969 = vmatpush1.msra.mxu0 %v4929
      %4970 = vmatprep.subr.mxu0 0.0
      %4971 = vmatpush1.msra.mxu0 %v4928
      %4972 = vmatprep.subr.mxu0 0.0
      %4973 = vmatpush2.msra.mxu0 0.0
      %4974 = vmatprep.subr.mxu0 0.0
      %4975 = vmatpush2.msra.mxu0 0.0
      %4976 = vmatprep.subr.mxu0 0.0
      %4977 = vmatpush2.msra.mxu0 0.0
      %4978 = vmatprep.subr.mxu0 0.0
      %4979 = vmatpush2.msra.mxu0 0.0
      %4980 = vmatprep.subr.mxu0 0.0
      %4981 = vmatpush2.msra.mxu0 0.0
      %4982 = vmatprep.subr.mxu0 0.0
      %4983 = vmatpush2.msra.mxu0 0.0
      %4984 = vmatprep.subr.mxu0 0.0
      %4985 = vmatpush2.msra.mxu0 0.0
      %4986 = vmatprep.subr.mxu0 0.0
      %4987 = vmatpush2.msra.mxu0 0.0
      %4988 = vmatprep.subr.mxu0 0.0
      %4989 = vmatpush2.msra.mxu0 0.0
      %4990 = vmatprep.subr.mxu0 0.0
      %4991 = vmatpush2.msra.mxu0 0.0
      %4992 = vmatprep.subr.mxu0 0.0
      %4993 = vmatpush2.msra.mxu0 0.0
      %4994 = vmatprep.subr.mxu0 0.0
      %4995 = vmatpush2.msra.mxu0 0.0
      %4996 = vmatprep.subr.mxu0 0.0
      %4997 = vmatpush2.msra.mxu0 0.0
      %4998 = vmatprep.subr.mxu0 0.0
      %4999 = vmatpush2.msra.mxu0 0.0
      %5000 = vmatprep.subr.mxu0 0.0
      %5001 = vmatpush2.msra.mxu0 0.0
      %5002 = vmatprep.subr.mxu0 0.0
      %5003 = vmatpush2.msra.mxu0 0.0
      %5004 = vmatprep.mubr.f32.mxu0 0.0
      %5005 = vmatmul.mubr.f32.gmra.mxu0 %v3664
      %v5006 = vpop.f32.mrf.mxu0
      %v5007 = vadd.f32 0.0, %v5006
      %v5008 = vpop.f32.mrf.mxu0
      %5009 = vmatprep.mubr.f32.mxu0 0.0
      %5010 = vmatmul.mubr.f32.gmra.mxu0 %v3666
      %v5011 = vpop.f32.mrf.mxu0
      %v5012 = vadd.f32 0.0, %v5011
      %v5013 = vpop.f32.mrf.mxu0
      %5014 = vmatprep.mubr.f32.mxu0 0.0
      %5015 = vmatmul.mubr.f32.gmra.mxu0 %v3668
      %v5016 = vpop.f32.mrf.mxu0
      %v5017 = vadd.f32 0.0, %v5016
      %v5018 = vpop.f32.mrf.mxu0
      %5019 = vmatprep.mubr.f32.mxu0 0.0
      %5020 = vmatmul.mubr.f32.gmra.mxu0 %v3670
      %v5021 = vpop.f32.mrf.mxu0
      %v5022 = vadd.f32 0.0, %v5021
      %v5023 = vpop.f32.mrf.mxu0
      %5024 = vmatprep.mubr.f32.mxu0 0.0
      %5025 = vmatmul.mubr.f32.gmra.mxu0 %v3672
      %v5026 = vpop.f32.mrf.mxu0
      %v5027 = vadd.f32 0.0, %v5026
      %v5028 = vpop.f32.mrf.mxu0
      %5029 = vmatprep.mubr.f32.mxu0 0.0
      %5030 = vmatmul.mubr.f32.gmra.mxu0 %v3674
      %v5031 = vpop.f32.mrf.mxu0
      %v5032 = vadd.f32 0.0, %v5031
      %v5033 = vpop.f32.mrf.mxu0
      %5034 = vmatprep.mubr.f32.mxu0 0.0
      %5035 = vmatmul.mubr.f32.gmra.mxu0 %v3676
      %v5036 = vpop.f32.mrf.mxu0
      %v5037 = vadd.f32 0.0, %v5036
      %v5038 = vpop.f32.mrf.mxu0
      %5039 = vmatprep.mubr.f32.mxu0 0.0
      %5040 = vmatmul.mubr.f32.gmra.mxu0 %v3678
      %v5041 = vpop.f32.mrf.mxu0
      %v5042 = vadd.f32 0.0, %v5041
      %v5043 = vpop.f32.mrf.mxu0
      %5044 = vmatprep.mubr.f32.mxu0 0.0
      %5045 = vmatmul.mubr.f32.gmra.mxu0 %v3680
      %v5046 = vpop.f32.mrf.mxu0
      %v5047 = vadd.f32 0.0, %v5046
      %v5048 = vpop.f32.mrf.mxu0
      %5049 = vmatprep.mubr.f32.mxu0 0.0
      %5050 = vmatmul.mubr.f32.gmra.mxu0 %v3682
      %v5051 = vpop.f32.mrf.mxu0
      %v5052 = vadd.f32 0.0, %v5051
      %v5053 = vpop.f32.mrf.mxu0
      %5054 = vmatprep.mubr.f32.mxu0 0.0
      %5055 = vmatmul.mubr.f32.gmra.mxu0 %v3684
      %v5056 = vpop.f32.mrf.mxu0
      %v5057 = vadd.f32 0.0, %v5056
      %v5058 = vpop.f32.mrf.mxu0
      %5059 = vmatprep.mubr.f32.mxu0 0.0
      %5060 = vmatmul.mubr.f32.gmra.mxu0 %v3686
      %v5061 = vpop.f32.mrf.mxu0
      %v5062 = vadd.f32 0.0, %v5061
      %v5063 = vpop.f32.mrf.mxu0
      %5064 = vmatprep.mubr.f32.mxu0 0.0
      %5065 = vmatmul.mubr.f32.gmra.mxu0 %v3688
      %v5066 = vpop.f32.mrf.mxu0
      %v5067 = vadd.f32 0.0, %v5066
      %v5068 = vpop.f32.mrf.mxu0
      %5069 = vmatprep.mubr.f32.mxu0 0.0
      %5070 = vmatmul.mubr.f32.gmra.mxu0 %v3690
      %v5071 = vpop.f32.mrf.mxu0
      %v5072 = vadd.f32 0.0, %v5071
      %v5073 = vpop.f32.mrf.mxu0
      %5074 = vmatprep.mubr.f32.mxu0 0.0
      %5075 = vmatmul.mubr.f32.gmra.mxu0 %v3692
      %v5076 = vpop.f32.mrf.mxu0
      %v5077 = vadd.f32 0.0, %v5076
      %v5078 = vpop.f32.mrf.mxu0
      %5079 = vmatprep.mubr.f32.mxu0 0.0
      %5080 = vmatmul.mubr.f32.gmra.mxu0 %v3694
      %v5081 = vpop.f32.mrf.mxu0
      %v5082 = vadd.f32 0.0, %v5081
      %v5083 = vpop.f32.mrf.mxu0
      %5084 = vmatprep.mubr.f32.mxu0 0.0
      %5085 = vmatmul.mubr.f32.gmra.mxu0 %v3696
      %v5086 = vpop.f32.mrf.mxu0
      %v5087 = vadd.f32 0.0, %v5086
      %v5088 = vpop.f32.mrf.mxu0
      %5089 = vmatprep.mubr.f32.mxu0 0.0
      %5090 = vmatmul.mubr.f32.gmra.mxu0 %v3698
      %v5091 = vpop.f32.mrf.mxu0
      %v5092 = vadd.f32 0.0, %v5091
      %v5093 = vpop.f32.mrf.mxu0
      %5094 = vmatprep.mubr.f32.mxu0 0.0
      %5095 = vmatmul.mubr.f32.gmra.mxu0 %v3700
      %v5096 = vpop.f32.mrf.mxu0
      %v5097 = vadd.f32 0.0, %v5096
      %v5098 = vpop.f32.mrf.mxu0
      %5099 = vmatprep.mubr.f32.mxu0 0.0
      %5100 = vmatmul.mubr.f32.gmra.mxu0 %v3702
      %v5101 = vpop.f32.mrf.mxu0
      %v5102 = vadd.f32 0.0, %v5101
      %v5103 = vpop.f32.mrf.mxu0
      %5104 = vmatprep.mubr.f32.mxu0 0.0
      %5105 = vmatmul.mubr.f32.gmra.mxu0 %v3704
      %v5106 = vpop.f32.mrf.mxu0
      %v5107 = vadd.f32 0.0, %v5106
      %v5108 = vpop.f32.mrf.mxu0
      %5109 = vmatprep.mubr.f32.mxu0 0.0
      %5110 = vmatmul.mubr.f32.gmra.mxu0 %v3706
      %v5111 = vpop.f32.mrf.mxu0
      %v5112 = vadd.f32 0.0, %v5111
      %v5113 = vpop.f32.mrf.mxu0
      %5114 = vmatprep.mubr.f32.mxu0 0.0
      %5115 = vmatmul.mubr.f32.gmra.mxu0 %v3708
      %v5116 = vpop.f32.mrf.mxu0
      %v5117 = vadd.f32 0.0, %v5116
      %v5118 = vpop.f32.mrf.mxu0
      %5119 = vmatprep.mubr.f32.mxu0 0.0
      %5120 = vmatmul.mubr.f32.gmra.mxu0 %v3710
      %v5121 = vpop.f32.mrf.mxu0
      %v5122 = vadd.f32 0.0, %v5121
      %v5123 = vpop.f32.mrf.mxu0
      %5124 = vmatprep.mubr.f32.mxu0 0.0
      %5125 = vmatmul.mubr.f32.gmra.mxu0 %v3712
      %v5126 = vpop.f32.mrf.mxu0
      %v5127 = vadd.f32 0.0, %v5126
      %v5128 = vpop.f32.mrf.mxu0
      %5129 = vmatprep.mubr.f32.mxu0 0.0
      %5130 = vmatmul.mubr.f32.gmra.mxu0 %v3714
      %v5131 = vpop.f32.mrf.mxu0
      %v5132 = vadd.f32 0.0, %v5131
      %v5133 = vpop.f32.mrf.mxu0
      %5134 = vmatprep.mubr.f32.mxu0 0.0
      %5135 = vmatmul.mubr.f32.gmra.mxu0 %v3716
      %v5136 = vpop.f32.mrf.mxu0
      %v5137 = vadd.f32 0.0, %v5136
      %v5138 = vpop.f32.mrf.mxu0
      %5139 = vmatprep.mubr.f32.mxu0 0.0
      %5140 = vmatmul.mubr.f32.gmra.mxu0 %v3718
      %v5141 = vpop.f32.mrf.mxu0
      %v5142 = vadd.f32 0.0, %v5141
      %v5143 = vpop.f32.mrf.mxu0
      %5144 = vmatprep.mubr.f32.mxu0 0.0
      %5145 = vmatmul.mubr.f32.gmra.mxu0 %v3720
      %v5146 = vpop.f32.mrf.mxu0
      %v5147 = vadd.f32 0.0, %v5146
      %v5148 = vpop.f32.mrf.mxu0
      %5149 = vmatprep.mubr.f32.mxu0 0.0
      %5150 = vmatmul.mubr.f32.gmra.mxu0 %v3722
      %v5151 = vpop.f32.mrf.mxu0
      %v5152 = vadd.f32 0.0, %v5151
      %v5153 = vpop.f32.mrf.mxu0
      %5154 = vmatprep.mubr.f32.mxu0 0.0
      %5155 = vmatmul.mubr.f32.gmra.mxu0 %v4936
      %v5156 = vpop.f32.mrf.mxu0
      %v5157 = vadd.f32 0.0, %v5156
      %v5158 = vpop.f32.mrf.mxu0
      %5159 = vmatprep.mubr.f32.mxu0 0.0
      %5160 = vmatmul.mubr.f32.gmra.mxu0 %v4938
      %v5161 = vpop.f32.mrf.mxu0
      %v5162 = vadd.f32 0.0, %v5161
      %v5163 = vpop.f32.mrf.mxu0
      %5164 = vdwg.mxu0
      %v5165 = vadd.f32 %v4889, %v5007
      %v5166 = vadd.f32 %v4890, %v5012
      %v5167 = vadd.f32 %v4891, %v5017
      %v5168 = vadd.f32 %v4892, %v5022
      %v5169 = vadd.f32 %v4893, %v5027
      %v5170 = vadd.f32 %v4894, %v5032
      %v5171 = vadd.f32 %v4895, %v5037
      %v5172 = vadd.f32 %v4896, %v5042
      %v5173 = vadd.f32 %v4897, %v5047
      %v5174 = vadd.f32 %v4898, %v5052
      %v5175 = vadd.f32 %v4899, %v5057
      %v5176 = vadd.f32 %v4900, %v5062
      %v5177 = vadd.f32 %v4901, %v5067
      %v5178 = vadd.f32 %v4902, %v5072
      %v5179 = vadd.f32 %v4903, %v5077
      %v5180 = vadd.f32 %v4904, %v5082
      %v5181 = vadd.f32 %v4905, %v5087
      %v5182 = vadd.f32 %v4906, %v5092
      %v5183 = vadd.f32 %v4907, %v5097
      %v5184 = vadd.f32 %v4908, %v5102
      %v5185 = vadd.f32 %v4909, %v5107
      %v5186 = vadd.f32 %v4910, %v5112
      %v5187 = vadd.f32 %v4911, %v5117
      %v5188 = vadd.f32 %v4912, %v5122
      %v5189 = vadd.f32 %v4913, %v5127
      %v5190 = vadd.f32 %v4914, %v5132
      %v5191 = vadd.f32 %v4915, %v5137
      %v5192 = vadd.f32 %v4916, %v5142
      %v5193 = vadd.f32 %v4917, %v5147
      %v5194 = vadd.f32 %v4918, %v5152
      %v5195 = vadd.f32 %v4919, %v5157
      %v5196 = vadd.f32 %v4920, %v5162
      %v5197 = vrot.slane %v3508, 2
      %v5198 = vrot.slane %v3509, 2
      %v5199 = vsel %vm4238, %v5197, %v5198
      %v5200 = vrot.slane %v3510, 2
      %v5201 = vsel %vm4238, %v5198, %v5200
      %s5202 = scalar_lea.vmem %s4, 320
      %v5203 = vld [vmem:[%s5202] sm:$0xff]
      %v5204 = vld [vmem:[%s5202 + $0x8] sm:$0xff]
      %v5205 = vld [vmem:[%s5202 + $0x10] sm:$0xff]
      %v5206 = vld [vmem:[%s5202 + $0x18] sm:$0xff]
      %v5207 = vld [vmem:[%s5202 + $0x20] sm:$0xff]
      %v5208 = vld [vmem:[%s5202 + $0x28] sm:$0xff]
      %v5209 = vld [vmem:[%s5202 + $0x30] sm:$0xff]
      %v5210 = vld [vmem:[%s5202 + $0x38] sm:$0xff]
      %v5211 = vsel %vm3081, %v5199, 0
      %v5213 = vsel %vm3081, %v5201, 0
      %5215 = vmatprep.subr.mxu0 0.0
      %5216 = vmatpush1.msra.mxu0 0.0
      %5217 = vmatprep.subr.mxu0 0.0
      %5218 = vmatpush1.msra.mxu0 0.0
      %5219 = vmatprep.subr.mxu0 0.0
      %5220 = vmatpush1.msra.mxu0 0.0
      %5221 = vmatprep.subr.mxu0 0.0
      %5222 = vmatpush1.msra.mxu0 0.0
      %5223 = vmatprep.subr.mxu0 0.0
      %5224 = vmatpush1.msra.mxu0 0.0
      %5225 = vmatprep.subr.mxu0 0.0
      %5226 = vmatpush1.msra.mxu0 0.0
      %5227 = vmatprep.subr.mxu0 0.0
      %5228 = vmatpush1.msra.mxu0 0.0
      %5229 = vmatprep.subr.mxu0 0.0
      %5230 = vmatpush1.msra.mxu0 0.0
      %5231 = vmatprep.subr.mxu0 0.0
      %5232 = vmatpush1.msra.mxu0 %v5210
      %5233 = vmatprep.subr.mxu0 0.0
      %5234 = vmatpush1.msra.mxu0 %v5209
      %5235 = vmatprep.subr.mxu0 0.0
      %5236 = vmatpush1.msra.mxu0 %v5208
      %5237 = vmatprep.subr.mxu0 0.0
      %5238 = vmatpush1.msra.mxu0 %v5207
      %5239 = vmatprep.subr.mxu0 0.0
      %5240 = vmatpush1.msra.mxu0 %v5206
      %5241 = vmatprep.subr.mxu0 0.0
      %5242 = vmatpush1.msra.mxu0 %v5205
      %5243 = vmatprep.subr.mxu0 0.0
      %5244 = vmatpush1.msra.mxu0 %v5204
      %5245 = vmatprep.subr.mxu0 0.0
      %5246 = vmatpush1.msra.mxu0 %v5203
      %5247 = vmatprep.subr.mxu0 0.0
      %5248 = vmatpush2.msra.mxu0 0.0
      %5249 = vmatprep.subr.mxu0 0.0
      %5250 = vmatpush2.msra.mxu0 0.0
      %5251 = vmatprep.subr.mxu0 0.0
      %5252 = vmatpush2.msra.mxu0 0.0
      %5253 = vmatprep.subr.mxu0 0.0
      %5254 = vmatpush2.msra.mxu0 0.0
      %5255 = vmatprep.subr.mxu0 0.0
      %5256 = vmatpush2.msra.mxu0 0.0
      %5257 = vmatprep.subr.mxu0 0.0
      %5258 = vmatpush2.msra.mxu0 0.0
      %5259 = vmatprep.subr.mxu0 0.0
      %5260 = vmatpush2.msra.mxu0 0.0
      %5261 = vmatprep.subr.mxu0 0.0
      %5262 = vmatpush2.msra.mxu0 0.0
      %5263 = vmatprep.subr.mxu0 0.0
      %5264 = vmatpush2.msra.mxu0 0.0
      %5265 = vmatprep.subr.mxu0 0.0
      %5266 = vmatpush2.msra.mxu0 0.0
      %5267 = vmatprep.subr.mxu0 0.0
      %5268 = vmatpush2.msra.mxu0 0.0
      %5269 = vmatprep.subr.mxu0 0.0
      %5270 = vmatpush2.msra.mxu0 0.0
      %5271 = vmatprep.subr.mxu0 0.0
      %5272 = vmatpush2.msra.mxu0 0.0
      %5273 = vmatprep.subr.mxu0 0.0
      %5274 = vmatpush2.msra.mxu0 0.0
      %5275 = vmatprep.subr.mxu0 0.0
      %5276 = vmatpush2.msra.mxu0 0.0
      %5277 = vmatprep.subr.mxu0 0.0
      %5278 = vmatpush2.msra.mxu0 0.0
      %5279 = vmatprep.mubr.f32.mxu0 0.0
      %5280 = vmatmul.mubr.f32.gmra.mxu0 %v4332
      %v5281 = vpop.f32.mrf.mxu0
      %v5282 = vadd.f32 0.0, %v5281
      %v5283 = vpop.f32.mrf.mxu0
      %5284 = vmatprep.mubr.f32.mxu0 0.0
      %5285 = vmatmul.mubr.f32.gmra.mxu0 %v4334
      %v5286 = vpop.f32.mrf.mxu0
      %v5287 = vadd.f32 0.0, %v5286
      %v5288 = vpop.f32.mrf.mxu0
      %5289 = vmatprep.mubr.f32.mxu0 0.0
      %5290 = vmatmul.mubr.f32.gmra.mxu0 %v4336
      %v5291 = vpop.f32.mrf.mxu0
      %v5292 = vadd.f32 0.0, %v5291
      %v5293 = vpop.f32.mrf.mxu0
      %5294 = vmatprep.mubr.f32.mxu0 0.0
      %5295 = vmatmul.mubr.f32.gmra.mxu0 %v4338
      %v5296 = vpop.f32.mrf.mxu0
      %v5297 = vadd.f32 0.0, %v5296
      %v5298 = vpop.f32.mrf.mxu0
      %5299 = vmatprep.mubr.f32.mxu0 0.0
      %5300 = vmatmul.mubr.f32.gmra.mxu0 %v4340
      %v5301 = vpop.f32.mrf.mxu0
      %v5302 = vadd.f32 0.0, %v5301
      %v5303 = vpop.f32.mrf.mxu0
      %5304 = vmatprep.mubr.f32.mxu0 0.0
      %5305 = vmatmul.mubr.f32.gmra.mxu0 %v4342
      %v5306 = vpop.f32.mrf.mxu0
      %v5307 = vadd.f32 0.0, %v5306
      %v5308 = vpop.f32.mrf.mxu0
      %5309 = vmatprep.mubr.f32.mxu0 0.0
      %5310 = vmatmul.mubr.f32.gmra.mxu0 %v4344
      %v5311 = vpop.f32.mrf.mxu0
      %v5312 = vadd.f32 0.0, %v5311
      %v5313 = vpop.f32.mrf.mxu0
      %5314 = vmatprep.mubr.f32.mxu0 0.0
      %5315 = vmatmul.mubr.f32.gmra.mxu0 %v4346
      %v5316 = vpop.f32.mrf.mxu0
      %v5317 = vadd.f32 0.0, %v5316
      %v5318 = vpop.f32.mrf.mxu0
      %5319 = vmatprep.mubr.f32.mxu0 0.0
      %5320 = vmatmul.mubr.f32.gmra.mxu0 %v4348
      %v5321 = vpop.f32.mrf.mxu0
      %v5322 = vadd.f32 0.0, %v5321
      %v5323 = vpop.f32.mrf.mxu0
      %5324 = vmatprep.mubr.f32.mxu0 0.0
      %5325 = vmatmul.mubr.f32.gmra.mxu0 %v4350
      %v5326 = vpop.f32.mrf.mxu0
      %v5327 = vadd.f32 0.0, %v5326
      %v5328 = vpop.f32.mrf.mxu0
      %5329 = vmatprep.mubr.f32.mxu0 0.0
      %5330 = vmatmul.mubr.f32.gmra.mxu0 %v4352
      %v5331 = vpop.f32.mrf.mxu0
      %v5332 = vadd.f32 0.0, %v5331
      %v5333 = vpop.f32.mrf.mxu0
      %5334 = vmatprep.mubr.f32.mxu0 0.0
      %5335 = vmatmul.mubr.f32.gmra.mxu0 %v4354
      %v5336 = vpop.f32.mrf.mxu0
      %v5337 = vadd.f32 0.0, %v5336
      %v5338 = vpop.f32.mrf.mxu0
      %5339 = vmatprep.mubr.f32.mxu0 0.0
      %5340 = vmatmul.mubr.f32.gmra.mxu0 %v4356
      %v5341 = vpop.f32.mrf.mxu0
      %v5342 = vadd.f32 0.0, %v5341
      %v5343 = vpop.f32.mrf.mxu0
      %5344 = vmatprep.mubr.f32.mxu0 0.0
      %5345 = vmatmul.mubr.f32.gmra.mxu0 %v4358
      %v5346 = vpop.f32.mrf.mxu0
      %v5347 = vadd.f32 0.0, %v5346
      %v5348 = vpop.f32.mrf.mxu0
      %5349 = vmatprep.mubr.f32.mxu0 0.0
      %5350 = vmatmul.mubr.f32.gmra.mxu0 %v4360
      %v5351 = vpop.f32.mrf.mxu0
      %v5352 = vadd.f32 0.0, %v5351
      %v5353 = vpop.f32.mrf.mxu0
      %5354 = vmatprep.mubr.f32.mxu0 0.0
      %5355 = vmatmul.mubr.f32.gmra.mxu0 %v4362
      %v5356 = vpop.f32.mrf.mxu0
      %v5357 = vadd.f32 0.0, %v5356
      %v5358 = vpop.f32.mrf.mxu0
      %5359 = vmatprep.mubr.f32.mxu0 0.0
      %5360 = vmatmul.mubr.f32.gmra.mxu0 %v4364
      %v5361 = vpop.f32.mrf.mxu0
      %v5362 = vadd.f32 0.0, %v5361
      %v5363 = vpop.f32.mrf.mxu0
      %5364 = vmatprep.mubr.f32.mxu0 0.0
      %5365 = vmatmul.mubr.f32.gmra.mxu0 %v4366
      %v5366 = vpop.f32.mrf.mxu0
      %v5367 = vadd.f32 0.0, %v5366
      %v5368 = vpop.f32.mrf.mxu0
      %5369 = vmatprep.mubr.f32.mxu0 0.0
      %5370 = vmatmul.mubr.f32.gmra.mxu0 %v4368
      %v5371 = vpop.f32.mrf.mxu0
      %v5372 = vadd.f32 0.0, %v5371
      %v5373 = vpop.f32.mrf.mxu0
      %5374 = vmatprep.mubr.f32.mxu0 0.0
      %5375 = vmatmul.mubr.f32.gmra.mxu0 %v4370
      %v5376 = vpop.f32.mrf.mxu0
      %v5377 = vadd.f32 0.0, %v5376
      %v5378 = vpop.f32.mrf.mxu0
      %5379 = vmatprep.mubr.f32.mxu0 0.0
      %5380 = vmatmul.mubr.f32.gmra.mxu0 %v4372
      %v5381 = vpop.f32.mrf.mxu0
      %v5382 = vadd.f32 0.0, %v5381
      %v5383 = vpop.f32.mrf.mxu0
      %5384 = vmatprep.mubr.f32.mxu0 0.0
      %5385 = vmatmul.mubr.f32.gmra.mxu0 %v4374
      %v5386 = vpop.f32.mrf.mxu0
      %v5387 = vadd.f32 0.0, %v5386
      %v5388 = vpop.f32.mrf.mxu0
      %5389 = vmatprep.mubr.f32.mxu0 0.0
      %5390 = vmatmul.mubr.f32.gmra.mxu0 %v4376
      %v5391 = vpop.f32.mrf.mxu0
      %v5392 = vadd.f32 0.0, %v5391
      %v5393 = vpop.f32.mrf.mxu0
      %5394 = vmatprep.mubr.f32.mxu0 0.0
      %5395 = vmatmul.mubr.f32.gmra.mxu0 %v4378
      %v5396 = vpop.f32.mrf.mxu0
      %v5397 = vadd.f32 0.0, %v5396
      %v5398 = vpop.f32.mrf.mxu0
      %5399 = vmatprep.mubr.f32.mxu0 0.0
      %5400 = vmatmul.mubr.f32.gmra.mxu0 %v4380
      %v5401 = vpop.f32.mrf.mxu0
      %v5402 = vadd.f32 0.0, %v5401
      %v5403 = vpop.f32.mrf.mxu0
      %5404 = vmatprep.mubr.f32.mxu0 0.0
      %5405 = vmatmul.mubr.f32.gmra.mxu0 %v4382
      %v5406 = vpop.f32.mrf.mxu0
      %v5407 = vadd.f32 0.0, %v5406
      %v5408 = vpop.f32.mrf.mxu0
      %5409 = vmatprep.mubr.f32.mxu0 0.0
      %5410 = vmatmul.mubr.f32.gmra.mxu0 %v4384
      %v5411 = vpop.f32.mrf.mxu0
      %v5412 = vadd.f32 0.0, %v5411
      %v5413 = vpop.f32.mrf.mxu0
      %5414 = vmatprep.mubr.f32.mxu0 0.0
      %5415 = vmatmul.mubr.f32.gmra.mxu0 %v4386
      %v5416 = vpop.f32.mrf.mxu0
      %v5417 = vadd.f32 0.0, %v5416
      %v5418 = vpop.f32.mrf.mxu0
      %5419 = vmatprep.mubr.f32.mxu0 0.0
      %5420 = vmatmul.mubr.f32.gmra.mxu0 %v4388
      %v5421 = vpop.f32.mrf.mxu0
      %v5422 = vadd.f32 0.0, %v5421
      %v5423 = vpop.f32.mrf.mxu0
      %5424 = vmatprep.mubr.f32.mxu0 0.0
      %5425 = vmatmul.mubr.f32.gmra.mxu0 %v4390
      %v5426 = vpop.f32.mrf.mxu0
      %v5427 = vadd.f32 0.0, %v5426
      %v5428 = vpop.f32.mrf.mxu0
      %5429 = vmatprep.mubr.f32.mxu0 0.0
      %5430 = vmatmul.mubr.f32.gmra.mxu0 %v5211
      %v5431 = vpop.f32.mrf.mxu0
      %v5432 = vadd.f32 0.0, %v5431
      %v5433 = vpop.f32.mrf.mxu0
      %5434 = vmatprep.mubr.f32.mxu0 0.0
      %5435 = vmatmul.mubr.f32.gmra.mxu0 %v5213
      %v5436 = vpop.f32.mrf.mxu0
      %v5437 = vadd.f32 0.0, %v5436
      %v5438 = vpop.f32.mrf.mxu0
      %5439 = vdwg.mxu0
      %v5440 = vadd.f32 %v5165, %v5282
      %v5441 = vadd.f32 %v5166, %v5287
      %v5442 = vadd.f32 %v5167, %v5292
      %v5443 = vadd.f32 %v5168, %v5297
      %v5444 = vadd.f32 %v5169, %v5302
      %v5445 = vadd.f32 %v5170, %v5307
      %v5446 = vadd.f32 %v5171, %v5312
      %v5447 = vadd.f32 %v5172, %v5317
      %v5448 = vadd.f32 %v5173, %v5322
      %v5449 = vadd.f32 %v5174, %v5327
      %v5450 = vadd.f32 %v5175, %v5332
      %v5451 = vadd.f32 %v5176, %v5337
      %v5452 = vadd.f32 %v5177, %v5342
      %v5453 = vadd.f32 %v5178, %v5347
      %v5454 = vadd.f32 %v5179, %v5352
      %v5455 = vadd.f32 %v5180, %v5357
      %v5456 = vadd.f32 %v5181, %v5362
      %v5457 = vadd.f32 %v5182, %v5367
      %v5458 = vadd.f32 %v5183, %v5372
      %v5459 = vadd.f32 %v5184, %v5377
      %v5460 = vadd.f32 %v5185, %v5382
      %v5461 = vadd.f32 %v5186, %v5387
      %v5462 = vadd.f32 %v5187, %v5392
      %v5463 = vadd.f32 %v5188, %v5397
      %v5464 = vadd.f32 %v5189, %v5402
      %v5465 = vadd.f32 %v5190, %v5407
      %v5466 = vadd.f32 %v5191, %v5412
      %v5467 = vadd.f32 %v5192, %v5417
      %v5468 = vadd.f32 %v5193, %v5422
      %v5469 = vadd.f32 %v5194, %v5427
      %v5470 = vadd.f32 %v5195, %v5432
      %v5471 = vadd.f32 %v5196, %v5437
      %s5472 = scalar_lea.vmem %s4, 384
      %v5473 = vld [vmem:[%s5472] sm:$0xff]
      %v5474 = vld [vmem:[%s5472 + $0x8] sm:$0xff]
      %v5475 = vld [vmem:[%s5472 + $0x10] sm:$0xff]
      %v5476 = vld [vmem:[%s5472 + $0x18] sm:$0xff]
      %v5477 = vld [vmem:[%s5472 + $0x20] sm:$0xff]
      %v5478 = vld [vmem:[%s5472 + $0x28] sm:$0xff]
      %v5479 = vld [vmem:[%s5472 + $0x30] sm:$0xff]
      %v5480 = vld [vmem:[%s5472 + $0x38] sm:$0xff]
      %v5482 = vsel %vm3081, %v3511, 0
      %v5485 = vsel %vm3081, %v3512, 0
      %5487 = vmatprep.subr.mxu0 0.0
      %5488 = vmatpush1.msra.mxu0 0.0
      %5489 = vmatprep.subr.mxu0 0.0
      %5490 = vmatpush1.msra.mxu0 0.0
      %5491 = vmatprep.subr.mxu0 0.0
      %5492 = vmatpush1.msra.mxu0 0.0
      %5493 = vmatprep.subr.mxu0 0.0
      %5494 = vmatpush1.msra.mxu0 0.0
      %5495 = vmatprep.subr.mxu0 0.0
      %5496 = vmatpush1.msra.mxu0 0.0
      %5497 = vmatprep.subr.mxu0 0.0
      %5498 = vmatpush1.msra.mxu0 0.0
      %5499 = vmatprep.subr.mxu0 0.0
      %5500 = vmatpush1.msra.mxu0 0.0
      %5501 = vmatprep.subr.mxu0 0.0
      %5502 = vmatpush1.msra.mxu0 0.0
      %5503 = vmatprep.subr.mxu0 0.0
      %5504 = vmatpush1.msra.mxu0 %v5480
      %5505 = vmatprep.subr.mxu0 0.0
      %5506 = vmatpush1.msra.mxu0 %v5479
      %5507 = vmatprep.subr.mxu0 0.0
      %5508 = vmatpush1.msra.mxu0 %v5478
      %5509 = vmatprep.subr.mxu0 0.0
      %5510 = vmatpush1.msra.mxu0 %v5477
      %5511 = vmatprep.subr.mxu0 0.0
      %5512 = vmatpush1.msra.mxu0 %v5476
      %5513 = vmatprep.subr.mxu0 0.0
      %5514 = vmatpush1.msra.mxu0 %v5475
      %5515 = vmatprep.subr.mxu0 0.0
      %5516 = vmatpush1.msra.mxu0 %v5474
      %5517 = vmatprep.subr.mxu0 0.0
      %5518 = vmatpush1.msra.mxu0 %v5473
      %5519 = vmatprep.subr.mxu0 0.0
      %5520 = vmatpush2.msra.mxu0 0.0
      %5521 = vmatprep.subr.mxu0 0.0
      %5522 = vmatpush2.msra.mxu0 0.0
      %5523 = vmatprep.subr.mxu0 0.0
      %5524 = vmatpush2.msra.mxu0 0.0
      %5525 = vmatprep.subr.mxu0 0.0
      %5526 = vmatpush2.msra.mxu0 0.0
      %5527 = vmatprep.subr.mxu0 0.0
      %5528 = vmatpush2.msra.mxu0 0.0
      %5529 = vmatprep.subr.mxu0 0.0
      %5530 = vmatpush2.msra.mxu0 0.0
      %5531 = vmatprep.subr.mxu0 0.0
      %5532 = vmatpush2.msra.mxu0 0.0
      %5533 = vmatprep.subr.mxu0 0.0
      %5534 = vmatpush2.msra.mxu0 0.0
      %5535 = vmatprep.subr.mxu0 0.0
      %5536 = vmatpush2.msra.mxu0 0.0
      %5537 = vmatprep.subr.mxu0 0.0
      %5538 = vmatpush2.msra.mxu0 0.0
      %5539 = vmatprep.subr.mxu0 0.0
      %5540 = vmatpush2.msra.mxu0 0.0
      %5541 = vmatprep.subr.mxu0 0.0
      %5542 = vmatpush2.msra.mxu0 0.0
      %5543 = vmatprep.subr.mxu0 0.0
      %5544 = vmatpush2.msra.mxu0 0.0
      %5545 = vmatprep.subr.mxu0 0.0
      %5546 = vmatpush2.msra.mxu0 0.0
      %5547 = vmatprep.subr.mxu0 0.0
      %5548 = vmatpush2.msra.mxu0 0.0
      %5549 = vmatprep.subr.mxu0 0.0
      %5550 = vmatpush2.msra.mxu0 0.0
      %5551 = vmatprep.mubr.f32.mxu0 0.0
      %5552 = vmatmul.mubr.f32.gmra.mxu0 %v3957
      %v5553 = vpop.f32.mrf.mxu0
      %v5554 = vadd.f32 0.0, %v5553
      %v5555 = vpop.f32.mrf.mxu0
      %5556 = vmatprep.mubr.f32.mxu0 0.0
      %5557 = vmatmul.mubr.f32.gmra.mxu0 %v3959
      %v5558 = vpop.f32.mrf.mxu0
      %v5559 = vadd.f32 0.0, %v5558
      %v5560 = vpop.f32.mrf.mxu0
      %5561 = vmatprep.mubr.f32.mxu0 0.0
      %5562 = vmatmul.mubr.f32.gmra.mxu0 %v3961
      %v5563 = vpop.f32.mrf.mxu0
      %v5564 = vadd.f32 0.0, %v5563
      %v5565 = vpop.f32.mrf.mxu0
      %5566 = vmatprep.mubr.f32.mxu0 0.0
      %5567 = vmatmul.mubr.f32.gmra.mxu0 %v3963
      %v5568 = vpop.f32.mrf.mxu0
      %v5569 = vadd.f32 0.0, %v5568
      %v5570 = vpop.f32.mrf.mxu0
      %5571 = vmatprep.mubr.f32.mxu0 0.0
      %5572 = vmatmul.mubr.f32.gmra.mxu0 %v3965
      %v5573 = vpop.f32.mrf.mxu0
      %v5574 = vadd.f32 0.0, %v5573
      %v5575 = vpop.f32.mrf.mxu0
      %5576 = vmatprep.mubr.f32.mxu0 0.0
      %5577 = vmatmul.mubr.f32.gmra.mxu0 %v3967
      %v5578 = vpop.f32.mrf.mxu0
      %v5579 = vadd.f32 0.0, %v5578
      %v5580 = vpop.f32.mrf.mxu0
      %5581 = vmatprep.mubr.f32.mxu0 0.0
      %5582 = vmatmul.mubr.f32.gmra.mxu0 %v3969
      %v5583 = vpop.f32.mrf.mxu0
      %v5584 = vadd.f32 0.0, %v5583
      %v5585 = vpop.f32.mrf.mxu0
      %5586 = vmatprep.mubr.f32.mxu0 0.0
      %5587 = vmatmul.mubr.f32.gmra.mxu0 %v3971
      %v5588 = vpop.f32.mrf.mxu0
      %v5589 = vadd.f32 0.0, %v5588
      %v5590 = vpop.f32.mrf.mxu0
      %5591 = vmatprep.mubr.f32.mxu0 0.0
      %5592 = vmatmul.mubr.f32.gmra.mxu0 %v3973
      %v5593 = vpop.f32.mrf.mxu0
      %v5594 = vadd.f32 0.0, %v5593
      %v5595 = vpop.f32.mrf.mxu0
      %5596 = vmatprep.mubr.f32.mxu0 0.0
      %5597 = vmatmul.mubr.f32.gmra.mxu0 %v3975
      %v5598 = vpop.f32.mrf.mxu0
      %v5599 = vadd.f32 0.0, %v5598
      %v5600 = vpop.f32.mrf.mxu0
      %5601 = vmatprep.mubr.f32.mxu0 0.0
      %5602 = vmatmul.mubr.f32.gmra.mxu0 %v3977
      %v5603 = vpop.f32.mrf.mxu0
      %v5604 = vadd.f32 0.0, %v5603
      %v5605 = vpop.f32.mrf.mxu0
      %5606 = vmatprep.mubr.f32.mxu0 0.0
      %5607 = vmatmul.mubr.f32.gmra.mxu0 %v3979
      %v5608 = vpop.f32.mrf.mxu0
      %v5609 = vadd.f32 0.0, %v5608
      %v5610 = vpop.f32.mrf.mxu0
      %5611 = vmatprep.mubr.f32.mxu0 0.0
      %5612 = vmatmul.mubr.f32.gmra.mxu0 %v3981
      %v5613 = vpop.f32.mrf.mxu0
      %v5614 = vadd.f32 0.0, %v5613
      %v5615 = vpop.f32.mrf.mxu0
      %5616 = vmatprep.mubr.f32.mxu0 0.0
      %5617 = vmatmul.mubr.f32.gmra.mxu0 %v3983
      %v5618 = vpop.f32.mrf.mxu0
      %v5619 = vadd.f32 0.0, %v5618
      %v5620 = vpop.f32.mrf.mxu0
      %5621 = vmatprep.mubr.f32.mxu0 0.0
      %5622 = vmatmul.mubr.f32.gmra.mxu0 %v3985
      %v5623 = vpop.f32.mrf.mxu0
      %v5624 = vadd.f32 0.0, %v5623
      %v5625 = vpop.f32.mrf.mxu0
      %5626 = vmatprep.mubr.f32.mxu0 0.0
      %5627 = vmatmul.mubr.f32.gmra.mxu0 %v3987
      %v5628 = vpop.f32.mrf.mxu0
      %v5629 = vadd.f32 0.0, %v5628
      %v5630 = vpop.f32.mrf.mxu0
      %5631 = vmatprep.mubr.f32.mxu0 0.0
      %5632 = vmatmul.mubr.f32.gmra.mxu0 %v3989
      %v5633 = vpop.f32.mrf.mxu0
      %v5634 = vadd.f32 0.0, %v5633
      %v5635 = vpop.f32.mrf.mxu0
      %5636 = vmatprep.mubr.f32.mxu0 0.0
      %5637 = vmatmul.mubr.f32.gmra.mxu0 %v3991
      %v5638 = vpop.f32.mrf.mxu0
      %v5639 = vadd.f32 0.0, %v5638
      %v5640 = vpop.f32.mrf.mxu0
      %5641 = vmatprep.mubr.f32.mxu0 0.0
      %5642 = vmatmul.mubr.f32.gmra.mxu0 %v3993
      %v5643 = vpop.f32.mrf.mxu0
      %v5644 = vadd.f32 0.0, %v5643
      %v5645 = vpop.f32.mrf.mxu0
      %5646 = vmatprep.mubr.f32.mxu0 0.0
      %5647 = vmatmul.mubr.f32.gmra.mxu0 %v3995
      %v5648 = vpop.f32.mrf.mxu0
      %v5649 = vadd.f32 0.0, %v5648
      %v5650 = vpop.f32.mrf.mxu0
      %5651 = vmatprep.mubr.f32.mxu0 0.0
      %5652 = vmatmul.mubr.f32.gmra.mxu0 %v3997
      %v5653 = vpop.f32.mrf.mxu0
      %v5654 = vadd.f32 0.0, %v5653
      %v5655 = vpop.f32.mrf.mxu0
      %5656 = vmatprep.mubr.f32.mxu0 0.0
      %5657 = vmatmul.mubr.f32.gmra.mxu0 %v3999
      %v5658 = vpop.f32.mrf.mxu0
      %v5659 = vadd.f32 0.0, %v5658
      %v5660 = vpop.f32.mrf.mxu0
      %5661 = vmatprep.mubr.f32.mxu0 0.0
      %5662 = vmatmul.mubr.f32.gmra.mxu0 %v4001
      %v5663 = vpop.f32.mrf.mxu0
      %v5664 = vadd.f32 0.0, %v5663
      %v5665 = vpop.f32.mrf.mxu0
      %5666 = vmatprep.mubr.f32.mxu0 0.0
      %5667 = vmatmul.mubr.f32.gmra.mxu0 %v4003
      %v5668 = vpop.f32.mrf.mxu0
      %v5669 = vadd.f32 0.0, %v5668
      %v5670 = vpop.f32.mrf.mxu0
      %5671 = vmatprep.mubr.f32.mxu0 0.0
      %5672 = vmatmul.mubr.f32.gmra.mxu0 %v4005
      %v5673 = vpop.f32.mrf.mxu0
      %v5674 = vadd.f32 0.0, %v5673
      %v5675 = vpop.f32.mrf.mxu0
      %5676 = vmatprep.mubr.f32.mxu0 0.0
      %5677 = vmatmul.mubr.f32.gmra.mxu0 %v4007
      %v5678 = vpop.f32.mrf.mxu0
      %v5679 = vadd.f32 0.0, %v5678
      %v5680 = vpop.f32.mrf.mxu0
      %5681 = vmatprep.mubr.f32.mxu0 0.0
      %5682 = vmatmul.mubr.f32.gmra.mxu0 %v4009
      %v5683 = vpop.f32.mrf.mxu0
      %v5684 = vadd.f32 0.0, %v5683
      %v5685 = vpop.f32.mrf.mxu0
      %5686 = vmatprep.mubr.f32.mxu0 0.0
      %5687 = vmatmul.mubr.f32.gmra.mxu0 %v4011
      %v5688 = vpop.f32.mrf.mxu0
      %v5689 = vadd.f32 0.0, %v5688
      %v5690 = vpop.f32.mrf.mxu0
      %5691 = vmatprep.mubr.f32.mxu0 0.0
      %5692 = vmatmul.mubr.f32.gmra.mxu0 %v4659
      %v5693 = vpop.f32.mrf.mxu0
      %v5694 = vadd.f32 0.0, %v5693
      %v5695 = vpop.f32.mrf.mxu0
      %5696 = vmatprep.mubr.f32.mxu0 0.0
      %5697 = vmatmul.mubr.f32.gmra.mxu0 %v4662
      %v5698 = vpop.f32.mrf.mxu0
      %v5699 = vadd.f32 0.0, %v5698
      %v5700 = vpop.f32.mrf.mxu0
      %5701 = vmatprep.mubr.f32.mxu0 0.0
      %5702 = vmatmul.mubr.f32.gmra.mxu0 %v5482
      %v5703 = vpop.f32.mrf.mxu0
      %v5704 = vadd.f32 0.0, %v5703
      %v5705 = vpop.f32.mrf.mxu0
      %5706 = vmatprep.mubr.f32.mxu0 0.0
      %5707 = vmatmul.mubr.f32.gmra.mxu0 %v5485
      %v5708 = vpop.f32.mrf.mxu0
      %v5709 = vadd.f32 0.0, %v5708
      %v5710 = vpop.f32.mrf.mxu0
      %5711 = vdwg.mxu0
      %v5712 = vadd.f32 %v5440, %v5554
      %v5713 = vadd.f32 %v5441, %v5559
      %v5714 = vadd.f32 %v5442, %v5564
      %v5715 = vadd.f32 %v5443, %v5569
      %v5716 = vadd.f32 %v5444, %v5574
      %v5717 = vadd.f32 %v5445, %v5579
      %v5718 = vadd.f32 %v5446, %v5584
      %v5719 = vadd.f32 %v5447, %v5589
      %v5720 = vadd.f32 %v5448, %v5594
      %v5721 = vadd.f32 %v5449, %v5599
      %v5722 = vadd.f32 %v5450, %v5604
      %v5723 = vadd.f32 %v5451, %v5609
      %v5724 = vadd.f32 %v5452, %v5614
      %v5725 = vadd.f32 %v5453, %v5619
      %v5726 = vadd.f32 %v5454, %v5624
      %v5727 = vadd.f32 %v5455, %v5629
      %v5728 = vadd.f32 %v5456, %v5634
      %v5729 = vadd.f32 %v5457, %v5639
      %v5730 = vadd.f32 %v5458, %v5644
      %v5731 = vadd.f32 %v5459, %v5649
      %v5732 = vadd.f32 %v5460, %v5654
      %v5733 = vadd.f32 %v5461, %v5659
      %v5734 = vadd.f32 %v5462, %v5664
      %v5735 = vadd.f32 %v5463, %v5669
      %v5736 = vadd.f32 %v5464, %v5674
      %v5737 = vadd.f32 %v5465, %v5679
      %v5738 = vadd.f32 %v5466, %v5684
      %v5739 = vadd.f32 %v5467, %v5689
      %v5740 = vadd.f32 %v5468, %v5694
      %v5741 = vadd.f32 %v5469, %v5699
      %v5742 = vadd.f32 %v5470, %v5704
      %v5743 = vadd.f32 %v5471, %v5709
      %v5745 = vrot.slane %v3511, 1
      %v5746 = vrot.slane %v3512, 1
      %v5747 = vsel %vm3570, %v5745, %v5746
      %v5748 = vrot.slane %v3513, 1
      %v5749 = vsel %vm3570, %v5746, %v5748
      %s5750 = scalar_lea.vmem %s4, 448
      %v5751 = vld [vmem:[%s5750] sm:$0xff]
      %v5752 = vld [vmem:[%s5750 + $0x8] sm:$0xff]
      %v5753 = vld [vmem:[%s5750 + $0x10] sm:$0xff]
      %v5754 = vld [vmem:[%s5750 + $0x18] sm:$0xff]
      %v5755 = vld [vmem:[%s5750 + $0x20] sm:$0xff]
      %v5756 = vld [vmem:[%s5750 + $0x28] sm:$0xff]
      %v5757 = vld [vmem:[%s5750 + $0x30] sm:$0xff]
      %v5758 = vld [vmem:[%s5750 + $0x38] sm:$0xff]
      %v5759 = vsel %vm3081, %v5747, 0
      %v5761 = vsel %vm3081, %v5749, 0
      %5763 = vmatprep.subr.mxu0 0.0
      %5764 = vmatpush1.msra.mxu0 0.0
      %5765 = vmatprep.subr.mxu0 0.0
      %5766 = vmatpush1.msra.mxu0 0.0
      %5767 = vmatprep.subr.mxu0 0.0
      %5768 = vmatpush1.msra.mxu0 0.0
      %5769 = vmatprep.subr.mxu0 0.0
      %5770 = vmatpush1.msra.mxu0 0.0
      %5771 = vmatprep.subr.mxu0 0.0
      %5772 = vmatpush1.msra.mxu0 0.0
      %5773 = vmatprep.subr.mxu0 0.0
      %5774 = vmatpush1.msra.mxu0 0.0
      %5775 = vmatprep.subr.mxu0 0.0
      %5776 = vmatpush1.msra.mxu0 0.0
      %5777 = vmatprep.subr.mxu0 0.0
      %5778 = vmatpush1.msra.mxu0 0.0
      %5779 = vmatprep.subr.mxu0 0.0
      %5780 = vmatpush1.msra.mxu0 %v5758
      %5781 = vmatprep.subr.mxu0 0.0
      %5782 = vmatpush1.msra.mxu0 %v5757
      %5783 = vmatprep.subr.mxu0 0.0
      %5784 = vmatpush1.msra.mxu0 %v5756
      %5785 = vmatprep.subr.mxu0 0.0
      %5786 = vmatpush1.msra.mxu0 %v5755
      %5787 = vmatprep.subr.mxu0 0.0
      %5788 = vmatpush1.msra.mxu0 %v5754
      %5789 = vmatprep.subr.mxu0 0.0
      %5790 = vmatpush1.msra.mxu0 %v5753
      %5791 = vmatprep.subr.mxu0 0.0
      %5792 = vmatpush1.msra.mxu0 %v5752
      %5793 = vmatprep.subr.mxu0 0.0
      %5794 = vmatpush1.msra.mxu0 %v5751
      %5795 = vmatprep.subr.mxu0 0.0
      %5796 = vmatpush2.msra.mxu0 0.0
      %5797 = vmatprep.subr.mxu0 0.0
      %5798 = vmatpush2.msra.mxu0 0.0
      %5799 = vmatprep.subr.mxu0 0.0
      %5800 = vmatpush2.msra.mxu0 0.0
      %5801 = vmatprep.subr.mxu0 0.0
      %5802 = vmatpush2.msra.mxu0 0.0
      %5803 = vmatprep.subr.mxu0 0.0
      %5804 = vmatpush2.msra.mxu0 0.0
      %5805 = vmatprep.subr.mxu0 0.0
      %5806 = vmatpush2.msra.mxu0 0.0
      %5807 = vmatprep.subr.mxu0 0.0
      %5808 = vmatpush2.msra.mxu0 0.0
      %5809 = vmatprep.subr.mxu0 0.0
      %5810 = vmatpush2.msra.mxu0 0.0
      %5811 = vmatprep.subr.mxu0 0.0
      %5812 = vmatpush2.msra.mxu0 0.0
      %5813 = vmatprep.subr.mxu0 0.0
      %5814 = vmatpush2.msra.mxu0 0.0
      %5815 = vmatprep.subr.mxu0 0.0
      %5816 = vmatpush2.msra.mxu0 0.0
      %5817 = vmatprep.subr.mxu0 0.0
      %5818 = vmatpush2.msra.mxu0 0.0
      %5819 = vmatprep.subr.mxu0 0.0
      %5820 = vmatpush2.msra.mxu0 0.0
      %5821 = vmatprep.subr.mxu0 0.0
      %5822 = vmatpush2.msra.mxu0 0.0
      %5823 = vmatprep.subr.mxu0 0.0
      %5824 = vmatpush2.msra.mxu0 0.0
      %5825 = vmatprep.subr.mxu0 0.0
      %5826 = vmatpush2.msra.mxu0 0.0
      %5827 = vmatprep.mubr.f32.mxu0 0.0
      %5828 = vmatmul.mubr.f32.gmra.mxu0 %v3668
      %v5829 = vpop.f32.mrf.mxu0
      %v5830 = vadd.f32 0.0, %v5829
      %v5831 = vpop.f32.mrf.mxu0
      %5832 = vmatprep.mubr.f32.mxu0 0.0
      %5833 = vmatmul.mubr.f32.gmra.mxu0 %v3670
      %v5834 = vpop.f32.mrf.mxu0
      %v5835 = vadd.f32 0.0, %v5834
      %v5836 = vpop.f32.mrf.mxu0
      %5837 = vmatprep.mubr.f32.mxu0 0.0
      %5838 = vmatmul.mubr.f32.gmra.mxu0 %v3672
      %v5839 = vpop.f32.mrf.mxu0
      %v5840 = vadd.f32 0.0, %v5839
      %v5841 = vpop.f32.mrf.mxu0
      %5842 = vmatprep.mubr.f32.mxu0 0.0
      %5843 = vmatmul.mubr.f32.gmra.mxu0 %v3674
      %v5844 = vpop.f32.mrf.mxu0
      %v5845 = vadd.f32 0.0, %v5844
      %v5846 = vpop.f32.mrf.mxu0
      %5847 = vmatprep.mubr.f32.mxu0 0.0
      %5848 = vmatmul.mubr.f32.gmra.mxu0 %v3676
      %v5849 = vpop.f32.mrf.mxu0
      %v5850 = vadd.f32 0.0, %v5849
      %v5851 = vpop.f32.mrf.mxu0
      %5852 = vmatprep.mubr.f32.mxu0 0.0
      %5853 = vmatmul.mubr.f32.gmra.mxu0 %v3678
      %v5854 = vpop.f32.mrf.mxu0
      %v5855 = vadd.f32 0.0, %v5854
      %v5856 = vpop.f32.mrf.mxu0
      %5857 = vmatprep.mubr.f32.mxu0 0.0
      %5858 = vmatmul.mubr.f32.gmra.mxu0 %v3680
      %v5859 = vpop.f32.mrf.mxu0
      %v5860 = vadd.f32 0.0, %v5859
      %v5861 = vpop.f32.mrf.mxu0
      %5862 = vmatprep.mubr.f32.mxu0 0.0
      %5863 = vmatmul.mubr.f32.gmra.mxu0 %v3682
      %v5864 = vpop.f32.mrf.mxu0
      %v5865 = vadd.f32 0.0, %v5864
      %v5866 = vpop.f32.mrf.mxu0
      %5867 = vmatprep.mubr.f32.mxu0 0.0
      %5868 = vmatmul.mubr.f32.gmra.mxu0 %v3684
      %v5869 = vpop.f32.mrf.mxu0
      %v5870 = vadd.f32 0.0, %v5869
      %v5871 = vpop.f32.mrf.mxu0
      %5872 = vmatprep.mubr.f32.mxu0 0.0
      %5873 = vmatmul.mubr.f32.gmra.mxu0 %v3686
      %v5874 = vpop.f32.mrf.mxu0
      %v5875 = vadd.f32 0.0, %v5874
      %v5876 = vpop.f32.mrf.mxu0
      %5877 = vmatprep.mubr.f32.mxu0 0.0
      %5878 = vmatmul.mubr.f32.gmra.mxu0 %v3688
      %v5879 = vpop.f32.mrf.mxu0
      %v5880 = vadd.f32 0.0, %v5879
      %v5881 = vpop.f32.mrf.mxu0
      %5882 = vmatprep.mubr.f32.mxu0 0.0
      %5883 = vmatmul.mubr.f32.gmra.mxu0 %v3690
      %v5884 = vpop.f32.mrf.mxu0
      %v5885 = vadd.f32 0.0, %v5884
      %v5886 = vpop.f32.mrf.mxu0
      %5887 = vmatprep.mubr.f32.mxu0 0.0
      %5888 = vmatmul.mubr.f32.gmra.mxu0 %v3692
      %v5889 = vpop.f32.mrf.mxu0
      %v5890 = vadd.f32 0.0, %v5889
      %v5891 = vpop.f32.mrf.mxu0
      %5892 = vmatprep.mubr.f32.mxu0 0.0
      %5893 = vmatmul.mubr.f32.gmra.mxu0 %v3694
      %v5894 = vpop.f32.mrf.mxu0
      %v5895 = vadd.f32 0.0, %v5894
      %v5896 = vpop.f32.mrf.mxu0
      %5897 = vmatprep.mubr.f32.mxu0 0.0
      %5898 = vmatmul.mubr.f32.gmra.mxu0 %v3696
      %v5899 = vpop.f32.mrf.mxu0
      %v5900 = vadd.f32 0.0, %v5899
      %v5901 = vpop.f32.mrf.mxu0
      %5902 = vmatprep.mubr.f32.mxu0 0.0
      %5903 = vmatmul.mubr.f32.gmra.mxu0 %v3698
      %v5904 = vpop.f32.mrf.mxu0
      %v5905 = vadd.f32 0.0, %v5904
      %v5906 = vpop.f32.mrf.mxu0
      %5907 = vmatprep.mubr.f32.mxu0 0.0
      %5908 = vmatmul.mubr.f32.gmra.mxu0 %v3700
      %v5909 = vpop.f32.mrf.mxu0
      %v5910 = vadd.f32 0.0, %v5909
      %v5911 = vpop.f32.mrf.mxu0
      %5912 = vmatprep.mubr.f32.mxu0 0.0
      %5913 = vmatmul.mubr.f32.gmra.mxu0 %v3702
      %v5914 = vpop.f32.mrf.mxu0
      %v5915 = vadd.f32 0.0, %v5914
      %v5916 = vpop.f32.mrf.mxu0
      %5917 = vmatprep.mubr.f32.mxu0 0.0
      %5918 = vmatmul.mubr.f32.gmra.mxu0 %v3704
      %v5919 = vpop.f32.mrf.mxu0
      %v5920 = vadd.f32 0.0, %v5919
      %v5921 = vpop.f32.mrf.mxu0
      %5922 = vmatprep.mubr.f32.mxu0 0.0
      %5923 = vmatmul.mubr.f32.gmra.mxu0 %v3706
      %v5924 = vpop.f32.mrf.mxu0
      %v5925 = vadd.f32 0.0, %v5924
      %v5926 = vpop.f32.mrf.mxu0
      %5927 = vmatprep.mubr.f32.mxu0 0.0
      %5928 = vmatmul.mubr.f32.gmra.mxu0 %v3708
      %v5929 = vpop.f32.mrf.mxu0
      %v5930 = vadd.f32 0.0, %v5929
      %v5931 = vpop.f32.mrf.mxu0
      %5932 = vmatprep.mubr.f32.mxu0 0.0
      %5933 = vmatmul.mubr.f32.gmra.mxu0 %v3710
      %v5934 = vpop.f32.mrf.mxu0
      %v5935 = vadd.f32 0.0, %v5934
      %v5936 = vpop.f32.mrf.mxu0
      %5937 = vmatprep.mubr.f32.mxu0 0.0
      %5938 = vmatmul.mubr.f32.gmra.mxu0 %v3712
      %v5939 = vpop.f32.mrf.mxu0
      %v5940 = vadd.f32 0.0, %v5939
      %v5941 = vpop.f32.mrf.mxu0
      %5942 = vmatprep.mubr.f32.mxu0 0.0
      %5943 = vmatmul.mubr.f32.gmra.mxu0 %v3714
      %v5944 = vpop.f32.mrf.mxu0
      %v5945 = vadd.f32 0.0, %v5944
      %v5946 = vpop.f32.mrf.mxu0
      %5947 = vmatprep.mubr.f32.mxu0 0.0
      %5948 = vmatmul.mubr.f32.gmra.mxu0 %v3716
      %v5949 = vpop.f32.mrf.mxu0
      %v5950 = vadd.f32 0.0, %v5949
      %v5951 = vpop.f32.mrf.mxu0
      %5952 = vmatprep.mubr.f32.mxu0 0.0
      %5953 = vmatmul.mubr.f32.gmra.mxu0 %v3718
      %v5954 = vpop.f32.mrf.mxu0
      %v5955 = vadd.f32 0.0, %v5954
      %v5956 = vpop.f32.mrf.mxu0
      %5957 = vmatprep.mubr.f32.mxu0 0.0
      %5958 = vmatmul.mubr.f32.gmra.mxu0 %v3720
      %v5959 = vpop.f32.mrf.mxu0
      %v5960 = vadd.f32 0.0, %v5959
      %v5961 = vpop.f32.mrf.mxu0
      %5962 = vmatprep.mubr.f32.mxu0 0.0
      %5963 = vmatmul.mubr.f32.gmra.mxu0 %v3722
      %v5964 = vpop.f32.mrf.mxu0
      %v5965 = vadd.f32 0.0, %v5964
      %v5966 = vpop.f32.mrf.mxu0
      %5967 = vmatprep.mubr.f32.mxu0 0.0
      %5968 = vmatmul.mubr.f32.gmra.mxu0 %v4936
      %v5969 = vpop.f32.mrf.mxu0
      %v5970 = vadd.f32 0.0, %v5969
      %v5971 = vpop.f32.mrf.mxu0
      %5972 = vmatprep.mubr.f32.mxu0 0.0
      %5973 = vmatmul.mubr.f32.gmra.mxu0 %v4938
      %v5974 = vpop.f32.mrf.mxu0
      %v5975 = vadd.f32 0.0, %v5974
      %v5976 = vpop.f32.mrf.mxu0
      %5977 = vmatprep.mubr.f32.mxu0 0.0
      %5978 = vmatmul.mubr.f32.gmra.mxu0 %v5759
      %v5979 = vpop.f32.mrf.mxu0
      %v5980 = vadd.f32 0.0, %v5979
      %v5981 = vpop.f32.mrf.mxu0
      %5982 = vmatprep.mubr.f32.mxu0 0.0
      %5983 = vmatmul.mubr.f32.gmra.mxu0 %v5761
      %v5984 = vpop.f32.mrf.mxu0
      %v5985 = vadd.f32 0.0, %v5984
      %v5986 = vpop.f32.mrf.mxu0
      %5987 = vdwg.mxu0
      %v5988 = vadd.f32 %v5712, %v5830
      %v5989 = vadd.f32 %v5713, %v5835
      %v5990 = vadd.f32 %v5714, %v5840
      %v5991 = vadd.f32 %v5715, %v5845
      %v5992 = vadd.f32 %v5716, %v5850
      %v5993 = vadd.f32 %v5717, %v5855
      %v5994 = vadd.f32 %v5718, %v5860
      %v5995 = vadd.f32 %v5719, %v5865
      %v5996 = vadd.f32 %v5720, %v5870
      %v5997 = vadd.f32 %v5721, %v5875
      %v5998 = vadd.f32 %v5722, %v5880
      %v5999 = vadd.f32 %v5723, %v5885
      %v6000 = vadd.f32 %v5724, %v5890
      %v6001 = vadd.f32 %v5725, %v5895
      %v6002 = vadd.f32 %v5726, %v5900
      %v6003 = vadd.f32 %v5727, %v5905
      %v6004 = vadd.f32 %v5728, %v5910
      %v6005 = vadd.f32 %v5729, %v5915
      %v6006 = vadd.f32 %v5730, %v5920
      %v6007 = vadd.f32 %v5731, %v5925
      %v6008 = vadd.f32 %v5732, %v5930
      %v6009 = vadd.f32 %v5733, %v5935
      %v6010 = vadd.f32 %v5734, %v5940
      %v6011 = vadd.f32 %v5735, %v5945
      %v6012 = vadd.f32 %v5736, %v5950
      %v6013 = vadd.f32 %v5737, %v5955
      %v6014 = vadd.f32 %v5738, %v5960
      %v6015 = vadd.f32 %v5739, %v5965
      %v6016 = vadd.f32 %v5740, %v5970
      %v6017 = vadd.f32 %v5741, %v5975
      %v6018 = vadd.f32 %v5742, %v5980
      %v6019 = vadd.f32 %v5743, %v5985
      %v6020 = vrot.slane %v3511, 2
      %v6021 = vrot.slane %v3512, 2
      %v6022 = vsel %vm4238, %v6020, %v6021
      %v6023 = vrot.slane %v3513, 2
      %v6024 = vsel %vm4238, %v6021, %v6023
      %s6025 = scalar_lea.vmem %s4, 512
      %v6026 = vld [vmem:[%s6025] sm:$0xff]
      %v6027 = vld [vmem:[%s6025 + $0x8] sm:$0xff]
      %v6028 = vld [vmem:[%s6025 + $0x10] sm:$0xff]
      %v6029 = vld [vmem:[%s6025 + $0x18] sm:$0xff]
      %v6030 = vld [vmem:[%s6025 + $0x20] sm:$0xff]
      %v6031 = vld [vmem:[%s6025 + $0x28] sm:$0xff]
      %v6032 = vld [vmem:[%s6025 + $0x30] sm:$0xff]
      %v6033 = vld [vmem:[%s6025 + $0x38] sm:$0xff]
      %v6034 = vsel %vm3081, %v6022, 0
      %v6036 = vsel %vm3081, %v6024, 0
      %6038 = vmatprep.subr.mxu0 0.0
      %6039 = vmatpush1.msra.mxu0 0.0
      %6040 = vmatprep.subr.mxu0 0.0
      %6041 = vmatpush1.msra.mxu0 0.0
      %6042 = vmatprep.subr.mxu0 0.0
      %6043 = vmatpush1.msra.mxu0 0.0
      %6044 = vmatprep.subr.mxu0 0.0
      %6045 = vmatpush1.msra.mxu0 0.0
      %6046 = vmatprep.subr.mxu0 0.0
      %6047 = vmatpush1.msra.mxu0 0.0
      %6048 = vmatprep.subr.mxu0 0.0
      %6049 = vmatpush1.msra.mxu0 0.0
      %6050 = vmatprep.subr.mxu0 0.0
      %6051 = vmatpush1.msra.mxu0 0.0
      %6052 = vmatprep.subr.mxu0 0.0
      %6053 = vmatpush1.msra.mxu0 0.0
      %6054 = vmatprep.subr.mxu0 0.0
      %6055 = vmatpush1.msra.mxu0 %v6033
      %6056 = vmatprep.subr.mxu0 0.0
      %6057 = vmatpush1.msra.mxu0 %v6032
      %6058 = vmatprep.subr.mxu0 0.0
      %6059 = vmatpush1.msra.mxu0 %v6031
      %6060 = vmatprep.subr.mxu0 0.0
      %6061 = vmatpush1.msra.mxu0 %v6030
      %6062 = vmatprep.subr.mxu0 0.0
      %6063 = vmatpush1.msra.mxu0 %v6029
      %6064 = vmatprep.subr.mxu0 0.0
      %6065 = vmatpush1.msra.mxu0 %v6028
      %6066 = vmatprep.subr.mxu0 0.0
      %6067 = vmatpush1.msra.mxu0 %v6027
      %6068 = vmatprep.subr.mxu0 0.0
      %6069 = vmatpush1.msra.mxu0 %v6026
      %6070 = vmatprep.subr.mxu0 0.0
      %6071 = vmatpush2.msra.mxu0 0.0
      %6072 = vmatprep.subr.mxu0 0.0
      %6073 = vmatpush2.msra.mxu0 0.0
      %6074 = vmatprep.subr.mxu0 0.0
      %6075 = vmatpush2.msra.mxu0 0.0
      %6076 = vmatprep.subr.mxu0 0.0
      %6077 = vmatpush2.msra.mxu0 0.0
      %6078 = vmatprep.subr.mxu0 0.0
      %6079 = vmatpush2.msra.mxu0 0.0
      %6080 = vmatprep.subr.mxu0 0.0
      %6081 = vmatpush2.msra.mxu0 0.0
      %6082 = vmatprep.subr.mxu0 0.0
      %6083 = vmatpush2.msra.mxu0 0.0
      %6084 = vmatprep.subr.mxu0 0.0
      %6085 = vmatpush2.msra.mxu0 0.0
      %6086 = vmatprep.subr.mxu0 0.0
      %6087 = vmatpush2.msra.mxu0 0.0
      %6088 = vmatprep.subr.mxu0 0.0
      %6089 = vmatpush2.msra.mxu0 0.0
      %6090 = vmatprep.subr.mxu0 0.0
      %6091 = vmatpush2.msra.mxu0 0.0
      %6092 = vmatprep.subr.mxu0 0.0
      %6093 = vmatpush2.msra.mxu0 0.0
      %6094 = vmatprep.subr.mxu0 0.0
      %6095 = vmatpush2.msra.mxu0 0.0
      %6096 = vmatprep.subr.mxu0 0.0
      %6097 = vmatpush2.msra.mxu0 0.0
      %6098 = vmatprep.subr.mxu0 0.0
      %6099 = vmatpush2.msra.mxu0 0.0
      %6100 = vmatprep.subr.mxu0 0.0
      %6101 = vmatpush2.msra.mxu0 0.0
      %6102 = vmatprep.mubr.f32.mxu0 0.0
      %6103 = vmatmul.mubr.f32.gmra.mxu0 %v4336
      %v6104 = vpop.f32.mrf.mxu0
      %v6105 = vadd.f32 0.0, %v6104
      %v6106 = vpop.f32.mrf.mxu0
      %6107 = vmatprep.mubr.f32.mxu0 0.0
      %6108 = vmatmul.mubr.f32.gmra.mxu0 %v4338
      %v6109 = vpop.f32.mrf.mxu0
      %v6110 = vadd.f32 0.0, %v6109
      %v6111 = vpop.f32.mrf.mxu0
      %6112 = vmatprep.mubr.f32.mxu0 0.0
      %6113 = vmatmul.mubr.f32.gmra.mxu0 %v4340
      %v6114 = vpop.f32.mrf.mxu0
      %v6115 = vadd.f32 0.0, %v6114
      %v6116 = vpop.f32.mrf.mxu0
      %6117 = vmatprep.mubr.f32.mxu0 0.0
      %6118 = vmatmul.mubr.f32.gmra.mxu0 %v4342
      %v6119 = vpop.f32.mrf.mxu0
      %v6120 = vadd.f32 0.0, %v6119
      %v6121 = vpop.f32.mrf.mxu0
      %6122 = vmatprep.mubr.f32.mxu0 0.0
      %6123 = vmatmul.mubr.f32.gmra.mxu0 %v4344
      %v6124 = vpop.f32.mrf.mxu0
      %v6125 = vadd.f32 0.0, %v6124
      %v6126 = vpop.f32.mrf.mxu0
      %6127 = vmatprep.mubr.f32.mxu0 0.0
      %6128 = vmatmul.mubr.f32.gmra.mxu0 %v4346
      %v6129 = vpop.f32.mrf.mxu0
      %v6130 = vadd.f32 0.0, %v6129
      %v6131 = vpop.f32.mrf.mxu0
      %6132 = vmatprep.mubr.f32.mxu0 0.0
      %6133 = vmatmul.mubr.f32.gmra.mxu0 %v4348
      %v6134 = vpop.f32.mrf.mxu0
      %v6135 = vadd.f32 0.0, %v6134
      %v6136 = vpop.f32.mrf.mxu0
      %6137 = vmatprep.mubr.f32.mxu0 0.0
      %6138 = vmatmul.mubr.f32.gmra.mxu0 %v4350
      %v6139 = vpop.f32.mrf.mxu0
      %v6140 = vadd.f32 0.0, %v6139
      %v6141 = vpop.f32.mrf.mxu0
      %6142 = vmatprep.mubr.f32.mxu0 0.0
      %6143 = vmatmul.mubr.f32.gmra.mxu0 %v4352
      %v6144 = vpop.f32.mrf.mxu0
      %v6145 = vadd.f32 0.0, %v6144
      %v6146 = vpop.f32.mrf.mxu0
      %6147 = vmatprep.mubr.f32.mxu0 0.0
      %6148 = vmatmul.mubr.f32.gmra.mxu0 %v4354
      %v6149 = vpop.f32.mrf.mxu0
      %v6150 = vadd.f32 0.0, %v6149
      %v6151 = vpop.f32.mrf.mxu0
      %6152 = vmatprep.mubr.f32.mxu0 0.0
      %6153 = vmatmul.mubr.f32.gmra.mxu0 %v4356
      %v6154 = vpop.f32.mrf.mxu0
      %v6155 = vadd.f32 0.0, %v6154
      %v6156 = vpop.f32.mrf.mxu0
      %6157 = vmatprep.mubr.f32.mxu0 0.0
      %6158 = vmatmul.mubr.f32.gmra.mxu0 %v4358
      %v6159 = vpop.f32.mrf.mxu0
      %v6160 = vadd.f32 0.0, %v6159
      %v6161 = vpop.f32.mrf.mxu0
      %6162 = vmatprep.mubr.f32.mxu0 0.0
      %6163 = vmatmul.mubr.f32.gmra.mxu0 %v4360
      %v6164 = vpop.f32.mrf.mxu0
      %v6165 = vadd.f32 0.0, %v6164
      %v6166 = vpop.f32.mrf.mxu0
      %6167 = vmatprep.mubr.f32.mxu0 0.0
      %6168 = vmatmul.mubr.f32.gmra.mxu0 %v4362
      %v6169 = vpop.f32.mrf.mxu0
      %v6170 = vadd.f32 0.0, %v6169
      %v6171 = vpop.f32.mrf.mxu0
      %6172 = vmatprep.mubr.f32.mxu0 0.0
      %6173 = vmatmul.mubr.f32.gmra.mxu0 %v4364
      %v6174 = vpop.f32.mrf.mxu0
      %v6175 = vadd.f32 0.0, %v6174
      %v6176 = vpop.f32.mrf.mxu0
      %6177 = vmatprep.mubr.f32.mxu0 0.0
      %6178 = vmatmul.mubr.f32.gmra.mxu0 %v4366
      %v6179 = vpop.f32.mrf.mxu0
      %v6180 = vadd.f32 0.0, %v6179
      %v6181 = vpop.f32.mrf.mxu0
      %6182 = vmatprep.mubr.f32.mxu0 0.0
      %6183 = vmatmul.mubr.f32.gmra.mxu0 %v4368
      %v6184 = vpop.f32.mrf.mxu0
      %v6185 = vadd.f32 0.0, %v6184
      %v6186 = vpop.f32.mrf.mxu0
      %6187 = vmatprep.mubr.f32.mxu0 0.0
      %6188 = vmatmul.mubr.f32.gmra.mxu0 %v4370
      %v6189 = vpop.f32.mrf.mxu0
      %v6190 = vadd.f32 0.0, %v6189
      %v6191 = vpop.f32.mrf.mxu0
      %6192 = vmatprep.mubr.f32.mxu0 0.0
      %6193 = vmatmul.mubr.f32.gmra.mxu0 %v4372
      %v6194 = vpop.f32.mrf.mxu0
      %v6195 = vadd.f32 0.0, %v6194
      %v6196 = vpop.f32.mrf.mxu0
      %6197 = vmatprep.mubr.f32.mxu0 0.0
      %6198 = vmatmul.mubr.f32.gmra.mxu0 %v4374
      %v6199 = vpop.f32.mrf.mxu0
      %v6200 = vadd.f32 0.0, %v6199
      %v6201 = vpop.f32.mrf.mxu0
      %6202 = vmatprep.mubr.f32.mxu0 0.0
      %6203 = vmatmul.mubr.f32.gmra.mxu0 %v4376
      %v6204 = vpop.f32.mrf.mxu0
      %v6205 = vadd.f32 0.0, %v6204
      %v6206 = vpop.f32.mrf.mxu0
      %6207 = vmatprep.mubr.f32.mxu0 0.0
      %6208 = vmatmul.mubr.f32.gmra.mxu0 %v4378
      %v6209 = vpop.f32.mrf.mxu0
      %v6210 = vadd.f32 0.0, %v6209
      %v6211 = vpop.f32.mrf.mxu0
      %6212 = vmatprep.mubr.f32.mxu0 0.0
      %6213 = vmatmul.mubr.f32.gmra.mxu0 %v4380
      %v6214 = vpop.f32.mrf.mxu0
      %v6215 = vadd.f32 0.0, %v6214
      %v6216 = vpop.f32.mrf.mxu0
      %6217 = vmatprep.mubr.f32.mxu0 0.0
      %6218 = vmatmul.mubr.f32.gmra.mxu0 %v4382
      %v6219 = vpop.f32.mrf.mxu0
      %v6220 = vadd.f32 0.0, %v6219
      %v6221 = vpop.f32.mrf.mxu0
      %6222 = vmatprep.mubr.f32.mxu0 0.0
      %6223 = vmatmul.mubr.f32.gmra.mxu0 %v4384
      %v6224 = vpop.f32.mrf.mxu0
      %v6225 = vadd.f32 0.0, %v6224
      %v6226 = vpop.f32.mrf.mxu0
      %6227 = vmatprep.mubr.f32.mxu0 0.0
      %6228 = vmatmul.mubr.f32.gmra.mxu0 %v4386
      %v6229 = vpop.f32.mrf.mxu0
      %v6230 = vadd.f32 0.0, %v6229
      %v6231 = vpop.f32.mrf.mxu0
      %6232 = vmatprep.mubr.f32.mxu0 0.0
      %6233 = vmatmul.mubr.f32.gmra.mxu0 %v4388
      %v6234 = vpop.f32.mrf.mxu0
      %v6235 = vadd.f32 0.0, %v6234
      %v6236 = vpop.f32.mrf.mxu0
      %6237 = vmatprep.mubr.f32.mxu0 0.0
      %6238 = vmatmul.mubr.f32.gmra.mxu0 %v4390
      %v6239 = vpop.f32.mrf.mxu0
      %v6240 = vadd.f32 0.0, %v6239
      %v6241 = vpop.f32.mrf.mxu0
      %6242 = vmatprep.mubr.f32.mxu0 0.0
      %6243 = vmatmul.mubr.f32.gmra.mxu0 %v5211
      %v6244 = vpop.f32.mrf.mxu0
      %v6245 = vadd.f32 0.0, %v6244
      %v6246 = vpop.f32.mrf.mxu0
      %6247 = vmatprep.mubr.f32.mxu0 0.0
      %6248 = vmatmul.mubr.f32.gmra.mxu0 %v5213
      %v6249 = vpop.f32.mrf.mxu0
      %v6250 = vadd.f32 0.0, %v6249
      %v6251 = vpop.f32.mrf.mxu0
      %6252 = vmatprep.mubr.f32.mxu0 0.0
      %6253 = vmatmul.mubr.f32.gmra.mxu0 %v6034
      %v6254 = vpop.f32.mrf.mxu0
      %v6255 = vadd.f32 0.0, %v6254
      %v6256 = vpop.f32.mrf.mxu0
      %6257 = vmatprep.mubr.f32.mxu0 0.0
      %6258 = vmatmul.mubr.f32.gmra.mxu0 %v6036
      %v6259 = vpop.f32.mrf.mxu0
      %v6260 = vadd.f32 0.0, %v6259
      %v6261 = vpop.f32.mrf.mxu0
      %6262 = vdwg.mxu0
      %v6263 = vadd.f32 %v5988, %v6105
      %v6264 = vadd.f32 %v5989, %v6110
      %v6265 = vadd.f32 %v5990, %v6115
      %v6266 = vadd.f32 %v5991, %v6120
      %v6267 = vadd.f32 %v5992, %v6125
      %v6268 = vadd.f32 %v5993, %v6130
      %v6269 = vadd.f32 %v5994, %v6135
      %v6270 = vadd.f32 %v5995, %v6140
      %v6271 = vadd.f32 %v5996, %v6145
      %v6272 = vadd.f32 %v5997, %v6150
      %v6273 = vadd.f32 %v5998, %v6155
      %v6274 = vadd.f32 %v5999, %v6160
      %v6275 = vadd.f32 %v6000, %v6165
      %v6276 = vadd.f32 %v6001, %v6170
      %v6277 = vadd.f32 %v6002, %v6175
      %v6278 = vadd.f32 %v6003, %v6180
      %v6279 = vadd.f32 %v6004, %v6185
      %v6280 = vadd.f32 %v6005, %v6190
      %v6281 = vadd.f32 %v6006, %v6195
      %v6282 = vadd.f32 %v6007, %v6200
      %v6283 = vadd.f32 %v6008, %v6205
      %v6284 = vadd.f32 %v6009, %v6210
      %v6285 = vadd.f32 %v6010, %v6215
      %v6286 = vadd.f32 %v6011, %v6220
      %v6287 = vadd.f32 %v6012, %v6225
      %v6288 = vadd.f32 %v6013, %v6230
      %v6289 = vadd.f32 %v6014, %v6235
      %v6290 = vadd.f32 %v6015, %v6240
      %v6291 = vadd.f32 %v6016, %v6245
      %v6292 = vadd.f32 %v6017, %v6250
      %v6293 = vadd.f32 %v6018, %v6255
      %v6294 = vadd.f32 %v6019, %v6260
      %v6295 = vld [vmem:[%s5] sm:$0xff]
      %v6296 = vld [vmem:[%s5 + $0x8] sm:$0xff]
      %v6297 = vld [vmem:[%s5 + $0x10] sm:$0xff]
      %v6298 = vld [vmem:[%s5 + $0x18] sm:$0xff]
      %v6299 = vld [vmem:[%s5 + $0x20] sm:$0xff]
      %v6300 = vld [vmem:[%s5 + $0x28] sm:$0xff]
      %v6301 = vld [vmem:[%s5 + $0x30] sm:$0xff]
      %v6302 = vld [vmem:[%s5 + $0x38] sm:$0xff]
      %v6303 = vsel %vm3266, %v3049, 0
      %v6305 = vsel %vm3266, %v3050, 0
      %v6307 = vsel %vm3266, %v3051, 0
      %v6309 = vsel %vm3266, %v3052, 0
      %v6311 = vsel %vm3266, %v3053, 0
      %v6313 = vsel %vm3266, %v3054, 0
      %v6315 = vsel %vm3266, %v3055, 0
      %v6317 = vsel %vm3266, %v3056, 0
      %v6319 = vsel %vm3266, %v3057, 0
      %v6321 = vsel %vm3266, %v3058, 0
      %v6323 = vsel %vm3266, %v3059, 0
      %v6325 = vsel %vm3266, %v3060, 0
      %v6327 = vsel %vm3266, %v3061, 0
      %v6329 = vsel %vm3266, %v3062, 0
      %v6331 = vsel %vm3266, %v3063, 0
      %v6333 = vsel %vm3266, %v3064, 0
      %v6335 = vsel %vm3266, %v3065, 0
      %v6337 = vsel %vm3266, %v3066, 0
      %v6339 = vsel %vm3266, %v3067, 0
      %v6341 = vsel %vm3266, %v3068, 0
      %v6343 = vsel %vm3266, %v3069, 0
      %v6345 = vsel %vm3266, %v3070, 0
      %v6347 = vsel %vm3266, %v3071, 0
      %v6349 = vsel %vm3266, %v3072, 0
      %v6351 = vsel %vm3266, %v3073, 0
      %v6353 = vsel %vm3266, %v3074, 0
      %v6355 = vsel %vm3266, %v3075, 0
      %v6357 = vsel %vm3266, %v3076, 0
      %v6359 = vsel %vm3266, %v3077, 0
      %v6361 = vsel %vm3266, %v3078, 0
      %v6363 = vsel %vm3266, %v3079, 0
      %v6365 = vsel %vm3266, %v3080, 0
      %6367 = vmatprep.subr.mxu0 0.0
      %6368 = vmatpush1.msra.mxu0 0.0
      %6369 = vmatprep.subr.mxu0 0.0
      %6370 = vmatpush1.msra.mxu0 0.0
      %6371 = vmatprep.subr.mxu0 0.0
      %6372 = vmatpush1.msra.mxu0 0.0
      %6373 = vmatprep.subr.mxu0 0.0
      %6374 = vmatpush1.msra.mxu0 0.0
      %6375 = vmatprep.subr.mxu0 0.0
      %6376 = vmatpush1.msra.mxu0 0.0
      %6377 = vmatprep.subr.mxu0 0.0
      %6378 = vmatpush1.msra.mxu0 0.0
      %6379 = vmatprep.subr.mxu0 0.0
      %6380 = vmatpush1.msra.mxu0 0.0
      %6381 = vmatprep.subr.mxu0 0.0
      %6382 = vmatpush1.msra.mxu0 0.0
      %6383 = vmatprep.subr.mxu0 0.0
      %6384 = vmatpush1.msra.mxu0 0.0
      %6385 = vmatprep.subr.mxu0 0.0
      %6386 = vmatpush1.msra.mxu0 0.0
      %6387 = vmatprep.subr.mxu0 0.0
      %6388 = vmatpush1.msra.mxu0 0.0
      %6389 = vmatprep.subr.mxu0 0.0
      %6390 = vmatpush1.msra.mxu0 0.0
      %6391 = vmatprep.subr.mxu0 0.0
      %6392 = vmatpush1.msra.mxu0 %v6302
      %6393 = vmatprep.subr.mxu0 0.0
      %6394 = vmatpush1.msra.mxu0 %v6301
      %6395 = vmatprep.subr.mxu0 0.0
      %6396 = vmatpush1.msra.mxu0 %v6300
      %6397 = vmatprep.subr.mxu0 0.0
      %6398 = vmatpush1.msra.mxu0 %v6299
      %6399 = vmatprep.subr.mxu0 0.0
      %6400 = vmatpush2.msra.mxu0 0.0
      %6401 = vmatprep.subr.mxu0 0.0
      %6402 = vmatpush2.msra.mxu0 0.0
      %6403 = vmatprep.subr.mxu0 0.0
      %6404 = vmatpush2.msra.mxu0 0.0
      %6405 = vmatprep.subr.mxu0 0.0
      %6406 = vmatpush2.msra.mxu0 0.0
      %6407 = vmatprep.subr.mxu0 0.0
      %6408 = vmatpush2.msra.mxu0 0.0
      %6409 = vmatprep.subr.mxu0 0.0
      %6410 = vmatpush2.msra.mxu0 0.0
      %6411 = vmatprep.subr.mxu0 0.0
      %6412 = vmatpush2.msra.mxu0 0.0
      %6413 = vmatprep.subr.mxu0 0.0
      %6414 = vmatpush2.msra.mxu0 0.0
      %6415 = vmatprep.subr.mxu0 0.0
      %6416 = vmatpush2.msra.mxu0 0.0
      %6417 = vmatprep.subr.mxu0 0.0
      %6418 = vmatpush2.msra.mxu0 0.0
      %6419 = vmatprep.subr.mxu0 0.0
      %6420 = vmatpush2.msra.mxu0 0.0
      %6421 = vmatprep.subr.mxu0 0.0
      %6422 = vmatpush2.msra.mxu0 0.0
      %6423 = vmatprep.subr.mxu0 0.0
      %6424 = vmatpush2.msra.mxu0 0.0
      %6425 = vmatprep.subr.mxu0 0.0
      %6426 = vmatpush2.msra.mxu0 0.0
      %6427 = vmatprep.subr.mxu0 0.0
      %6428 = vmatpush2.msra.mxu0 0.0
      %6429 = vmatprep.subr.mxu0 0.0
      %6430 = vmatpush2.msra.mxu0 0.0
      %6431 = vmatprep.mubr.f32.mxu0 0.0
      %6432 = vmatmul.mubr.f32.gmra.mxu0 %v6303
      %v6433 = vpop.f32.mrf.mxu0
      %v6434 = vadd.f32 0.0, %v6433
      %v6435 = vpop.f32.mrf.mxu0
      %6436 = vmatprep.mubr.f32.mxu0 0.0
      %6437 = vmatmul.mubr.f32.gmra.mxu0 %v6305
      %v6438 = vpop.f32.mrf.mxu0
      %v6439 = vadd.f32 0.0, %v6438
      %v6440 = vpop.f32.mrf.mxu0
      %6441 = vmatprep.mubr.f32.mxu0 0.0
      %6442 = vmatmul.mubr.f32.gmra.mxu0 %v6307
      %v6443 = vpop.f32.mrf.mxu0
      %v6444 = vadd.f32 0.0, %v6443
      %v6445 = vpop.f32.mrf.mxu0
      %6446 = vmatprep.mubr.f32.mxu0 0.0
      %6447 = vmatmul.mubr.f32.gmra.mxu0 %v6309
      %v6448 = vpop.f32.mrf.mxu0
      %v6449 = vadd.f32 0.0, %v6448
      %v6450 = vpop.f32.mrf.mxu0
      %6451 = vmatprep.mubr.f32.mxu0 0.0
      %6452 = vmatmul.mubr.f32.gmra.mxu0 %v6311
      %v6453 = vpop.f32.mrf.mxu0
      %v6454 = vadd.f32 0.0, %v6453
      %v6455 = vpop.f32.mrf.mxu0
      %6456 = vmatprep.mubr.f32.mxu0 0.0
      %6457 = vmatmul.mubr.f32.gmra.mxu0 %v6313
      %v6458 = vpop.f32.mrf.mxu0
      %v6459 = vadd.f32 0.0, %v6458
      %v6460 = vpop.f32.mrf.mxu0
      %6461 = vmatprep.mubr.f32.mxu0 0.0
      %6462 = vmatmul.mubr.f32.gmra.mxu0 %v6315
      %v6463 = vpop.f32.mrf.mxu0
      %v6464 = vadd.f32 0.0, %v6463
      %v6465 = vpop.f32.mrf.mxu0
      %6466 = vmatprep.mubr.f32.mxu0 0.0
      %6467 = vmatmul.mubr.f32.gmra.mxu0 %v6317
      %v6468 = vpop.f32.mrf.mxu0
      %v6469 = vadd.f32 0.0, %v6468
      %v6470 = vpop.f32.mrf.mxu0
      %6471 = vmatprep.mubr.f32.mxu0 0.0
      %6472 = vmatmul.mubr.f32.gmra.mxu0 %v6319
      %v6473 = vpop.f32.mrf.mxu0
      %v6474 = vadd.f32 0.0, %v6473
      %v6475 = vpop.f32.mrf.mxu0
      %6476 = vmatprep.mubr.f32.mxu0 0.0
      %6477 = vmatmul.mubr.f32.gmra.mxu0 %v6321
      %v6478 = vpop.f32.mrf.mxu0
      %v6479 = vadd.f32 0.0, %v6478
      %v6480 = vpop.f32.mrf.mxu0
      %6481 = vmatprep.mubr.f32.mxu0 0.0
      %6482 = vmatmul.mubr.f32.gmra.mxu0 %v6323
      %v6483 = vpop.f32.mrf.mxu0
      %v6484 = vadd.f32 0.0, %v6483
      %v6485 = vpop.f32.mrf.mxu0
      %6486 = vmatprep.mubr.f32.mxu0 0.0
      %6487 = vmatmul.mubr.f32.gmra.mxu0 %v6325
      %v6488 = vpop.f32.mrf.mxu0
      %v6489 = vadd.f32 0.0, %v6488
      %v6490 = vpop.f32.mrf.mxu0
      %6491 = vmatprep.mubr.f32.mxu0 0.0
      %6492 = vmatmul.mubr.f32.gmra.mxu0 %v6327
      %v6493 = vpop.f32.mrf.mxu0
      %v6494 = vadd.f32 0.0, %v6493
      %v6495 = vpop.f32.mrf.mxu0
      %6496 = vmatprep.mubr.f32.mxu0 0.0
      %6497 = vmatmul.mubr.f32.gmra.mxu0 %v6329
      %v6498 = vpop.f32.mrf.mxu0
      %v6499 = vadd.f32 0.0, %v6498
      %v6500 = vpop.f32.mrf.mxu0
      %6501 = vmatprep.mubr.f32.mxu0 0.0
      %6502 = vmatmul.mubr.f32.gmra.mxu0 %v6331
      %v6503 = vpop.f32.mrf.mxu0
      %v6504 = vadd.f32 0.0, %v6503
      %v6505 = vpop.f32.mrf.mxu0
      %6506 = vmatprep.mubr.f32.mxu0 0.0
      %6507 = vmatmul.mubr.f32.gmra.mxu0 %v6333
      %v6508 = vpop.f32.mrf.mxu0
      %v6509 = vadd.f32 0.0, %v6508
      %v6510 = vpop.f32.mrf.mxu0
      %6511 = vmatprep.mubr.f32.mxu0 0.0
      %6512 = vmatmul.mubr.f32.gmra.mxu0 %v6335
      %v6513 = vpop.f32.mrf.mxu0
      %v6514 = vadd.f32 0.0, %v6513
      %v6515 = vpop.f32.mrf.mxu0
      %6516 = vmatprep.mubr.f32.mxu0 0.0
      %6517 = vmatmul.mubr.f32.gmra.mxu0 %v6337
      %v6518 = vpop.f32.mrf.mxu0
      %v6519 = vadd.f32 0.0, %v6518
      %v6520 = vpop.f32.mrf.mxu0
      %6521 = vmatprep.mubr.f32.mxu0 0.0
      %6522 = vmatmul.mubr.f32.gmra.mxu0 %v6339
      %v6523 = vpop.f32.mrf.mxu0
      %v6524 = vadd.f32 0.0, %v6523
      %v6525 = vpop.f32.mrf.mxu0
      %6526 = vmatprep.mubr.f32.mxu0 0.0
      %6527 = vmatmul.mubr.f32.gmra.mxu0 %v6341
      %v6528 = vpop.f32.mrf.mxu0
      %v6529 = vadd.f32 0.0, %v6528
      %v6530 = vpop.f32.mrf.mxu0
      %6531 = vmatprep.mubr.f32.mxu0 0.0
      %6532 = vmatmul.mubr.f32.gmra.mxu0 %v6343
      %v6533 = vpop.f32.mrf.mxu0
      %v6534 = vadd.f32 0.0, %v6533
      %v6535 = vpop.f32.mrf.mxu0
      %6536 = vmatprep.mubr.f32.mxu0 0.0
      %6537 = vmatmul.mubr.f32.gmra.mxu0 %v6345
      %v6538 = vpop.f32.mrf.mxu0
      %v6539 = vadd.f32 0.0, %v6538
      %v6540 = vpop.f32.mrf.mxu0
      %6541 = vmatprep.mubr.f32.mxu0 0.0
      %6542 = vmatmul.mubr.f32.gmra.mxu0 %v6347
      %v6543 = vpop.f32.mrf.mxu0
      %v6544 = vadd.f32 0.0, %v6543
      %v6545 = vpop.f32.mrf.mxu0
      %6546 = vmatprep.mubr.f32.mxu0 0.0
      %6547 = vmatmul.mubr.f32.gmra.mxu0 %v6349
      %v6548 = vpop.f32.mrf.mxu0
      %v6549 = vadd.f32 0.0, %v6548
      %v6550 = vpop.f32.mrf.mxu0
      %6551 = vmatprep.mubr.f32.mxu0 0.0
      %6552 = vmatmul.mubr.f32.gmra.mxu0 %v6351
      %v6553 = vpop.f32.mrf.mxu0
      %v6554 = vadd.f32 0.0, %v6553
      %v6555 = vpop.f32.mrf.mxu0
      %6556 = vmatprep.mubr.f32.mxu0 0.0
      %6557 = vmatmul.mubr.f32.gmra.mxu0 %v6353
      %v6558 = vpop.f32.mrf.mxu0
      %v6559 = vadd.f32 0.0, %v6558
      %v6560 = vpop.f32.mrf.mxu0
      %6561 = vmatprep.mubr.f32.mxu0 0.0
      %6562 = vmatmul.mubr.f32.gmra.mxu0 %v6355
      %v6563 = vpop.f32.mrf.mxu0
      %v6564 = vadd.f32 0.0, %v6563
      %v6565 = vpop.f32.mrf.mxu0
      %6566 = vmatprep.mubr.f32.mxu0 0.0
      %6567 = vmatmul.mubr.f32.gmra.mxu0 %v6357
      %v6568 = vpop.f32.mrf.mxu0
      %v6569 = vadd.f32 0.0, %v6568
      %v6570 = vpop.f32.mrf.mxu0
      %6571 = vmatprep.mubr.f32.mxu0 0.0
      %6572 = vmatmul.mubr.f32.gmra.mxu0 %v6359
      %v6573 = vpop.f32.mrf.mxu0
      %v6574 = vadd.f32 0.0, %v6573
      %v6575 = vpop.f32.mrf.mxu0
      %6576 = vmatprep.mubr.f32.mxu0 0.0
      %6577 = vmatmul.mubr.f32.gmra.mxu0 %v6361
      %v6578 = vpop.f32.mrf.mxu0
      %v6579 = vadd.f32 0.0, %v6578
      %v6580 = vpop.f32.mrf.mxu0
      %6581 = vmatprep.mubr.f32.mxu0 0.0
      %6582 = vmatmul.mubr.f32.gmra.mxu0 %v6363
      %v6583 = vpop.f32.mrf.mxu0
      %v6584 = vadd.f32 0.0, %v6583
      %v6585 = vpop.f32.mrf.mxu0
      %6586 = vmatprep.mubr.f32.mxu0 0.0
      %6587 = vmatmul.mubr.f32.gmra.mxu0 %v6365
      %v6588 = vpop.f32.mrf.mxu0
      %v6589 = vadd.f32 0.0, %v6588
      %v6590 = vpop.f32.mrf.mxu0
      %6591 = vdwg.mxu0
      %v6592 = vsel %vm3266, %v3170, 0
      %v6594 = vsel %vm3266, %v3172, 0
      %v6596 = vsel %vm3266, %v3174, 0
      %v6598 = vsel %vm3266, %v3176, 0
      %v6600 = vsel %vm3266, %v3178, 0
      %v6602 = vsel %vm3266, %v3180, 0
      %v6604 = vsel %vm3266, %v3182, 0
      %v6606 = vsel %vm3266, %v3184, 0
      %v6608 = vsel %vm3266, %v3186, 0
      %v6610 = vsel %vm3266, %v3188, 0
      %v6612 = vsel %vm3266, %v3190, 0
      %v6614 = vsel %vm3266, %v3192, 0
      %v6616 = vsel %vm3266, %v3194, 0
      %v6618 = vsel %vm3266, %v3196, 0
      %v6620 = vsel %vm3266, %v3198, 0
      %v6622 = vsel %vm3266, %v3200, 0
      %v6624 = vsel %vm3266, %v3202, 0
      %v6626 = vsel %vm3266, %v3204, 0
      %v6628 = vsel %vm3266, %v3206, 0
      %v6630 = vsel %vm3266, %v3208, 0
      %v6632 = vsel %vm3266, %v3210, 0
      %v6634 = vsel %vm3266, %v3212, 0
      %v6636 = vsel %vm3266, %v3214, 0
      %v6638 = vsel %vm3266, %v3216, 0
      %v6640 = vsel %vm3266, %v3218, 0
      %v6642 = vsel %vm3266, %v3220, 0
      %v6644 = vsel %vm3266, %v3222, 0
      %v6646 = vsel %vm3266, %v3224, 0
      %v6648 = vsel %vm3266, %v3226, 0
      %v6650 = vsel %vm3266, %v3228, 0
      %v6652 = vsel %vm3266, %v3230, 0
      %v6654 = vsel %vm3266, %v3232, 0
      %6656 = vmatprep.subr.mxu0 0.0
      %6657 = vmatpush1.msra.mxu0 0.0
      %6658 = vmatprep.subr.mxu0 0.0
      %6659 = vmatpush1.msra.mxu0 0.0
      %6660 = vmatprep.subr.mxu0 0.0
      %6661 = vmatpush1.msra.mxu0 0.0
      %6662 = vmatprep.subr.mxu0 0.0
      %6663 = vmatpush1.msra.mxu0 0.0
      %6664 = vmatprep.subr.mxu0 0.0
      %6665 = vmatpush1.msra.mxu0 0.0
      %6666 = vmatprep.subr.mxu0 0.0
      %6667 = vmatpush1.msra.mxu0 0.0
      %6668 = vmatprep.subr.mxu0 0.0
      %6669 = vmatpush1.msra.mxu0 0.0
      %6670 = vmatprep.subr.mxu0 0.0
      %6671 = vmatpush1.msra.mxu0 0.0
      %6672 = vmatprep.subr.mxu0 0.0
      %6673 = vmatpush1.msra.mxu0 0.0
      %6674 = vmatprep.subr.mxu0 0.0
      %6675 = vmatpush1.msra.mxu0 0.0
      %6676 = vmatprep.subr.mxu0 0.0
      %6677 = vmatpush1.msra.mxu0 0.0
      %6678 = vmatprep.subr.mxu0 0.0
      %6679 = vmatpush1.msra.mxu0 0.0
      %6680 = vmatprep.subr.mxu0 0.0
      %6681 = vmatpush1.msra.mxu0 %v6298
      %6682 = vmatprep.subr.mxu0 0.0
      %6683 = vmatpush1.msra.mxu0 %v6297
      %6684 = vmatprep.subr.mxu0 0.0
      %6685 = vmatpush1.msra.mxu0 %v6296
      %6686 = vmatprep.subr.mxu0 0.0
      %6687 = vmatpush1.msra.mxu0 %v6295
      %6688 = vmatprep.subr.mxu0 0.0
      %6689 = vmatpush2.msra.mxu0 0.0
      %6690 = vmatprep.subr.mxu0 0.0
      %6691 = vmatpush2.msra.mxu0 0.0
      %6692 = vmatprep.subr.mxu0 0.0
      %6693 = vmatpush2.msra.mxu0 0.0
      %6694 = vmatprep.subr.mxu0 0.0
      %6695 = vmatpush2.msra.mxu0 0.0
      %6696 = vmatprep.subr.mxu0 0.0
      %6697 = vmatpush2.msra.mxu0 0.0
      %6698 = vmatprep.subr.mxu0 0.0
      %6699 = vmatpush2.msra.mxu0 0.0
      %6700 = vmatprep.subr.mxu0 0.0
      %6701 = vmatpush2.msra.mxu0 0.0
      %6702 = vmatprep.subr.mxu0 0.0
      %6703 = vmatpush2.msra.mxu0 0.0
      %6704 = vmatprep.subr.mxu0 0.0
      %6705 = vmatpush2.msra.mxu0 0.0
      %6706 = vmatprep.subr.mxu0 0.0
      %6707 = vmatpush2.msra.mxu0 0.0
      %6708 = vmatprep.subr.mxu0 0.0
      %6709 = vmatpush2.msra.mxu0 0.0
      %6710 = vmatprep.subr.mxu0 0.0
      %6711 = vmatpush2.msra.mxu0 0.0
      %6712 = vmatprep.subr.mxu0 0.0
      %6713 = vmatpush2.msra.mxu0 0.0
      %6714 = vmatprep.subr.mxu0 0.0
      %6715 = vmatpush2.msra.mxu0 0.0
      %6716 = vmatprep.subr.mxu0 0.0
      %6717 = vmatpush2.msra.mxu0 0.0
      %6718 = vmatprep.subr.mxu0 0.0
      %6719 = vmatpush2.msra.mxu0 0.0
      %6720 = vmatprep.mubr.f32.mxu0 0.0
      %6721 = vmatmul.mubr.f32.gmra.mxu0 %v6592
      %v6722 = vpop.f32.mrf.mxu0
      %v6723 = vadd.f32 %v6434, %v6722
      %v6724 = vpop.f32.mrf.mxu0
      %6725 = vmatprep.mubr.f32.mxu0 0.0
      %6726 = vmatmul.mubr.f32.gmra.mxu0 %v6594
      %v6727 = vpop.f32.mrf.mxu0
      %v6728 = vadd.f32 %v6439, %v6727
      %v6729 = vpop.f32.mrf.mxu0
      %6730 = vmatprep.mubr.f32.mxu0 0.0
      %6731 = vmatmul.mubr.f32.gmra.mxu0 %v6596
      %v6732 = vpop.f32.mrf.mxu0
      %v6733 = vadd.f32 %v6444, %v6732
      %v6734 = vpop.f32.mrf.mxu0
      %6735 = vmatprep.mubr.f32.mxu0 0.0
      %6736 = vmatmul.mubr.f32.gmra.mxu0 %v6598
      %v6737 = vpop.f32.mrf.mxu0
      %v6738 = vadd.f32 %v6449, %v6737
      %v6739 = vpop.f32.mrf.mxu0
      %6740 = vmatprep.mubr.f32.mxu0 0.0
      %6741 = vmatmul.mubr.f32.gmra.mxu0 %v6600
      %v6742 = vpop.f32.mrf.mxu0
      %v6743 = vadd.f32 %v6454, %v6742
      %v6744 = vpop.f32.mrf.mxu0
      %6745 = vmatprep.mubr.f32.mxu0 0.0
      %6746 = vmatmul.mubr.f32.gmra.mxu0 %v6602
      %v6747 = vpop.f32.mrf.mxu0
      %v6748 = vadd.f32 %v6459, %v6747
      %v6749 = vpop.f32.mrf.mxu0
      %6750 = vmatprep.mubr.f32.mxu0 0.0
      %6751 = vmatmul.mubr.f32.gmra.mxu0 %v6604
      %v6752 = vpop.f32.mrf.mxu0
      %v6753 = vadd.f32 %v6464, %v6752
      %v6754 = vpop.f32.mrf.mxu0
      %6755 = vmatprep.mubr.f32.mxu0 0.0
      %6756 = vmatmul.mubr.f32.gmra.mxu0 %v6606
      %v6757 = vpop.f32.mrf.mxu0
      %v6758 = vadd.f32 %v6469, %v6757
      %v6759 = vpop.f32.mrf.mxu0
      %6760 = vmatprep.mubr.f32.mxu0 0.0
      %6761 = vmatmul.mubr.f32.gmra.mxu0 %v6608
      %v6762 = vpop.f32.mrf.mxu0
      %v6763 = vadd.f32 %v6474, %v6762
      %v6764 = vpop.f32.mrf.mxu0
      %6765 = vmatprep.mubr.f32.mxu0 0.0
      %6766 = vmatmul.mubr.f32.gmra.mxu0 %v6610
      %v6767 = vpop.f32.mrf.mxu0
      %v6768 = vadd.f32 %v6479, %v6767
      %v6769 = vpop.f32.mrf.mxu0
      %6770 = vmatprep.mubr.f32.mxu0 0.0
      %6771 = vmatmul.mubr.f32.gmra.mxu0 %v6612
      %v6772 = vpop.f32.mrf.mxu0
      %v6773 = vadd.f32 %v6484, %v6772
      %v6774 = vpop.f32.mrf.mxu0
      %6775 = vmatprep.mubr.f32.mxu0 0.0
      %6776 = vmatmul.mubr.f32.gmra.mxu0 %v6614
      %v6777 = vpop.f32.mrf.mxu0
      %v6778 = vadd.f32 %v6489, %v6777
      %v6779 = vpop.f32.mrf.mxu0
      %6780 = vmatprep.mubr.f32.mxu0 0.0
      %6781 = vmatmul.mubr.f32.gmra.mxu0 %v6616
      %v6782 = vpop.f32.mrf.mxu0
      %v6783 = vadd.f32 %v6494, %v6782
      %v6784 = vpop.f32.mrf.mxu0
      %6785 = vmatprep.mubr.f32.mxu0 0.0
      %6786 = vmatmul.mubr.f32.gmra.mxu0 %v6618
      %v6787 = vpop.f32.mrf.mxu0
      %v6788 = vadd.f32 %v6499, %v6787
      %v6789 = vpop.f32.mrf.mxu0
      %6790 = vmatprep.mubr.f32.mxu0 0.0
      %6791 = vmatmul.mubr.f32.gmra.mxu0 %v6620
      %v6792 = vpop.f32.mrf.mxu0
      %v6793 = vadd.f32 %v6504, %v6792
      %v6794 = vpop.f32.mrf.mxu0
      %6795 = vmatprep.mubr.f32.mxu0 0.0
      %6796 = vmatmul.mubr.f32.gmra.mxu0 %v6622
      %v6797 = vpop.f32.mrf.mxu0
      %v6798 = vadd.f32 %v6509, %v6797
      %v6799 = vpop.f32.mrf.mxu0
      %6800 = vmatprep.mubr.f32.mxu0 0.0
      %6801 = vmatmul.mubr.f32.gmra.mxu0 %v6624
      %v6802 = vpop.f32.mrf.mxu0
      %v6803 = vadd.f32 %v6514, %v6802
      %v6804 = vpop.f32.mrf.mxu0
      %6805 = vmatprep.mubr.f32.mxu0 0.0
      %6806 = vmatmul.mubr.f32.gmra.mxu0 %v6626
      %v6807 = vpop.f32.mrf.mxu0
      %v6808 = vadd.f32 %v6519, %v6807
      %v6809 = vpop.f32.mrf.mxu0
      %6810 = vmatprep.mubr.f32.mxu0 0.0
      %6811 = vmatmul.mubr.f32.gmra.mxu0 %v6628
      %v6812 = vpop.f32.mrf.mxu0
      %v6813 = vadd.f32 %v6524, %v6812
      %v6814 = vpop.f32.mrf.mxu0
      %6815 = vmatprep.mubr.f32.mxu0 0.0
      %6816 = vmatmul.mubr.f32.gmra.mxu0 %v6630
      %v6817 = vpop.f32.mrf.mxu0
      %v6818 = vadd.f32 %v6529, %v6817
      %v6819 = vpop.f32.mrf.mxu0
      %6820 = vmatprep.mubr.f32.mxu0 0.0
      %6821 = vmatmul.mubr.f32.gmra.mxu0 %v6632
      %v6822 = vpop.f32.mrf.mxu0
      %v6823 = vadd.f32 %v6534, %v6822
      %v6824 = vpop.f32.mrf.mxu0
      %6825 = vmatprep.mubr.f32.mxu0 0.0
      %6826 = vmatmul.mubr.f32.gmra.mxu0 %v6634
      %v6827 = vpop.f32.mrf.mxu0
      %v6828 = vadd.f32 %v6539, %v6827
      %v6829 = vpop.f32.mrf.mxu0
      %6830 = vmatprep.mubr.f32.mxu0 0.0
      %6831 = vmatmul.mubr.f32.gmra.mxu0 %v6636
      %v6832 = vpop.f32.mrf.mxu0
      %v6833 = vadd.f32 %v6544, %v6832
      %v6834 = vpop.f32.mrf.mxu0
      %6835 = vmatprep.mubr.f32.mxu0 0.0
      %6836 = vmatmul.mubr.f32.gmra.mxu0 %v6638
      %v6837 = vpop.f32.mrf.mxu0
      %v6838 = vadd.f32 %v6549, %v6837
      %v6839 = vpop.f32.mrf.mxu0
      %6840 = vmatprep.mubr.f32.mxu0 0.0
      %6841 = vmatmul.mubr.f32.gmra.mxu0 %v6640
      %v6842 = vpop.f32.mrf.mxu0
      %v6843 = vadd.f32 %v6554, %v6842
      %v6844 = vpop.f32.mrf.mxu0
      %6845 = vmatprep.mubr.f32.mxu0 0.0
      %6846 = vmatmul.mubr.f32.gmra.mxu0 %v6642
      %v6847 = vpop.f32.mrf.mxu0
      %v6848 = vadd.f32 %v6559, %v6847
      %v6849 = vpop.f32.mrf.mxu0
      %6850 = vmatprep.mubr.f32.mxu0 0.0
      %6851 = vmatmul.mubr.f32.gmra.mxu0 %v6644
      %v6852 = vpop.f32.mrf.mxu0
      %v6853 = vadd.f32 %v6564, %v6852
      %v6854 = vpop.f32.mrf.mxu0
      %6855 = vmatprep.mubr.f32.mxu0 0.0
      %6856 = vmatmul.mubr.f32.gmra.mxu0 %v6646
      %v6857 = vpop.f32.mrf.mxu0
      %v6858 = vadd.f32 %v6569, %v6857
      %v6859 = vpop.f32.mrf.mxu0
      %6860 = vmatprep.mubr.f32.mxu0 0.0
      %6861 = vmatmul.mubr.f32.gmra.mxu0 %v6648
      %v6862 = vpop.f32.mrf.mxu0
      %v6863 = vadd.f32 %v6574, %v6862
      %v6864 = vpop.f32.mrf.mxu0
      %6865 = vmatprep.mubr.f32.mxu0 0.0
      %6866 = vmatmul.mubr.f32.gmra.mxu0 %v6650
      %v6867 = vpop.f32.mrf.mxu0
      %v6868 = vadd.f32 %v6579, %v6867
      %v6869 = vpop.f32.mrf.mxu0
      %6870 = vmatprep.mubr.f32.mxu0 0.0
      %6871 = vmatmul.mubr.f32.gmra.mxu0 %v6652
      %v6872 = vpop.f32.mrf.mxu0
      %v6873 = vadd.f32 %v6584, %v6872
      %v6874 = vpop.f32.mrf.mxu0
      %6875 = vmatprep.mubr.f32.mxu0 0.0
      %6876 = vmatmul.mubr.f32.gmra.mxu0 %v6654
      %v6877 = vpop.f32.mrf.mxu0
      %v6878 = vadd.f32 %v6589, %v6877
      %v6879 = vpop.f32.mrf.mxu0
      %6880 = vdwg.mxu0
      %6913 = vrot.lane.b32.xlu0 %v6263, 64
      %v6914 = vpop.permute.xlu0 %6913
      %6915 = vrot.lane.b32.xlu0 %v6264, 64
      %v6916 = vpop.permute.xlu0 %6915
      %6917 = vrot.lane.b32.xlu0 %v6265, 64
      %v6918 = vpop.permute.xlu0 %6917
      %6919 = vrot.lane.b32.xlu0 %v6266, 64
      %v6920 = vpop.permute.xlu0 %6919
      %6921 = vrot.lane.b32.xlu0 %v6267, 64
      %v6922 = vpop.permute.xlu0 %6921
      %6923 = vrot.lane.b32.xlu0 %v6268, 64
      %v6924 = vpop.permute.xlu0 %6923
      %6925 = vrot.lane.b32.xlu0 %v6269, 64
      %v6926 = vpop.permute.xlu0 %6925
      %6927 = vrot.lane.b32.xlu0 %v6270, 64
      %v6928 = vpop.permute.xlu0 %6927
      %6929 = vrot.lane.b32.xlu0 %v6271, 64
      %v6930 = vpop.permute.xlu0 %6929
      %6931 = vrot.lane.b32.xlu0 %v6272, 64
      %v6932 = vpop.permute.xlu0 %6931
      %6933 = vrot.lane.b32.xlu0 %v6273, 64
      %v6934 = vpop.permute.xlu0 %6933
      %6935 = vrot.lane.b32.xlu0 %v6274, 64
      %v6936 = vpop.permute.xlu0 %6935
      %6937 = vrot.lane.b32.xlu0 %v6275, 64
      %v6938 = vpop.permute.xlu0 %6937
      %6939 = vrot.lane.b32.xlu0 %v6276, 64
      %v6940 = vpop.permute.xlu0 %6939
      %6941 = vrot.lane.b32.xlu0 %v6277, 64
      %v6942 = vpop.permute.xlu0 %6941
      %6943 = vrot.lane.b32.xlu0 %v6278, 64
      %v6944 = vpop.permute.xlu0 %6943
      %6945 = vrot.lane.b32.xlu0 %v6279, 64
      %v6946 = vpop.permute.xlu0 %6945
      %6947 = vrot.lane.b32.xlu0 %v6280, 64
      %v6948 = vpop.permute.xlu0 %6947
      %6949 = vrot.lane.b32.xlu0 %v6281, 64
      %v6950 = vpop.permute.xlu0 %6949
      %6951 = vrot.lane.b32.xlu0 %v6282, 64
      %v6952 = vpop.permute.xlu0 %6951
      %6953 = vrot.lane.b32.xlu0 %v6283, 64
      %v6954 = vpop.permute.xlu0 %6953
      %6955 = vrot.lane.b32.xlu0 %v6284, 64
      %v6956 = vpop.permute.xlu0 %6955
      %6957 = vrot.lane.b32.xlu0 %v6285, 64
      %v6958 = vpop.permute.xlu0 %6957
      %6959 = vrot.lane.b32.xlu0 %v6286, 64
      %v6960 = vpop.permute.xlu0 %6959
      %6961 = vrot.lane.b32.xlu0 %v6287, 64
      %v6962 = vpop.permute.xlu0 %6961
      %6963 = vrot.lane.b32.xlu0 %v6288, 64
      %v6964 = vpop.permute.xlu0 %6963
      %6965 = vrot.lane.b32.xlu0 %v6289, 64
      %v6966 = vpop.permute.xlu0 %6965
      %6967 = vrot.lane.b32.xlu0 %v6290, 64
      %v6968 = vpop.permute.xlu0 %6967
      %6969 = vrot.lane.b32.xlu0 %v6291, 64
      %v6970 = vpop.permute.xlu0 %6969
      %6971 = vrot.lane.b32.xlu0 %v6292, 64
      %v6972 = vpop.permute.xlu0 %6971
      %6973 = vrot.lane.b32.xlu0 %v6293, 64
      %v6974 = vpop.permute.xlu0 %6973
      %6975 = vrot.lane.b32.xlu0 %v6294, 64
      %v6976 = vpop.permute.xlu0 %6975
      %v7009 = vadd.f32 %v1293, %v6914
      %v7010 = vadd.f32 %v1299, %v6916
      %v7011 = vadd.f32 %v1305, %v6918
      %v7012 = vadd.f32 %v1311, %v6920
      %v7013 = vadd.f32 %v1317, %v6922
      %v7014 = vadd.f32 %v1323, %v6924
      %v7015 = vadd.f32 %v1329, %v6926
      %v7016 = vadd.f32 %v1335, %v6928
      %v7017 = vadd.f32 %v1341, %v6930
      %v7018 = vadd.f32 %v1347, %v6932
      %v7019 = vadd.f32 %v1353, %v6934
      %v7020 = vadd.f32 %v1359, %v6936
      %v7021 = vadd.f32 %v1365, %v6938
      %v7022 = vadd.f32 %v1371, %v6940
      %v7023 = vadd.f32 %v1377, %v6942
      %v7024 = vadd.f32 %v1383, %v6944
      %v7025 = vadd.f32 %v1389, %v6946
      %v7026 = vadd.f32 %v1395, %v6948
      %v7027 = vadd.f32 %v1401, %v6950
      %v7028 = vadd.f32 %v1407, %v6952
      %v7029 = vadd.f32 %v1413, %v6954
      %v7030 = vadd.f32 %v1419, %v6956
      %v7031 = vadd.f32 %v1425, %v6958
      %v7032 = vadd.f32 %v1431, %v6960
      %v7033 = vadd.f32 %v1437, %v6962
      %v7034 = vadd.f32 %v1443, %v6964
      %v7035 = vadd.f32 %v1449, %v6966
      %v7036 = vadd.f32 %v1455, %v6968
      %v7037 = vadd.f32 %v1461, %v6970
      %v7038 = vadd.f32 %v1467, %v6972
      %v7039 = vadd.f32 %v1473, %v6974
      %v7040 = vadd.f32 %v1479, %v6976
      %v7041 = vsub.f32 0.0, %v7009
      %v7042 = vsub.f32 0.0, %v7010
      %v7043 = vsub.f32 0.0, %v7011
      %v7044 = vsub.f32 0.0, %v7012
      %v7045 = vsub.f32 0.0, %v7013
      %v7046 = vsub.f32 0.0, %v7014
      %v7047 = vsub.f32 0.0, %v7015
      %v7048 = vsub.f32 0.0, %v7016
      %v7049 = vsub.f32 0.0, %v7017
      %v7050 = vsub.f32 0.0, %v7018
      %v7051 = vsub.f32 0.0, %v7019
      %v7052 = vsub.f32 0.0, %v7020
      %v7053 = vsub.f32 0.0, %v7021
      %v7054 = vsub.f32 0.0, %v7022
      %v7055 = vsub.f32 0.0, %v7023
      %v7056 = vsub.f32 0.0, %v7024
      %v7057 = vsub.f32 0.0, %v7025
      %v7058 = vsub.f32 0.0, %v7026
      %v7059 = vsub.f32 0.0, %v7027
      %v7060 = vsub.f32 0.0, %v7028
      %v7061 = vsub.f32 0.0, %v7029
      %v7062 = vsub.f32 0.0, %v7030
      %v7063 = vsub.f32 0.0, %v7031
      %v7064 = vsub.f32 0.0, %v7032
      %v7065 = vsub.f32 0.0, %v7033
      %v7066 = vsub.f32 0.0, %v7034
      %v7067 = vsub.f32 0.0, %v7035
      %v7068 = vsub.f32 0.0, %v7036
      %v7069 = vsub.f32 0.0, %v7037
      %v7070 = vsub.f32 0.0, %v7038
      %v7071 = vsub.f32 0.0, %v7039
      %v7072 = vsub.f32 0.0, %v7040
      %v7073 = vmul.f32 %v7041, 1.442695
      %v7074 = vpow.pop %v7073
      %v7075 = vmul.f32 %v7042, 1.442695
      %v7076 = vpow.pop %v7075
      %v7077 = vmul.f32 %v7043, 1.442695
      %v7078 = vpow.pop %v7077
      %v7079 = vmul.f32 %v7044, 1.442695
      %v7080 = vpow.pop %v7079
      %v7081 = vmul.f32 %v7045, 1.442695
      %v7082 = vpow.pop %v7081
      %v7083 = vmul.f32 %v7046, 1.442695
      %v7084 = vpow.pop %v7083
      %v7085 = vmul.f32 %v7047, 1.442695
      %v7086 = vpow.pop %v7085
      %v7087 = vmul.f32 %v7048, 1.442695
      %v7088 = vpow.pop %v7087
      %v7089 = vmul.f32 %v7049, 1.442695
      %v7090 = vpow.pop %v7089
      %v7091 = vmul.f32 %v7050, 1.442695
      %v7092 = vpow.pop %v7091
      %v7093 = vmul.f32 %v7051, 1.442695
      %v7094 = vpow.pop %v7093
      %v7095 = vmul.f32 %v7052, 1.442695
      %v7096 = vpow.pop %v7095
      %v7097 = vmul.f32 %v7053, 1.442695
      %v7098 = vpow.pop %v7097
      %v7099 = vmul.f32 %v7054, 1.442695
      %v7100 = vpow.pop %v7099
      %v7101 = vmul.f32 %v7055, 1.442695
      %v7102 = vpow.pop %v7101
      %v7103 = vmul.f32 %v7056, 1.442695
      %v7104 = vpow.pop %v7103
      %v7105 = vmul.f32 %v7057, 1.442695
      %v7106 = vpow.pop %v7105
      %v7107 = vmul.f32 %v7058, 1.442695
      %v7108 = vpow.pop %v7107
      %v7109 = vmul.f32 %v7059, 1.442695
      %v7110 = vpow.pop %v7109
      %v7111 = vmul.f32 %v7060, 1.442695
      %v7112 = vpow.pop %v7111
      %v7113 = vmul.f32 %v7061, 1.442695
      %v7114 = vpow.pop %v7113
      %v7115 = vmul.f32 %v7062, 1.442695
      %v7116 = vpow.pop %v7115
      %v7117 = vmul.f32 %v7063, 1.442695
      %v7118 = vpow.pop %v7117
      %v7119 = vmul.f32 %v7064, 1.442695
      %v7120 = vpow.pop %v7119
      %v7121 = vmul.f32 %v7065, 1.442695
      %v7122 = vpow.pop %v7121
      %v7123 = vmul.f32 %v7066, 1.442695
      %v7124 = vpow.pop %v7123
      %v7125 = vmul.f32 %v7067, 1.442695
      %v7126 = vpow.pop %v7125
      %v7127 = vmul.f32 %v7068, 1.442695
      %v7128 = vpow.pop %v7127
      %v7129 = vmul.f32 %v7069, 1.442695
      %v7130 = vpow.pop %v7129
      %v7131 = vmul.f32 %v7070, 1.442695
      %v7132 = vpow.pop %v7131
      %v7133 = vmul.f32 %v7071, 1.442695
      %v7134 = vpow.pop %v7133
      %v7135 = vmul.f32 %v7072, 1.442695
      %v7136 = vpow.pop %v7135
      %v7137 = vadd.f32 %v7074, 1.0
      %v7138 = vadd.f32 %v7076, 1.0
      %v7139 = vadd.f32 %v7078, 1.0
      %v7140 = vadd.f32 %v7080, 1.0
      %v7141 = vadd.f32 %v7082, 1.0
      %v7142 = vadd.f32 %v7084, 1.0
      %v7143 = vadd.f32 %v7086, 1.0
      %v7144 = vadd.f32 %v7088, 1.0
      %v7145 = vadd.f32 %v7090, 1.0
      %v7146 = vadd.f32 %v7092, 1.0
      %v7147 = vadd.f32 %v7094, 1.0
      %v7148 = vadd.f32 %v7096, 1.0
      %v7149 = vadd.f32 %v7098, 1.0
      %v7150 = vadd.f32 %v7100, 1.0
      %v7151 = vadd.f32 %v7102, 1.0
      %v7152 = vadd.f32 %v7104, 1.0
      %v7153 = vadd.f32 %v7106, 1.0
      %v7154 = vadd.f32 %v7108, 1.0
      %v7155 = vadd.f32 %v7110, 1.0
      %v7156 = vadd.f32 %v7112, 1.0
      %v7157 = vadd.f32 %v7114, 1.0
      %v7158 = vadd.f32 %v7116, 1.0
      %v7159 = vadd.f32 %v7118, 1.0
      %v7160 = vadd.f32 %v7120, 1.0
      %v7161 = vadd.f32 %v7122, 1.0
      %v7162 = vadd.f32 %v7124, 1.0
      %v7163 = vadd.f32 %v7126, 1.0
      %v7164 = vadd.f32 %v7128, 1.0
      %v7165 = vadd.f32 %v7130, 1.0
      %v7166 = vadd.f32 %v7132, 1.0
      %v7167 = vadd.f32 %v7134, 1.0
      %v7168 = vadd.f32 %v7136, 1.0
      %v7169 = vrcp.pop %v7137
      %v7170 = vmul.f32 1.0, %v7169
      %v7171 = vrcp.pop %v7138
      %v7172 = vmul.f32 1.0, %v7171
      %v7173 = vrcp.pop %v7139
      %v7174 = vmul.f32 1.0, %v7173
      %v7175 = vrcp.pop %v7140
      %v7176 = vmul.f32 1.0, %v7175
      %v7177 = vrcp.pop %v7141
      %v7178 = vmul.f32 1.0, %v7177
      %v7179 = vrcp.pop %v7142
      %v7180 = vmul.f32 1.0, %v7179
      %v7181 = vrcp.pop %v7143
      %v7182 = vmul.f32 1.0, %v7181
      %v7183 = vrcp.pop %v7144
      %v7184 = vmul.f32 1.0, %v7183
      %v7185 = vrcp.pop %v7145
      %v7186 = vmul.f32 1.0, %v7185
      %v7187 = vrcp.pop %v7146
      %v7188 = vmul.f32 1.0, %v7187
      %v7189 = vrcp.pop %v7147
      %v7190 = vmul.f32 1.0, %v7189
      %v7191 = vrcp.pop %v7148
      %v7192 = vmul.f32 1.0, %v7191
      %v7193 = vrcp.pop %v7149
      %v7194 = vmul.f32 1.0, %v7193
      %v7195 = vrcp.pop %v7150
      %v7196 = vmul.f32 1.0, %v7195
      %v7197 = vrcp.pop %v7151
      %v7198 = vmul.f32 1.0, %v7197
      %v7199 = vrcp.pop %v7152
      %v7200 = vmul.f32 1.0, %v7199
      %v7201 = vrcp.pop %v7153
      %v7202 = vmul.f32 1.0, %v7201
      %v7203 = vrcp.pop %v7154
      %v7204 = vmul.f32 1.0, %v7203
      %v7205 = vrcp.pop %v7155
      %v7206 = vmul.f32 1.0, %v7205
      %v7207 = vrcp.pop %v7156
      %v7208 = vmul.f32 1.0, %v7207
      %v7209 = vrcp.pop %v7157
      %v7210 = vmul.f32 1.0, %v7209
      %v7211 = vrcp.pop %v7158
      %v7212 = vmul.f32 1.0, %v7211
      %v7213 = vrcp.pop %v7159
      %v7214 = vmul.f32 1.0, %v7213
      %v7215 = vrcp.pop %v7160
      %v7216 = vmul.f32 1.0, %v7215
      %v7217 = vrcp.pop %v7161
      %v7218 = vmul.f32 1.0, %v7217
      %v7219 = vrcp.pop %v7162
      %v7220 = vmul.f32 1.0, %v7219
      %v7221 = vrcp.pop %v7163
      %v7222 = vmul.f32 1.0, %v7221
      %v7223 = vrcp.pop %v7164
      %v7224 = vmul.f32 1.0, %v7223
      %v7225 = vrcp.pop %v7165
      %v7226 = vmul.f32 1.0, %v7225
      %v7227 = vrcp.pop %v7166
      %v7228 = vmul.f32 1.0, %v7227
      %v7229 = vrcp.pop %v7167
      %v7230 = vmul.f32 1.0, %v7229
      %v7231 = vrcp.pop %v7168
      %v7232 = vmul.f32 1.0, %v7231
      %v7233 = vtanh.pop %v6723
      %v7234 = vtanh.pop %v6728
      %v7235 = vtanh.pop %v6733
      %v7236 = vtanh.pop %v6738
      %v7237 = vtanh.pop %v6743
      %v7238 = vtanh.pop %v6748
      %v7239 = vtanh.pop %v6753
      %v7240 = vtanh.pop %v6758
      %v7241 = vtanh.pop %v6763
      %v7242 = vtanh.pop %v6768
      %v7243 = vtanh.pop %v6773
      %v7244 = vtanh.pop %v6778
      %v7245 = vtanh.pop %v6783
      %v7246 = vtanh.pop %v6788
      %v7247 = vtanh.pop %v6793
      %v7248 = vtanh.pop %v6798
      %v7249 = vtanh.pop %v6803
      %v7250 = vtanh.pop %v6808
      %v7251 = vtanh.pop %v6813
      %v7252 = vtanh.pop %v6818
      %v7253 = vtanh.pop %v6823
      %v7254 = vtanh.pop %v6828
      %v7255 = vtanh.pop %v6833
      %v7256 = vtanh.pop %v6838
      %v7257 = vtanh.pop %v6843
      %v7258 = vtanh.pop %v6848
      %v7259 = vtanh.pop %v6853
      %v7260 = vtanh.pop %v6858
      %v7261 = vtanh.pop %v6863
      %v7262 = vtanh.pop %v6868
      %v7263 = vtanh.pop %v6873
      %v7264 = vtanh.pop %v6878
      %7297 = vrot.lane.b32.xlu0 %v7233, 64
      %v7298 = vpop.permute.xlu0 %7297
      %7299 = vrot.lane.b32.xlu0 %v7234, 64
      %v7300 = vpop.permute.xlu0 %7299
      %7301 = vrot.lane.b32.xlu0 %v7235, 64
      %v7302 = vpop.permute.xlu0 %7301
      %7303 = vrot.lane.b32.xlu0 %v7236, 64
      %v7304 = vpop.permute.xlu0 %7303
      %7305 = vrot.lane.b32.xlu0 %v7237, 64
      %v7306 = vpop.permute.xlu0 %7305
      %7307 = vrot.lane.b32.xlu0 %v7238, 64
      %v7308 = vpop.permute.xlu0 %7307
      %7309 = vrot.lane.b32.xlu0 %v7239, 64
      %v7310 = vpop.permute.xlu0 %7309
      %7311 = vrot.lane.b32.xlu0 %v7240, 64
      %v7312 = vpop.permute.xlu0 %7311
      %7313 = vrot.lane.b32.xlu0 %v7241, 64
      %v7314 = vpop.permute.xlu0 %7313
      %7315 = vrot.lane.b32.xlu0 %v7242, 64
      %v7316 = vpop.permute.xlu0 %7315
      %7317 = vrot.lane.b32.xlu0 %v7243, 64
      %v7318 = vpop.permute.xlu0 %7317
      %7319 = vrot.lane.b32.xlu0 %v7244, 64
      %v7320 = vpop.permute.xlu0 %7319
      %7321 = vrot.lane.b32.xlu0 %v7245, 64
      %v7322 = vpop.permute.xlu0 %7321
      %7323 = vrot.lane.b32.xlu0 %v7246, 64
      %v7324 = vpop.permute.xlu0 %7323
      %7325 = vrot.lane.b32.xlu0 %v7247, 64
      %v7326 = vpop.permute.xlu0 %7325
      %7327 = vrot.lane.b32.xlu0 %v7248, 64
      %v7328 = vpop.permute.xlu0 %7327
      %7329 = vrot.lane.b32.xlu0 %v7249, 64
      %v7330 = vpop.permute.xlu0 %7329
      %7331 = vrot.lane.b32.xlu0 %v7250, 64
      %v7332 = vpop.permute.xlu0 %7331
      %7333 = vrot.lane.b32.xlu0 %v7251, 64
      %v7334 = vpop.permute.xlu0 %7333
      %7335 = vrot.lane.b32.xlu0 %v7252, 64
      %v7336 = vpop.permute.xlu0 %7335
      %7337 = vrot.lane.b32.xlu0 %v7253, 64
      %v7338 = vpop.permute.xlu0 %7337
      %7339 = vrot.lane.b32.xlu0 %v7254, 64
      %v7340 = vpop.permute.xlu0 %7339
      %7341 = vrot.lane.b32.xlu0 %v7255, 64
      %v7342 = vpop.permute.xlu0 %7341
      %7343 = vrot.lane.b32.xlu0 %v7256, 64
      %v7344 = vpop.permute.xlu0 %7343
      %7345 = vrot.lane.b32.xlu0 %v7257, 64
      %v7346 = vpop.permute.xlu0 %7345
      %7347 = vrot.lane.b32.xlu0 %v7258, 64
      %v7348 = vpop.permute.xlu0 %7347
      %7349 = vrot.lane.b32.xlu0 %v7259, 64
      %v7350 = vpop.permute.xlu0 %7349
      %7351 = vrot.lane.b32.xlu0 %v7260, 64
      %v7352 = vpop.permute.xlu0 %7351
      %7353 = vrot.lane.b32.xlu0 %v7261, 64
      %v7354 = vpop.permute.xlu0 %7353
      %7355 = vrot.lane.b32.xlu0 %v7262, 64
      %v7356 = vpop.permute.xlu0 %7355
      %7357 = vrot.lane.b32.xlu0 %v7263, 64
      %v7358 = vpop.permute.xlu0 %7357
      %7359 = vrot.lane.b32.xlu0 %v7264, 64
      %v7360 = vpop.permute.xlu0 %7359
      %v7393 = vmul.f32 %v7170, %v7298
      %v7394 = vmul.f32 %v7172, %v7300
      %v7395 = vmul.f32 %v7174, %v7302
      %v7396 = vmul.f32 %v7176, %v7304
      %v7397 = vmul.f32 %v7178, %v7306
      %v7398 = vmul.f32 %v7180, %v7308
      %v7399 = vmul.f32 %v7182, %v7310
      %v7400 = vmul.f32 %v7184, %v7312
      %v7401 = vmul.f32 %v7186, %v7314
      %v7402 = vmul.f32 %v7188, %v7316
      %v7403 = vmul.f32 %v7190, %v7318
      %v7404 = vmul.f32 %v7192, %v7320
      %v7405 = vmul.f32 %v7194, %v7322
      %v7406 = vmul.f32 %v7196, %v7324
      %v7407 = vmul.f32 %v7198, %v7326
      %v7408 = vmul.f32 %v7200, %v7328
      %v7409 = vmul.f32 %v7202, %v7330
      %v7410 = vmul.f32 %v7204, %v7332
      %v7411 = vmul.f32 %v7206, %v7334
      %v7412 = vmul.f32 %v7208, %v7336
      %v7413 = vmul.f32 %v7210, %v7338
      %v7414 = vmul.f32 %v7212, %v7340
      %v7415 = vmul.f32 %v7214, %v7342
      %v7416 = vmul.f32 %v7216, %v7344
      %v7417 = vmul.f32 %v7218, %v7346
      %v7418 = vmul.f32 %v7220, %v7348
      %v7419 = vmul.f32 %v7222, %v7350
      %v7420 = vmul.f32 %v7224, %v7352
      %v7421 = vmul.f32 %v7226, %v7354
      %v7422 = vmul.f32 %v7228, %v7356
      %v7423 = vmul.f32 %v7230, %v7358
      %v7424 = vmul.f32 %v7232, %v7360
      %7457 = vrot.lane.b32.xlu0 %v7393, 64
      %v7458 = vpop.permute.xlu0 %7457
      %7459 = vrot.lane.b32.xlu0 %v7394, 64
      %v7460 = vpop.permute.xlu0 %7459
      %7461 = vrot.lane.b32.xlu0 %v7395, 64
      %v7462 = vpop.permute.xlu0 %7461
      %7463 = vrot.lane.b32.xlu0 %v7396, 64
      %v7464 = vpop.permute.xlu0 %7463
      %7465 = vrot.lane.b32.xlu0 %v7397, 64
      %v7466 = vpop.permute.xlu0 %7465
      %7467 = vrot.lane.b32.xlu0 %v7398, 64
      %v7468 = vpop.permute.xlu0 %7467
      %7469 = vrot.lane.b32.xlu0 %v7399, 64
      %v7470 = vpop.permute.xlu0 %7469
      %7471 = vrot.lane.b32.xlu0 %v7400, 64
      %v7472 = vpop.permute.xlu0 %7471
      %7473 = vrot.lane.b32.xlu0 %v7401, 64
      %v7474 = vpop.permute.xlu0 %7473
      %7475 = vrot.lane.b32.xlu0 %v7402, 64
      %v7476 = vpop.permute.xlu0 %7475
      %7477 = vrot.lane.b32.xlu0 %v7403, 64
      %v7478 = vpop.permute.xlu0 %7477
      %7479 = vrot.lane.b32.xlu0 %v7404, 64
      %v7480 = vpop.permute.xlu0 %7479
      %7481 = vrot.lane.b32.xlu0 %v7405, 64
      %v7482 = vpop.permute.xlu0 %7481
      %7483 = vrot.lane.b32.xlu0 %v7406, 64
      %v7484 = vpop.permute.xlu0 %7483
      %7485 = vrot.lane.b32.xlu0 %v7407, 64
      %v7486 = vpop.permute.xlu0 %7485
      %7487 = vrot.lane.b32.xlu0 %v7408, 64
      %v7488 = vpop.permute.xlu0 %7487
      %7489 = vrot.lane.b32.xlu0 %v7409, 64
      %v7490 = vpop.permute.xlu0 %7489
      %7491 = vrot.lane.b32.xlu0 %v7410, 64
      %v7492 = vpop.permute.xlu0 %7491
      %7493 = vrot.lane.b32.xlu0 %v7411, 64
      %v7494 = vpop.permute.xlu0 %7493
      %7495 = vrot.lane.b32.xlu0 %v7412, 64
      %v7496 = vpop.permute.xlu0 %7495
      %7497 = vrot.lane.b32.xlu0 %v7413, 64
      %v7498 = vpop.permute.xlu0 %7497
      %7499 = vrot.lane.b32.xlu0 %v7414, 64
      %v7500 = vpop.permute.xlu0 %7499
      %7501 = vrot.lane.b32.xlu0 %v7415, 64
      %v7502 = vpop.permute.xlu0 %7501
      %7503 = vrot.lane.b32.xlu0 %v7416, 64
      %v7504 = vpop.permute.xlu0 %7503
      %7505 = vrot.lane.b32.xlu0 %v7417, 64
      %v7506 = vpop.permute.xlu0 %7505
      %7507 = vrot.lane.b32.xlu0 %v7418, 64
      %v7508 = vpop.permute.xlu0 %7507
      %7509 = vrot.lane.b32.xlu0 %v7419, 64
      %v7510 = vpop.permute.xlu0 %7509
      %7511 = vrot.lane.b32.xlu0 %v7420, 64
      %v7512 = vpop.permute.xlu0 %7511
      %7513 = vrot.lane.b32.xlu0 %v7421, 64
      %v7514 = vpop.permute.xlu0 %7513
      %7515 = vrot.lane.b32.xlu0 %v7422, 64
      %v7516 = vpop.permute.xlu0 %7515
      %7517 = vrot.lane.b32.xlu0 %v7423, 64
      %v7518 = vpop.permute.xlu0 %7517
      %7519 = vrot.lane.b32.xlu0 %v7424, 64
      %v7520 = vpop.permute.xlu0 %7519
      %7553 = vst.msk [vmem:[%s291] sm:$0xff] %vm3266, %v7458
      %7554 = vst.msk [vmem:[%s291 + $0x10] sm:$0xff] %vm3266, %v7460
      %7555 = vst.msk [vmem:[%s291 + $0x20] sm:$0xff] %vm3266, %v7462
      %7556 = vst.msk [vmem:[%s291 + $0x30] sm:$0xff] %vm3266, %v7464
      %7557 = vst.msk [vmem:[%s291 + $0x40] sm:$0xff] %vm3266, %v7466
      %7558 = vst.msk [vmem:[%s291 + $0x50] sm:$0xff] %vm3266, %v7468
      %7559 = vst.msk [vmem:[%s291 + $0x60] sm:$0xff] %vm3266, %v7470
      %7560 = vst.msk [vmem:[%s291 + $0x70] sm:$0xff] %vm3266, %v7472
      %7561 = vst.msk [vmem:[%s291 + $0x80] sm:$0xff] %vm3266, %v7474
      %7562 = vst.msk [vmem:[%s291 + $0x90] sm:$0xff] %vm3266, %v7476
      %7563 = vst.msk [vmem:[%s291 + $0xa0] sm:$0xff] %vm3266, %v7478
      %7564 = vst.msk [vmem:[%s291 + $0xb0] sm:$0xff] %vm3266, %v7480
      %7565 = vst.msk [vmem:[%s291 + $0xc0] sm:$0xff] %vm3266, %v7482
      %7566 = vst.msk [vmem:[%s291 + $0xd0] sm:$0xff] %vm3266, %v7484
      %7567 = vst.msk [vmem:[%s291 + $0xe0] sm:$0xff] %vm3266, %v7486
      %7568 = vst.msk [vmem:[%s291 + $0xf0] sm:$0xff] %vm3266, %v7488
      %7569 = vst.msk [vmem:[%s291 + $0x100] sm:$0xff] %vm3266, %v7490
      %7570 = vst.msk [vmem:[%s291 + $0x110] sm:$0xff] %vm3266, %v7492
      %7571 = vst.msk [vmem:[%s291 + $0x120] sm:$0xff] %vm3266, %v7494
      %7572 = vst.msk [vmem:[%s291 + $0x130] sm:$0xff] %vm3266, %v7496
      %7573 = vst.msk [vmem:[%s291 + $0x140] sm:$0xff] %vm3266, %v7498
      %7574 = vst.msk [vmem:[%s291 + $0x150] sm:$0xff] %vm3266, %v7500
      %7575 = vst.msk [vmem:[%s291 + $0x160] sm:$0xff] %vm3266, %v7502
      %7576 = vst.msk [vmem:[%s291 + $0x170] sm:$0xff] %vm3266, %v7504
      %7577 = vst.msk [vmem:[%s291 + $0x180] sm:$0xff] %vm3266, %v7506
      %7578 = vst.msk [vmem:[%s291 + $0x190] sm:$0xff] %vm3266, %v7508
      %7579 = vst.msk [vmem:[%s291 + $0x1a0] sm:$0xff] %vm3266, %v7510
      %7580 = vst.msk [vmem:[%s291 + $0x1b0] sm:$0xff] %vm3266, %v7512
      %7581 = vst.msk [vmem:[%s291 + $0x1c0] sm:$0xff] %vm3266, %v7514
      %7582 = vst.msk [vmem:[%s291 + $0x1d0] sm:$0xff] %vm3266, %v7516
      %7583 = vst.msk [vmem:[%s291 + $0x1e0] sm:$0xff] %vm3266, %v7518
      %7584 = vst.msk [vmem:[%s291 + $0x1f0] sm:$0xff] %vm3266, %v7520
      %7585 = vst.msk [vmem:[%s291] sm:$0xff] %vm3427, %v2441
      %7586 = vst.msk [vmem:[%s291 + $0x10] sm:$0xff] %vm3427, %v2442
      %7587 = vst.msk [vmem:[%s291 + $0x20] sm:$0xff] %vm3427, %v2443
      %7588 = vst.msk [vmem:[%s291 + $0x30] sm:$0xff] %vm3427, %v2444
      %7589 = vst.msk [vmem:[%s291 + $0x40] sm:$0xff] %vm3427, %v2445
      %7590 = vst.msk [vmem:[%s291 + $0x50] sm:$0xff] %vm3427, %v2446
      %7591 = vst.msk [vmem:[%s291 + $0x60] sm:$0xff] %vm3427, %v2447
      %7592 = vst.msk [vmem:[%s291 + $0x70] sm:$0xff] %vm3427, %v2448
      %7593 = vst.msk [vmem:[%s291 + $0x80] sm:$0xff] %vm3427, %v2449
      %7594 = vst.msk [vmem:[%s291 + $0x90] sm:$0xff] %vm3427, %v2450
      %7595 = vst.msk [vmem:[%s291 + $0xa0] sm:$0xff] %vm3427, %v2451
      %7596 = vst.msk [vmem:[%s291 + $0xb0] sm:$0xff] %vm3427, %v2452
      %7597 = vst.msk [vmem:[%s291 + $0xc0] sm:$0xff] %vm3427, %v2453
      %7598 = vst.msk [vmem:[%s291 + $0xd0] sm:$0xff] %vm3427, %v2454
      %7599 = vst.msk [vmem:[%s291 + $0xe0] sm:$0xff] %vm3427, %v2455
      %7600 = vst.msk [vmem:[%s291 + $0xf0] sm:$0xff] %vm3427, %v2456
      %7601 = vst.msk [vmem:[%s291 + $0x100] sm:$0xff] %vm3427, %v2457
      %7602 = vst.msk [vmem:[%s291 + $0x110] sm:$0xff] %vm3427, %v2458
      %7603 = vst.msk [vmem:[%s291 + $0x120] sm:$0xff] %vm3427, %v2459
      %7604 = vst.msk [vmem:[%s291 + $0x130] sm:$0xff] %vm3427, %v2460
      %7605 = vst.msk [vmem:[%s291 + $0x140] sm:$0xff] %vm3427, %v2461
      %7606 = vst.msk [vmem:[%s291 + $0x150] sm:$0xff] %vm3427, %v2462
      %7607 = vst.msk [vmem:[%s291 + $0x160] sm:$0xff] %vm3427, %v2463
      %7608 = vst.msk [vmem:[%s291 + $0x170] sm:$0xff] %vm3427, %v2464
      %7609 = vst.msk [vmem:[%s291 + $0x180] sm:$0xff] %vm3427, %v2465
      %7610 = vst.msk [vmem:[%s291 + $0x190] sm:$0xff] %vm3427, %v2466
      %7611 = vst.msk [vmem:[%s291 + $0x1a0] sm:$0xff] %vm3427, %v2467
      %7612 = vst.msk [vmem:[%s291 + $0x1b0] sm:$0xff] %vm3427, %v2468
      %7613 = vst.msk [vmem:[%s291 + $0x1c0] sm:$0xff] %vm3427, %v2469
      %7614 = vst.msk [vmem:[%s291 + $0x1d0] sm:$0xff] %vm3427, %v2470
      %7615 = vst.msk [vmem:[%s291 + $0x1e0] sm:$0xff] %vm3427, %v2471
      %7616 = vst.msk [vmem:[%s291 + $0x1f0] sm:$0xff] %vm3427, %v2472
      %7617 = vrot.lane.b32.xlu0 %v3049, 64
      %v7618 = vpop.permute.xlu0 %7617
      %7619 = vrot.lane.b32.xlu0 %v3050, 64
      %v7620 = vpop.permute.xlu0 %7619
      %7621 = vrot.lane.b32.xlu0 %v3051, 64
      %v7622 = vpop.permute.xlu0 %7621
      %7623 = vrot.lane.b32.xlu0 %v3052, 64
      %v7624 = vpop.permute.xlu0 %7623
      %7625 = vrot.lane.b32.xlu0 %v3053, 64
      %v7626 = vpop.permute.xlu0 %7625
      %7627 = vrot.lane.b32.xlu0 %v3054, 64
      %v7628 = vpop.permute.xlu0 %7627
      %7629 = vrot.lane.b32.xlu0 %v3055, 64
      %v7630 = vpop.permute.xlu0 %7629
      %7631 = vrot.lane.b32.xlu0 %v3056, 64
      %v7632 = vpop.permute.xlu0 %7631
      %7633 = vrot.lane.b32.xlu0 %v3057, 64
      %v7634 = vpop.permute.xlu0 %7633
      %7635 = vrot.lane.b32.xlu0 %v3058, 64
      %v7636 = vpop.permute.xlu0 %7635
      %7637 = vrot.lane.b32.xlu0 %v3059, 64
      %v7638 = vpop.permute.xlu0 %7637
      %7639 = vrot.lane.b32.xlu0 %v3060, 64
      %v7640 = vpop.permute.xlu0 %7639
      %7641 = vrot.lane.b32.xlu0 %v3061, 64
      %v7642 = vpop.permute.xlu0 %7641
      %7643 = vrot.lane.b32.xlu0 %v3062, 64
      %v7644 = vpop.permute.xlu0 %7643
      %7645 = vrot.lane.b32.xlu0 %v3063, 64
      %v7646 = vpop.permute.xlu0 %7645
      %7647 = vrot.lane.b32.xlu0 %v3064, 64
      %v7648 = vpop.permute.xlu0 %7647
      %7649 = vrot.lane.b32.xlu0 %v3065, 64
      %v7650 = vpop.permute.xlu0 %7649
      %7651 = vrot.lane.b32.xlu0 %v3066, 64
      %v7652 = vpop.permute.xlu0 %7651
      %7653 = vrot.lane.b32.xlu0 %v3067, 64
      %v7654 = vpop.permute.xlu0 %7653
      %7655 = vrot.lane.b32.xlu0 %v3068, 64
      %v7656 = vpop.permute.xlu0 %7655
      %7657 = vrot.lane.b32.xlu0 %v3069, 64
      %v7658 = vpop.permute.xlu0 %7657
      %7659 = vrot.lane.b32.xlu0 %v3070, 64
      %v7660 = vpop.permute.xlu0 %7659
      %7661 = vrot.lane.b32.xlu0 %v3071, 64
      %v7662 = vpop.permute.xlu0 %7661
      %7663 = vrot.lane.b32.xlu0 %v3072, 64
      %v7664 = vpop.permute.xlu0 %7663
      %7665 = vrot.lane.b32.xlu0 %v3073, 64
      %v7666 = vpop.permute.xlu0 %7665
      %7667 = vrot.lane.b32.xlu0 %v3074, 64
      %v7668 = vpop.permute.xlu0 %7667
      %7669 = vrot.lane.b32.xlu0 %v3075, 64
      %v7670 = vpop.permute.xlu0 %7669
      %7671 = vrot.lane.b32.xlu0 %v3076, 64
      %v7672 = vpop.permute.xlu0 %7671
      %7673 = vrot.lane.b32.xlu0 %v3077, 64
      %v7674 = vpop.permute.xlu0 %7673
      %7675 = vrot.lane.b32.xlu0 %v3078, 64
      %v7676 = vpop.permute.xlu0 %7675
      %7677 = vrot.lane.b32.xlu0 %v3079, 64
      %v7678 = vpop.permute.xlu0 %7677
      %7679 = vrot.lane.b32.xlu0 %v3080, 64
      %v7680 = vpop.permute.xlu0 %7679
      %vm7713 = vcmask 785920
      %7714 = vst.msk [vmem:[%s291] sm:$0xff] %vm7713, %v7618
      %7715 = vst.msk [vmem:[%s291 + $0x10] sm:$0xff] %vm7713, %v7620
      %7716 = vst.msk [vmem:[%s291 + $0x20] sm:$0xff] %vm7713, %v7622
      %7717 = vst.msk [vmem:[%s291 + $0x30] sm:$0xff] %vm7713, %v7624
      %7718 = vst.msk [vmem:[%s291 + $0x40] sm:$0xff] %vm7713, %v7626
      %7719 = vst.msk [vmem:[%s291 + $0x50] sm:$0xff] %vm7713, %v7628
      %7720 = vst.msk [vmem:[%s291 + $0x60] sm:$0xff] %vm7713, %v7630
      %7721 = vst.msk [vmem:[%s291 + $0x70] sm:$0xff] %vm7713, %v7632
      %7722 = vst.msk [vmem:[%s291 + $0x80] sm:$0xff] %vm7713, %v7634
      %7723 = vst.msk [vmem:[%s291 + $0x90] sm:$0xff] %vm7713, %v7636
      %7724 = vst.msk [vmem:[%s291 + $0xa0] sm:$0xff] %vm7713, %v7638
      %7725 = vst.msk [vmem:[%s291 + $0xb0] sm:$0xff] %vm7713, %v7640
      %7726 = vst.msk [vmem:[%s291 + $0xc0] sm:$0xff] %vm7713, %v7642
      %7727 = vst.msk [vmem:[%s291 + $0xd0] sm:$0xff] %vm7713, %v7644
      %7728 = vst.msk [vmem:[%s291 + $0xe0] sm:$0xff] %vm7713, %v7646
      %7729 = vst.msk [vmem:[%s291 + $0xf0] sm:$0xff] %vm7713, %v7648
      %7730 = vst.msk [vmem:[%s291 + $0x100] sm:$0xff] %vm7713, %v7650
      %7731 = vst.msk [vmem:[%s291 + $0x110] sm:$0xff] %vm7713, %v7652
      %7732 = vst.msk [vmem:[%s291 + $0x120] sm:$0xff] %vm7713, %v7654
      %7733 = vst.msk [vmem:[%s291 + $0x130] sm:$0xff] %vm7713, %v7656
      %7734 = vst.msk [vmem:[%s291 + $0x140] sm:$0xff] %vm7713, %v7658
      %7735 = vst.msk [vmem:[%s291 + $0x150] sm:$0xff] %vm7713, %v7660
      %7736 = vst.msk [vmem:[%s291 + $0x160] sm:$0xff] %vm7713, %v7662
      %7737 = vst.msk [vmem:[%s291 + $0x170] sm:$0xff] %vm7713, %v7664
      %7738 = vst.msk [vmem:[%s291 + $0x180] sm:$0xff] %vm7713, %v7666
      %7739 = vst.msk [vmem:[%s291 + $0x190] sm:$0xff] %vm7713, %v7668
      %7740 = vst.msk [vmem:[%s291 + $0x1a0] sm:$0xff] %vm7713, %v7670
      %7741 = vst.msk [vmem:[%s291 + $0x1b0] sm:$0xff] %vm7713, %v7672
      %7742 = vst.msk [vmem:[%s291 + $0x1c0] sm:$0xff] %vm7713, %v7674
      %7743 = vst.msk [vmem:[%s291 + $0x1d0] sm:$0xff] %vm7713, %v7676
      %7744 = vst.msk [vmem:[%s291 + $0x1e0] sm:$0xff] %vm7713, %v7678
      %7745 = vst.msk [vmem:[%s291 + $0x1f0] sm:$0xff] %vm7713, %v7680
      %7746 = vrot.lane.b32.xlu0 %v2121, 96
      %v7747 = vpop.permute.xlu0 %7746
      %7748 = vrot.lane.b32.xlu0 %v2122, 96
      %v7749 = vpop.permute.xlu0 %7748
      %7750 = vrot.lane.b32.xlu0 %v2123, 96
      %v7751 = vpop.permute.xlu0 %7750
      %7752 = vrot.lane.b32.xlu0 %v2124, 96
      %v7753 = vpop.permute.xlu0 %7752
      %7754 = vrot.lane.b32.xlu0 %v2125, 96
      %v7755 = vpop.permute.xlu0 %7754
      %7756 = vrot.lane.b32.xlu0 %v2126, 96
      %v7757 = vpop.permute.xlu0 %7756
      %7758 = vrot.lane.b32.xlu0 %v2127, 96
      %v7759 = vpop.permute.xlu0 %7758
      %7760 = vrot.lane.b32.xlu0 %v2128, 96
      %v7761 = vpop.permute.xlu0 %7760
      %7762 = vrot.lane.b32.xlu0 %v2129, 96
      %v7763 = vpop.permute.xlu0 %7762
      %7764 = vrot.lane.b32.xlu0 %v2130, 96
      %v7765 = vpop.permute.xlu0 %7764
      %7766 = vrot.lane.b32.xlu0 %v2131, 96
      %v7767 = vpop.permute.xlu0 %7766
      %7768 = vrot.lane.b32.xlu0 %v2132, 96
      %v7769 = vpop.permute.xlu0 %7768
      %7770 = vrot.lane.b32.xlu0 %v2133, 96
      %v7771 = vpop.permute.xlu0 %7770
      %7772 = vrot.lane.b32.xlu0 %v2134, 96
      %v7773 = vpop.permute.xlu0 %7772
      %7774 = vrot.lane.b32.xlu0 %v2135, 96
      %v7775 = vpop.permute.xlu0 %7774
      %7776 = vrot.lane.b32.xlu0 %v2136, 96
      %v7777 = vpop.permute.xlu0 %7776
      %7778 = vrot.lane.b32.xlu0 %v2137, 96
      %v7779 = vpop.permute.xlu0 %7778
      %7780 = vrot.lane.b32.xlu0 %v2138, 96
      %v7781 = vpop.permute.xlu0 %7780
      %7782 = vrot.lane.b32.xlu0 %v2139, 96
      %v7783 = vpop.permute.xlu0 %7782
      %7784 = vrot.lane.b32.xlu0 %v2140, 96
      %v7785 = vpop.permute.xlu0 %7784
      %7786 = vrot.lane.b32.xlu0 %v2141, 96
      %v7787 = vpop.permute.xlu0 %7786
      %7788 = vrot.lane.b32.xlu0 %v2142, 96
      %v7789 = vpop.permute.xlu0 %7788
      %7790 = vrot.lane.b32.xlu0 %v2143, 96
      %v7791 = vpop.permute.xlu0 %7790
      %7792 = vrot.lane.b32.xlu0 %v2144, 96
      %v7793 = vpop.permute.xlu0 %7792
      %7794 = vrot.lane.b32.xlu0 %v2145, 96
      %v7795 = vpop.permute.xlu0 %7794
      %7796 = vrot.lane.b32.xlu0 %v2146, 96
      %v7797 = vpop.permute.xlu0 %7796
      %7798 = vrot.lane.b32.xlu0 %v2147, 96
      %v7799 = vpop.permute.xlu0 %7798
      %7800 = vrot.lane.b32.xlu0 %v2148, 96
      %v7801 = vpop.permute.xlu0 %7800
      %7802 = vrot.lane.b32.xlu0 %v2149, 96
      %v7803 = vpop.permute.xlu0 %7802
      %7804 = vrot.lane.b32.xlu0 %v2150, 96
      %v7805 = vpop.permute.xlu0 %7804
      %7806 = vrot.lane.b32.xlu0 %v2151, 96
      %v7807 = vpop.permute.xlu0 %7806
      %7808 = vrot.lane.b32.xlu0 %v2152, 96
      %v7809 = vpop.permute.xlu0 %7808
      %vm7842 = vcmask 1048320
      %7843 = vst.msk [vmem:[%s291] sm:$0xff] %vm7842, %v7747
      %7844 = vst.msk [vmem:[%s291 + $0x10] sm:$0xff] %vm7842, %v7749
      %7845 = vst.msk [vmem:[%s291 + $0x20] sm:$0xff] %vm7842, %v7751
      %7846 = vst.msk [vmem:[%s291 + $0x30] sm:$0xff] %vm7842, %v7753
      %7847 = vst.msk [vmem:[%s291 + $0x40] sm:$0xff] %vm7842, %v7755
      %7848 = vst.msk [vmem:[%s291 + $0x50] sm:$0xff] %vm7842, %v7757
      %7849 = vst.msk [vmem:[%s291 + $0x60] sm:$0xff] %vm7842, %v7759
      %7850 = vst.msk [vmem:[%s291 + $0x70] sm:$0xff] %vm7842, %v7761
      %7851 = vst.msk [vmem:[%s291 + $0x80] sm:$0xff] %vm7842, %v7763
      %7852 = vst.msk [vmem:[%s291 + $0x90] sm:$0xff] %vm7842, %v7765
      %7853 = vst.msk [vmem:[%s291 + $0xa0] sm:$0xff] %vm7842, %v7767
      %7854 = vst.msk [vmem:[%s291 + $0xb0] sm:$0xff] %vm7842, %v7769
      %7855 = vst.msk [vmem:[%s291 + $0xc0] sm:$0xff] %vm7842, %v7771
      %7856 = vst.msk [vmem:[%s291 + $0xd0] sm:$0xff] %vm7842, %v7773
      %7857 = vst.msk [vmem:[%s291 + $0xe0] sm:$0xff] %vm7842, %v7775
      %7858 = vst.msk [vmem:[%s291 + $0xf0] sm:$0xff] %vm7842, %v7777
      %7859 = vst.msk [vmem:[%s291 + $0x100] sm:$0xff] %vm7842, %v7779
      %7860 = vst.msk [vmem:[%s291 + $0x110] sm:$0xff] %vm7842, %v7781
      %7861 = vst.msk [vmem:[%s291 + $0x120] sm:$0xff] %vm7842, %v7783
      %7862 = vst.msk [vmem:[%s291 + $0x130] sm:$0xff] %vm7842, %v7785
      %7863 = vst.msk [vmem:[%s291 + $0x140] sm:$0xff] %vm7842, %v7787
      %7864 = vst.msk [vmem:[%s291 + $0x150] sm:$0xff] %vm7842, %v7789
      %7865 = vst.msk [vmem:[%s291 + $0x160] sm:$0xff] %vm7842, %v7791
      %7866 = vst.msk [vmem:[%s291 + $0x170] sm:$0xff] %vm7842, %v7793
      %7867 = vst.msk [vmem:[%s291 + $0x180] sm:$0xff] %vm7842, %v7795
      %7868 = vst.msk [vmem:[%s291 + $0x190] sm:$0xff] %vm7842, %v7797
      %7869 = vst.msk [vmem:[%s291 + $0x1a0] sm:$0xff] %vm7842, %v7799
      %7870 = vst.msk [vmem:[%s291 + $0x1b0] sm:$0xff] %vm7842, %v7801
      %7871 = vst.msk [vmem:[%s291 + $0x1c0] sm:$0xff] %vm7842, %v7803
      %7872 = vst.msk [vmem:[%s291 + $0x1d0] sm:$0xff] %vm7842, %v7805
      %7873 = vst.msk [vmem:[%s291 + $0x1e0] sm:$0xff] %vm7842, %v7807
      %7874 = vst.msk [vmem:[%s291 + $0x1f0] sm:$0xff] %vm7842, %v7809
      %7875 = vst.msk [vmem:[%s291 + $0x8] sm:$0xff] %vm3266, %v2954
      %7876 = vst.msk [vmem:[%s291 + $0x18] sm:$0xff] %vm3266, %v2956
      %7877 = vst.msk [vmem:[%s291 + $0x28] sm:$0xff] %vm3266, %v2958
      %7878 = vst.msk [vmem:[%s291 + $0x38] sm:$0xff] %vm3266, %v2960
      %7879 = vst.msk [vmem:[%s291 + $0x48] sm:$0xff] %vm3266, %v2962
      %7880 = vst.msk [vmem:[%s291 + $0x58] sm:$0xff] %vm3266, %v2964
      %7881 = vst.msk [vmem:[%s291 + $0x68] sm:$0xff] %vm3266, %v2966
      %7882 = vst.msk [vmem:[%s291 + $0x78] sm:$0xff] %vm3266, %v2968
      %7883 = vst.msk [vmem:[%s291 + $0x88] sm:$0xff] %vm3266, %v2970
      %7884 = vst.msk [vmem:[%s291 + $0x98] sm:$0xff] %vm3266, %v2972
      %7885 = vst.msk [vmem:[%s291 + $0xa8] sm:$0xff] %vm3266, %v2974
      %7886 = vst.msk [vmem:[%s291 + $0xb8] sm:$0xff] %vm3266, %v2976
      %7887 = vst.msk [vmem:[%s291 + $0xc8] sm:$0xff] %vm3266, %v2978
      %7888 = vst.msk [vmem:[%s291 + $0xd8] sm:$0xff] %vm3266, %v2980
      %7889 = vst.msk [vmem:[%s291 + $0xe8] sm:$0xff] %vm3266, %v2982
      %7890 = vst.msk [vmem:[%s291 + $0xf8] sm:$0xff] %vm3266, %v2984
      %7891 = vst.msk [vmem:[%s291 + $0x108] sm:$0xff] %vm3266, %v2986
      %7892 = vst.msk [vmem:[%s291 + $0x118] sm:$0xff] %vm3266, %v2988
      %7893 = vst.msk [vmem:[%s291 + $0x128] sm:$0xff] %vm3266, %v2990
      %7894 = vst.msk [vmem:[%s291 + $0x138] sm:$0xff] %vm3266, %v2992
      %7895 = vst.msk [vmem:[%s291 + $0x148] sm:$0xff] %vm3266, %v2994
      %7896 = vst.msk [vmem:[%s291 + $0x158] sm:$0xff] %vm3266, %v2996
      %7897 = vst.msk [vmem:[%s291 + $0x168] sm:$0xff] %vm3266, %v2998
      %7898 = vst.msk [vmem:[%s291 + $0x178] sm:$0xff] %vm3266, %v3000
      %7899 = vst.msk [vmem:[%s291 + $0x188] sm:$0xff] %vm3266, %v3002
      %7900 = vst.msk [vmem:[%s291 + $0x198] sm:$0xff] %vm3266, %v3004
      %7901 = vst.msk [vmem:[%s291 + $0x1a8] sm:$0xff] %vm3266, %v3006
      %7902 = vst.msk [vmem:[%s291 + $0x1b8] sm:$0xff] %vm3266, %v3008
      %7903 = vst.msk [vmem:[%s291 + $0x1c8] sm:$0xff] %vm3266, %v3010
      %7904 = vst.msk [vmem:[%s291 + $0x1d8] sm:$0xff] %vm3266, %v3012
      %7905 = vst.msk [vmem:[%s291 + $0x1e8] sm:$0xff] %vm3266, %v3014
      %7906 = vst.msk [vmem:[%s291 + $0x1f8] sm:$0xff] %vm3266, %v3016
      %p7907 = scmp.lt.s32.totalorder %s17, 1
      %s7908 = scalar_select %p7907, %s17, 1
      %s7909 = smul.addr %s7908, 64
      %s7910 = smul.addr %s7909, 8
      %s7911 = scalar_lea.vmem %s6, %s7910
      // Predicated region
      $region45: #{st_lstm_cell_v2.1} parent=43 // pred_check
        %p7912 = pneg %p176
      $region46: #{st_lstm_cell_v2.1} parent=43 // pred_check_branch
        %7914 = sbr.rel (%p7912) target = $region48
      $region47: #{st_lstm_cell_v2.1} parent=43 // pred_region
        _
      $region48: #{st_lstm_cell_v2.1} parent=43 // pred_fallthru
        _
    $region44: #{st_lstm_cell_v2.1} parent=5 // pred_fallthru
      _
    %p7915 = scmp.le.s32.totalorder 2, %s12
    // Predicated region
    $region49: #{st_lstm_cell_v2.1} parent=5 // pred_check
      %p7916 = pneg %p7915
    $region50: #{st_lstm_cell_v2.1} parent=5 // pred_check_branch
      %7918 = sbr.rel (%p7916) target = $region52
    $region51: #{st_lstm_cell_v2.1} parent=5 // pred_region
      %s7919 = ssub.s32 %s12, 2
      // Predicated region
      $region53: #{st_lstm_cell_v2.1} parent=51 // pred_check
        %p7920 = pneg %p182
      $region54: #{st_lstm_cell_v2.1} parent=51 // pred_check_branch
        %7922 = sbr.rel (%p7920) target = $region56
      $region55: #{st_lstm_cell_v2.1} parent=51 // pred_region
        %p7923 = scmp.lt.s32.totalorder %s18, 1
        %s7924 = scalar_select %p7923, %s18, 1
        %s7925 = smul.addr %s7924, 64
        %s7926 = smul.addr %s7925, 8
        %s7927 = scalar_lea.vmem %s6, %s7926
      $region56: #{st_lstm_cell_v2.1} parent=51 // pred_fallthru
        _
    $region52: #{st_lstm_cell_v2.1} parent=5 // pred_fallthru
      _
  $region6: #{st_lstm_cell_v2.1} parent=0 // loop_footer
    %s16 = sadd.s32 1, %s12
  $region7: #{st_lstm_cell_v2.1} parent=0 // loop_footer_branch
    %11 = sbr.rel target = $region3
  $region8: #{st_lstm_cell_v2.1} parent=0 // loop_exit
    _

</llo_original>
